<compile_context>
chip_gen: v7x
topology: tpu7x:2x2x1
jax: 0.10.0
libtpu: 0.0.40
codegen_flags: <defaults>
</compile_context>

<pallas_src>
import numpy as np
import jax
import jax.numpy as jnp
from jax.experimental import pallas as pl
from jax.experimental.pallas import tpu as pltpu

H_IN = 14                       # input spatial size (AvgPool2d(5,3): 14 -> 4)
H_OUT = 4
HW_IN = H_IN * H_IN             # 196
HW_PAD = 256                    # pool-matmul contraction dim padded to a lane multiple
P_OUT = H_OUT * H_OUT           # 16 pooled positions
CONV_OUT = 128
FC_HIDDEN = 1024
FC_IN = CONV_OUT * P_OUT        # 128*4*4 = 2048
LANE = 128


# ------------------------------- fused kernel --------------------------------

def _aux_fused_kernel(p_ref, x_ref, wc_ref, bc_ref, w1_ref, b1_ref, w2_ref, b2_ref, o_ref):
    # p_ref : (16, 256)   bf16  AvgPool2d(5,3) as a matmul (zero-padded K)
    # x_ref : (bt, 256, C) f32  batch tile, (H*W padded, C) layout
    # wc_ref: (C, 128)    bf16  1x1-conv weight, pre-transposed
    # bc_ref: (1, 128)    f32
    # w1_ref: (2048, 1024) bf16 Linear1 weight, pre-transposed + row-permuted
    # b1_ref: (1, 1024)   f32
    # w2_ref: (1024, Np)  bf16  Linear2 weight, pre-transposed + lane-padded
    # b2_ref: (1, Np)     f32
    # o_ref : (bt, Np)    f32
    bt = x_ref.shape[0]
    c_in = x_ref.shape[2]

    x = x_ref[...].astype(jnp.bfloat16)                                   # (bt, 256, C)
    pm = jnp.broadcast_to(p_ref[...][None], (bt, P_OUT, HW_PAD))          # (bt, 16, 256)

    # AvgPool2d(5,3) as a batched MXU matmul: (bt,16,256) @ (bt,256,C) -> (bt,16,C)
    pooled = jnp.einsum('bpq,bqc->bpc', pm, x,
                        preferred_element_type=jnp.float32)

    # 1x1 conv == plain matmul over channels; batch*spatial flattened into rows.
    pooled2 = pooled.reshape(bt * P_OUT, c_in).astype(jnp.bfloat16)       # (bt*16, C)
    conv = jnp.dot(pooled2, wc_ref[...],
                   preferred_element_type=jnp.float32)                    # (bt*16, 128)
    conv = conv + bc_ref[...]

    # Flatten to (bt, 2048) in (spatial, channel) order.  w1's rows were permuted
    # at prep time to match, so PyTorch's NCHW (c,h,w) flatten needs no transpose.
    flat = conv.reshape(bt, FC_IN).astype(jnp.bfloat16)

    h = jnp.dot(flat, w1_ref[...], preferred_element_type=jnp.float32)    # (bt, 1024)
    h = jnp.maximum(h + b1_ref[...], 0.0)                                 # Linear + ReLU
    # TODO(synk): Dropout(0.5) is stochastic in train mode; eval-mode identity here.

    y = jnp.dot(h.astype(jnp.bfloat16), w2_ref[...],
                preferred_element_type=jnp.float32)                       # (bt, Np)
    o_ref[...] = (y + b2_ref[...]).astype(o_ref.dtype)


# ------------------------------ params & glue ---------------------------------

def _make_pool_matrix(k=5, s=3):
    """AvgPool2d(k, s) on (14,14) as a (16, 256) matrix (K zero-padded 196 -> 256)."""
    P = np.zeros((P_OUT, HW_PAD), dtype=np.float32)
    for oh in range(H_OUT):
        for ow in range(H_OUT):
            for kh in range(k):
                for kw in range(k):
                    ih, iw = oh * s + kh, ow * s + kw
                    P[oh * H_OUT + ow, ih * H_IN + iw] = 1.0 / (k * k)
    return P


def init_params(key, in_channel, out_channel):
    """PyTorch-layout float32 parameters (same init scheme as nn.Conv2d/nn.Linear)."""
    ks = jax.random.split(key, 6)

    def u(k, shape, fan_in):
        bound = 1.0 / np.sqrt(fan_in)
        return jax.random.uniform(k, shape, jnp.float32, -bound, bound)

    return dict(
        wc=u(ks[0], (CONV_OUT, in_channel), in_channel),       # Conv2d 1x1 weight (O, C)
        bc=u(ks[1], (CONV_OUT,), in_channel),
        w1=u(ks[2], (FC_HIDDEN, FC_IN), FC_IN),                # Linear(2048, 1024)
        b1=u(ks[3], (FC_HIDDEN,), FC_IN),
        w2=u(ks[4], (out_channel, FC_HIDDEN), FC_HIDDEN),      # Linear(1024, out)
        b2=u(ks[5], (out_channel,), FC_HIDDEN),
    )


def prep_params(params):
    """One-time conversion to kernel-ready layout (transposed / permuted / padded / bf16)."""
    wc, bc = params["wc"], params["bc"]
    w1, b1 = params["w1"], params["b1"]
    w2, b2 = params["w2"], params["b2"]
    n_classes = w2.shape[0]
    n_pad = ((n_classes + LANE - 1) // LANE) * LANE

    # Permute w1's input rows from PyTorch's (c, h, w) flatten order to the kernel's
    # (spatial, channel) order: w1p[p*128 + o, j] = w1[j, o*16 + p].
    w1p = jnp.transpose(w1.reshape(FC_HIDDEN, CONV_OUT, P_OUT), (2, 1, 0)).reshape(FC_IN, FC_HIDDEN)
    w2p = jnp.zeros((FC_HIDDEN, n_pad), jnp.float32).at[:, :n_classes].set(w2.T)
    b2p = jnp.zeros((n_pad,), jnp.float32).at[:n_classes].set(b2)

    return dict(
        pool=jnp.asarray(_make_pool_matrix(), jnp.bfloat16),   # (16, 256)
        wc_t=wc.T.astype(jnp.bfloat16),                        # (C, 128)
        bc=bc.reshape(1, CONV_OUT).astype(jnp.float32),
        w1p=w1p.astype(jnp.bfloat16),                          # (2048, 1024)
        b1=b1.reshape(1, FC_HIDDEN).astype(jnp.float32),
        w2p=w2p.astype(jnp.bfloat16),                          # (1024, n_pad)
        b2p=b2p.reshape(1, n_pad).astype(jnp.float32),
    )


def aux_logits_forward(x, kp, n_classes):
    """x: NCHW float32 (B, C_in, 14, 14) -> logits (B, n_classes)."""
    B, C, H, W = x.shape
    assert H == H_IN and W == H_IN, "aux_logits expects 14x14 spatial input"
    n_pad = kp["w2p"].shape[1]

    # NCHW -> (B, H*W, C); zero-pad the spatial axis 196 -> 256 (pool matrix is zero there).
    x_hwc = jnp.transpose(x, (0, 2, 3, 1)).reshape(B, HW_IN, C)
    x_hwc = jnp.pad(x_hwc, ((0, 0), (0, HW_PAD - HW_IN), (0, 0)))

    # Batch tiling: each grid step processes `bt` images; weights use constant index
    # maps so they stay resident in VMEM across steps (and across both TCs on v7x).
    bt = B if B <= 128 else 128
    nb = (B + bt - 1) // bt
    b_pad = nb * bt
    if b_pad != B:
        x_hwc = jnp.pad(x_hwc, ((0, b_pad - B), (0, 0), (0, 0)))

    out = pl.pallas_call(
        _aux_fused_kernel,
        out_shape=jax.ShapeDtypeStruct((b_pad, n_pad), jnp.float32),
        grid=(nb,),
        in_specs=[
            pl.BlockSpec((P_OUT, HW_PAD), lambda i: (0, 0)),
            pl.BlockSpec((bt, HW_PAD, C), lambda i: (i, 0, 0)),
            pl.BlockSpec((C, CONV_OUT), lambda i: (0, 0)),
            pl.BlockSpec((1, CONV_OUT), lambda i: (0, 0)),
            pl.BlockSpec((FC_IN, FC_HIDDEN), lambda i: (0, 0)),
            pl.BlockSpec((1, FC_HIDDEN), lambda i: (0, 0)),
            pl.BlockSpec((FC_HIDDEN, n_pad), lambda i: (0, 0)),
            pl.BlockSpec((1, n_pad), lambda i: (0, 0)),
        ],
        out_specs=pl.BlockSpec((bt, n_pad), lambda i: (i, 0)),
        compiler_params=pltpu.CompilerParams(
            dimension_semantics=("parallel",),
            vmem_limit_bytes=32 * 1024 * 1024,
        ),
    )(kp["pool"], x_hwc, kp["wc_t"], kp["bc"], kp["w1p"], kp["b1"], kp["w2p"], kp["b2p"])

    return out[:B, :n_classes]


# Pure-JAX f32 reference (PyTorch semantics) for a sanity check.
def _reference_forward(x, params):
    B = x.shape[0]
    pooled = jax.lax.reduce_window(x, 0.0, jax.lax.add,
                                   (1, 1, 5, 5), (1, 1, 3, 3), 'VALID') / 25.0
    conv = jnp.einsum('oc,bchw->bohw', params['wc'], pooled) + params['bc'][None, :, None, None]
    flat = conv.reshape(B, -1)
    h = jnp.maximum(flat @ params['w1'].T + params['b1'], 0.0)
    return h @ params['w2'].T + params['b2']


if __name__ == "__main__":
    key = jax.random.PRNGKey(0)
    k_x, k_p = jax.random.split(key)

    B, IN_CHANNEL, OUT_CHANNEL = 2, 4, 10
    x = jax.random.normal(k_x, (B, IN_CHANNEL, H_IN, H_IN), dtype=jnp.float32)
    params = init_params(k_p, IN_CHANNEL, OUT_CHANNEL)
    kparams = prep_params(params)

    fwd = jax.jit(aux_logits_forward, static_argnames=("n_classes",))
    out = fwd(x, kparams, n_classes=OUT_CHANNEL)
    out = jax.block_until_ready(out)

    assert out.shape == (B, OUT_CHANNEL) and out.dtype == jnp.float32

    ref = _reference_forward(x, params)
    np.testing.assert_allclose(np.asarray(out), np.asarray(ref), rtol=5e-2, atol=1e-2)

    print("KERNEL_OK")
</pallas_src>

<mosaic_0001>
module attributes {stable_mosaic.version = 11 : i64} {
  func.func @_aux_fused_kernel(%arg0: i32, %arg1: memref<16x256xbf16, #tpu.memory_space<vmem>>, %arg2: memref<2x256x4xf32, #tpu.memory_space<vmem>>, %arg3: memref<4x128xbf16, #tpu.memory_space<vmem>>, %arg4: memref<1x128xf32, #tpu.memory_space<vmem>>, %arg5: memref<2048x1024xbf16, #tpu.memory_space<vmem>>, %arg6: memref<1x1024xf32, #tpu.memory_space<vmem>>, %arg7: memref<1024x128xbf16, #tpu.memory_space<vmem>>, %arg8: memref<1x128xf32, #tpu.memory_space<vmem>>, %arg9: memref<2x128xf32, #tpu.memory_space<vmem>>) attributes {dimension_semantics = [#tpu.dimension_semantics<parallel>], iteration_bounds = array<i64: 1>, scalar_prefetch = 0 : i64, scratch_operands = 0 : i64, tpu.core_type = #tpu.core_type<tc>, window_params = [{pipeline_mode = #tpu.pipeline_mode<synchronous>, transform_indices = @transform_0, window_bounds = array<i64: 16, 256>}, {transform_indices = @transform_1, window_bounds = array<i64: 2, 256, 4>}, {pipeline_mode = #tpu.pipeline_mode<synchronous>, transform_indices = @transform_2, window_bounds = array<i64: 4, 128>}, {pipeline_mode = #tpu.pipeline_mode<synchronous>, transform_indices = @transform_3, window_bounds = array<i64: 1, 128>}, {pipeline_mode = #tpu.pipeline_mode<synchronous>, transform_indices = @transform_4, window_bounds = array<i64: 2048, 1024>}, {pipeline_mode = #tpu.pipeline_mode<synchronous>, transform_indices = @transform_5, window_bounds = array<i64: 1, 1024>}, {pipeline_mode = #tpu.pipeline_mode<synchronous>, transform_indices = @transform_6, window_bounds = array<i64: 1024, 128>}, {pipeline_mode = #tpu.pipeline_mode<synchronous>, transform_indices = @transform_7, window_bounds = array<i64: 1, 128>}, {transform_indices = @transform_8, window_bounds = array<i64: 2, 128>}]} {
    %c0 = arith.constant 0 : index
    %c0_0 = arith.constant 0 : index
    %c0_1 = arith.constant 0 : index
    %0 = vector.load %arg2[%c0, %c0_0, %c0_1] : memref<2x256x4xf32, #tpu.memory_space<vmem>>, vector<2x256x4xf32>
    %1 = arith.truncf %0 : vector<2x256x4xf32> to vector<2x256x4xbf16>
    %c0_2 = arith.constant 0 : index
    %c0_3 = arith.constant 0 : index
    %2 = vector.load %arg1[%c0_2, %c0_3] : memref<16x256xbf16, #tpu.memory_space<vmem>>, vector<16x256xbf16>
    %3 = vector.shape_cast %2 : vector<16x256xbf16> to vector<1x16x256xbf16>
    %4 = vector.shape_cast %3 : vector<1x16x256xbf16> to vector<1x16x256xbf16>
    %5 = vector.broadcast %4 : vector<1x16x256xbf16> to vector<2x16x256xbf16>
    "tpu.trace_start"() <{level = 10 : i32, message = "bpq,bqc->bpc"}> : () -> ()
    %cst = arith.constant dense<0.000000e+00> : vector<2x16x4xf32>
    %6 = tpu.matmul %5, %1, %cst {dimension_numbers = #tpu.dot_dimension_numbers<[2], [1], [1], [2], [0, 0, 0, 1, 1, 2], [0], [0]>} : vector<2x16x256xbf16>, vector<2x256x4xbf16>, vector<2x16x4xf32> -> vector<2x16x4xf32>
    "tpu.trace_stop"() : () -> ()
    %7 = vector.shape_cast %6 : vector<2x16x4xf32> to vector<32x4xf32>
    %8 = arith.truncf %7 : vector<32x4xf32> to vector<32x4xbf16>
    %c0_4 = arith.constant 0 : index
    %c0_5 = arith.constant 0 : index
    %9 = vector.load %arg3[%c0_4, %c0_5] : memref<4x128xbf16, #tpu.memory_space<vmem>>, vector<4x128xbf16>
    %cst_6 = arith.constant dense<0.000000e+00> : vector<32x128xf32>
    %10 = tpu.matmul %8, %9, %cst_6 {dimension_numbers = #tpu.dot_dimension_numbers<[1], [0], [0], [1], [0, 0, 1, 1], [], []>} : vector<32x4xbf16>, vector<4x128xbf16>, vector<32x128xf32> -> vector<32x128xf32>
    %c0_7 = arith.constant 0 : index
    %c0_8 = arith.constant 0 : index
    %11 = vector.load %arg4[%c0_7, %c0_8] : memref<1x128xf32, #tpu.memory_space<vmem>>, vector<1x128xf32>
    %12 = vector.broadcast %11 : vector<1x128xf32> to vector<32x128xf32>
    %13 = arith.addf %10, %12 : vector<32x128xf32>
    %14 = vector.shape_cast %13 : vector<32x128xf32> to vector<2x2048xf32>
    %15 = arith.truncf %14 : vector<2x2048xf32> to vector<2x2048xbf16>
    %c0_9 = arith.constant 0 : index
    %c0_10 = arith.constant 0 : index
    %16 = vector.load %arg5[%c0_9, %c0_10] : memref<2048x1024xbf16, #tpu.memory_space<vmem>>, vector<2048x1024xbf16>
    %cst_11 = arith.constant dense<0.000000e+00> : vector<2x1024xf32>
    %17 = tpu.matmul %15, %16, %cst_11 {dimension_numbers = #tpu.dot_dimension_numbers<[1], [0], [0], [1], [0, 0, 1, 1], [], []>} : vector<2x2048xbf16>, vector<2048x1024xbf16>, vector<2x1024xf32> -> vector<2x1024xf32>
    %c0_12 = arith.constant 0 : index
    %c0_13 = arith.constant 0 : index
    %18 = vector.load %arg6[%c0_12, %c0_13] : memref<1x1024xf32, #tpu.memory_space<vmem>>, vector<1x1024xf32>
    %19 = vector.broadcast %18 : vector<1x1024xf32> to vector<2x1024xf32>
    %20 = arith.addf %17, %19 : vector<2x1024xf32>
    %cst_14 = arith.constant 0.000000e+00 : f32
    %21 = vector.broadcast %cst_14 : f32 to vector<2x1024xf32>
    %22 = arith.maximumf %20, %21 : vector<2x1024xf32>
    %23 = arith.truncf %22 : vector<2x1024xf32> to vector<2x1024xbf16>
    %c0_15 = arith.constant 0 : index
    %c0_16 = arith.constant 0 : index
    %24 = vector.load %arg7[%c0_15, %c0_16] : memref<1024x128xbf16, #tpu.memory_space<vmem>>, vector<1024x128xbf16>
    %cst_17 = arith.constant dense<0.000000e+00> : vector<2x128xf32>
    %25 = tpu.matmul %23, %24, %cst_17 {dimension_numbers = #tpu.dot_dimension_numbers<[1], [0], [0], [1], [0, 0, 1, 1], [], []>} : vector<2x1024xbf16>, vector<1024x128xbf16>, vector<2x128xf32> -> vector<2x128xf32>
    %c0_18 = arith.constant 0 : index
    %c0_19 = arith.constant 0 : index
    %26 = vector.load %arg8[%c0_18, %c0_19] : memref<1x128xf32, #tpu.memory_space<vmem>>, vector<1x128xf32>
    %27 = vector.broadcast %26 : vector<1x128xf32> to vector<2x128xf32>
    %28 = arith.addf %25, %27 : vector<2x128xf32>
    %c0_20 = arith.constant 0 : index
    %c0_21 = arith.constant 0 : index
    %29 = vector.load %arg9[%c0_20, %c0_21] : memref<2x128xf32, #tpu.memory_space<vmem>>, vector<2x128xf32>
    tpu.vector_store %arg9[%c0_20, %c0_21], %28 {strides = array<i32>} : memref<2x128xf32, #tpu.memory_space<vmem>>, vector<2x128xf32>,
    return
  }
  func.func @transform_0(%arg0: i32) -> (i32, i32) {
    %c0_i32 = arith.constant 0 : i32
    %c0_i32_0 = arith.constant 0 : i32
    %c0_i32_1 = arith.constant 0 : i32
    return %c0_i32, %c0_i32_0 : i32, i32
  }
  func.func @transform_1(%arg0: i32) -> (i32, i32, i32) {
    %c0_i32 = arith.constant 0 : i32
    %c0_i32_0 = arith.constant 0 : i32
    %c0_i32_1 = arith.constant 0 : i32
    return %arg0, %c0_i32, %c0_i32_0 : i32, i32, i32
  }
  func.func @transform_2(%arg0: i32) -> (i32, i32) {
    %c0_i32 = arith.constant 0 : i32
    %c0_i32_0 = arith.constant 0 : i32
    %c0_i32_1 = arith.constant 0 : i32
    return %c0_i32, %c0_i32_0 : i32, i32
  }
  func.func @transform_3(%arg0: i32) -> (i32, i32) {
    %c0_i32 = arith.constant 0 : i32
    %c0_i32_0 = arith.constant 0 : i32
    %c0_i32_1 = arith.constant 0 : i32
    return %c0_i32, %c0_i32_0 : i32, i32
  }
  func.func @transform_4(%arg0: i32) -> (i32, i32) {
    %c0_i32 = arith.constant 0 : i32
    %c0_i32_0 = arith.constant 0 : i32
    %c0_i32_1 = arith.constant 0 : i32
    return %c0_i32, %c0_i32_0 : i32, i32
  }
  func.func @transform_5(%arg0: i32) -> (i32, i32) {
    %c0_i32 = arith.constant 0 : i32
    %c0_i32_0 = arith.constant 0 : i32
    %c0_i32_1 = arith.constant 0 : i32
    return %c0_i32, %c0_i32_0 : i32, i32
  }
  func.func @transform_6(%arg0: i32) -> (i32, i32) {
    %c0_i32 = arith.constant 0 : i32
    %c0_i32_0 = arith.constant 0 : i32
    %c0_i32_1 = arith.constant 0 : i32
    return %c0_i32, %c0_i32_0 : i32, i32
  }
  func.func @transform_7(%arg0: i32) -> (i32, i32) {
    %c0_i32 = arith.constant 0 : i32
    %c0_i32_0 = arith.constant 0 : i32
    %c0_i32_1 = arith.constant 0 : i32
    return %c0_i32, %c0_i32_0 : i32, i32
  }
  func.func @transform_8(%arg0: i32) -> (i32, i32) {
    %c0_i32 = arith.constant 0 : i32
    %c0_i32_0 = arith.constant 0 : i32
    return %arg0, %c0_i32 : i32, i32
  }
}

</mosaic_0001>

<llo_original>
// kernel: aux_logits_forward.1
$region0: #{aux_logits_forward.1}
  #allocation0 [shape = 'u32[]', space=smem, size = 0x4, offset = 0x4, fixed_abs, tag = 'smem constant byte address 0x4 - core index']
  #allocation1 [shape = 'u32[144,128]{1,0:T(1,128)}', space=vmem, size = 0x12000, scoped, tag = 'internal scratch']
  %s0 = inlined_call_operand.hbm [shape: bf16[16,256], index: 0, kind: input, shape index: {}]
  %s1 = inlined_call_operand.vmem [shape: f32[2,256,4], index: 1, kind: input, shape index: {}]
  %s2 = inlined_call_operand.hbm [shape: bf16[4,128], index: 2, kind: input, shape index: {}]
  %s3 = inlined_call_operand.hbm [shape: f32[1,128], index: 3, kind: input, shape index: {}]
  %s4 = inlined_call_operand.hbm [shape: bf16[2048,1024], index: 4, kind: input, shape index: {}]
  %s5 = inlined_call_operand.hbm [shape: f32[1,1024], index: 5, kind: input, shape index: {}]
  %s6 = inlined_call_operand.hbm [shape: bf16[1024,128], index: 6, kind: input, shape index: {}]
  %s7 = inlined_call_operand.hbm [shape: f32[1,128], index: 7, kind: input, shape index: {}]
  %s8 = inlined_call_operand.hbm [shape: f32[2,128], index: 8, kind: output, shape index: {}]
  %s9 = sld [smem:[#allocation0]]
  $region70: #{aux_logits_forward.1} parent=0
    _
  %s11 = ssub.s32 1, %s9
  %s12 = scalar_select 0, %s11, %s9
  $region1: #{aux_logits_forward.1} parent=0
    #allocation2 [shape = 'u8[8192]{0}', space=vmem, size = 0x2000, scoped, tag = 'input window, operand 0, single buffered']
    #allocation3 [shape = 's32[1]{0}', space=sflag, size = 0x4, scoped, tag = 'scoped memory for aux_logits_forward.1']
    #allocation4 [shape = 's32[1]{0}', space=sflag, size = 0x4, scoped, tag = 'scoped memory for aux_logits_forward.1']
    #allocation5 [shape = 'u8[1024]{0}', space=vmem, size = 0x400, scoped, tag = 'input window, operand 2, single buffered']
    #allocation6 [shape = 's32[1]{0}', space=sflag, size = 0x4, scoped, tag = 'scoped memory for aux_logits_forward.1']
    #allocation7 [shape = 'u8[512]{0}', space=vmem, size = 0x400, scoped, tag = 'input window, operand 3, single buffered']
    #allocation8 [shape = 'u8[4194304]{0}', space=vmem, size = 0x400000, scoped, tag = 'input window, operand 4, single buffered']
    #allocation9 [shape = 's32[1]{0}', space=sflag, size = 0x4, scoped, tag = 'scoped memory for aux_logits_forward.1']
    #allocation10 [shape = 'u8[4096]{0}', space=vmem, size = 0x1000, scoped, tag = 'input window, operand 5, single buffered']
    #allocation11 [shape = 'u8[262144]{0}', space=vmem, size = 0x40000, scoped, tag = 'input window, operand 6, single buffered']
    #allocation12 [shape = 's32[1]{0}', space=sflag, size = 0x4, scoped, tag = 'scoped memory for aux_logits_forward.1']
    #allocation13 [shape = 'u8[512]{0}', space=vmem, size = 0x400, scoped, tag = 'input window, operand 7, single buffered']
    #allocation14 [shape = 'u8[1024]{0}', space=vmem, size = 0x400, scoped, tag = 'output window, operand 0, single buffered']
    %13 = vsyncpa [#allocation3], 0
    %14 = vsyncpa [#allocation6], 0
    %15 = vsyncpa [#allocation9], 0
    %16 = vsyncpa [#allocation12], 0
    %17 = vsyncpa [#allocation4], 0
    // Predicated region
    $region2: #{aux_logits_forward.1} parent=1 // pred_check
      _
    $region3: #{aux_logits_forward.1} parent=1 // pred_check_branch
      %19 = sbr.rel (0) target = $region5
    $region4: #{aux_logits_forward.1} parent=1 // pred_region
      %s21 = ssub.s32 256, 256
      %22 = vsyncadd [#allocation3], %s21
      %s23 = sshll.u32 [#allocation2], 4
      %s24 = int_to_ptr.vmem [resolvable:$true] %s23
      %29 = dma.hbm_to_vmem [thread:$0]  %s0, 256, %s24, [#allocation3], 128, 128, 8
    $region5: #{aux_logits_forward.1} parent=1 // pred_fallthru
      _
    // Predicated region
    $region6: #{aux_logits_forward.1} parent=1 // pred_check
      _
    $region7: #{aux_logits_forward.1} parent=1 // pred_check_branch
      %31 = sbr.rel (0) target = $region9
    $region8: #{aux_logits_forward.1} parent=1 // pred_region
      _
    $region9: #{aux_logits_forward.1} parent=1 // pred_fallthru
      _
    // Predicated region
    $region10: #{aux_logits_forward.1} parent=1 // pred_check
      _
    $region11: #{aux_logits_forward.1} parent=1 // pred_check_branch
      %33 = sbr.rel (0) target = $region13
    $region12: #{aux_logits_forward.1} parent=1 // pred_region
      %s35 = ssub.s32 32, 32
      %36 = vsyncadd [#allocation6], %s35
      %s38 = sshll.u32 [#allocation5], 4
      %s39 = int_to_ptr.vmem [resolvable:$true] %s38
      %41 = dma.hbm_to_vmem [thread:$0]  %s2, 32, %s39, [#allocation6]
    $region13: #{aux_logits_forward.1} parent=1 // pred_fallthru
      _
    // Predicated region
    $region14: #{aux_logits_forward.1} parent=1 // pred_check
      _
    $region15: #{aux_logits_forward.1} parent=1 // pred_check_branch
      %43 = sbr.rel (0) target = $region17
    $region16: #{aux_logits_forward.1} parent=1 // pred_region
      %s45 = ssub.s32 16, 16
      %46 = vsyncadd [#allocation6], %s45
      %s48 = sshll.u32 [#allocation7], 4
      %s49 = int_to_ptr.vmem [resolvable:$true] %s48
      %51 = dma.hbm_to_vmem [thread:$0]  %s3, 16, %s49, [#allocation6]
    $region17: #{aux_logits_forward.1} parent=1 // pred_fallthru
      _
    // Predicated region
    $region18: #{aux_logits_forward.1} parent=1 // pred_check
      _
    $region19: #{aux_logits_forward.1} parent=1 // pred_check_branch
      %53 = sbr.rel (0) target = $region21
    $region20: #{aux_logits_forward.1} parent=1 // pred_region
      %s55 = ssub.s32 131072, 131072
      %56 = vsyncadd [#allocation9], %s55
      %s57 = sshll.u32 [#allocation8], 4
      %s58 = int_to_ptr.vmem [resolvable:$true] %s57
      %63 = dma.hbm_to_vmem [thread:$0]  %s4, 131072, %s58, [#allocation9], 512, 512, 32
    $region21: #{aux_logits_forward.1} parent=1 // pred_fallthru
      _
    // Predicated region
    $region22: #{aux_logits_forward.1} parent=1 // pred_check
      _
    $region23: #{aux_logits_forward.1} parent=1 // pred_check_branch
      %65 = sbr.rel (0) target = $region25
    $region24: #{aux_logits_forward.1} parent=1 // pred_region
      %s67 = ssub.s32 128, 128
      %68 = vsyncadd [#allocation9], %s67
      %s70 = sshll.u32 [#allocation10], 4
      %s71 = int_to_ptr.vmem [resolvable:$true] %s70
      %73 = dma.hbm_to_vmem [thread:$0]  %s5, 128, %s71, [#allocation9]
    $region25: #{aux_logits_forward.1} parent=1 // pred_fallthru
      _
    // Predicated region
    $region26: #{aux_logits_forward.1} parent=1 // pred_check
      _
    $region27: #{aux_logits_forward.1} parent=1 // pred_check_branch
      %75 = sbr.rel (0) target = $region29
    $region28: #{aux_logits_forward.1} parent=1 // pred_region
      %s77 = ssub.s32 8192, 8192
      %78 = vsyncadd [#allocation12], %s77
      %s79 = sshll.u32 [#allocation11], 4
      %s80 = int_to_ptr.vmem [resolvable:$true] %s79
      %85 = dma.hbm_to_vmem [thread:$0]  %s6, 8192, %s80, [#allocation12], 64, 64, 4
    $region29: #{aux_logits_forward.1} parent=1 // pred_fallthru
      _
    // Predicated region
    $region30: #{aux_logits_forward.1} parent=1 // pred_check
      _
    $region31: #{aux_logits_forward.1} parent=1 // pred_check_branch
      %87 = sbr.rel (0) target = $region33
    $region32: #{aux_logits_forward.1} parent=1 // pred_region
      %s89 = ssub.s32 16, 16
      %90 = vsyncadd [#allocation12], %s89
      %s92 = sshll.u32 [#allocation13], 4
      %s93 = int_to_ptr.vmem [resolvable:$true] %s92
      %95 = dma.hbm_to_vmem [thread:$0]  %s7, 16, %s93, [#allocation12]
    $region33: #{aux_logits_forward.1} parent=1 // pred_fallthru
      _
    // Predicated region
    $region34: #{aux_logits_forward.1} parent=1 // pred_check
      _
    $region35: #{aux_logits_forward.1} parent=1 // pred_check_branch
      %97 = sbr.rel (0) target = $region37
    $region36: #{aux_logits_forward.1} parent=1 // pred_region
      %98 = dma.done [#allocation3], 256
    $region37: #{aux_logits_forward.1} parent=1 // pred_fallthru
      _
    // Predicated region
    $region38: #{aux_logits_forward.1} parent=1 // pred_check
      _
    $region39: #{aux_logits_forward.1} parent=1 // pred_check_branch
      %100 = sbr.rel (0) target = $region41
    $region40: #{aux_logits_forward.1} parent=1 // pred_region
      %101 = dma.done [#allocation6], 32
    $region41: #{aux_logits_forward.1} parent=1 // pred_fallthru
      _
    // Predicated region
    $region42: #{aux_logits_forward.1} parent=1 // pred_check
      _
    $region43: #{aux_logits_forward.1} parent=1 // pred_check_branch
      %103 = sbr.rel (0) target = $region45
    $region44: #{aux_logits_forward.1} parent=1 // pred_region
      %104 = dma.done [#allocation6], 16
    $region45: #{aux_logits_forward.1} parent=1 // pred_fallthru
      _
    // Predicated region
    $region46: #{aux_logits_forward.1} parent=1 // pred_check
      _
    $region47: #{aux_logits_forward.1} parent=1 // pred_check_branch
      %106 = sbr.rel (0) target = $region49
    $region48: #{aux_logits_forward.1} parent=1 // pred_region
      %107 = dma.done [#allocation9], 131072
    $region49: #{aux_logits_forward.1} parent=1 // pred_fallthru
      _
    // Predicated region
    $region50: #{aux_logits_forward.1} parent=1 // pred_check
      _
    $region51: #{aux_logits_forward.1} parent=1 // pred_check_branch
      %109 = sbr.rel (0) target = $region53
    $region52: #{aux_logits_forward.1} parent=1 // pred_region
      %110 = dma.done [#allocation9], 128
    $region53: #{aux_logits_forward.1} parent=1 // pred_fallthru
      _
    // Predicated region
    $region54: #{aux_logits_forward.1} parent=1 // pred_check
      _
    $region55: #{aux_logits_forward.1} parent=1 // pred_check_branch
      %112 = sbr.rel (0) target = $region57
    $region56: #{aux_logits_forward.1} parent=1 // pred_region
      %113 = dma.done [#allocation12], 8192
    $region57: #{aux_logits_forward.1} parent=1 // pred_fallthru
      _
    // Predicated region
    $region58: #{aux_logits_forward.1} parent=1 // pred_check
      _
    $region59: #{aux_logits_forward.1} parent=1 // pred_check_branch
      %115 = sbr.rel (0) target = $region61
    $region60: #{aux_logits_forward.1} parent=1 // pred_region
      %116 = dma.done [#allocation12], 16
    $region61: #{aux_logits_forward.1} parent=1 // pred_fallthru
      _
    %v118 = vld [vmem:[%s1] sm:$0xff]
    %v119 = vld [vmem:[%s1 + $0x8] sm:$0xff]
    %v120 = vld [vmem:[%s1 + $0x10] sm:$0xff]
    %v121 = vld [vmem:[%s1 + $0x18] sm:$0xff]
    %v122 = vld [vmem:[%s1 + $0x20] sm:$0xff]
    %v123 = vld [vmem:[%s1 + $0x28] sm:$0xff]
    %v124 = vld [vmem:[%s1 + $0x30] sm:$0xff]
    %v125 = vld [vmem:[%s1 + $0x38] sm:$0xff]
    %v126 = vld [vmem:[%s1 + $0x40] sm:$0xff]
    %v127 = vld [vmem:[%s1 + $0x48] sm:$0xff]
    %v128 = vld [vmem:[%s1 + $0x50] sm:$0xff]
    %v129 = vld [vmem:[%s1 + $0x58] sm:$0xff]
    %v130 = vld [vmem:[%s1 + $0x60] sm:$0xff]
    %v131 = vld [vmem:[%s1 + $0x68] sm:$0xff]
    %v132 = vld [vmem:[%s1 + $0x70] sm:$0xff]
    %v133 = vld [vmem:[%s1 + $0x78] sm:$0xff]
    %v134 = vld [vmem:[%s1 + $0x80] sm:$0xff]
    %v135 = vld [vmem:[%s1 + $0x88] sm:$0xff]
    %v136 = vld [vmem:[%s1 + $0x90] sm:$0xff]
    %v137 = vld [vmem:[%s1 + $0x98] sm:$0xff]
    %v138 = vld [vmem:[%s1 + $0xa0] sm:$0xff]
    %v139 = vld [vmem:[%s1 + $0xa8] sm:$0xff]
    %v140 = vld [vmem:[%s1 + $0xb0] sm:$0xff]
    %v141 = vld [vmem:[%s1 + $0xb8] sm:$0xff]
    %v142 = vld [vmem:[%s1 + $0xc0] sm:$0xff]
    %v143 = vld [vmem:[%s1 + $0xc8] sm:$0xff]
    %v144 = vld [vmem:[%s1 + $0xd0] sm:$0xff]
    %v145 = vld [vmem:[%s1 + $0xd8] sm:$0xff]
    %v146 = vld [vmem:[%s1 + $0xe0] sm:$0xff]
    %v147 = vld [vmem:[%s1 + $0xe8] sm:$0xff]
    %v148 = vld [vmem:[%s1 + $0xf0] sm:$0xff]
    %v149 = vld [vmem:[%s1 + $0xf8] sm:$0xff]
    %v150 = vld [vmem:[%s1 + $0x100] sm:$0xff]
    %v151 = vld [vmem:[%s1 + $0x108] sm:$0xff]
    %v152 = vld [vmem:[%s1 + $0x110] sm:$0xff]
    %v153 = vld [vmem:[%s1 + $0x118] sm:$0xff]
    %v154 = vld [vmem:[%s1 + $0x120] sm:$0xff]
    %v155 = vld [vmem:[%s1 + $0x128] sm:$0xff]
    %v156 = vld [vmem:[%s1 + $0x130] sm:$0xff]
    %v157 = vld [vmem:[%s1 + $0x138] sm:$0xff]
    %v158 = vld [vmem:[%s1 + $0x140] sm:$0xff]
    %v159 = vld [vmem:[%s1 + $0x148] sm:$0xff]
    %v160 = vld [vmem:[%s1 + $0x150] sm:$0xff]
    %v161 = vld [vmem:[%s1 + $0x158] sm:$0xff]
    %v162 = vld [vmem:[%s1 + $0x160] sm:$0xff]
    %v163 = vld [vmem:[%s1 + $0x168] sm:$0xff]
    %v164 = vld [vmem:[%s1 + $0x170] sm:$0xff]
    %v165 = vld [vmem:[%s1 + $0x178] sm:$0xff]
    %v166 = vld [vmem:[%s1 + $0x180] sm:$0xff]
    %v167 = vld [vmem:[%s1 + $0x188] sm:$0xff]
    %v168 = vld [vmem:[%s1 + $0x190] sm:$0xff]
    %v169 = vld [vmem:[%s1 + $0x198] sm:$0xff]
    %v170 = vld [vmem:[%s1 + $0x1a0] sm:$0xff]
    %v171 = vld [vmem:[%s1 + $0x1a8] sm:$0xff]
    %v172 = vld [vmem:[%s1 + $0x1b0] sm:$0xff]
    %v173 = vld [vmem:[%s1 + $0x1b8] sm:$0xff]
    %v174 = vld [vmem:[%s1 + $0x1c0] sm:$0xff]
    %v175 = vld [vmem:[%s1 + $0x1c8] sm:$0xff]
    %v176 = vld [vmem:[%s1 + $0x1d0] sm:$0xff]
    %v177 = vld [vmem:[%s1 + $0x1d8] sm:$0xff]
    %v178 = vld [vmem:[%s1 + $0x1e0] sm:$0xff]
    %v179 = vld [vmem:[%s1 + $0x1e8] sm:$0xff]
    %v180 = vld [vmem:[%s1 + $0x1f0] sm:$0xff]
    %v181 = vld [vmem:[%s1 + $0x1f8] sm:$0xff]
    %v182 = vpack.c.bf16 %v119, %v118
    %v183 = vpack.c.bf16 %v121, %v120
    %v184 = vpack.c.bf16 %v123, %v122
    %v185 = vpack.c.bf16 %v125, %v124
    %v186 = vpack.c.bf16 %v127, %v126
    %v187 = vpack.c.bf16 %v129, %v128
    %v188 = vpack.c.bf16 %v131, %v130
    %v189 = vpack.c.bf16 %v133, %v132
    %v190 = vpack.c.bf16 %v135, %v134
    %v191 = vpack.c.bf16 %v137, %v136
    %v192 = vpack.c.bf16 %v139, %v138
    %v193 = vpack.c.bf16 %v141, %v140
    %v194 = vpack.c.bf16 %v143, %v142
    %v195 = vpack.c.bf16 %v145, %v144
    %v196 = vpack.c.bf16 %v147, %v146
    %v197 = vpack.c.bf16 %v149, %v148
    %v198 = vpack.c.bf16 %v151, %v150
    %v199 = vpack.c.bf16 %v153, %v152
    %v200 = vpack.c.bf16 %v155, %v154
    %v201 = vpack.c.bf16 %v157, %v156
    %v202 = vpack.c.bf16 %v159, %v158
    %v203 = vpack.c.bf16 %v161, %v160
    %v204 = vpack.c.bf16 %v163, %v162
    %v205 = vpack.c.bf16 %v165, %v164
    %v206 = vpack.c.bf16 %v167, %v166
    %v207 = vpack.c.bf16 %v169, %v168
    %v208 = vpack.c.bf16 %v171, %v170
    %v209 = vpack.c.bf16 %v173, %v172
    %v210 = vpack.c.bf16 %v175, %v174
    %v211 = vpack.c.bf16 %v177, %v176
    %v212 = vpack.c.bf16 %v179, %v178
    %v213 = vpack.c.bf16 %v181, %v180
    %v214 = vld [vmem:[#allocation2] sm:$0xff]
    %v215 = vld [vmem:[#allocation2 + $0x8] sm:$0xff]
    %v218 = vunpack.c.l.b16 %v214
    %v219 = vunpack.c.h.b16 %v214
    %v220 = vunpack.c.l.b16 %v215
    %v221 = vunpack.c.h.b16 %v215
    %v222 = vpack.c.b16 %v220, %v218
    %v223 = vpack.c.b16 %v221, %v219
    %226 = vmatprep.subr.bf16.mxu0 0
    %227 = vmatpush1.bf16.msra.mxu0 %v182
    %228 = vmatprep.subr.bf16.mxu0 0
    %229 = vmatpush1.bf16.msra.mxu0 %v183
    %230 = vmatprep.subr.bf16.mxu0 0
    %231 = vmatpush1.bf16.msra.mxu0 %v184
    %232 = vmatprep.subr.bf16.mxu0 0
    %233 = vmatpush1.bf16.msra.mxu0 %v185
    %234 = vmatprep.subr.bf16.mxu0 0
    %235 = vmatpush1.bf16.msra.mxu0 %v186
    %236 = vmatprep.subr.bf16.mxu0 0
    %237 = vmatpush1.bf16.msra.mxu0 %v187
    %238 = vmatprep.subr.bf16.mxu0 0
    %239 = vmatpush1.bf16.msra.mxu0 %v188
    %240 = vmatprep.subr.bf16.mxu0 0
    %241 = vmatpush1.bf16.msra.mxu0 %v189
    %242 = vmatprep.subr.bf16.mxu0 0
    %243 = vmatpush1.bf16.msra.mxu0 %v190
    %244 = vmatprep.subr.bf16.mxu0 0
    %245 = vmatpush1.bf16.msra.mxu0 %v191
    %246 = vmatprep.subr.bf16.mxu0 0
    %247 = vmatpush1.bf16.msra.mxu0 %v192
    %248 = vmatprep.subr.bf16.mxu0 0
    %249 = vmatpush1.bf16.msra.mxu0 %v193
    %250 = vmatprep.subr.bf16.mxu0 0
    %251 = vmatpush1.bf16.msra.mxu0 %v194
    %252 = vmatprep.subr.bf16.mxu0 0
    %253 = vmatpush1.bf16.msra.mxu0 %v195
    %254 = vmatprep.subr.bf16.mxu0 0
    %255 = vmatpush1.bf16.msra.mxu0 %v196
    %256 = vmatprep.subr.bf16.mxu0 0
    %257 = vmatpush1.bf16.msra.mxu0 %v197
    %258 = vmatprep.mubr.bf16.mxu0 %v223
    %259 = vmatmul.mubr.bf16.gmra.mrb[0].mxu0 %v222
    %v260 = vpop.f32.mrb[0].mxu0
    %v261 = vadd.f32 0.0, %v260
    %v262 = vpop.f32.mrb[0].mxu0
    %v263 = vpop.f32.mrb[0].mxu0
    %v264 = vadd.f32 0.0, %v263
    %v265 = vpop.f32.mrb[0].mxu0
    %266 = vdwg.mxu0
    %267 = vmatprep.subr.bf16.mxu0 0
    %268 = vmatpush1.bf16.msra.mxu0 %v198
    %269 = vmatprep.subr.bf16.mxu0 0
    %270 = vmatpush1.bf16.msra.mxu0 %v199
    %271 = vmatprep.subr.bf16.mxu0 0
    %272 = vmatpush1.bf16.msra.mxu0 %v200
    %273 = vmatprep.subr.bf16.mxu0 0
    %274 = vmatpush1.bf16.msra.mxu0 %v201
    %275 = vmatprep.subr.bf16.mxu0 0
    %276 = vmatpush1.bf16.msra.mxu0 %v202
    %277 = vmatprep.subr.bf16.mxu0 0
    %278 = vmatpush1.bf16.msra.mxu0 %v203
    %279 = vmatprep.subr.bf16.mxu0 0
    %280 = vmatpush1.bf16.msra.mxu0 %v204
    %281 = vmatprep.subr.bf16.mxu0 0
    %282 = vmatpush1.bf16.msra.mxu0 %v205
    %283 = vmatprep.subr.bf16.mxu0 0
    %284 = vmatpush1.bf16.msra.mxu0 %v206
    %285 = vmatprep.subr.bf16.mxu0 0
    %286 = vmatpush1.bf16.msra.mxu0 %v207
    %287 = vmatprep.subr.bf16.mxu0 0
    %288 = vmatpush1.bf16.msra.mxu0 %v208
    %289 = vmatprep.subr.bf16.mxu0 0
    %290 = vmatpush1.bf16.msra.mxu0 %v209
    %291 = vmatprep.subr.bf16.mxu0 0
    %292 = vmatpush1.bf16.msra.mxu0 %v210
    %293 = vmatprep.subr.bf16.mxu0 0
    %294 = vmatpush1.bf16.msra.mxu0 %v211
    %295 = vmatprep.subr.bf16.mxu0 0
    %296 = vmatpush1.bf16.msra.mxu0 %v212
    %297 = vmatprep.subr.bf16.mxu0 0
    %298 = vmatpush1.bf16.msra.mxu0 %v213
    %299 = vmatprep.mubr.bf16.mxu0 %v223
    %300 = vmatmul.mubr.bf16.gmra.mrb[0].mxu0 %v222
    %v301 = vpop.f32.mrb[0].mxu0
    %v302 = vadd.f32 0.0, %v301
    %v303 = vpop.f32.mrb[0].mxu0
    %v304 = vpop.f32.mrb[0].mxu0
    %v305 = vadd.f32 0.0, %v304
    %v306 = vpop.f32.mrb[0].mxu0
    %307 = vdwg.mxu0
    %v308 = vpack.c.bf16 %v264, %v261
    %v309 = vpack.c.bf16 %v305, %v302
    %v310 = vld [vmem:[#allocation5] sm:$0x3]
    %v311 = vld [vmem:[#allocation7] sm:$0x1]
    %v313 = vlaneseq
    %v314 = vshrl.u32 %v313, 7
    %v315 = vsub.s32 0, %v314
    %v316 = vrot.slane %v311, %v315
    %vm318 = vcmask 31744
    %v320 = vsel %vm318, %v308, 0
    %v323 = vsel %vm318, %v309, 0
    %vm325 = vcmask 1041408
    %v327 = vsel %vm325, %v310, 0
    %329 = vmatprep.subr.bf16.mxu0 0
    %330 = vmatpush1.bf16.msra.mxu0 %v327
    %331 = vmatprep.subr.bf16.mxu0 0
    %332 = vmatpush1.bf16.msra.mxu0 0
    %333 = vmatprep.subr.bf16.mxu0 0
    %334 = vmatpush1.bf16.msra.mxu0 0
    %335 = vmatprep.subr.bf16.mxu0 0
    %336 = vmatpush1.bf16.msra.mxu0 0
    %337 = vmatprep.subr.bf16.mxu0 0
    %338 = vmatpush1.bf16.msra.mxu0 0
    %339 = vmatprep.subr.bf16.mxu0 0
    %340 = vmatpush1.bf16.msra.mxu0 0
    %341 = vmatprep.subr.bf16.mxu0 0
    %342 = vmatpush1.bf16.msra.mxu0 0
    %343 = vmatprep.subr.bf16.mxu0 0
    %344 = vmatpush1.bf16.msra.mxu0 0
    %345 = vmatprep.subr.bf16.mxu0 0
    %346 = vmatpush1.bf16.msra.mxu0 0
    %347 = vmatprep.subr.bf16.mxu0 0
    %348 = vmatpush1.bf16.msra.mxu0 0
    %349 = vmatprep.subr.bf16.mxu0 0
    %350 = vmatpush1.bf16.msra.mxu0 0
    %351 = vmatprep.subr.bf16.mxu0 0
    %352 = vmatpush1.bf16.msra.mxu0 0
    %353 = vmatprep.subr.bf16.mxu0 0
    %354 = vmatpush1.bf16.msra.mxu0 0
    %355 = vmatprep.subr.bf16.mxu0 0
    %356 = vmatpush1.bf16.msra.mxu0 0
    %357 = vmatprep.subr.bf16.mxu0 0
    %358 = vmatpush1.bf16.msra.mxu0 0
    %359 = vmatprep.subr.bf16.mxu0 0
    %360 = vmatpush1.bf16.msra.mxu0 0
    %361 = vmatprep.mubr.bf16.mxu0 0
    %362 = vmatmul.mubr.bf16.gmra.mrb[0].mxu0 %v320
    %v363 = vpop.f32.mrb[0].mxu0
    %v364 = vadd.f32 %v316, %v363
    %v365 = vpop.f32.mrb[0].mxu0
    %v366 = vpop.f32.mrb[0].mxu0
    %v367 = vadd.f32 %v316, %v366
    %v368 = vpop.f32.mrb[0].mxu0
    %369 = vmatprep.mubr.bf16.mxu0 0
    %370 = vmatmul.mubr.bf16.gmra.mrb[0].mxu0 %v323
    %v371 = vpop.f32.mrb[0].mxu0
    %v372 = vadd.f32 %v316, %v371
    %v373 = vpop.f32.mrb[0].mxu0
    %v374 = vpop.f32.mrb[0].mxu0
    %v375 = vadd.f32 %v316, %v374
    %v376 = vpop.f32.mrb[0].mxu0
    %377 = vdwg.mxu0
    %v382 = vcombine.low %v364, %v372
    %v383 = vcombine.high %v364, %v372
    %v385 = vunpack.c.l.s4 1966171168
    %v386 = vunpack.c.0.s8 %v385
    %v387 = vlaneseq
    %v388 = vshrl.u32 %v387, 7
    %v389 = vsub.s32 %v386, %v388
    %v390 = vrot.slane %v382, %v389
    %v392 = vunpack.c.l.s4 1966171168
    %v393 = vunpack.c.0.s8 %v392
    %v394 = vlaneseq
    %v395 = vshrl.u32 %v394, 7
    %v396 = vsub.s32 %v393, %v395
    %v397 = vrot.slane %v383, %v396
    %v398 = vcombine.high %v390, %v390
    %v399 = vcombine.high %v397, %v397
    %v401 = vunpack.c.l.s4 1966171168
    %v402 = vunpack.c.0.s8 %v401
    %v403 = vlaneseq
    %v404 = vshrl.u32 %v403, 7
    %v405 = vsub.s32 %v402, %v404
    %v406 = vrot.slane %v390, %v405
    %v408 = vunpack.c.l.s4 1966171168
    %v409 = vunpack.c.0.s8 %v408
    %v410 = vlaneseq
    %v411 = vshrl.u32 %v410, 7
    %v412 = vsub.s32 %v409, %v411
    %v413 = vrot.slane %v397, %v412
    %v415 = vunpack.c.l.s4 1966171168
    %v416 = vunpack.c.0.s8 %v415
    %v417 = vlaneseq
    %v418 = vshrl.u32 %v417, 7
    %v419 = vsub.s32 %v416, %v418
    %v420 = vrot.slane %v398, %v419
    %v422 = vunpack.c.l.s4 1966171168
    %v423 = vunpack.c.0.s8 %v422
    %v424 = vlaneseq
    %v425 = vshrl.u32 %v424, 7
    %v426 = vsub.s32 %v423, %v425
    %v427 = vrot.slane %v399, %v426
    %v428 = vcombine.high %v406, %v406
    %v429 = vcombine.high %v413, %v413
    %v430 = vcombine.high %v420, %v420
    %v431 = vcombine.high %v427, %v427
    %v432 = vcombine.low %v367, %v375
    %v433 = vcombine.high %v367, %v375
    %v435 = vunpack.c.l.s4 1966171168
    %v436 = vunpack.c.0.s8 %v435
    %v437 = vlaneseq
    %v438 = vshrl.u32 %v437, 7
    %v439 = vsub.s32 %v436, %v438
    %v440 = vrot.slane %v432, %v439
    %v442 = vunpack.c.l.s4 1966171168
    %v443 = vunpack.c.0.s8 %v442
    %v444 = vlaneseq
    %v445 = vshrl.u32 %v444, 7
    %v446 = vsub.s32 %v443, %v445
    %v447 = vrot.slane %v433, %v446
    %v448 = vcombine.high %v440, %v440
    %v449 = vcombine.high %v447, %v447
    %v451 = vunpack.c.l.s4 1966171168
    %v452 = vunpack.c.0.s8 %v451
    %v453 = vlaneseq
    %v454 = vshrl.u32 %v453, 7
    %v455 = vsub.s32 %v452, %v454
    %v456 = vrot.slane %v440, %v455
    %v458 = vunpack.c.l.s4 1966171168
    %v459 = vunpack.c.0.s8 %v458
    %v460 = vlaneseq
    %v461 = vshrl.u32 %v460, 7
    %v462 = vsub.s32 %v459, %v461
    %v463 = vrot.slane %v447, %v462
    %v465 = vunpack.c.l.s4 1966171168
    %v466 = vunpack.c.0.s8 %v465
    %v467 = vlaneseq
    %v468 = vshrl.u32 %v467, 7
    %v469 = vsub.s32 %v466, %v468
    %v470 = vrot.slane %v448, %v469
    %v472 = vunpack.c.l.s4 1966171168
    %v473 = vunpack.c.0.s8 %v472
    %v474 = vlaneseq
    %v475 = vshrl.u32 %v474, 7
    %v476 = vsub.s32 %v473, %v475
    %v477 = vrot.slane %v449, %v476
    %v478 = vcombine.high %v456, %v456
    %v479 = vcombine.high %v463, %v463
    %v480 = vcombine.high %v470, %v470
    %v481 = vcombine.high %v477, %v477
    %v498 = vpack.c.bf16 %v406, %v406
    %v499 = vpack.c.bf16 %v420, %v420
    %v500 = vpack.c.bf16 %v428, %v428
    %v501 = vpack.c.bf16 %v430, %v430
    %v502 = vpack.c.bf16 %v413, %v413
    %v503 = vpack.c.bf16 %v427, %v427
    %v504 = vpack.c.bf16 %v429, %v429
    %v505 = vpack.c.bf16 %v431, %v431
    %v506 = vpack.c.bf16 %v456, %v456
    %v507 = vpack.c.bf16 %v470, %v470
    %v508 = vpack.c.bf16 %v478, %v478
    %v509 = vpack.c.bf16 %v480, %v480
    %v510 = vpack.c.bf16 %v463, %v463
    %v511 = vpack.c.bf16 %v477, %v477
    %v512 = vpack.c.bf16 %v479, %v479
    %v513 = vpack.c.bf16 %v481, %v481
    %v514 = vld [vmem:[#allocation8] sm:$0xff]
    %v515 = vld [vmem:[#allocation8 + $0x8] sm:$0xff]
    %v516 = vld [vmem:[#allocation8 + $0x10] sm:$0xff]
    %v517 = vld [vmem:[#allocation8 + $0x18] sm:$0xff]
    %v518 = vld [vmem:[#allocation8 + $0x20] sm:$0xff]
    %v519 = vld [vmem:[#allocation8 + $0x28] sm:$0xff]
    %v520 = vld [vmem:[#allocation8 + $0x30] sm:$0xff]
    %v521 = vld [vmem:[#allocation8 + $0x38] sm:$0xff]
    %v522 = vld [vmem:[#allocation8 + $0x40] sm:$0xff]
    %v523 = vld [vmem:[#allocation8 + $0x48] sm:$0xff]
    %v524 = vld [vmem:[#allocation8 + $0x50] sm:$0xff]
    %v525 = vld [vmem:[#allocation8 + $0x58] sm:$0xff]
    %v526 = vld [vmem:[#allocation8 + $0x60] sm:$0xff]
    %v527 = vld [vmem:[#allocation8 + $0x68] sm:$0xff]
    %v528 = vld [vmem:[#allocation8 + $0x70] sm:$0xff]
    %v529 = vld [vmem:[#allocation8 + $0x78] sm:$0xff]
    %v530 = vld [vmem:[#allocation8 + $0x80] sm:$0xff]
    %v531 = vld [vmem:[#allocation8 + $0x88] sm:$0xff]
    %v532 = vld [vmem:[#allocation8 + $0x90] sm:$0xff]
    %v533 = vld [vmem:[#allocation8 + $0x98] sm:$0xff]
    %v534 = vld [vmem:[#allocation8 + $0xa0] sm:$0xff]
    %v535 = vld [vmem:[#allocation8 + $0xa8] sm:$0xff]
    %v536 = vld [vmem:[#allocation8 + $0xb0] sm:$0xff]
    %v537 = vld [vmem:[#allocation8 + $0xb8] sm:$0xff]
    %v538 = vld [vmem:[#allocation8 + $0xc0] sm:$0xff]
    %v539 = vld [vmem:[#allocation8 + $0xc8] sm:$0xff]
    %v540 = vld [vmem:[#allocation8 + $0xd0] sm:$0xff]
    %v541 = vld [vmem:[#allocation8 + $0xd8] sm:$0xff]
    %v542 = vld [vmem:[#allocation8 + $0xe0] sm:$0xff]
    %v543 = vld [vmem:[#allocation8 + $0xe8] sm:$0xff]
    %v544 = vld [vmem:[#allocation8 + $0xf0] sm:$0xff]
    %v545 = vld [vmem:[#allocation8 + $0xf8] sm:$0xff]
    %v546 = vld [vmem:[#allocation8 + $0x100] sm:$0xff]
    %v547 = vld [vmem:[#allocation8 + $0x108] sm:$0xff]
    %v548 = vld [vmem:[#allocation8 + $0x110] sm:$0xff]
    %v549 = vld [vmem:[#allocation8 + $0x118] sm:$0xff]
    %v550 = vld [vmem:[#allocation8 + $0x120] sm:$0xff]
    %v551 = vld [vmem:[#allocation8 + $0x128] sm:$0xff]
    %v552 = vld [vmem:[#allocation8 + $0x130] sm:$0xff]
    %v553 = vld [vmem:[#allocation8 + $0x138] sm:$0xff]
    %v554 = vld [vmem:[#allocation8 + $0x140] sm:$0xff]
    %v555 = vld [vmem:[#allocation8 + $0x148] sm:$0xff]
    %v556 = vld [vmem:[#allocation8 + $0x150] sm:$0xff]
    %v557 = vld [vmem:[#allocation8 + $0x158] sm:$0xff]
    %v558 = vld [vmem:[#allocation8 + $0x160] sm:$0xff]
    %v559 = vld [vmem:[#allocation8 + $0x168] sm:$0xff]
    %v560 = vld [vmem:[#allocation8 + $0x170] sm:$0xff]
    %v561 = vld [vmem:[#allocation8 + $0x178] sm:$0xff]
    %v562 = vld [vmem:[#allocation8 + $0x180] sm:$0xff]
    %v563 = vld [vmem:[#allocation8 + $0x188] sm:$0xff]
    %v564 = vld [vmem:[#allocation8 + $0x190] sm:$0xff]
    %v565 = vld [vmem:[#allocation8 + $0x198] sm:$0xff]
    %v566 = vld [vmem:[#allocation8 + $0x1a0] sm:$0xff]
    %v567 = vld [vmem:[#allocation8 + $0x1a8] sm:$0xff]
    %v568 = vld [vmem:[#allocation8 + $0x1b0] sm:$0xff]
    %v569 = vld [vmem:[#allocation8 + $0x1b8] sm:$0xff]
    %v570 = vld [vmem:[#allocation8 + $0x1c0] sm:$0xff]
    %v571 = vld [vmem:[#allocation8 + $0x1c8] sm:$0xff]
    %v572 = vld [vmem:[#allocation8 + $0x1d0] sm:$0xff]
    %v573 = vld [vmem:[#allocation8 + $0x1d8] sm:$0xff]
    %v574 = vld [vmem:[#allocation8 + $0x1e0] sm:$0xff]
    %v575 = vld [vmem:[#allocation8 + $0x1e8] sm:$0xff]
    %v576 = vld [vmem:[#allocation8 + $0x1f0] sm:$0xff]
    %v577 = vld [vmem:[#allocation8 + $0x1f8] sm:$0xff]
    %v578 = vld [vmem:[#allocation8 + $0x200] sm:$0xff]
    %v579 = vld [vmem:[#allocation8 + $0x208] sm:$0xff]
    %v580 = vld [vmem:[#allocation8 + $0x210] sm:$0xff]
    %v581 = vld [vmem:[#allocation8 + $0x218] sm:$0xff]
    %v582 = vld [vmem:[#allocation8 + $0x220] sm:$0xff]
    %v583 = vld [vmem:[#allocation8 + $0x228] sm:$0xff]
    %v584 = vld [vmem:[#allocation8 + $0x230] sm:$0xff]
    %v585 = vld [vmem:[#allocation8 + $0x238] sm:$0xff]
    %v586 = vld [vmem:[#allocation8 + $0x240] sm:$0xff]
    %v587 = vld [vmem:[#allocation8 + $0x248] sm:$0xff]
    %v588 = vld [vmem:[#allocation8 + $0x250] sm:$0xff]
    %v589 = vld [vmem:[#allocation8 + $0x258] sm:$0xff]
    %v590 = vld [vmem:[#allocation8 + $0x260] sm:$0xff]
    %v591 = vld [vmem:[#allocation8 + $0x268] sm:$0xff]
    %v592 = vld [vmem:[#allocation8 + $0x270] sm:$0xff]
    %v593 = vld [vmem:[#allocation8 + $0x278] sm:$0xff]
    %v594 = vld [vmem:[#allocation8 + $0x280] sm:$0xff]
    %v595 = vld [vmem:[#allocation8 + $0x288] sm:$0xff]
    %v596 = vld [vmem:[#allocation8 + $0x290] sm:$0xff]
    %v597 = vld [vmem:[#allocation8 + $0x298] sm:$0xff]
    %v598 = vld [vmem:[#allocation8 + $0x2a0] sm:$0xff]
    %v599 = vld [vmem:[#allocation8 + $0x2a8] sm:$0xff]
    %v600 = vld [vmem:[#allocation8 + $0x2b0] sm:$0xff]
    %v601 = vld [vmem:[#allocation8 + $0x2b8] sm:$0xff]
    %v602 = vld [vmem:[#allocation8 + $0x2c0] sm:$0xff]
    %v603 = vld [vmem:[#allocation8 + $0x2c8] sm:$0xff]
    %v604 = vld [vmem:[#allocation8 + $0x2d0] sm:$0xff]
    %v605 = vld [vmem:[#allocation8 + $0x2d8] sm:$0xff]
    %v606 = vld [vmem:[#allocation8 + $0x2e0] sm:$0xff]
    %v607 = vld [vmem:[#allocation8 + $0x2e8] sm:$0xff]
    %v608 = vld [vmem:[#allocation8 + $0x2f0] sm:$0xff]
    %v609 = vld [vmem:[#allocation8 + $0x2f8] sm:$0xff]
    %v610 = vld [vmem:[#allocation8 + $0x300] sm:$0xff]
    %v611 = vld [vmem:[#allocation8 + $0x308] sm:$0xff]
    %v612 = vld [vmem:[#allocation8 + $0x310] sm:$0xff]
    %v613 = vld [vmem:[#allocation8 + $0x318] sm:$0xff]
    %v614 = vld [vmem:[#allocation8 + $0x320] sm:$0xff]
    %v615 = vld [vmem:[#allocation8 + $0x328] sm:$0xff]
    %v616 = vld [vmem:[#allocation8 + $0x330] sm:$0xff]
    %v617 = vld [vmem:[#allocation8 + $0x338] sm:$0xff]
    %v618 = vld [vmem:[#allocation8 + $0x340] sm:$0xff]
    %v619 = vld [vmem:[#allocation8 + $0x348] sm:$0xff]
    %v620 = vld [vmem:[#allocation8 + $0x350] sm:$0xff]
    %v621 = vld [vmem:[#allocation8 + $0x358] sm:$0xff]
    %v622 = vld [vmem:[#allocation8 + $0x360] sm:$0xff]
    %v623 = vld [vmem:[#allocation8 + $0x368] sm:$0xff]
    %v624 = vld [vmem:[#allocation8 + $0x370] sm:$0xff]
    %v625 = vld [vmem:[#allocation8 + $0x378] sm:$0xff]
    %v626 = vld [vmem:[#allocation8 + $0x380] sm:$0xff]
    %v627 = vld [vmem:[#allocation8 + $0x388] sm:$0xff]
    %v628 = vld [vmem:[#allocation8 + $0x390] sm:$0xff]
    %v629 = vld [vmem:[#allocation8 + $0x398] sm:$0xff]
    %v630 = vld [vmem:[#allocation8 + $0x3a0] sm:$0xff]
    %v631 = vld [vmem:[#allocation8 + $0x3a8] sm:$0xff]
    %v632 = vld [vmem:[#allocation8 + $0x3b0] sm:$0xff]
    %v633 = vld [vmem:[#allocation8 + $0x3b8] sm:$0xff]
    %v634 = vld [vmem:[#allocation8 + $0x3c0] sm:$0xff]
    %v635 = vld [vmem:[#allocation8 + $0x3c8] sm:$0xff]
    %v636 = vld [vmem:[#allocation8 + $0x3d0] sm:$0xff]
    %v637 = vld [vmem:[#allocation8 + $0x3d8] sm:$0xff]
    %v638 = vld [vmem:[#allocation8 + $0x3e0] sm:$0xff]
    %v639 = vld [vmem:[#allocation8 + $0x3e8] sm:$0xff]
    %v640 = vld [vmem:[#allocation8 + $0x3f0] sm:$0xff]
    %v641 = vld [vmem:[#allocation8 + $0x3f8] sm:$0xff]
    %v642 = vld [vmem:[#allocation8 + $0x400] sm:$0xff]
    %v643 = vld [vmem:[#allocation8 + $0x408] sm:$0xff]
    %v644 = vld [vmem:[#allocation8 + $0x410] sm:$0xff]
    %v645 = vld [vmem:[#allocation8 + $0x418] sm:$0xff]
    %v646 = vld [vmem:[#allocation8 + $0x420] sm:$0xff]
    %v647 = vld [vmem:[#allocation8 + $0x428] sm:$0xff]
    %v648 = vld [vmem:[#allocation8 + $0x430] sm:$0xff]
    %v649 = vld [vmem:[#allocation8 + $0x438] sm:$0xff]
    %v650 = vld [vmem:[#allocation8 + $0x440] sm:$0xff]
    %v651 = vld [vmem:[#allocation8 + $0x448] sm:$0xff]
    %v652 = vld [vmem:[#allocation8 + $0x450] sm:$0xff]
    %v653 = vld [vmem:[#allocation8 + $0x458] sm:$0xff]
    %v654 = vld [vmem:[#allocation8 + $0x460] sm:$0xff]
    %v655 = vld [vmem:[#allocation8 + $0x468] sm:$0xff]
    %v656 = vld [vmem:[#allocation8 + $0x470] sm:$0xff]
    %v657 = vld [vmem:[#allocation8 + $0x478] sm:$0xff]
    %v658 = vld [vmem:[#allocation8 + $0x480] sm:$0xff]
    %v659 = vld [vmem:[#allocation8 + $0x488] sm:$0xff]
    %v660 = vld [vmem:[#allocation8 + $0x490] sm:$0xff]
    %v661 = vld [vmem:[#allocation8 + $0x498] sm:$0xff]
    %v662 = vld [vmem:[#allocation8 + $0x4a0] sm:$0xff]
    %v663 = vld [vmem:[#allocation8 + $0x4a8] sm:$0xff]
    %v664 = vld [vmem:[#allocation8 + $0x4b0] sm:$0xff]
    %v665 = vld [vmem:[#allocation8 + $0x4b8] sm:$0xff]
    %v666 = vld [vmem:[#allocation8 + $0x4c0] sm:$0xff]
    %v667 = vld [vmem:[#allocation8 + $0x4c8] sm:$0xff]
    %v668 = vld [vmem:[#allocation8 + $0x4d0] sm:$0xff]
    %v669 = vld [vmem:[#allocation8 + $0x4d8] sm:$0xff]
    %v670 = vld [vmem:[#allocation8 + $0x4e0] sm:$0xff]
    %v671 = vld [vmem:[#allocation8 + $0x4e8] sm:$0xff]
    %v672 = vld [vmem:[#allocation8 + $0x4f0] sm:$0xff]
    %v673 = vld [vmem:[#allocation8 + $0x4f8] sm:$0xff]
    %v674 = vld [vmem:[#allocation8 + $0x500] sm:$0xff]
    %v675 = vld [vmem:[#allocation8 + $0x508] sm:$0xff]
    %v676 = vld [vmem:[#allocation8 + $0x510] sm:$0xff]
    %v677 = vld [vmem:[#allocation8 + $0x518] sm:$0xff]
    %v678 = vld [vmem:[#allocation8 + $0x520] sm:$0xff]
    %v679 = vld [vmem:[#allocation8 + $0x528] sm:$0xff]
    %v680 = vld [vmem:[#allocation8 + $0x530] sm:$0xff]
    %v681 = vld [vmem:[#allocation8 + $0x538] sm:$0xff]
    %v682 = vld [vmem:[#allocation8 + $0x540] sm:$0xff]
    %v683 = vld [vmem:[#allocation8 + $0x548] sm:$0xff]
    %v684 = vld [vmem:[#allocation8 + $0x550] sm:$0xff]
    %v685 = vld [vmem:[#allocation8 + $0x558] sm:$0xff]
    %v686 = vld [vmem:[#allocation8 + $0x560] sm:$0xff]
    %v687 = vld [vmem:[#allocation8 + $0x568] sm:$0xff]
    %v688 = vld [vmem:[#allocation8 + $0x570] sm:$0xff]
    %v689 = vld [vmem:[#allocation8 + $0x578] sm:$0xff]
    %v690 = vld [vmem:[#allocation8 + $0x580] sm:$0xff]
    %v691 = vld [vmem:[#allocation8 + $0x588] sm:$0xff]
    %v692 = vld [vmem:[#allocation8 + $0x590] sm:$0xff]
    %v693 = vld [vmem:[#allocation8 + $0x598] sm:$0xff]
    %v694 = vld [vmem:[#allocation8 + $0x5a0] sm:$0xff]
    %v695 = vld [vmem:[#allocation8 + $0x5a8] sm:$0xff]
    %v696 = vld [vmem:[#allocation8 + $0x5b0] sm:$0xff]
    %v697 = vld [vmem:[#allocation8 + $0x5b8] sm:$0xff]
    %v698 = vld [vmem:[#allocation8 + $0x5c0] sm:$0xff]
    %v699 = vld [vmem:[#allocation8 + $0x5c8] sm:$0xff]
    %v700 = vld [vmem:[#allocation8 + $0x5d0] sm:$0xff]
    %v701 = vld [vmem:[#allocation8 + $0x5d8] sm:$0xff]
    %v702 = vld [vmem:[#allocation8 + $0x5e0] sm:$0xff]
    %v703 = vld [vmem:[#allocation8 + $0x5e8] sm:$0xff]
    %v704 = vld [vmem:[#allocation8 + $0x5f0] sm:$0xff]
    %v705 = vld [vmem:[#allocation8 + $0x5f8] sm:$0xff]
    %v706 = vld [vmem:[#allocation8 + $0x600] sm:$0xff]
    %v707 = vld [vmem:[#allocation8 + $0x608] sm:$0xff]
    %v708 = vld [vmem:[#allocation8 + $0x610] sm:$0xff]
    %v709 = vld [vmem:[#allocation8 + $0x618] sm:$0xff]
    %v710 = vld [vmem:[#allocation8 + $0x620] sm:$0xff]
    %v711 = vld [vmem:[#allocation8 + $0x628] sm:$0xff]
    %v712 = vld [vmem:[#allocation8 + $0x630] sm:$0xff]
    %v713 = vld [vmem:[#allocation8 + $0x638] sm:$0xff]
    %v714 = vld [vmem:[#allocation8 + $0x640] sm:$0xff]
    %v715 = vld [vmem:[#allocation8 + $0x648] sm:$0xff]
    %v716 = vld [vmem:[#allocation8 + $0x650] sm:$0xff]
    %v717 = vld [vmem:[#allocation8 + $0x658] sm:$0xff]
    %v718 = vld [vmem:[#allocation8 + $0x660] sm:$0xff]
    %v719 = vld [vmem:[#allocation8 + $0x668] sm:$0xff]
    %v720 = vld [vmem:[#allocation8 + $0x670] sm:$0xff]
    %v721 = vld [vmem:[#allocation8 + $0x678] sm:$0xff]
    %v722 = vld [vmem:[#allocation8 + $0x680] sm:$0xff]
    %v723 = vld [vmem:[#allocation8 + $0x688] sm:$0xff]
    %v724 = vld [vmem:[#allocation8 + $0x690] sm:$0xff]
    %v725 = vld [vmem:[#allocation8 + $0x698] sm:$0xff]
    %v726 = vld [vmem:[#allocation8 + $0x6a0] sm:$0xff]
    %v727 = vld [vmem:[#allocation8 + $0x6a8] sm:$0xff]
    %v728 = vld [vmem:[#allocation8 + $0x6b0] sm:$0xff]
    %v729 = vld [vmem:[#allocation8 + $0x6b8] sm:$0xff]
    %v730 = vld [vmem:[#allocation8 + $0x6c0] sm:$0xff]
    %v731 = vld [vmem:[#allocation8 + $0x6c8] sm:$0xff]
    %v732 = vld [vmem:[#allocation8 + $0x6d0] sm:$0xff]
    %v733 = vld [vmem:[#allocation8 + $0x6d8] sm:$0xff]
    %v734 = vld [vmem:[#allocation8 + $0x6e0] sm:$0xff]
    %v735 = vld [vmem:[#allocation8 + $0x6e8] sm:$0xff]
    %v736 = vld [vmem:[#allocation8 + $0x6f0] sm:$0xff]
    %v737 = vld [vmem:[#allocation8 + $0x6f8] sm:$0xff]
    %v738 = vld [vmem:[#allocation8 + $0x700] sm:$0xff]
    %v739 = vld [vmem:[#allocation8 + $0x708] sm:$0xff]
    %v740 = vld [vmem:[#allocation8 + $0x710] sm:$0xff]
    %v741 = vld [vmem:[#allocation8 + $0x718] sm:$0xff]
    %v742 = vld [vmem:[#allocation8 + $0x720] sm:$0xff]
    %v743 = vld [vmem:[#allocation8 + $0x728] sm:$0xff]
    %v744 = vld [vmem:[#allocation8 + $0x730] sm:$0xff]
    %v745 = vld [vmem:[#allocation8 + $0x738] sm:$0xff]
    %v746 = vld [vmem:[#allocation8 + $0x740] sm:$0xff]
    %v747 = vld [vmem:[#allocation8 + $0x748] sm:$0xff]
    %v748 = vld [vmem:[#allocation8 + $0x750] sm:$0xff]
    %v749 = vld [vmem:[#allocation8 + $0x758] sm:$0xff]
    %v750 = vld [vmem:[#allocation8 + $0x760] sm:$0xff]
    %v751 = vld [vmem:[#allocation8 + $0x768] sm:$0xff]
    %v752 = vld [vmem:[#allocation8 + $0x770] sm:$0xff]
    %v753 = vld [vmem:[#allocation8 + $0x778] sm:$0xff]
    %v754 = vld [vmem:[#allocation8 + $0x780] sm:$0xff]
    %v755 = vld [vmem:[#allocation8 + $0x788] sm:$0xff]
    %v756 = vld [vmem:[#allocation8 + $0x790] sm:$0xff]
    %v757 = vld [vmem:[#allocation8 + $0x798] sm:$0xff]
    %v758 = vld [vmem:[#allocation8 + $0x7a0] sm:$0xff]
    %v759 = vld [vmem:[#allocation8 + $0x7a8] sm:$0xff]
    %v760 = vld [vmem:[#allocation8 + $0x7b0] sm:$0xff]
    %v761 = vld [vmem:[#allocation8 + $0x7b8] sm:$0xff]
    %v762 = vld [vmem:[#allocation8 + $0x7c0] sm:$0xff]
    %v763 = vld [vmem:[#allocation8 + $0x7c8] sm:$0xff]
    %v764 = vld [vmem:[#allocation8 + $0x7d0] sm:$0xff]
    %v765 = vld [vmem:[#allocation8 + $0x7d8] sm:$0xff]
    %v766 = vld [vmem:[#allocation8 + $0x7e0] sm:$0xff]
    %v767 = vld [vmem:[#allocation8 + $0x7e8] sm:$0xff]
    %v768 = vld [vmem:[#allocation8 + $0x7f0] sm:$0xff]
    %v769 = vld [vmem:[#allocation8 + $0x7f8] sm:$0xff]
    %v770 = vld [vmem:[#allocation8 + $0x800] sm:$0xff]
    %v771 = vld [vmem:[#allocation8 + $0x808] sm:$0xff]
    %v772 = vld [vmem:[#allocation8 + $0x810] sm:$0xff]
    %v773 = vld [vmem:[#allocation8 + $0x818] sm:$0xff]
    %v774 = vld [vmem:[#allocation8 + $0x820] sm:$0xff]
    %v775 = vld [vmem:[#allocation8 + $0x828] sm:$0xff]
    %v776 = vld [vmem:[#allocation8 + $0x830] sm:$0xff]
    %v777 = vld [vmem:[#allocation8 + $0x838] sm:$0xff]
    %v778 = vld [vmem:[#allocation8 + $0x840] sm:$0xff]
    %v779 = vld [vmem:[#allocation8 + $0x848] sm:$0xff]
    %v780 = vld [vmem:[#allocation8 + $0x850] sm:$0xff]
    %v781 = vld [vmem:[#allocation8 + $0x858] sm:$0xff]
    %v782 = vld [vmem:[#allocation8 + $0x860] sm:$0xff]
    %v783 = vld [vmem:[#allocation8 + $0x868] sm:$0xff]
    %v784 = vld [vmem:[#allocation8 + $0x870] sm:$0xff]
    %v785 = vld [vmem:[#allocation8 + $0x878] sm:$0xff]
    %v786 = vld [vmem:[#allocation8 + $0x880] sm:$0xff]
    %v787 = vld [vmem:[#allocation8 + $0x888] sm:$0xff]
    %v788 = vld [vmem:[#allocation8 + $0x890] sm:$0xff]
    %v789 = vld [vmem:[#allocation8 + $0x898] sm:$0xff]
    %v790 = vld [vmem:[#allocation8 + $0x8a0] sm:$0xff]
    %v791 = vld [vmem:[#allocation8 + $0x8a8] sm:$0xff]
    %v792 = vld [vmem:[#allocation8 + $0x8b0] sm:$0xff]
    %v793 = vld [vmem:[#allocation8 + $0x8b8] sm:$0xff]
    %v794 = vld [vmem:[#allocation8 + $0x8c0] sm:$0xff]
    %v795 = vld [vmem:[#allocation8 + $0x8c8] sm:$0xff]
    %v796 = vld [vmem:[#allocation8 + $0x8d0] sm:$0xff]
    %v797 = vld [vmem:[#allocation8 + $0x8d8] sm:$0xff]
    %v798 = vld [vmem:[#allocation8 + $0x8e0] sm:$0xff]
    %v799 = vld [vmem:[#allocation8 + $0x8e8] sm:$0xff]
    %v800 = vld [vmem:[#allocation8 + $0x8f0] sm:$0xff]
    %v801 = vld [vmem:[#allocation8 + $0x8f8] sm:$0xff]
    %v802 = vld [vmem:[#allocation8 + $0x900] sm:$0xff]
    %v803 = vld [vmem:[#allocation8 + $0x908] sm:$0xff]
    %v804 = vld [vmem:[#allocation8 + $0x910] sm:$0xff]
    %v805 = vld [vmem:[#allocation8 + $0x918] sm:$0xff]
    %v806 = vld [vmem:[#allocation8 + $0x920] sm:$0xff]
    %v807 = vld [vmem:[#allocation8 + $0x928] sm:$0xff]
    %v808 = vld [vmem:[#allocation8 + $0x930] sm:$0xff]
    %v809 = vld [vmem:[#allocation8 + $0x938] sm:$0xff]
    %v810 = vld [vmem:[#allocation8 + $0x940] sm:$0xff]
    %v811 = vld [vmem:[#allocation8 + $0x948] sm:$0xff]
    %v812 = vld [vmem:[#allocation8 + $0x950] sm:$0xff]
    %v813 = vld [vmem:[#allocation8 + $0x958] sm:$0xff]
    %v814 = vld [vmem:[#allocation8 + $0x960] sm:$0xff]
    %v815 = vld [vmem:[#allocation8 + $0x968] sm:$0xff]
    %v816 = vld [vmem:[#allocation8 + $0x970] sm:$0xff]
    %v817 = vld [vmem:[#allocation8 + $0x978] sm:$0xff]
    %v818 = vld [vmem:[#allocation8 + $0x980] sm:$0xff]
    %v819 = vld [vmem:[#allocation8 + $0x988] sm:$0xff]
    %v820 = vld [vmem:[#allocation8 + $0x990] sm:$0xff]
    %v821 = vld [vmem:[#allocation8 + $0x998] sm:$0xff]
    %v822 = vld [vmem:[#allocation8 + $0x9a0] sm:$0xff]
    %v823 = vld [vmem:[#allocation8 + $0x9a8] sm:$0xff]
    %v824 = vld [vmem:[#allocation8 + $0x9b0] sm:$0xff]
    %v825 = vld [vmem:[#allocation8 + $0x9b8] sm:$0xff]
    %v826 = vld [vmem:[#allocation8 + $0x9c0] sm:$0xff]
    %v827 = vld [vmem:[#allocation8 + $0x9c8] sm:$0xff]
    %v828 = vld [vmem:[#allocation8 + $0x9d0] sm:$0xff]
    %v829 = vld [vmem:[#allocation8 + $0x9d8] sm:$0xff]
    %v830 = vld [vmem:[#allocation8 + $0x9e0] sm:$0xff]
    %v831 = vld [vmem:[#allocation8 + $0x9e8] sm:$0xff]
    %v832 = vld [vmem:[#allocation8 + $0x9f0] sm:$0xff]
    %v833 = vld [vmem:[#allocation8 + $0x9f8] sm:$0xff]
    %v834 = vld [vmem:[#allocation8 + $0xa00] sm:$0xff]
    %v835 = vld [vmem:[#allocation8 + $0xa08] sm:$0xff]
    %v836 = vld [vmem:[#allocation8 + $0xa10] sm:$0xff]
    %v837 = vld [vmem:[#allocation8 + $0xa18] sm:$0xff]
    %v838 = vld [vmem:[#allocation8 + $0xa20] sm:$0xff]
    %v839 = vld [vmem:[#allocation8 + $0xa28] sm:$0xff]
    %v840 = vld [vmem:[#allocation8 + $0xa30] sm:$0xff]
    %v841 = vld [vmem:[#allocation8 + $0xa38] sm:$0xff]
    %v842 = vld [vmem:[#allocation8 + $0xa40] sm:$0xff]
    %v843 = vld [vmem:[#allocation8 + $0xa48] sm:$0xff]
    %v844 = vld [vmem:[#allocation8 + $0xa50] sm:$0xff]
    %v845 = vld [vmem:[#allocation8 + $0xa58] sm:$0xff]
    %v846 = vld [vmem:[#allocation8 + $0xa60] sm:$0xff]
    %v847 = vld [vmem:[#allocation8 + $0xa68] sm:$0xff]
    %v848 = vld [vmem:[#allocation8 + $0xa70] sm:$0xff]
    %v849 = vld [vmem:[#allocation8 + $0xa78] sm:$0xff]
    %v850 = vld [vmem:[#allocation8 + $0xa80] sm:$0xff]
    %v851 = vld [vmem:[#allocation8 + $0xa88] sm:$0xff]
    %v852 = vld [vmem:[#allocation8 + $0xa90] sm:$0xff]
    %v853 = vld [vmem:[#allocation8 + $0xa98] sm:$0xff]
    %v854 = vld [vmem:[#allocation8 + $0xaa0] sm:$0xff]
    %v855 = vld [vmem:[#allocation8 + $0xaa8] sm:$0xff]
    %v856 = vld [vmem:[#allocation8 + $0xab0] sm:$0xff]
    %v857 = vld [vmem:[#allocation8 + $0xab8] sm:$0xff]
    %v858 = vld [vmem:[#allocation8 + $0xac0] sm:$0xff]
    %v859 = vld [vmem:[#allocation8 + $0xac8] sm:$0xff]
    %v860 = vld [vmem:[#allocation8 + $0xad0] sm:$0xff]
    %v861 = vld [vmem:[#allocation8 + $0xad8] sm:$0xff]
    %v862 = vld [vmem:[#allocation8 + $0xae0] sm:$0xff]
    %v863 = vld [vmem:[#allocation8 + $0xae8] sm:$0xff]
    %v864 = vld [vmem:[#allocation8 + $0xaf0] sm:$0xff]
    %v865 = vld [vmem:[#allocation8 + $0xaf8] sm:$0xff]
    %v866 = vld [vmem:[#allocation8 + $0xb00] sm:$0xff]
    %v867 = vld [vmem:[#allocation8 + $0xb08] sm:$0xff]
    %v868 = vld [vmem:[#allocation8 + $0xb10] sm:$0xff]
    %v869 = vld [vmem:[#allocation8 + $0xb18] sm:$0xff]
    %v870 = vld [vmem:[#allocation8 + $0xb20] sm:$0xff]
    %v871 = vld [vmem:[#allocation8 + $0xb28] sm:$0xff]
    %v872 = vld [vmem:[#allocation8 + $0xb30] sm:$0xff]
    %v873 = vld [vmem:[#allocation8 + $0xb38] sm:$0xff]
    %v874 = vld [vmem:[#allocation8 + $0xb40] sm:$0xff]
    %v875 = vld [vmem:[#allocation8 + $0xb48] sm:$0xff]
    %v876 = vld [vmem:[#allocation8 + $0xb50] sm:$0xff]
    %v877 = vld [vmem:[#allocation8 + $0xb58] sm:$0xff]
    %v878 = vld [vmem:[#allocation8 + $0xb60] sm:$0xff]
    %v879 = vld [vmem:[#allocation8 + $0xb68] sm:$0xff]
    %v880 = vld [vmem:[#allocation8 + $0xb70] sm:$0xff]
    %v881 = vld [vmem:[#allocation8 + $0xb78] sm:$0xff]
    %v882 = vld [vmem:[#allocation8 + $0xb80] sm:$0xff]
    %v883 = vld [vmem:[#allocation8 + $0xb88] sm:$0xff]
    %v884 = vld [vmem:[#allocation8 + $0xb90] sm:$0xff]
    %v885 = vld [vmem:[#allocation8 + $0xb98] sm:$0xff]
    %v886 = vld [vmem:[#allocation8 + $0xba0] sm:$0xff]
    %v887 = vld [vmem:[#allocation8 + $0xba8] sm:$0xff]
    %v888 = vld [vmem:[#allocation8 + $0xbb0] sm:$0xff]
    %v889 = vld [vmem:[#allocation8 + $0xbb8] sm:$0xff]
    %v890 = vld [vmem:[#allocation8 + $0xbc0] sm:$0xff]
    %v891 = vld [vmem:[#allocation8 + $0xbc8] sm:$0xff]
    %v892 = vld [vmem:[#allocation8 + $0xbd0] sm:$0xff]
    %v893 = vld [vmem:[#allocation8 + $0xbd8] sm:$0xff]
    %v894 = vld [vmem:[#allocation8 + $0xbe0] sm:$0xff]
    %v895 = vld [vmem:[#allocation8 + $0xbe8] sm:$0xff]
    %v896 = vld [vmem:[#allocation8 + $0xbf0] sm:$0xff]
    %v897 = vld [vmem:[#allocation8 + $0xbf8] sm:$0xff]
    %v898 = vld [vmem:[#allocation8 + $0xc00] sm:$0xff]
    %v899 = vld [vmem:[#allocation8 + $0xc08] sm:$0xff]
    %v900 = vld [vmem:[#allocation8 + $0xc10] sm:$0xff]
    %v901 = vld [vmem:[#allocation8 + $0xc18] sm:$0xff]
    %v902 = vld [vmem:[#allocation8 + $0xc20] sm:$0xff]
    %v903 = vld [vmem:[#allocation8 + $0xc28] sm:$0xff]
    %v904 = vld [vmem:[#allocation8 + $0xc30] sm:$0xff]
    %v905 = vld [vmem:[#allocation8 + $0xc38] sm:$0xff]
    %v906 = vld [vmem:[#allocation8 + $0xc40] sm:$0xff]
    %v907 = vld [vmem:[#allocation8 + $0xc48] sm:$0xff]
    %v908 = vld [vmem:[#allocation8 + $0xc50] sm:$0xff]
    %v909 = vld [vmem:[#allocation8 + $0xc58] sm:$0xff]
    %v910 = vld [vmem:[#allocation8 + $0xc60] sm:$0xff]
    %v911 = vld [vmem:[#allocation8 + $0xc68] sm:$0xff]
    %v912 = vld [vmem:[#allocation8 + $0xc70] sm:$0xff]
    %v913 = vld [vmem:[#allocation8 + $0xc78] sm:$0xff]
    %v914 = vld [vmem:[#allocation8 + $0xc80] sm:$0xff]
    %v915 = vld [vmem:[#allocation8 + $0xc88] sm:$0xff]
    %v916 = vld [vmem:[#allocation8 + $0xc90] sm:$0xff]
    %v917 = vld [vmem:[#allocation8 + $0xc98] sm:$0xff]
    %v918 = vld [vmem:[#allocation8 + $0xca0] sm:$0xff]
    %v919 = vld [vmem:[#allocation8 + $0xca8] sm:$0xff]
    %v920 = vld [vmem:[#allocation8 + $0xcb0] sm:$0xff]
    %v921 = vld [vmem:[#allocation8 + $0xcb8] sm:$0xff]
    %v922 = vld [vmem:[#allocation8 + $0xcc0] sm:$0xff]
    %v923 = vld [vmem:[#allocation8 + $0xcc8] sm:$0xff]
    %v924 = vld [vmem:[#allocation8 + $0xcd0] sm:$0xff]
    %v925 = vld [vmem:[#allocation8 + $0xcd8] sm:$0xff]
    %v926 = vld [vmem:[#allocation8 + $0xce0] sm:$0xff]
    %v927 = vld [vmem:[#allocation8 + $0xce8] sm:$0xff]
    %v928 = vld [vmem:[#allocation8 + $0xcf0] sm:$0xff]
    %v929 = vld [vmem:[#allocation8 + $0xcf8] sm:$0xff]
    %v930 = vld [vmem:[#allocation8 + $0xd00] sm:$0xff]
    %v931 = vld [vmem:[#allocation8 + $0xd08] sm:$0xff]
    %v932 = vld [vmem:[#allocation8 + $0xd10] sm:$0xff]
    %v933 = vld [vmem:[#allocation8 + $0xd18] sm:$0xff]
    %v934 = vld [vmem:[#allocation8 + $0xd20] sm:$0xff]
    %v935 = vld [vmem:[#allocation8 + $0xd28] sm:$0xff]
    %v936 = vld [vmem:[#allocation8 + $0xd30] sm:$0xff]
    %v937 = vld [vmem:[#allocation8 + $0xd38] sm:$0xff]
    %v938 = vld [vmem:[#allocation8 + $0xd40] sm:$0xff]
    %v939 = vld [vmem:[#allocation8 + $0xd48] sm:$0xff]
    %v940 = vld [vmem:[#allocation8 + $0xd50] sm:$0xff]
    %v941 = vld [vmem:[#allocation8 + $0xd58] sm:$0xff]
    %v942 = vld [vmem:[#allocation8 + $0xd60] sm:$0xff]
    %v943 = vld [vmem:[#allocation8 + $0xd68] sm:$0xff]
    %v944 = vld [vmem:[#allocation8 + $0xd70] sm:$0xff]
    %v945 = vld [vmem:[#allocation8 + $0xd78] sm:$0xff]
    %v946 = vld [vmem:[#allocation8 + $0xd80] sm:$0xff]
    %v947 = vld [vmem:[#allocation8 + $0xd88] sm:$0xff]
    %v948 = vld [vmem:[#allocation8 + $0xd90] sm:$0xff]
    %v949 = vld [vmem:[#allocation8 + $0xd98] sm:$0xff]
    %v950 = vld [vmem:[#allocation8 + $0xda0] sm:$0xff]
    %v951 = vld [vmem:[#allocation8 + $0xda8] sm:$0xff]
    %v952 = vld [vmem:[#allocation8 + $0xdb0] sm:$0xff]
    %v953 = vld [vmem:[#allocation8 + $0xdb8] sm:$0xff]
    %v954 = vld [vmem:[#allocation8 + $0xdc0] sm:$0xff]
    %v955 = vld [vmem:[#allocation8 + $0xdc8] sm:$0xff]
    %v956 = vld [vmem:[#allocation8 + $0xdd0] sm:$0xff]
    %v957 = vld [vmem:[#allocation8 + $0xdd8] sm:$0xff]
    %v958 = vld [vmem:[#allocation8 + $0xde0] sm:$0xff]
    %v959 = vld [vmem:[#allocation8 + $0xde8] sm:$0xff]
    %v960 = vld [vmem:[#allocation8 + $0xdf0] sm:$0xff]
    %v961 = vld [vmem:[#allocation8 + $0xdf8] sm:$0xff]
    %v962 = vld [vmem:[#allocation8 + $0xe00] sm:$0xff]
    %v963 = vld [vmem:[#allocation8 + $0xe08] sm:$0xff]
    %v964 = vld [vmem:[#allocation8 + $0xe10] sm:$0xff]
    %v965 = vld [vmem:[#allocation8 + $0xe18] sm:$0xff]
    %v966 = vld [vmem:[#allocation8 + $0xe20] sm:$0xff]
    %v967 = vld [vmem:[#allocation8 + $0xe28] sm:$0xff]
    %v968 = vld [vmem:[#allocation8 + $0xe30] sm:$0xff]
    %v969 = vld [vmem:[#allocation8 + $0xe38] sm:$0xff]
    %v970 = vld [vmem:[#allocation8 + $0xe40] sm:$0xff]
    %v971 = vld [vmem:[#allocation8 + $0xe48] sm:$0xff]
    %v972 = vld [vmem:[#allocation8 + $0xe50] sm:$0xff]
    %v973 = vld [vmem:[#allocation8 + $0xe58] sm:$0xff]
    %v974 = vld [vmem:[#allocation8 + $0xe60] sm:$0xff]
    %v975 = vld [vmem:[#allocation8 + $0xe68] sm:$0xff]
    %v976 = vld [vmem:[#allocation8 + $0xe70] sm:$0xff]
    %v977 = vld [vmem:[#allocation8 + $0xe78] sm:$0xff]
    %v978 = vld [vmem:[#allocation8 + $0xe80] sm:$0xff]
    %v979 = vld [vmem:[#allocation8 + $0xe88] sm:$0xff]
    %v980 = vld [vmem:[#allocation8 + $0xe90] sm:$0xff]
    %v981 = vld [vmem:[#allocation8 + $0xe98] sm:$0xff]
    %v982 = vld [vmem:[#allocation8 + $0xea0] sm:$0xff]
    %v983 = vld [vmem:[#allocation8 + $0xea8] sm:$0xff]
    %v984 = vld [vmem:[#allocation8 + $0xeb0] sm:$0xff]
    %v985 = vld [vmem:[#allocation8 + $0xeb8] sm:$0xff]
    %v986 = vld [vmem:[#allocation8 + $0xec0] sm:$0xff]
    %v987 = vld [vmem:[#allocation8 + $0xec8] sm:$0xff]
    %v988 = vld [vmem:[#allocation8 + $0xed0] sm:$0xff]
    %v989 = vld [vmem:[#allocation8 + $0xed8] sm:$0xff]
    %v990 = vld [vmem:[#allocation8 + $0xee0] sm:$0xff]
    %v991 = vld [vmem:[#allocation8 + $0xee8] sm:$0xff]
    %v992 = vld [vmem:[#allocation8 + $0xef0] sm:$0xff]
    %v993 = vld [vmem:[#allocation8 + $0xef8] sm:$0xff]
    %v994 = vld [vmem:[#allocation8 + $0xf00] sm:$0xff]
    %v995 = vld [vmem:[#allocation8 + $0xf08] sm:$0xff]
    %v996 = vld [vmem:[#allocation8 + $0xf10] sm:$0xff]
    %v997 = vld [vmem:[#allocation8 + $0xf18] sm:$0xff]
    %v998 = vld [vmem:[#allocation8 + $0xf20] sm:$0xff]
    %v999 = vld [vmem:[#allocation8 + $0xf28] sm:$0xff]
    %v1000 = vld [vmem:[#allocation8 + $0xf30] sm:$0xff]
    %v1001 = vld [vmem:[#allocation8 + $0xf38] sm:$0xff]
    %v1002 = vld [vmem:[#allocation8 + $0xf40] sm:$0xff]
    %v1003 = vld [vmem:[#allocation8 + $0xf48] sm:$0xff]
    %v1004 = vld [vmem:[#allocation8 + $0xf50] sm:$0xff]
    %v1005 = vld [vmem:[#allocation8 + $0xf58] sm:$0xff]
    %v1006 = vld [vmem:[#allocation8 + $0xf60] sm:$0xff]
    %v1007 = vld [vmem:[#allocation8 + $0xf68] sm:$0xff]
    %v1008 = vld [vmem:[#allocation8 + $0xf70] sm:$0xff]
    %v1009 = vld [vmem:[#allocation8 + $0xf78] sm:$0xff]
    %v1010 = vld [vmem:[#allocation8 + $0xf80] sm:$0xff]
    %v1011 = vld [vmem:[#allocation8 + $0xf88] sm:$0xff]
    %v1012 = vld [vmem:[#allocation8 + $0xf90] sm:$0xff]
    %v1013 = vld [vmem:[#allocation8 + $0xf98] sm:$0xff]
    %v1014 = vld [vmem:[#allocation8 + $0xfa0] sm:$0xff]
    %v1015 = vld [vmem:[#allocation8 + $0xfa8] sm:$0xff]
    %v1016 = vld [vmem:[#allocation8 + $0xfb0] sm:$0xff]
    %v1017 = vld [vmem:[#allocation8 + $0xfb8] sm:$0xff]
    %v1018 = vld [vmem:[#allocation8 + $0xfc0] sm:$0xff]
    %v1019 = vld [vmem:[#allocation8 + $0xfc8] sm:$0xff]
    %v1020 = vld [vmem:[#allocation8 + $0xfd0] sm:$0xff]
    %v1021 = vld [vmem:[#allocation8 + $0xfd8] sm:$0xff]
    %v1022 = vld [vmem:[#allocation8 + $0xfe0] sm:$0xff]
    %v1023 = vld [vmem:[#allocation8 + $0xfe8] sm:$0xff]
    %v1024 = vld [vmem:[#allocation8 + $0xff0] sm:$0xff]
    %v1025 = vld [vmem:[#allocation8 + $0xff8] sm:$0xff]
    %v1026 = vld [vmem:[#allocation8 + $0x1000] sm:$0xff]
    %v1027 = vld [vmem:[#allocation8 + $0x1008] sm:$0xff]
    %v1028 = vld [vmem:[#allocation8 + $0x1010] sm:$0xff]
    %v1029 = vld [vmem:[#allocation8 + $0x1018] sm:$0xff]
    %v1030 = vld [vmem:[#allocation8 + $0x1020] sm:$0xff]
    %v1031 = vld [vmem:[#allocation8 + $0x1028] sm:$0xff]
    %v1032 = vld [vmem:[#allocation8 + $0x1030] sm:$0xff]
    %v1033 = vld [vmem:[#allocation8 + $0x1038] sm:$0xff]
    %v1034 = vld [vmem:[#allocation8 + $0x1040] sm:$0xff]
    %v1035 = vld [vmem:[#allocation8 + $0x1048] sm:$0xff]
    %v1036 = vld [vmem:[#allocation8 + $0x1050] sm:$0xff]
    %v1037 = vld [vmem:[#allocation8 + $0x1058] sm:$0xff]
    %v1038 = vld [vmem:[#allocation8 + $0x1060] sm:$0xff]
    %v1039 = vld [vmem:[#allocation8 + $0x1068] sm:$0xff]
    %v1040 = vld [vmem:[#allocation8 + $0x1070] sm:$0xff]
    %v1041 = vld [vmem:[#allocation8 + $0x1078] sm:$0xff]
    %v1042 = vld [vmem:[#allocation8 + $0x1080] sm:$0xff]
    %v1043 = vld [vmem:[#allocation8 + $0x1088] sm:$0xff]
    %v1044 = vld [vmem:[#allocation8 + $0x1090] sm:$0xff]
    %v1045 = vld [vmem:[#allocation8 + $0x1098] sm:$0xff]
    %v1046 = vld [vmem:[#allocation8 + $0x10a0] sm:$0xff]
    %v1047 = vld [vmem:[#allocation8 + $0x10a8] sm:$0xff]
    %v1048 = vld [vmem:[#allocation8 + $0x10b0] sm:$0xff]
    %v1049 = vld [vmem:[#allocation8 + $0x10b8] sm:$0xff]
    %v1050 = vld [vmem:[#allocation8 + $0x10c0] sm:$0xff]
    %v1051 = vld [vmem:[#allocation8 + $0x10c8] sm:$0xff]
    %v1052 = vld [vmem:[#allocation8 + $0x10d0] sm:$0xff]
    %v1053 = vld [vmem:[#allocation8 + $0x10d8] sm:$0xff]
    %v1054 = vld [vmem:[#allocation8 + $0x10e0] sm:$0xff]
    %v1055 = vld [vmem:[#allocation8 + $0x10e8] sm:$0xff]
    %v1056 = vld [vmem:[#allocation8 + $0x10f0] sm:$0xff]
    %v1057 = vld [vmem:[#allocation8 + $0x10f8] sm:$0xff]
    %v1058 = vld [vmem:[#allocation8 + $0x1100] sm:$0xff]
    %v1059 = vld [vmem:[#allocation8 + $0x1108] sm:$0xff]
    %v1060 = vld [vmem:[#allocation8 + $0x1110] sm:$0xff]
    %v1061 = vld [vmem:[#allocation8 + $0x1118] sm:$0xff]
    %v1062 = vld [vmem:[#allocation8 + $0x1120] sm:$0xff]
    %v1063 = vld [vmem:[#allocation8 + $0x1128] sm:$0xff]
    %v1064 = vld [vmem:[#allocation8 + $0x1130] sm:$0xff]
    %v1065 = vld [vmem:[#allocation8 + $0x1138] sm:$0xff]
    %v1066 = vld [vmem:[#allocation8 + $0x1140] sm:$0xff]
    %v1067 = vld [vmem:[#allocation8 + $0x1148] sm:$0xff]
    %v1068 = vld [vmem:[#allocation8 + $0x1150] sm:$0xff]
    %v1069 = vld [vmem:[#allocation8 + $0x1158] sm:$0xff]
    %v1070 = vld [vmem:[#allocation8 + $0x1160] sm:$0xff]
    %v1071 = vld [vmem:[#allocation8 + $0x1168] sm:$0xff]
    %v1072 = vld [vmem:[#allocation8 + $0x1170] sm:$0xff]
    %v1073 = vld [vmem:[#allocation8 + $0x1178] sm:$0xff]
    %v1074 = vld [vmem:[#allocation8 + $0x1180] sm:$0xff]
    %v1075 = vld [vmem:[#allocation8 + $0x1188] sm:$0xff]
    %v1076 = vld [vmem:[#allocation8 + $0x1190] sm:$0xff]
    %v1077 = vld [vmem:[#allocation8 + $0x1198] sm:$0xff]
    %v1078 = vld [vmem:[#allocation8 + $0x11a0] sm:$0xff]
    %v1079 = vld [vmem:[#allocation8 + $0x11a8] sm:$0xff]
    %v1080 = vld [vmem:[#allocation8 + $0x11b0] sm:$0xff]
    %v1081 = vld [vmem:[#allocation8 + $0x11b8] sm:$0xff]
    %v1082 = vld [vmem:[#allocation8 + $0x11c0] sm:$0xff]
    %v1083 = vld [vmem:[#allocation8 + $0x11c8] sm:$0xff]
    %v1084 = vld [vmem:[#allocation8 + $0x11d0] sm:$0xff]
    %v1085 = vld [vmem:[#allocation8 + $0x11d8] sm:$0xff]
    %v1086 = vld [vmem:[#allocation8 + $0x11e0] sm:$0xff]
    %v1087 = vld [vmem:[#allocation8 + $0x11e8] sm:$0xff]
    %v1088 = vld [vmem:[#allocation8 + $0x11f0] sm:$0xff]
    %v1089 = vld [vmem:[#allocation8 + $0x11f8] sm:$0xff]
    %v1090 = vld [vmem:[#allocation8 + $0x1200] sm:$0xff]
    %v1091 = vld [vmem:[#allocation8 + $0x1208] sm:$0xff]
    %v1092 = vld [vmem:[#allocation8 + $0x1210] sm:$0xff]
    %v1093 = vld [vmem:[#allocation8 + $0x1218] sm:$0xff]
    %v1094 = vld [vmem:[#allocation8 + $0x1220] sm:$0xff]
    %v1095 = vld [vmem:[#allocation8 + $0x1228] sm:$0xff]
    %v1096 = vld [vmem:[#allocation8 + $0x1230] sm:$0xff]
    %v1097 = vld [vmem:[#allocation8 + $0x1238] sm:$0xff]
    %v1098 = vld [vmem:[#allocation8 + $0x1240] sm:$0xff]
    %v1099 = vld [vmem:[#allocation8 + $0x1248] sm:$0xff]
    %v1100 = vld [vmem:[#allocation8 + $0x1250] sm:$0xff]
    %v1101 = vld [vmem:[#allocation8 + $0x1258] sm:$0xff]
    %v1102 = vld [vmem:[#allocation8 + $0x1260] sm:$0xff]
    %v1103 = vld [vmem:[#allocation8 + $0x1268] sm:$0xff]
    %v1104 = vld [vmem:[#allocation8 + $0x1270] sm:$0xff]
    %v1105 = vld [vmem:[#allocation8 + $0x1278] sm:$0xff]
    %v1106 = vld [vmem:[#allocation8 + $0x1280] sm:$0xff]
    %v1107 = vld [vmem:[#allocation8 + $0x1288] sm:$0xff]
    %v1108 = vld [vmem:[#allocation8 + $0x1290] sm:$0xff]
    %v1109 = vld [vmem:[#allocation8 + $0x1298] sm:$0xff]
    %v1110 = vld [vmem:[#allocation8 + $0x12a0] sm:$0xff]
    %v1111 = vld [vmem:[#allocation8 + $0x12a8] sm:$0xff]
    %v1112 = vld [vmem:[#allocation8 + $0x12b0] sm:$0xff]
    %v1113 = vld [vmem:[#allocation8 + $0x12b8] sm:$0xff]
    %v1114 = vld [vmem:[#allocation8 + $0x12c0] sm:$0xff]
    %v1115 = vld [vmem:[#allocation8 + $0x12c8] sm:$0xff]
    %v1116 = vld [vmem:[#allocation8 + $0x12d0] sm:$0xff]
    %v1117 = vld [vmem:[#allocation8 + $0x12d8] sm:$0xff]
    %v1118 = vld [vmem:[#allocation8 + $0x12e0] sm:$0xff]
    %v1119 = vld [vmem:[#allocation8 + $0x12e8] sm:$0xff]
    %v1120 = vld [vmem:[#allocation8 + $0x12f0] sm:$0xff]
    %v1121 = vld [vmem:[#allocation8 + $0x12f8] sm:$0xff]
    %v1122 = vld [vmem:[#allocation8 + $0x1300] sm:$0xff]
    %v1123 = vld [vmem:[#allocation8 + $0x1308] sm:$0xff]
    %v1124 = vld [vmem:[#allocation8 + $0x1310] sm:$0xff]
    %v1125 = vld [vmem:[#allocation8 + $0x1318] sm:$0xff]
    %v1126 = vld [vmem:[#allocation8 + $0x1320] sm:$0xff]
    %v1127 = vld [vmem:[#allocation8 + $0x1328] sm:$0xff]
    %v1128 = vld [vmem:[#allocation8 + $0x1330] sm:$0xff]
    %v1129 = vld [vmem:[#allocation8 + $0x1338] sm:$0xff]
    %v1130 = vld [vmem:[#allocation8 + $0x1340] sm:$0xff]
    %v1131 = vld [vmem:[#allocation8 + $0x1348] sm:$0xff]
    %v1132 = vld [vmem:[#allocation8 + $0x1350] sm:$0xff]
    %v1133 = vld [vmem:[#allocation8 + $0x1358] sm:$0xff]
    %v1134 = vld [vmem:[#allocation8 + $0x1360] sm:$0xff]
    %v1135 = vld [vmem:[#allocation8 + $0x1368] sm:$0xff]
    %v1136 = vld [vmem:[#allocation8 + $0x1370] sm:$0xff]
    %v1137 = vld [vmem:[#allocation8 + $0x1378] sm:$0xff]
    %v1138 = vld [vmem:[#allocation8 + $0x1380] sm:$0xff]
    %v1139 = vld [vmem:[#allocation8 + $0x1388] sm:$0xff]
    %v1140 = vld [vmem:[#allocation8 + $0x1390] sm:$0xff]
    %v1141 = vld [vmem:[#allocation8 + $0x1398] sm:$0xff]
    %v1142 = vld [vmem:[#allocation8 + $0x13a0] sm:$0xff]
    %v1143 = vld [vmem:[#allocation8 + $0x13a8] sm:$0xff]
    %v1144 = vld [vmem:[#allocation8 + $0x13b0] sm:$0xff]
    %v1145 = vld [vmem:[#allocation8 + $0x13b8] sm:$0xff]
    %v1146 = vld [vmem:[#allocation8 + $0x13c0] sm:$0xff]
    %v1147 = vld [vmem:[#allocation8 + $0x13c8] sm:$0xff]
    %v1148 = vld [vmem:[#allocation8 + $0x13d0] sm:$0xff]
    %v1149 = vld [vmem:[#allocation8 + $0x13d8] sm:$0xff]
    %v1150 = vld [vmem:[#allocation8 + $0x13e0] sm:$0xff]
    %v1151 = vld [vmem:[#allocation8 + $0x13e8] sm:$0xff]
    %v1152 = vld [vmem:[#allocation8 + $0x13f0] sm:$0xff]
    %v1153 = vld [vmem:[#allocation8 + $0x13f8] sm:$0xff]
    %v1154 = vld [vmem:[#allocation8 + $0x1400] sm:$0xff]
    %v1155 = vld [vmem:[#allocation8 + $0x1408] sm:$0xff]
    %v1156 = vld [vmem:[#allocation8 + $0x1410] sm:$0xff]
    %v1157 = vld [vmem:[#allocation8 + $0x1418] sm:$0xff]
    %v1158 = vld [vmem:[#allocation8 + $0x1420] sm:$0xff]
    %v1159 = vld [vmem:[#allocation8 + $0x1428] sm:$0xff]
    %v1160 = vld [vmem:[#allocation8 + $0x1430] sm:$0xff]
    %v1161 = vld [vmem:[#allocation8 + $0x1438] sm:$0xff]
    %v1162 = vld [vmem:[#allocation8 + $0x1440] sm:$0xff]
    %v1163 = vld [vmem:[#allocation8 + $0x1448] sm:$0xff]
    %v1164 = vld [vmem:[#allocation8 + $0x1450] sm:$0xff]
    %v1165 = vld [vmem:[#allocation8 + $0x1458] sm:$0xff]
    %v1166 = vld [vmem:[#allocation8 + $0x1460] sm:$0xff]
    %v1167 = vld [vmem:[#allocation8 + $0x1468] sm:$0xff]
    %v1168 = vld [vmem:[#allocation8 + $0x1470] sm:$0xff]
    %v1169 = vld [vmem:[#allocation8 + $0x1478] sm:$0xff]
    %v1170 = vld [vmem:[#allocation8 + $0x1480] sm:$0xff]
    %v1171 = vld [vmem:[#allocation8 + $0x1488] sm:$0xff]
    %v1172 = vld [vmem:[#allocation8 + $0x1490] sm:$0xff]
    %v1173 = vld [vmem:[#allocation8 + $0x1498] sm:$0xff]
    %v1174 = vld [vmem:[#allocation8 + $0x14a0] sm:$0xff]
    %v1175 = vld [vmem:[#allocation8 + $0x14a8] sm:$0xff]
    %v1176 = vld [vmem:[#allocation8 + $0x14b0] sm:$0xff]
    %v1177 = vld [vmem:[#allocation8 + $0x14b8] sm:$0xff]
    %v1178 = vld [vmem:[#allocation8 + $0x14c0] sm:$0xff]
    %v1179 = vld [vmem:[#allocation8 + $0x14c8] sm:$0xff]
    %v1180 = vld [vmem:[#allocation8 + $0x14d0] sm:$0xff]
    %v1181 = vld [vmem:[#allocation8 + $0x14d8] sm:$0xff]
    %v1182 = vld [vmem:[#allocation8 + $0x14e0] sm:$0xff]
    %v1183 = vld [vmem:[#allocation8 + $0x14e8] sm:$0xff]
    %v1184 = vld [vmem:[#allocation8 + $0x14f0] sm:$0xff]
    %v1185 = vld [vmem:[#allocation8 + $0x14f8] sm:$0xff]
    %v1186 = vld [vmem:[#allocation8 + $0x1500] sm:$0xff]
    %v1187 = vld [vmem:[#allocation8 + $0x1508] sm:$0xff]
    %v1188 = vld [vmem:[#allocation8 + $0x1510] sm:$0xff]
    %v1189 = vld [vmem:[#allocation8 + $0x1518] sm:$0xff]
    %v1190 = vld [vmem:[#allocation8 + $0x1520] sm:$0xff]
    %v1191 = vld [vmem:[#allocation8 + $0x1528] sm:$0xff]
    %v1192 = vld [vmem:[#allocation8 + $0x1530] sm:$0xff]
    %v1193 = vld [vmem:[#allocation8 + $0x1538] sm:$0xff]
    %v1194 = vld [vmem:[#allocation8 + $0x1540] sm:$0xff]
    %v1195 = vld [vmem:[#allocation8 + $0x1548] sm:$0xff]
    %v1196 = vld [vmem:[#allocation8 + $0x1550] sm:$0xff]
    %v1197 = vld [vmem:[#allocation8 + $0x1558] sm:$0xff]
    %v1198 = vld [vmem:[#allocation8 + $0x1560] sm:$0xff]
    %v1199 = vld [vmem:[#allocation8 + $0x1568] sm:$0xff]
    %v1200 = vld [vmem:[#allocation8 + $0x1570] sm:$0xff]
    %v1201 = vld [vmem:[#allocation8 + $0x1578] sm:$0xff]
    %v1202 = vld [vmem:[#allocation8 + $0x1580] sm:$0xff]
    %v1203 = vld [vmem:[#allocation8 + $0x1588] sm:$0xff]
    %v1204 = vld [vmem:[#allocation8 + $0x1590] sm:$0xff]
    %v1205 = vld [vmem:[#allocation8 + $0x1598] sm:$0xff]
    %v1206 = vld [vmem:[#allocation8 + $0x15a0] sm:$0xff]
    %v1207 = vld [vmem:[#allocation8 + $0x15a8] sm:$0xff]
    %v1208 = vld [vmem:[#allocation8 + $0x15b0] sm:$0xff]
    %v1209 = vld [vmem:[#allocation8 + $0x15b8] sm:$0xff]
    %v1210 = vld [vmem:[#allocation8 + $0x15c0] sm:$0xff]
    %v1211 = vld [vmem:[#allocation8 + $0x15c8] sm:$0xff]
    %v1212 = vld [vmem:[#allocation8 + $0x15d0] sm:$0xff]
    %v1213 = vld [vmem:[#allocation8 + $0x15d8] sm:$0xff]
    %v1214 = vld [vmem:[#allocation8 + $0x15e0] sm:$0xff]
    %v1215 = vld [vmem:[#allocation8 + $0x15e8] sm:$0xff]
    %v1216 = vld [vmem:[#allocation8 + $0x15f0] sm:$0xff]
    %v1217 = vld [vmem:[#allocation8 + $0x15f8] sm:$0xff]
    %v1218 = vld [vmem:[#allocation8 + $0x1600] sm:$0xff]
    %v1219 = vld [vmem:[#allocation8 + $0x1608] sm:$0xff]
    %v1220 = vld [vmem:[#allocation8 + $0x1610] sm:$0xff]
    %v1221 = vld [vmem:[#allocation8 + $0x1618] sm:$0xff]
    %v1222 = vld [vmem:[#allocation8 + $0x1620] sm:$0xff]
    %v1223 = vld [vmem:[#allocation8 + $0x1628] sm:$0xff]
    %v1224 = vld [vmem:[#allocation8 + $0x1630] sm:$0xff]
    %v1225 = vld [vmem:[#allocation8 + $0x1638] sm:$0xff]
    %v1226 = vld [vmem:[#allocation8 + $0x1640] sm:$0xff]
    %v1227 = vld [vmem:[#allocation8 + $0x1648] sm:$0xff]
    %v1228 = vld [vmem:[#allocation8 + $0x1650] sm:$0xff]
    %v1229 = vld [vmem:[#allocation8 + $0x1658] sm:$0xff]
    %v1230 = vld [vmem:[#allocation8 + $0x1660] sm:$0xff]
    %v1231 = vld [vmem:[#allocation8 + $0x1668] sm:$0xff]
    %v1232 = vld [vmem:[#allocation8 + $0x1670] sm:$0xff]
    %v1233 = vld [vmem:[#allocation8 + $0x1678] sm:$0xff]
    %v1234 = vld [vmem:[#allocation8 + $0x1680] sm:$0xff]
    %v1235 = vld [vmem:[#allocation8 + $0x1688] sm:$0xff]
    %v1236 = vld [vmem:[#allocation8 + $0x1690] sm:$0xff]
    %v1237 = vld [vmem:[#allocation8 + $0x1698] sm:$0xff]
    %v1238 = vld [vmem:[#allocation8 + $0x16a0] sm:$0xff]
    %v1239 = vld [vmem:[#allocation8 + $0x16a8] sm:$0xff]
    %v1240 = vld [vmem:[#allocation8 + $0x16b0] sm:$0xff]
    %v1241 = vld [vmem:[#allocation8 + $0x16b8] sm:$0xff]
    %v1242 = vld [vmem:[#allocation8 + $0x16c0] sm:$0xff]
    %v1243 = vld [vmem:[#allocation8 + $0x16c8] sm:$0xff]
    %v1244 = vld [vmem:[#allocation8 + $0x16d0] sm:$0xff]
    %v1245 = vld [vmem:[#allocation8 + $0x16d8] sm:$0xff]
    %v1246 = vld [vmem:[#allocation8 + $0x16e0] sm:$0xff]
    %v1247 = vld [vmem:[#allocation8 + $0x16e8] sm:$0xff]
    %v1248 = vld [vmem:[#allocation8 + $0x16f0] sm:$0xff]
    %v1249 = vld [vmem:[#allocation8 + $0x16f8] sm:$0xff]
    %v1250 = vld [vmem:[#allocation8 + $0x1700] sm:$0xff]
    %v1251 = vld [vmem:[#allocation8 + $0x1708] sm:$0xff]
    %v1252 = vld [vmem:[#allocation8 + $0x1710] sm:$0xff]
    %v1253 = vld [vmem:[#allocation8 + $0x1718] sm:$0xff]
    %v1254 = vld [vmem:[#allocation8 + $0x1720] sm:$0xff]
    %v1255 = vld [vmem:[#allocation8 + $0x1728] sm:$0xff]
    %v1256 = vld [vmem:[#allocation8 + $0x1730] sm:$0xff]
    %v1257 = vld [vmem:[#allocation8 + $0x1738] sm:$0xff]
    %v1258 = vld [vmem:[#allocation8 + $0x1740] sm:$0xff]
    %v1259 = vld [vmem:[#allocation8 + $0x1748] sm:$0xff]
    %v1260 = vld [vmem:[#allocation8 + $0x1750] sm:$0xff]
    %v1261 = vld [vmem:[#allocation8 + $0x1758] sm:$0xff]
    %v1262 = vld [vmem:[#allocation8 + $0x1760] sm:$0xff]
    %v1263 = vld [vmem:[#allocation8 + $0x1768] sm:$0xff]
    %v1264 = vld [vmem:[#allocation8 + $0x1770] sm:$0xff]
    %v1265 = vld [vmem:[#allocation8 + $0x1778] sm:$0xff]
    %v1266 = vld [vmem:[#allocation8 + $0x1780] sm:$0xff]
    %v1267 = vld [vmem:[#allocation8 + $0x1788] sm:$0xff]
    %v1268 = vld [vmem:[#allocation8 + $0x1790] sm:$0xff]
    %v1269 = vld [vmem:[#allocation8 + $0x1798] sm:$0xff]
    %v1270 = vld [vmem:[#allocation8 + $0x17a0] sm:$0xff]
    %v1271 = vld [vmem:[#allocation8 + $0x17a8] sm:$0xff]
    %v1272 = vld [vmem:[#allocation8 + $0x17b0] sm:$0xff]
    %v1273 = vld [vmem:[#allocation8 + $0x17b8] sm:$0xff]
    %v1274 = vld [vmem:[#allocation8 + $0x17c0] sm:$0xff]
    %v1275 = vld [vmem:[#allocation8 + $0x17c8] sm:$0xff]
    %v1276 = vld [vmem:[#allocation8 + $0x17d0] sm:$0xff]
    %v1277 = vld [vmem:[#allocation8 + $0x17d8] sm:$0xff]
    %v1278 = vld [vmem:[#allocation8 + $0x17e0] sm:$0xff]
    %v1279 = vld [vmem:[#allocation8 + $0x17e8] sm:$0xff]
    %v1280 = vld [vmem:[#allocation8 + $0x17f0] sm:$0xff]
    %v1281 = vld [vmem:[#allocation8 + $0x17f8] sm:$0xff]
    %v1282 = vld [vmem:[#allocation8 + $0x1800] sm:$0xff]
    %v1283 = vld [vmem:[#allocation8 + $0x1808] sm:$0xff]
    %v1284 = vld [vmem:[#allocation8 + $0x1810] sm:$0xff]
    %v1285 = vld [vmem:[#allocation8 + $0x1818] sm:$0xff]
    %v1286 = vld [vmem:[#allocation8 + $0x1820] sm:$0xff]
    %v1287 = vld [vmem:[#allocation8 + $0x1828] sm:$0xff]
    %v1288 = vld [vmem:[#allocation8 + $0x1830] sm:$0xff]
    %v1289 = vld [vmem:[#allocation8 + $0x1838] sm:$0xff]
    %v1290 = vld [vmem:[#allocation8 + $0x1840] sm:$0xff]
    %v1291 = vld [vmem:[#allocation8 + $0x1848] sm:$0xff]
    %v1292 = vld [vmem:[#allocation8 + $0x1850] sm:$0xff]
    %v1293 = vld [vmem:[#allocation8 + $0x1858] sm:$0xff]
    %v1294 = vld [vmem:[#allocation8 + $0x1860] sm:$0xff]
    %v1295 = vld [vmem:[#allocation8 + $0x1868] sm:$0xff]
    %v1296 = vld [vmem:[#allocation8 + $0x1870] sm:$0xff]
    %v1297 = vld [vmem:[#allocation8 + $0x1878] sm:$0xff]
    %v1298 = vld [vmem:[#allocation8 + $0x1880] sm:$0xff]
    %v1299 = vld [vmem:[#allocation8 + $0x1888] sm:$0xff]
    %v1300 = vld [vmem:[#allocation8 + $0x1890] sm:$0xff]
    %v1301 = vld [vmem:[#allocation8 + $0x1898] sm:$0xff]
    %v1302 = vld [vmem:[#allocation8 + $0x18a0] sm:$0xff]
    %v1303 = vld [vmem:[#allocation8 + $0x18a8] sm:$0xff]
    %v1304 = vld [vmem:[#allocation8 + $0x18b0] sm:$0xff]
    %v1305 = vld [vmem:[#allocation8 + $0x18b8] sm:$0xff]
    %v1306 = vld [vmem:[#allocation8 + $0x18c0] sm:$0xff]
    %v1307 = vld [vmem:[#allocation8 + $0x18c8] sm:$0xff]
    %v1308 = vld [vmem:[#allocation8 + $0x18d0] sm:$0xff]
    %v1309 = vld [vmem:[#allocation8 + $0x18d8] sm:$0xff]
    %v1310 = vld [vmem:[#allocation8 + $0x18e0] sm:$0xff]
    %v1311 = vld [vmem:[#allocation8 + $0x18e8] sm:$0xff]
    %v1312 = vld [vmem:[#allocation8 + $0x18f0] sm:$0xff]
    %v1313 = vld [vmem:[#allocation8 + $0x18f8] sm:$0xff]
    %v1314 = vld [vmem:[#allocation8 + $0x1900] sm:$0xff]
    %v1315 = vld [vmem:[#allocation8 + $0x1908] sm:$0xff]
    %v1316 = vld [vmem:[#allocation8 + $0x1910] sm:$0xff]
    %v1317 = vld [vmem:[#allocation8 + $0x1918] sm:$0xff]
    %v1318 = vld [vmem:[#allocation8 + $0x1920] sm:$0xff]
    %v1319 = vld [vmem:[#allocation8 + $0x1928] sm:$0xff]
    %v1320 = vld [vmem:[#allocation8 + $0x1930] sm:$0xff]
    %v1321 = vld [vmem:[#allocation8 + $0x1938] sm:$0xff]
    %v1322 = vld [vmem:[#allocation8 + $0x1940] sm:$0xff]
    %v1323 = vld [vmem:[#allocation8 + $0x1948] sm:$0xff]
    %v1324 = vld [vmem:[#allocation8 + $0x1950] sm:$0xff]
    %v1325 = vld [vmem:[#allocation8 + $0x1958] sm:$0xff]
    %v1326 = vld [vmem:[#allocation8 + $0x1960] sm:$0xff]
    %v1327 = vld [vmem:[#allocation8 + $0x1968] sm:$0xff]
    %v1328 = vld [vmem:[#allocation8 + $0x1970] sm:$0xff]
    %v1329 = vld [vmem:[#allocation8 + $0x1978] sm:$0xff]
    %v1330 = vld [vmem:[#allocation8 + $0x1980] sm:$0xff]
    %v1331 = vld [vmem:[#allocation8 + $0x1988] sm:$0xff]
    %v1332 = vld [vmem:[#allocation8 + $0x1990] sm:$0xff]
    %v1333 = vld [vmem:[#allocation8 + $0x1998] sm:$0xff]
    %v1334 = vld [vmem:[#allocation8 + $0x19a0] sm:$0xff]
    %v1335 = vld [vmem:[#allocation8 + $0x19a8] sm:$0xff]
    %v1336 = vld [vmem:[#allocation8 + $0x19b0] sm:$0xff]
    %v1337 = vld [vmem:[#allocation8 + $0x19b8] sm:$0xff]
    %v1338 = vld [vmem:[#allocation8 + $0x19c0] sm:$0xff]
    %v1339 = vld [vmem:[#allocation8 + $0x19c8] sm:$0xff]
    %v1340 = vld [vmem:[#allocation8 + $0x19d0] sm:$0xff]
    %v1341 = vld [vmem:[#allocation8 + $0x19d8] sm:$0xff]
    %v1342 = vld [vmem:[#allocation8 + $0x19e0] sm:$0xff]
    %v1343 = vld [vmem:[#allocation8 + $0x19e8] sm:$0xff]
    %v1344 = vld [vmem:[#allocation8 + $0x19f0] sm:$0xff]
    %v1345 = vld [vmem:[#allocation8 + $0x19f8] sm:$0xff]
    %v1346 = vld [vmem:[#allocation8 + $0x1a00] sm:$0xff]
    %v1347 = vld [vmem:[#allocation8 + $0x1a08] sm:$0xff]
    %v1348 = vld [vmem:[#allocation8 + $0x1a10] sm:$0xff]
    %v1349 = vld [vmem:[#allocation8 + $0x1a18] sm:$0xff]
    %v1350 = vld [vmem:[#allocation8 + $0x1a20] sm:$0xff]
    %v1351 = vld [vmem:[#allocation8 + $0x1a28] sm:$0xff]
    %v1352 = vld [vmem:[#allocation8 + $0x1a30] sm:$0xff]
    %v1353 = vld [vmem:[#allocation8 + $0x1a38] sm:$0xff]
    %v1354 = vld [vmem:[#allocation8 + $0x1a40] sm:$0xff]
    %v1355 = vld [vmem:[#allocation8 + $0x1a48] sm:$0xff]
    %v1356 = vld [vmem:[#allocation8 + $0x1a50] sm:$0xff]
    %v1357 = vld [vmem:[#allocation8 + $0x1a58] sm:$0xff]
    %v1358 = vld [vmem:[#allocation8 + $0x1a60] sm:$0xff]
    %v1359 = vld [vmem:[#allocation8 + $0x1a68] sm:$0xff]
    %v1360 = vld [vmem:[#allocation8 + $0x1a70] sm:$0xff]
    %v1361 = vld [vmem:[#allocation8 + $0x1a78] sm:$0xff]
    %v1362 = vld [vmem:[#allocation8 + $0x1a80] sm:$0xff]
    %v1363 = vld [vmem:[#allocation8 + $0x1a88] sm:$0xff]
    %v1364 = vld [vmem:[#allocation8 + $0x1a90] sm:$0xff]
    %v1365 = vld [vmem:[#allocation8 + $0x1a98] sm:$0xff]
    %v1366 = vld [vmem:[#allocation8 + $0x1aa0] sm:$0xff]
    %v1367 = vld [vmem:[#allocation8 + $0x1aa8] sm:$0xff]
    %v1368 = vld [vmem:[#allocation8 + $0x1ab0] sm:$0xff]
    %v1369 = vld [vmem:[#allocation8 + $0x1ab8] sm:$0xff]
    %v1370 = vld [vmem:[#allocation8 + $0x1ac0] sm:$0xff]
    %v1371 = vld [vmem:[#allocation8 + $0x1ac8] sm:$0xff]
    %v1372 = vld [vmem:[#allocation8 + $0x1ad0] sm:$0xff]
    %v1373 = vld [vmem:[#allocation8 + $0x1ad8] sm:$0xff]
    %v1374 = vld [vmem:[#allocation8 + $0x1ae0] sm:$0xff]
    %v1375 = vld [vmem:[#allocation8 + $0x1ae8] sm:$0xff]
    %v1376 = vld [vmem:[#allocation8 + $0x1af0] sm:$0xff]
    %v1377 = vld [vmem:[#allocation8 + $0x1af8] sm:$0xff]
    %v1378 = vld [vmem:[#allocation8 + $0x1b00] sm:$0xff]
    %v1379 = vld [vmem:[#allocation8 + $0x1b08] sm:$0xff]
    %v1380 = vld [vmem:[#allocation8 + $0x1b10] sm:$0xff]
    %v1381 = vld [vmem:[#allocation8 + $0x1b18] sm:$0xff]
    %v1382 = vld [vmem:[#allocation8 + $0x1b20] sm:$0xff]
    %v1383 = vld [vmem:[#allocation8 + $0x1b28] sm:$0xff]
    %v1384 = vld [vmem:[#allocation8 + $0x1b30] sm:$0xff]
    %v1385 = vld [vmem:[#allocation8 + $0x1b38] sm:$0xff]
    %v1386 = vld [vmem:[#allocation8 + $0x1b40] sm:$0xff]
    %v1387 = vld [vmem:[#allocation8 + $0x1b48] sm:$0xff]
    %v1388 = vld [vmem:[#allocation8 + $0x1b50] sm:$0xff]
    %v1389 = vld [vmem:[#allocation8 + $0x1b58] sm:$0xff]
    %v1390 = vld [vmem:[#allocation8 + $0x1b60] sm:$0xff]
    %v1391 = vld [vmem:[#allocation8 + $0x1b68] sm:$0xff]
    %v1392 = vld [vmem:[#allocation8 + $0x1b70] sm:$0xff]
    %v1393 = vld [vmem:[#allocation8 + $0x1b78] sm:$0xff]
    %v1394 = vld [vmem:[#allocation8 + $0x1b80] sm:$0xff]
    %v1395 = vld [vmem:[#allocation8 + $0x1b88] sm:$0xff]
    %v1396 = vld [vmem:[#allocation8 + $0x1b90] sm:$0xff]
    %v1397 = vld [vmem:[#allocation8 + $0x1b98] sm:$0xff]
    %v1398 = vld [vmem:[#allocation8 + $0x1ba0] sm:$0xff]
    %v1399 = vld [vmem:[#allocation8 + $0x1ba8] sm:$0xff]
    %v1400 = vld [vmem:[#allocation8 + $0x1bb0] sm:$0xff]
    %v1401 = vld [vmem:[#allocation8 + $0x1bb8] sm:$0xff]
    %v1402 = vld [vmem:[#allocation8 + $0x1bc0] sm:$0xff]
    %v1403 = vld [vmem:[#allocation8 + $0x1bc8] sm:$0xff]
    %v1404 = vld [vmem:[#allocation8 + $0x1bd0] sm:$0xff]
    %v1405 = vld [vmem:[#allocation8 + $0x1bd8] sm:$0xff]
    %v1406 = vld [vmem:[#allocation8 + $0x1be0] sm:$0xff]
    %v1407 = vld [vmem:[#allocation8 + $0x1be8] sm:$0xff]
    %v1408 = vld [vmem:[#allocation8 + $0x1bf0] sm:$0xff]
    %v1409 = vld [vmem:[#allocation8 + $0x1bf8] sm:$0xff]
    %v1410 = vld [vmem:[#allocation8 + $0x1c00] sm:$0xff]
    %v1411 = vld [vmem:[#allocation8 + $0x1c08] sm:$0xff]
    %v1412 = vld [vmem:[#allocation8 + $0x1c10] sm:$0xff]
    %v1413 = vld [vmem:[#allocation8 + $0x1c18] sm:$0xff]
    %v1414 = vld [vmem:[#allocation8 + $0x1c20] sm:$0xff]
    %v1415 = vld [vmem:[#allocation8 + $0x1c28] sm:$0xff]
    %v1416 = vld [vmem:[#allocation8 + $0x1c30] sm:$0xff]
    %v1417 = vld [vmem:[#allocation8 + $0x1c38] sm:$0xff]
    %v1418 = vld [vmem:[#allocation8 + $0x1c40] sm:$0xff]
    %v1419 = vld [vmem:[#allocation8 + $0x1c48] sm:$0xff]
    %v1420 = vld [vmem:[#allocation8 + $0x1c50] sm:$0xff]
    %v1421 = vld [vmem:[#allocation8 + $0x1c58] sm:$0xff]
    %v1422 = vld [vmem:[#allocation8 + $0x1c60] sm:$0xff]
    %v1423 = vld [vmem:[#allocation8 + $0x1c68] sm:$0xff]
    %v1424 = vld [vmem:[#allocation8 + $0x1c70] sm:$0xff]
    %v1425 = vld [vmem:[#allocation8 + $0x1c78] sm:$0xff]
    %v1426 = vld [vmem:[#allocation8 + $0x1c80] sm:$0xff]
    %v1427 = vld [vmem:[#allocation8 + $0x1c88] sm:$0xff]
    %v1428 = vld [vmem:[#allocation8 + $0x1c90] sm:$0xff]
    %v1429 = vld [vmem:[#allocation8 + $0x1c98] sm:$0xff]
    %v1430 = vld [vmem:[#allocation8 + $0x1ca0] sm:$0xff]
    %v1431 = vld [vmem:[#allocation8 + $0x1ca8] sm:$0xff]
    %v1432 = vld [vmem:[#allocation8 + $0x1cb0] sm:$0xff]
    %v1433 = vld [vmem:[#allocation8 + $0x1cb8] sm:$0xff]
    %v1434 = vld [vmem:[#allocation8 + $0x1cc0] sm:$0xff]
    %v1435 = vld [vmem:[#allocation8 + $0x1cc8] sm:$0xff]
    %v1436 = vld [vmem:[#allocation8 + $0x1cd0] sm:$0xff]
    %v1437 = vld [vmem:[#allocation8 + $0x1cd8] sm:$0xff]
    %v1438 = vld [vmem:[#allocation8 + $0x1ce0] sm:$0xff]
    %v1439 = vld [vmem:[#allocation8 + $0x1ce8] sm:$0xff]
    %v1440 = vld [vmem:[#allocation8 + $0x1cf0] sm:$0xff]
    %v1441 = vld [vmem:[#allocation8 + $0x1cf8] sm:$0xff]
    %v1442 = vld [vmem:[#allocation8 + $0x1d00] sm:$0xff]
    %v1443 = vld [vmem:[#allocation8 + $0x1d08] sm:$0xff]
    %v1444 = vld [vmem:[#allocation8 + $0x1d10] sm:$0xff]
    %v1445 = vld [vmem:[#allocation8 + $0x1d18] sm:$0xff]
    %v1446 = vld [vmem:[#allocation8 + $0x1d20] sm:$0xff]
    %v1447 = vld [vmem:[#allocation8 + $0x1d28] sm:$0xff]
    %v1448 = vld [vmem:[#allocation8 + $0x1d30] sm:$0xff]
    %v1449 = vld [vmem:[#allocation8 + $0x1d38] sm:$0xff]
    %v1450 = vld [vmem:[#allocation8 + $0x1d40] sm:$0xff]
    %v1451 = vld [vmem:[#allocation8 + $0x1d48] sm:$0xff]
    %v1452 = vld [vmem:[#allocation8 + $0x1d50] sm:$0xff]
    %v1453 = vld [vmem:[#allocation8 + $0x1d58] sm:$0xff]
    %v1454 = vld [vmem:[#allocation8 + $0x1d60] sm:$0xff]
    %v1455 = vld [vmem:[#allocation8 + $0x1d68] sm:$0xff]
    %v1456 = vld [vmem:[#allocation8 + $0x1d70] sm:$0xff]
    %v1457 = vld [vmem:[#allocation8 + $0x1d78] sm:$0xff]
    %v1458 = vld [vmem:[#allocation8 + $0x1d80] sm:$0xff]
    %v1459 = vld [vmem:[#allocation8 + $0x1d88] sm:$0xff]
    %v1460 = vld [vmem:[#allocation8 + $0x1d90] sm:$0xff]
    %v1461 = vld [vmem:[#allocation8 + $0x1d98] sm:$0xff]
    %v1462 = vld [vmem:[#allocation8 + $0x1da0] sm:$0xff]
    %v1463 = vld [vmem:[#allocation8 + $0x1da8] sm:$0xff]
    %v1464 = vld [vmem:[#allocation8 + $0x1db0] sm:$0xff]
    %v1465 = vld [vmem:[#allocation8 + $0x1db8] sm:$0xff]
    %v1466 = vld [vmem:[#allocation8 + $0x1dc0] sm:$0xff]
    %v1467 = vld [vmem:[#allocation8 + $0x1dc8] sm:$0xff]
    %v1468 = vld [vmem:[#allocation8 + $0x1dd0] sm:$0xff]
    %v1469 = vld [vmem:[#allocation8 + $0x1dd8] sm:$0xff]
    %v1470 = vld [vmem:[#allocation8 + $0x1de0] sm:$0xff]
    %v1471 = vld [vmem:[#allocation8 + $0x1de8] sm:$0xff]
    %v1472 = vld [vmem:[#allocation8 + $0x1df0] sm:$0xff]
    %v1473 = vld [vmem:[#allocation8 + $0x1df8] sm:$0xff]
    %v1474 = vld [vmem:[#allocation8 + $0x1e00] sm:$0xff]
    %v1475 = vld [vmem:[#allocation8 + $0x1e08] sm:$0xff]
    %v1476 = vld [vmem:[#allocation8 + $0x1e10] sm:$0xff]
    %v1477 = vld [vmem:[#allocation8 + $0x1e18] sm:$0xff]
    %v1478 = vld [vmem:[#allocation8 + $0x1e20] sm:$0xff]
    %v1479 = vld [vmem:[#allocation8 + $0x1e28] sm:$0xff]
    %v1480 = vld [vmem:[#allocation8 + $0x1e30] sm:$0xff]
    %v1481 = vld [vmem:[#allocation8 + $0x1e38] sm:$0xff]
    %v1482 = vld [vmem:[#allocation8 + $0x1e40] sm:$0xff]
    %v1483 = vld [vmem:[#allocation8 + $0x1e48] sm:$0xff]
    %v1484 = vld [vmem:[#allocation8 + $0x1e50] sm:$0xff]
    %v1485 = vld [vmem:[#allocation8 + $0x1e58] sm:$0xff]
    %v1486 = vld [vmem:[#allocation8 + $0x1e60] sm:$0xff]
    %v1487 = vld [vmem:[#allocation8 + $0x1e68] sm:$0xff]
    %v1488 = vld [vmem:[#allocation8 + $0x1e70] sm:$0xff]
    %v1489 = vld [vmem:[#allocation8 + $0x1e78] sm:$0xff]
    %v1490 = vld [vmem:[#allocation8 + $0x1e80] sm:$0xff]
    %v1491 = vld [vmem:[#allocation8 + $0x1e88] sm:$0xff]
    %v1492 = vld [vmem:[#allocation8 + $0x1e90] sm:$0xff]
    %v1493 = vld [vmem:[#allocation8 + $0x1e98] sm:$0xff]
    %v1494 = vld [vmem:[#allocation8 + $0x1ea0] sm:$0xff]
    %v1495 = vld [vmem:[#allocation8 + $0x1ea8] sm:$0xff]
    %v1496 = vld [vmem:[#allocation8 + $0x1eb0] sm:$0xff]
    %v1497 = vld [vmem:[#allocation8 + $0x1eb8] sm:$0xff]
    %v1498 = vld [vmem:[#allocation8 + $0x1ec0] sm:$0xff]
    %v1499 = vld [vmem:[#allocation8 + $0x1ec8] sm:$0xff]
    %v1500 = vld [vmem:[#allocation8 + $0x1ed0] sm:$0xff]
    %v1501 = vld [vmem:[#allocation8 + $0x1ed8] sm:$0xff]
    %v1502 = vld [vmem:[#allocation8 + $0x1ee0] sm:$0xff]
    %v1503 = vld [vmem:[#allocation8 + $0x1ee8] sm:$0xff]
    %v1504 = vld [vmem:[#allocation8 + $0x1ef0] sm:$0xff]
    %v1505 = vld [vmem:[#allocation8 + $0x1ef8] sm:$0xff]
    %v1506 = vld [vmem:[#allocation8 + $0x1f00] sm:$0xff]
    %v1507 = vld [vmem:[#allocation8 + $0x1f08] sm:$0xff]
    %v1508 = vld [vmem:[#allocation8 + $0x1f10] sm:$0xff]
    %v1509 = vld [vmem:[#allocation8 + $0x1f18] sm:$0xff]
    %v1510 = vld [vmem:[#allocation8 + $0x1f20] sm:$0xff]
    %v1511 = vld [vmem:[#allocation8 + $0x1f28] sm:$0xff]
    %v1512 = vld [vmem:[#allocation8 + $0x1f30] sm:$0xff]
    %v1513 = vld [vmem:[#allocation8 + $0x1f38] sm:$0xff]
    %v1514 = vld [vmem:[#allocation8 + $0x1f40] sm:$0xff]
    %v1515 = vld [vmem:[#allocation8 + $0x1f48] sm:$0xff]
    %v1516 = vld [vmem:[#allocation8 + $0x1f50] sm:$0xff]
    %v1517 = vld [vmem:[#allocation8 + $0x1f58] sm:$0xff]
    %v1518 = vld [vmem:[#allocation8 + $0x1f60] sm:$0xff]
    %v1519 = vld [vmem:[#allocation8 + $0x1f68] sm:$0xff]
    %v1520 = vld [vmem:[#allocation8 + $0x1f70] sm:$0xff]
    %v1521 = vld [vmem:[#allocation8 + $0x1f78] sm:$0xff]
    %v1522 = vld [vmem:[#allocation8 + $0x1f80] sm:$0xff]
    %v1523 = vld [vmem:[#allocation8 + $0x1f88] sm:$0xff]
    %v1524 = vld [vmem:[#allocation8 + $0x1f90] sm:$0xff]
    %v1525 = vld [vmem:[#allocation8 + $0x1f98] sm:$0xff]
    %v1526 = vld [vmem:[#allocation8 + $0x1fa0] sm:$0xff]
    %v1527 = vld [vmem:[#allocation8 + $0x1fa8] sm:$0xff]
    %v1528 = vld [vmem:[#allocation8 + $0x1fb0] sm:$0xff]
    %v1529 = vld [vmem:[#allocation8 + $0x1fb8] sm:$0xff]
    %v1530 = vld [vmem:[#allocation8 + $0x1fc0] sm:$0xff]
    %v1531 = vld [vmem:[#allocation8 + $0x1fc8] sm:$0xff]
    %v1532 = vld [vmem:[#allocation8 + $0x1fd0] sm:$0xff]
    %v1533 = vld [vmem:[#allocation8 + $0x1fd8] sm:$0xff]
    %v1534 = vld [vmem:[#allocation8 + $0x1fe0] sm:$0xff]
    %v1535 = vld [vmem:[#allocation8 + $0x1fe8] sm:$0xff]
    %v1536 = vld [vmem:[#allocation8 + $0x1ff0] sm:$0xff]
    %v1537 = vld [vmem:[#allocation8 + $0x1ff8] sm:$0xff]
    %v1538 = vld [vmem:[#allocation10] sm:$0xff]
    %v1540 = vlaneseq
    %v1541 = vshrl.u32 %v1540, 7
    %v1542 = vsub.s32 0, %v1541
    %v1543 = vrot.slane %v1538, %v1542
    %v1544 = vlaneseq
    %v1545 = vshrl.u32 %v1544, 7
    %v1546 = vsub.s32 1, %v1545
    %v1547 = vrot.slane %v1538, %v1546
    %v1548 = vlaneseq
    %v1549 = vshrl.u32 %v1548, 7
    %v1550 = vsub.s32 2, %v1549
    %v1551 = vrot.slane %v1538, %v1550
    %v1552 = vlaneseq
    %v1553 = vshrl.u32 %v1552, 7
    %v1554 = vsub.s32 3, %v1553
    %v1555 = vrot.slane %v1538, %v1554
    %v1556 = vlaneseq
    %v1557 = vshrl.u32 %v1556, 7
    %v1558 = vsub.s32 4, %v1557
    %v1559 = vrot.slane %v1538, %v1558
    %v1560 = vlaneseq
    %v1561 = vshrl.u32 %v1560, 7
    %v1562 = vsub.s32 5, %v1561
    %v1563 = vrot.slane %v1538, %v1562
    %v1564 = vlaneseq
    %v1565 = vshrl.u32 %v1564, 7
    %v1566 = vsub.s32 6, %v1565
    %v1567 = vrot.slane %v1538, %v1566
    %v1568 = vlaneseq
    %v1569 = vshrl.u32 %v1568, 7
    %v1570 = vsub.s32 7, %v1569
    %v1571 = vrot.slane %v1538, %v1570
    %v2604 = vunpack.c.l.b16 %v514
    %v2605 = vunpack.c.h.b16 %v514
    %v2606 = vunpack.c.l.b16 %v515
    %v2607 = vunpack.c.h.b16 %v515
    %v2608 = vunpack.c.l.b16 %v516
    %v2609 = vunpack.c.h.b16 %v516
    %v2610 = vunpack.c.l.b16 %v517
    %v2611 = vunpack.c.h.b16 %v517
    %v2612 = vunpack.c.l.b16 %v518
    %v2613 = vunpack.c.h.b16 %v518
    %v2614 = vunpack.c.l.b16 %v519
    %v2615 = vunpack.c.h.b16 %v519
    %v2616 = vunpack.c.l.b16 %v520
    %v2617 = vunpack.c.h.b16 %v520
    %v2618 = vunpack.c.l.b16 %v521
    %v2619 = vunpack.c.h.b16 %v521
    %v2620 = vunpack.c.l.b16 %v522
    %v2621 = vunpack.c.h.b16 %v522
    %v2622 = vunpack.c.l.b16 %v523
    %v2623 = vunpack.c.h.b16 %v523
    %v2624 = vunpack.c.l.b16 %v524
    %v2625 = vunpack.c.h.b16 %v524
    %v2626 = vunpack.c.l.b16 %v525
    %v2627 = vunpack.c.h.b16 %v525
    %v2628 = vunpack.c.l.b16 %v526
    %v2629 = vunpack.c.h.b16 %v526
    %v2630 = vunpack.c.l.b16 %v527
    %v2631 = vunpack.c.h.b16 %v527
    %v2632 = vunpack.c.l.b16 %v528
    %v2633 = vunpack.c.h.b16 %v528
    %v2634 = vunpack.c.l.b16 %v529
    %v2635 = vunpack.c.h.b16 %v529
    %v2636 = vunpack.c.l.b16 %v530
    %v2637 = vunpack.c.h.b16 %v530
    %v2638 = vunpack.c.l.b16 %v531
    %v2639 = vunpack.c.h.b16 %v531
    %v2640 = vunpack.c.l.b16 %v532
    %v2641 = vunpack.c.h.b16 %v532
    %v2642 = vunpack.c.l.b16 %v533
    %v2643 = vunpack.c.h.b16 %v533
    %v2644 = vunpack.c.l.b16 %v534
    %v2645 = vunpack.c.h.b16 %v534
    %v2646 = vunpack.c.l.b16 %v535
    %v2647 = vunpack.c.h.b16 %v535
    %v2648 = vunpack.c.l.b16 %v536
    %v2649 = vunpack.c.h.b16 %v536
    %v2650 = vunpack.c.l.b16 %v537
    %v2651 = vunpack.c.h.b16 %v537
    %v2652 = vunpack.c.l.b16 %v538
    %v2653 = vunpack.c.h.b16 %v538
    %v2654 = vunpack.c.l.b16 %v539
    %v2655 = vunpack.c.h.b16 %v539
    %v2656 = vunpack.c.l.b16 %v540
    %v2657 = vunpack.c.h.b16 %v540
    %v2658 = vunpack.c.l.b16 %v541
    %v2659 = vunpack.c.h.b16 %v541
    %v2660 = vunpack.c.l.b16 %v542
    %v2661 = vunpack.c.h.b16 %v542
    %v2662 = vunpack.c.l.b16 %v543
    %v2663 = vunpack.c.h.b16 %v543
    %v2664 = vunpack.c.l.b16 %v544
    %v2665 = vunpack.c.h.b16 %v544
    %v2666 = vunpack.c.l.b16 %v545
    %v2667 = vunpack.c.h.b16 %v545
    %v2668 = vunpack.c.l.b16 %v546
    %v2669 = vunpack.c.h.b16 %v546
    %v2670 = vunpack.c.l.b16 %v547
    %v2671 = vunpack.c.h.b16 %v547
    %v2672 = vunpack.c.l.b16 %v548
    %v2673 = vunpack.c.h.b16 %v548
    %v2674 = vunpack.c.l.b16 %v549
    %v2675 = vunpack.c.h.b16 %v549
    %v2676 = vunpack.c.l.b16 %v550
    %v2677 = vunpack.c.h.b16 %v550
    %v2678 = vunpack.c.l.b16 %v551
    %v2679 = vunpack.c.h.b16 %v551
    %v2680 = vunpack.c.l.b16 %v552
    %v2681 = vunpack.c.h.b16 %v552
    %v2682 = vunpack.c.l.b16 %v553
    %v2683 = vunpack.c.h.b16 %v553
    %v2684 = vunpack.c.l.b16 %v554
    %v2685 = vunpack.c.h.b16 %v554
    %v2686 = vunpack.c.l.b16 %v555
    %v2687 = vunpack.c.h.b16 %v555
    %v2688 = vunpack.c.l.b16 %v556
    %v2689 = vunpack.c.h.b16 %v556
    %v2690 = vunpack.c.l.b16 %v557
    %v2691 = vunpack.c.h.b16 %v557
    %v2692 = vunpack.c.l.b16 %v558
    %v2693 = vunpack.c.h.b16 %v558
    %v2694 = vunpack.c.l.b16 %v559
    %v2695 = vunpack.c.h.b16 %v559
    %v2696 = vunpack.c.l.b16 %v560
    %v2697 = vunpack.c.h.b16 %v560
    %v2698 = vunpack.c.l.b16 %v561
    %v2699 = vunpack.c.h.b16 %v561
    %v2700 = vunpack.c.l.b16 %v562
    %v2701 = vunpack.c.h.b16 %v562
    %v2702 = vunpack.c.l.b16 %v563
    %v2703 = vunpack.c.h.b16 %v563
    %v2704 = vunpack.c.l.b16 %v564
    %v2705 = vunpack.c.h.b16 %v564
    %v2706 = vunpack.c.l.b16 %v565
    %v2707 = vunpack.c.h.b16 %v565
    %v2708 = vunpack.c.l.b16 %v566
    %v2709 = vunpack.c.h.b16 %v566
    %v2710 = vunpack.c.l.b16 %v567
    %v2711 = vunpack.c.h.b16 %v567
    %v2712 = vunpack.c.l.b16 %v568
    %v2713 = vunpack.c.h.b16 %v568
    %v2714 = vunpack.c.l.b16 %v569
    %v2715 = vunpack.c.h.b16 %v569
    %v2716 = vunpack.c.l.b16 %v570
    %v2717 = vunpack.c.h.b16 %v570
    %v2718 = vunpack.c.l.b16 %v571
    %v2719 = vunpack.c.h.b16 %v571
    %v2720 = vunpack.c.l.b16 %v572
    %v2721 = vunpack.c.h.b16 %v572
    %v2722 = vunpack.c.l.b16 %v573
    %v2723 = vunpack.c.h.b16 %v573
    %v2724 = vunpack.c.l.b16 %v574
    %v2725 = vunpack.c.h.b16 %v574
    %v2726 = vunpack.c.l.b16 %v575
    %v2727 = vunpack.c.h.b16 %v575
    %v2728 = vunpack.c.l.b16 %v576
    %v2729 = vunpack.c.h.b16 %v576
    %v2730 = vunpack.c.l.b16 %v577
    %v2731 = vunpack.c.h.b16 %v577
    %v2732 = vunpack.c.l.b16 %v578
    %v2733 = vunpack.c.h.b16 %v578
    %v2734 = vunpack.c.l.b16 %v579
    %v2735 = vunpack.c.h.b16 %v579
    %v2736 = vunpack.c.l.b16 %v580
    %v2737 = vunpack.c.h.b16 %v580
    %v2738 = vunpack.c.l.b16 %v581
    %v2739 = vunpack.c.h.b16 %v581
    %v2740 = vunpack.c.l.b16 %v582
    %v2741 = vunpack.c.h.b16 %v582
    %v2742 = vunpack.c.l.b16 %v583
    %v2743 = vunpack.c.h.b16 %v583
    %v2744 = vunpack.c.l.b16 %v584
    %v2745 = vunpack.c.h.b16 %v584
    %v2746 = vunpack.c.l.b16 %v585
    %v2747 = vunpack.c.h.b16 %v585
    %v2748 = vunpack.c.l.b16 %v586
    %v2749 = vunpack.c.h.b16 %v586
    %v2750 = vunpack.c.l.b16 %v587
    %v2751 = vunpack.c.h.b16 %v587
    %v2752 = vunpack.c.l.b16 %v588
    %v2753 = vunpack.c.h.b16 %v588
    %v2754 = vunpack.c.l.b16 %v589
    %v2755 = vunpack.c.h.b16 %v589
    %v2756 = vunpack.c.l.b16 %v590
    %v2757 = vunpack.c.h.b16 %v590
    %v2758 = vunpack.c.l.b16 %v591
    %v2759 = vunpack.c.h.b16 %v591
    %v2760 = vunpack.c.l.b16 %v592
    %v2761 = vunpack.c.h.b16 %v592
    %v2762 = vunpack.c.l.b16 %v593
    %v2763 = vunpack.c.h.b16 %v593
    %v2764 = vunpack.c.l.b16 %v594
    %v2765 = vunpack.c.h.b16 %v594
    %v2766 = vunpack.c.l.b16 %v595
    %v2767 = vunpack.c.h.b16 %v595
    %v2768 = vunpack.c.l.b16 %v596
    %v2769 = vunpack.c.h.b16 %v596
    %v2770 = vunpack.c.l.b16 %v597
    %v2771 = vunpack.c.h.b16 %v597
    %v2772 = vunpack.c.l.b16 %v598
    %v2773 = vunpack.c.h.b16 %v598
    %v2774 = vunpack.c.l.b16 %v599
    %v2775 = vunpack.c.h.b16 %v599
    %v2776 = vunpack.c.l.b16 %v600
    %v2777 = vunpack.c.h.b16 %v600
    %v2778 = vunpack.c.l.b16 %v601
    %v2779 = vunpack.c.h.b16 %v601
    %v2780 = vunpack.c.l.b16 %v602
    %v2781 = vunpack.c.h.b16 %v602
    %v2782 = vunpack.c.l.b16 %v603
    %v2783 = vunpack.c.h.b16 %v603
    %v2784 = vunpack.c.l.b16 %v604
    %v2785 = vunpack.c.h.b16 %v604
    %v2786 = vunpack.c.l.b16 %v605
    %v2787 = vunpack.c.h.b16 %v605
    %v2788 = vunpack.c.l.b16 %v606
    %v2789 = vunpack.c.h.b16 %v606
    %v2790 = vunpack.c.l.b16 %v607
    %v2791 = vunpack.c.h.b16 %v607
    %v2792 = vunpack.c.l.b16 %v608
    %v2793 = vunpack.c.h.b16 %v608
    %v2794 = vunpack.c.l.b16 %v609
    %v2795 = vunpack.c.h.b16 %v609
    %v2796 = vunpack.c.l.b16 %v610
    %v2797 = vunpack.c.h.b16 %v610
    %v2798 = vunpack.c.l.b16 %v611
    %v2799 = vunpack.c.h.b16 %v611
    %v2800 = vunpack.c.l.b16 %v612
    %v2801 = vunpack.c.h.b16 %v612
    %v2802 = vunpack.c.l.b16 %v613
    %v2803 = vunpack.c.h.b16 %v613
    %v2804 = vunpack.c.l.b16 %v614
    %v2805 = vunpack.c.h.b16 %v614
    %v2806 = vunpack.c.l.b16 %v615
    %v2807 = vunpack.c.h.b16 %v615
    %v2808 = vunpack.c.l.b16 %v616
    %v2809 = vunpack.c.h.b16 %v616
    %v2810 = vunpack.c.l.b16 %v617
    %v2811 = vunpack.c.h.b16 %v617
    %v2812 = vunpack.c.l.b16 %v618
    %v2813 = vunpack.c.h.b16 %v618
    %v2814 = vunpack.c.l.b16 %v619
    %v2815 = vunpack.c.h.b16 %v619
    %v2816 = vunpack.c.l.b16 %v620
    %v2817 = vunpack.c.h.b16 %v620
    %v2818 = vunpack.c.l.b16 %v621
    %v2819 = vunpack.c.h.b16 %v621
    %v2820 = vunpack.c.l.b16 %v622
    %v2821 = vunpack.c.h.b16 %v622
    %v2822 = vunpack.c.l.b16 %v623
    %v2823 = vunpack.c.h.b16 %v623
    %v2824 = vunpack.c.l.b16 %v624
    %v2825 = vunpack.c.h.b16 %v624
    %v2826 = vunpack.c.l.b16 %v625
    %v2827 = vunpack.c.h.b16 %v625
    %v2828 = vunpack.c.l.b16 %v626
    %v2829 = vunpack.c.h.b16 %v626
    %v2830 = vunpack.c.l.b16 %v627
    %v2831 = vunpack.c.h.b16 %v627
    %v2832 = vunpack.c.l.b16 %v628
    %v2833 = vunpack.c.h.b16 %v628
    %v2834 = vunpack.c.l.b16 %v629
    %v2835 = vunpack.c.h.b16 %v629
    %v2836 = vunpack.c.l.b16 %v630
    %v2837 = vunpack.c.h.b16 %v630
    %v2838 = vunpack.c.l.b16 %v631
    %v2839 = vunpack.c.h.b16 %v631
    %v2840 = vunpack.c.l.b16 %v632
    %v2841 = vunpack.c.h.b16 %v632
    %v2842 = vunpack.c.l.b16 %v633
    %v2843 = vunpack.c.h.b16 %v633
    %v2844 = vunpack.c.l.b16 %v634
    %v2845 = vunpack.c.h.b16 %v634
    %v2846 = vunpack.c.l.b16 %v635
    %v2847 = vunpack.c.h.b16 %v635
    %v2848 = vunpack.c.l.b16 %v636
    %v2849 = vunpack.c.h.b16 %v636
    %v2850 = vunpack.c.l.b16 %v637
    %v2851 = vunpack.c.h.b16 %v637
    %v2852 = vunpack.c.l.b16 %v638
    %v2853 = vunpack.c.h.b16 %v638
    %v2854 = vunpack.c.l.b16 %v639
    %v2855 = vunpack.c.h.b16 %v639
    %v2856 = vunpack.c.l.b16 %v640
    %v2857 = vunpack.c.h.b16 %v640
    %v2858 = vunpack.c.l.b16 %v641
    %v2859 = vunpack.c.h.b16 %v641
    %v2860 = vunpack.c.l.b16 %v642
    %v2861 = vunpack.c.h.b16 %v642
    %v2862 = vunpack.c.l.b16 %v643
    %v2863 = vunpack.c.h.b16 %v643
    %v2864 = vunpack.c.l.b16 %v644
    %v2865 = vunpack.c.h.b16 %v644
    %v2866 = vunpack.c.l.b16 %v645
    %v2867 = vunpack.c.h.b16 %v645
    %v2868 = vunpack.c.l.b16 %v646
    %v2869 = vunpack.c.h.b16 %v646
    %v2870 = vunpack.c.l.b16 %v647
    %v2871 = vunpack.c.h.b16 %v647
    %v2872 = vunpack.c.l.b16 %v648
    %v2873 = vunpack.c.h.b16 %v648
    %v2874 = vunpack.c.l.b16 %v649
    %v2875 = vunpack.c.h.b16 %v649
    %v2876 = vunpack.c.l.b16 %v650
    %v2877 = vunpack.c.h.b16 %v650
    %v2878 = vunpack.c.l.b16 %v651
    %v2879 = vunpack.c.h.b16 %v651
    %v2880 = vunpack.c.l.b16 %v652
    %v2881 = vunpack.c.h.b16 %v652
    %v2882 = vunpack.c.l.b16 %v653
    %v2883 = vunpack.c.h.b16 %v653
    %v2884 = vunpack.c.l.b16 %v654
    %v2885 = vunpack.c.h.b16 %v654
    %v2886 = vunpack.c.l.b16 %v655
    %v2887 = vunpack.c.h.b16 %v655
    %v2888 = vunpack.c.l.b16 %v656
    %v2889 = vunpack.c.h.b16 %v656
    %v2890 = vunpack.c.l.b16 %v657
    %v2891 = vunpack.c.h.b16 %v657
    %v2892 = vunpack.c.l.b16 %v658
    %v2893 = vunpack.c.h.b16 %v658
    %v2894 = vunpack.c.l.b16 %v659
    %v2895 = vunpack.c.h.b16 %v659
    %v2896 = vunpack.c.l.b16 %v660
    %v2897 = vunpack.c.h.b16 %v660
    %v2898 = vunpack.c.l.b16 %v661
    %v2899 = vunpack.c.h.b16 %v661
    %v2900 = vunpack.c.l.b16 %v662
    %v2901 = vunpack.c.h.b16 %v662
    %v2902 = vunpack.c.l.b16 %v663
    %v2903 = vunpack.c.h.b16 %v663
    %v2904 = vunpack.c.l.b16 %v664
    %v2905 = vunpack.c.h.b16 %v664
    %v2906 = vunpack.c.l.b16 %v665
    %v2907 = vunpack.c.h.b16 %v665
    %v2908 = vunpack.c.l.b16 %v666
    %v2909 = vunpack.c.h.b16 %v666
    %v2910 = vunpack.c.l.b16 %v667
    %v2911 = vunpack.c.h.b16 %v667
    %v2912 = vunpack.c.l.b16 %v668
    %v2913 = vunpack.c.h.b16 %v668
    %v2914 = vunpack.c.l.b16 %v669
    %v2915 = vunpack.c.h.b16 %v669
    %v2916 = vunpack.c.l.b16 %v670
    %v2917 = vunpack.c.h.b16 %v670
    %v2918 = vunpack.c.l.b16 %v671
    %v2919 = vunpack.c.h.b16 %v671
    %v2920 = vunpack.c.l.b16 %v672
    %v2921 = vunpack.c.h.b16 %v672
    %v2922 = vunpack.c.l.b16 %v673
    %v2923 = vunpack.c.h.b16 %v673
    %v2924 = vunpack.c.l.b16 %v674
    %v2925 = vunpack.c.h.b16 %v674
    %v2926 = vunpack.c.l.b16 %v675
    %v2927 = vunpack.c.h.b16 %v675
    %v2928 = vunpack.c.l.b16 %v676
    %v2929 = vunpack.c.h.b16 %v676
    %v2930 = vunpack.c.l.b16 %v677
    %v2931 = vunpack.c.h.b16 %v677
    %v2932 = vunpack.c.l.b16 %v678
    %v2933 = vunpack.c.h.b16 %v678
    %v2934 = vunpack.c.l.b16 %v679
    %v2935 = vunpack.c.h.b16 %v679
    %v2936 = vunpack.c.l.b16 %v680
    %v2937 = vunpack.c.h.b16 %v680
    %v2938 = vunpack.c.l.b16 %v681
    %v2939 = vunpack.c.h.b16 %v681
    %v2940 = vunpack.c.l.b16 %v682
    %v2941 = vunpack.c.h.b16 %v682
    %v2942 = vunpack.c.l.b16 %v683
    %v2943 = vunpack.c.h.b16 %v683
    %v2944 = vunpack.c.l.b16 %v684
    %v2945 = vunpack.c.h.b16 %v684
    %v2946 = vunpack.c.l.b16 %v685
    %v2947 = vunpack.c.h.b16 %v685
    %v2948 = vunpack.c.l.b16 %v686
    %v2949 = vunpack.c.h.b16 %v686
    %v2950 = vunpack.c.l.b16 %v687
    %v2951 = vunpack.c.h.b16 %v687
    %v2952 = vunpack.c.l.b16 %v688
    %v2953 = vunpack.c.h.b16 %v688
    %v2954 = vunpack.c.l.b16 %v689
    %v2955 = vunpack.c.h.b16 %v689
    %v2956 = vunpack.c.l.b16 %v690
    %v2957 = vunpack.c.h.b16 %v690
    %v2958 = vunpack.c.l.b16 %v691
    %v2959 = vunpack.c.h.b16 %v691
    %v2960 = vunpack.c.l.b16 %v692
    %v2961 = vunpack.c.h.b16 %v692
    %v2962 = vunpack.c.l.b16 %v693
    %v2963 = vunpack.c.h.b16 %v693
    %v2964 = vunpack.c.l.b16 %v694
    %v2965 = vunpack.c.h.b16 %v694
    %v2966 = vunpack.c.l.b16 %v695
    %v2967 = vunpack.c.h.b16 %v695
    %v2968 = vunpack.c.l.b16 %v696
    %v2969 = vunpack.c.h.b16 %v696
    %v2970 = vunpack.c.l.b16 %v697
    %v2971 = vunpack.c.h.b16 %v697
    %v2972 = vunpack.c.l.b16 %v698
    %v2973 = vunpack.c.h.b16 %v698
    %v2974 = vunpack.c.l.b16 %v699
    %v2975 = vunpack.c.h.b16 %v699
    %v2976 = vunpack.c.l.b16 %v700
    %v2977 = vunpack.c.h.b16 %v700
    %v2978 = vunpack.c.l.b16 %v701
    %v2979 = vunpack.c.h.b16 %v701
    %v2980 = vunpack.c.l.b16 %v702
    %v2981 = vunpack.c.h.b16 %v702
    %v2982 = vunpack.c.l.b16 %v703
    %v2983 = vunpack.c.h.b16 %v703
    %v2984 = vunpack.c.l.b16 %v704
    %v2985 = vunpack.c.h.b16 %v704
    %v2986 = vunpack.c.l.b16 %v705
    %v2987 = vunpack.c.h.b16 %v705
    %v2988 = vunpack.c.l.b16 %v706
    %v2989 = vunpack.c.h.b16 %v706
    %v2990 = vunpack.c.l.b16 %v707
    %v2991 = vunpack.c.h.b16 %v707
    %v2992 = vunpack.c.l.b16 %v708
    %v2993 = vunpack.c.h.b16 %v708
    %v2994 = vunpack.c.l.b16 %v709
    %v2995 = vunpack.c.h.b16 %v709
    %v2996 = vunpack.c.l.b16 %v710
    %v2997 = vunpack.c.h.b16 %v710
    %v2998 = vunpack.c.l.b16 %v711
    %v2999 = vunpack.c.h.b16 %v711
    %v3000 = vunpack.c.l.b16 %v712
    %v3001 = vunpack.c.h.b16 %v712
    %v3002 = vunpack.c.l.b16 %v713
    %v3003 = vunpack.c.h.b16 %v713
    %v3004 = vunpack.c.l.b16 %v714
    %v3005 = vunpack.c.h.b16 %v714
    %v3006 = vunpack.c.l.b16 %v715
    %v3007 = vunpack.c.h.b16 %v715
    %v3008 = vunpack.c.l.b16 %v716
    %v3009 = vunpack.c.h.b16 %v716
    %v3010 = vunpack.c.l.b16 %v717
    %v3011 = vunpack.c.h.b16 %v717
    %v3012 = vunpack.c.l.b16 %v718
    %v3013 = vunpack.c.h.b16 %v718
    %v3014 = vunpack.c.l.b16 %v719
    %v3015 = vunpack.c.h.b16 %v719
    %v3016 = vunpack.c.l.b16 %v720
    %v3017 = vunpack.c.h.b16 %v720
    %v3018 = vunpack.c.l.b16 %v721
    %v3019 = vunpack.c.h.b16 %v721
    %v3020 = vunpack.c.l.b16 %v722
    %v3021 = vunpack.c.h.b16 %v722
    %v3022 = vunpack.c.l.b16 %v723
    %v3023 = vunpack.c.h.b16 %v723
    %v3024 = vunpack.c.l.b16 %v724
    %v3025 = vunpack.c.h.b16 %v724
    %v3026 = vunpack.c.l.b16 %v725
    %v3027 = vunpack.c.h.b16 %v725
    %v3028 = vunpack.c.l.b16 %v726
    %v3029 = vunpack.c.h.b16 %v726
    %v3030 = vunpack.c.l.b16 %v727
    %v3031 = vunpack.c.h.b16 %v727
    %v3032 = vunpack.c.l.b16 %v728
    %v3033 = vunpack.c.h.b16 %v728
    %v3034 = vunpack.c.l.b16 %v729
    %v3035 = vunpack.c.h.b16 %v729
    %v3036 = vunpack.c.l.b16 %v730
    %v3037 = vunpack.c.h.b16 %v730
    %v3038 = vunpack.c.l.b16 %v731
    %v3039 = vunpack.c.h.b16 %v731
    %v3040 = vunpack.c.l.b16 %v732
    %v3041 = vunpack.c.h.b16 %v732
    %v3042 = vunpack.c.l.b16 %v733
    %v3043 = vunpack.c.h.b16 %v733
    %v3044 = vunpack.c.l.b16 %v734
    %v3045 = vunpack.c.h.b16 %v734
    %v3046 = vunpack.c.l.b16 %v735
    %v3047 = vunpack.c.h.b16 %v735
    %v3048 = vunpack.c.l.b16 %v736
    %v3049 = vunpack.c.h.b16 %v736
    %v3050 = vunpack.c.l.b16 %v737
    %v3051 = vunpack.c.h.b16 %v737
    %v3052 = vunpack.c.l.b16 %v738
    %v3053 = vunpack.c.h.b16 %v738
    %v3054 = vunpack.c.l.b16 %v739
    %v3055 = vunpack.c.h.b16 %v739
    %v3056 = vunpack.c.l.b16 %v740
    %v3057 = vunpack.c.h.b16 %v740
    %v3058 = vunpack.c.l.b16 %v741
    %v3059 = vunpack.c.h.b16 %v741
    %v3060 = vunpack.c.l.b16 %v742
    %v3061 = vunpack.c.h.b16 %v742
    %v3062 = vunpack.c.l.b16 %v743
    %v3063 = vunpack.c.h.b16 %v743
    %v3064 = vunpack.c.l.b16 %v744
    %v3065 = vunpack.c.h.b16 %v744
    %v3066 = vunpack.c.l.b16 %v745
    %v3067 = vunpack.c.h.b16 %v745
    %v3068 = vunpack.c.l.b16 %v746
    %v3069 = vunpack.c.h.b16 %v746
    %v3070 = vunpack.c.l.b16 %v747
    %v3071 = vunpack.c.h.b16 %v747
    %v3072 = vunpack.c.l.b16 %v748
    %v3073 = vunpack.c.h.b16 %v748
    %v3074 = vunpack.c.l.b16 %v749
    %v3075 = vunpack.c.h.b16 %v749
    %v3076 = vunpack.c.l.b16 %v750
    %v3077 = vunpack.c.h.b16 %v750
    %v3078 = vunpack.c.l.b16 %v751
    %v3079 = vunpack.c.h.b16 %v751
    %v3080 = vunpack.c.l.b16 %v752
    %v3081 = vunpack.c.h.b16 %v752
    %v3082 = vunpack.c.l.b16 %v753
    %v3083 = vunpack.c.h.b16 %v753
    %v3084 = vunpack.c.l.b16 %v754
    %v3085 = vunpack.c.h.b16 %v754
    %v3086 = vunpack.c.l.b16 %v755
    %v3087 = vunpack.c.h.b16 %v755
    %v3088 = vunpack.c.l.b16 %v756
    %v3089 = vunpack.c.h.b16 %v756
    %v3090 = vunpack.c.l.b16 %v757
    %v3091 = vunpack.c.h.b16 %v757
    %v3092 = vunpack.c.l.b16 %v758
    %v3093 = vunpack.c.h.b16 %v758
    %v3094 = vunpack.c.l.b16 %v759
    %v3095 = vunpack.c.h.b16 %v759
    %v3096 = vunpack.c.l.b16 %v760
    %v3097 = vunpack.c.h.b16 %v760
    %v3098 = vunpack.c.l.b16 %v761
    %v3099 = vunpack.c.h.b16 %v761
    %v3100 = vunpack.c.l.b16 %v762
    %v3101 = vunpack.c.h.b16 %v762
    %v3102 = vunpack.c.l.b16 %v763
    %v3103 = vunpack.c.h.b16 %v763
    %v3104 = vunpack.c.l.b16 %v764
    %v3105 = vunpack.c.h.b16 %v764
    %v3106 = vunpack.c.l.b16 %v765
    %v3107 = vunpack.c.h.b16 %v765
    %v3108 = vunpack.c.l.b16 %v766
    %v3109 = vunpack.c.h.b16 %v766
    %v3110 = vunpack.c.l.b16 %v767
    %v3111 = vunpack.c.h.b16 %v767
    %v3112 = vunpack.c.l.b16 %v768
    %v3113 = vunpack.c.h.b16 %v768
    %v3114 = vunpack.c.l.b16 %v769
    %v3115 = vunpack.c.h.b16 %v769
    %v3116 = vunpack.c.l.b16 %v770
    %v3117 = vunpack.c.h.b16 %v770
    %v3118 = vunpack.c.l.b16 %v771
    %v3119 = vunpack.c.h.b16 %v771
    %v3120 = vunpack.c.l.b16 %v772
    %v3121 = vunpack.c.h.b16 %v772
    %v3122 = vunpack.c.l.b16 %v773
    %v3123 = vunpack.c.h.b16 %v773
    %v3124 = vunpack.c.l.b16 %v774
    %v3125 = vunpack.c.h.b16 %v774
    %v3126 = vunpack.c.l.b16 %v775
    %v3127 = vunpack.c.h.b16 %v775
    %v3128 = vunpack.c.l.b16 %v776
    %v3129 = vunpack.c.h.b16 %v776
    %v3130 = vunpack.c.l.b16 %v777
    %v3131 = vunpack.c.h.b16 %v777
    %v3132 = vunpack.c.l.b16 %v778
    %v3133 = vunpack.c.h.b16 %v778
    %v3134 = vunpack.c.l.b16 %v779
    %v3135 = vunpack.c.h.b16 %v779
    %v3136 = vunpack.c.l.b16 %v780
    %v3137 = vunpack.c.h.b16 %v780
    %v3138 = vunpack.c.l.b16 %v781
    %v3139 = vunpack.c.h.b16 %v781
    %v3140 = vunpack.c.l.b16 %v782
    %v3141 = vunpack.c.h.b16 %v782
    %v3142 = vunpack.c.l.b16 %v783
    %v3143 = vunpack.c.h.b16 %v783
    %v3144 = vunpack.c.l.b16 %v784
    %v3145 = vunpack.c.h.b16 %v784
    %v3146 = vunpack.c.l.b16 %v785
    %v3147 = vunpack.c.h.b16 %v785
    %v3148 = vunpack.c.l.b16 %v786
    %v3149 = vunpack.c.h.b16 %v786
    %v3150 = vunpack.c.l.b16 %v787
    %v3151 = vunpack.c.h.b16 %v787
    %v3152 = vunpack.c.l.b16 %v788
    %v3153 = vunpack.c.h.b16 %v788
    %v3154 = vunpack.c.l.b16 %v789
    %v3155 = vunpack.c.h.b16 %v789
    %v3156 = vunpack.c.l.b16 %v790
    %v3157 = vunpack.c.h.b16 %v790
    %v3158 = vunpack.c.l.b16 %v791
    %v3159 = vunpack.c.h.b16 %v791
    %v3160 = vunpack.c.l.b16 %v792
    %v3161 = vunpack.c.h.b16 %v792
    %v3162 = vunpack.c.l.b16 %v793
    %v3163 = vunpack.c.h.b16 %v793
    %v3164 = vunpack.c.l.b16 %v794
    %v3165 = vunpack.c.h.b16 %v794
    %v3166 = vunpack.c.l.b16 %v795
    %v3167 = vunpack.c.h.b16 %v795
    %v3168 = vunpack.c.l.b16 %v796
    %v3169 = vunpack.c.h.b16 %v796
    %v3170 = vunpack.c.l.b16 %v797
    %v3171 = vunpack.c.h.b16 %v797
    %v3172 = vunpack.c.l.b16 %v798
    %v3173 = vunpack.c.h.b16 %v798
    %v3174 = vunpack.c.l.b16 %v799
    %v3175 = vunpack.c.h.b16 %v799
    %v3176 = vunpack.c.l.b16 %v800
    %v3177 = vunpack.c.h.b16 %v800
    %v3178 = vunpack.c.l.b16 %v801
    %v3179 = vunpack.c.h.b16 %v801
    %v3180 = vunpack.c.l.b16 %v802
    %v3181 = vunpack.c.h.b16 %v802
    %v3182 = vunpack.c.l.b16 %v803
    %v3183 = vunpack.c.h.b16 %v803
    %v3184 = vunpack.c.l.b16 %v804
    %v3185 = vunpack.c.h.b16 %v804
    %v3186 = vunpack.c.l.b16 %v805
    %v3187 = vunpack.c.h.b16 %v805
    %v3188 = vunpack.c.l.b16 %v806
    %v3189 = vunpack.c.h.b16 %v806
    %v3190 = vunpack.c.l.b16 %v807
    %v3191 = vunpack.c.h.b16 %v807
    %v3192 = vunpack.c.l.b16 %v808
    %v3193 = vunpack.c.h.b16 %v808
    %v3194 = vunpack.c.l.b16 %v809
    %v3195 = vunpack.c.h.b16 %v809
    %v3196 = vunpack.c.l.b16 %v810
    %v3197 = vunpack.c.h.b16 %v810
    %v3198 = vunpack.c.l.b16 %v811
    %v3199 = vunpack.c.h.b16 %v811
    %v3200 = vunpack.c.l.b16 %v812
    %v3201 = vunpack.c.h.b16 %v812
    %v3202 = vunpack.c.l.b16 %v813
    %v3203 = vunpack.c.h.b16 %v813
    %v3204 = vunpack.c.l.b16 %v814
    %v3205 = vunpack.c.h.b16 %v814
    %v3206 = vunpack.c.l.b16 %v815
    %v3207 = vunpack.c.h.b16 %v815
    %v3208 = vunpack.c.l.b16 %v816
    %v3209 = vunpack.c.h.b16 %v816
    %v3210 = vunpack.c.l.b16 %v817
    %v3211 = vunpack.c.h.b16 %v817
    %v3212 = vunpack.c.l.b16 %v818
    %v3213 = vunpack.c.h.b16 %v818
    %v3214 = vunpack.c.l.b16 %v819
    %v3215 = vunpack.c.h.b16 %v819
    %v3216 = vunpack.c.l.b16 %v820
    %v3217 = vunpack.c.h.b16 %v820
    %v3218 = vunpack.c.l.b16 %v821
    %v3219 = vunpack.c.h.b16 %v821
    %v3220 = vunpack.c.l.b16 %v822
    %v3221 = vunpack.c.h.b16 %v822
    %v3222 = vunpack.c.l.b16 %v823
    %v3223 = vunpack.c.h.b16 %v823
    %v3224 = vunpack.c.l.b16 %v824
    %v3225 = vunpack.c.h.b16 %v824
    %v3226 = vunpack.c.l.b16 %v825
    %v3227 = vunpack.c.h.b16 %v825
    %v3228 = vunpack.c.l.b16 %v826
    %v3229 = vunpack.c.h.b16 %v826
    %v3230 = vunpack.c.l.b16 %v827
    %v3231 = vunpack.c.h.b16 %v827
    %v3232 = vunpack.c.l.b16 %v828
    %v3233 = vunpack.c.h.b16 %v828
    %v3234 = vunpack.c.l.b16 %v829
    %v3235 = vunpack.c.h.b16 %v829
    %v3236 = vunpack.c.l.b16 %v830
    %v3237 = vunpack.c.h.b16 %v830
    %v3238 = vunpack.c.l.b16 %v831
    %v3239 = vunpack.c.h.b16 %v831
    %v3240 = vunpack.c.l.b16 %v832
    %v3241 = vunpack.c.h.b16 %v832
    %v3242 = vunpack.c.l.b16 %v833
    %v3243 = vunpack.c.h.b16 %v833
    %v3244 = vunpack.c.l.b16 %v834
    %v3245 = vunpack.c.h.b16 %v834
    %v3246 = vunpack.c.l.b16 %v835
    %v3247 = vunpack.c.h.b16 %v835
    %v3248 = vunpack.c.l.b16 %v836
    %v3249 = vunpack.c.h.b16 %v836
    %v3250 = vunpack.c.l.b16 %v837
    %v3251 = vunpack.c.h.b16 %v837
    %v3252 = vunpack.c.l.b16 %v838
    %v3253 = vunpack.c.h.b16 %v838
    %v3254 = vunpack.c.l.b16 %v839
    %v3255 = vunpack.c.h.b16 %v839
    %v3256 = vunpack.c.l.b16 %v840
    %v3257 = vunpack.c.h.b16 %v840
    %v3258 = vunpack.c.l.b16 %v841
    %v3259 = vunpack.c.h.b16 %v841
    %v3260 = vunpack.c.l.b16 %v842
    %v3261 = vunpack.c.h.b16 %v842
    %v3262 = vunpack.c.l.b16 %v843
    %v3263 = vunpack.c.h.b16 %v843
    %v3264 = vunpack.c.l.b16 %v844
    %v3265 = vunpack.c.h.b16 %v844
    %v3266 = vunpack.c.l.b16 %v845
    %v3267 = vunpack.c.h.b16 %v845
    %v3268 = vunpack.c.l.b16 %v846
    %v3269 = vunpack.c.h.b16 %v846
    %v3270 = vunpack.c.l.b16 %v847
    %v3271 = vunpack.c.h.b16 %v847
    %v3272 = vunpack.c.l.b16 %v848
    %v3273 = vunpack.c.h.b16 %v848
    %v3274 = vunpack.c.l.b16 %v849
    %v3275 = vunpack.c.h.b16 %v849
    %v3276 = vunpack.c.l.b16 %v850
    %v3277 = vunpack.c.h.b16 %v850
    %v3278 = vunpack.c.l.b16 %v851
    %v3279 = vunpack.c.h.b16 %v851
    %v3280 = vunpack.c.l.b16 %v852
    %v3281 = vunpack.c.h.b16 %v852
    %v3282 = vunpack.c.l.b16 %v853
    %v3283 = vunpack.c.h.b16 %v853
    %v3284 = vunpack.c.l.b16 %v854
    %v3285 = vunpack.c.h.b16 %v854
    %v3286 = vunpack.c.l.b16 %v855
    %v3287 = vunpack.c.h.b16 %v855
    %v3288 = vunpack.c.l.b16 %v856
    %v3289 = vunpack.c.h.b16 %v856
    %v3290 = vunpack.c.l.b16 %v857
    %v3291 = vunpack.c.h.b16 %v857
    %v3292 = vunpack.c.l.b16 %v858
    %v3293 = vunpack.c.h.b16 %v858
    %v3294 = vunpack.c.l.b16 %v859
    %v3295 = vunpack.c.h.b16 %v859
    %v3296 = vunpack.c.l.b16 %v860
    %v3297 = vunpack.c.h.b16 %v860
    %v3298 = vunpack.c.l.b16 %v861
    %v3299 = vunpack.c.h.b16 %v861
    %v3300 = vunpack.c.l.b16 %v862
    %v3301 = vunpack.c.h.b16 %v862
    %v3302 = vunpack.c.l.b16 %v863
    %v3303 = vunpack.c.h.b16 %v863
    %v3304 = vunpack.c.l.b16 %v864
    %v3305 = vunpack.c.h.b16 %v864
    %v3306 = vunpack.c.l.b16 %v865
    %v3307 = vunpack.c.h.b16 %v865
    %v3308 = vunpack.c.l.b16 %v866
    %v3309 = vunpack.c.h.b16 %v866
    %v3310 = vunpack.c.l.b16 %v867
    %v3311 = vunpack.c.h.b16 %v867
    %v3312 = vunpack.c.l.b16 %v868
    %v3313 = vunpack.c.h.b16 %v868
    %v3314 = vunpack.c.l.b16 %v869
    %v3315 = vunpack.c.h.b16 %v869
    %v3316 = vunpack.c.l.b16 %v870
    %v3317 = vunpack.c.h.b16 %v870
    %v3318 = vunpack.c.l.b16 %v871
    %v3319 = vunpack.c.h.b16 %v871
    %v3320 = vunpack.c.l.b16 %v872
    %v3321 = vunpack.c.h.b16 %v872
    %v3322 = vunpack.c.l.b16 %v873
    %v3323 = vunpack.c.h.b16 %v873
    %v3324 = vunpack.c.l.b16 %v874
    %v3325 = vunpack.c.h.b16 %v874
    %v3326 = vunpack.c.l.b16 %v875
    %v3327 = vunpack.c.h.b16 %v875
    %v3328 = vunpack.c.l.b16 %v876
    %v3329 = vunpack.c.h.b16 %v876
    %v3330 = vunpack.c.l.b16 %v877
    %v3331 = vunpack.c.h.b16 %v877
    %v3332 = vunpack.c.l.b16 %v878
    %v3333 = vunpack.c.h.b16 %v878
    %v3334 = vunpack.c.l.b16 %v879
    %v3335 = vunpack.c.h.b16 %v879
    %v3336 = vunpack.c.l.b16 %v880
    %v3337 = vunpack.c.h.b16 %v880
    %v3338 = vunpack.c.l.b16 %v881
    %v3339 = vunpack.c.h.b16 %v881
    %v3340 = vunpack.c.l.b16 %v882
    %v3341 = vunpack.c.h.b16 %v882
    %v3342 = vunpack.c.l.b16 %v883
    %v3343 = vunpack.c.h.b16 %v883
    %v3344 = vunpack.c.l.b16 %v884
    %v3345 = vunpack.c.h.b16 %v884
    %v3346 = vunpack.c.l.b16 %v885
    %v3347 = vunpack.c.h.b16 %v885
    %v3348 = vunpack.c.l.b16 %v886
    %v3349 = vunpack.c.h.b16 %v886
    %v3350 = vunpack.c.l.b16 %v887
    %v3351 = vunpack.c.h.b16 %v887
    %v3352 = vunpack.c.l.b16 %v888
    %v3353 = vunpack.c.h.b16 %v888
    %v3354 = vunpack.c.l.b16 %v889
    %v3355 = vunpack.c.h.b16 %v889
    %v3356 = vunpack.c.l.b16 %v890
    %v3357 = vunpack.c.h.b16 %v890
    %v3358 = vunpack.c.l.b16 %v891
    %v3359 = vunpack.c.h.b16 %v891
    %v3360 = vunpack.c.l.b16 %v892
    %v3361 = vunpack.c.h.b16 %v892
    %v3362 = vunpack.c.l.b16 %v893
    %v3363 = vunpack.c.h.b16 %v893
    %v3364 = vunpack.c.l.b16 %v894
    %v3365 = vunpack.c.h.b16 %v894
    %v3366 = vunpack.c.l.b16 %v895
    %v3367 = vunpack.c.h.b16 %v895
    %v3368 = vunpack.c.l.b16 %v896
    %v3369 = vunpack.c.h.b16 %v896
    %v3370 = vunpack.c.l.b16 %v897
    %v3371 = vunpack.c.h.b16 %v897
    %v3372 = vunpack.c.l.b16 %v898
    %v3373 = vunpack.c.h.b16 %v898
    %v3374 = vunpack.c.l.b16 %v899
    %v3375 = vunpack.c.h.b16 %v899
    %v3376 = vunpack.c.l.b16 %v900
    %v3377 = vunpack.c.h.b16 %v900
    %v3378 = vunpack.c.l.b16 %v901
    %v3379 = vunpack.c.h.b16 %v901
    %v3380 = vunpack.c.l.b16 %v902
    %v3381 = vunpack.c.h.b16 %v902
    %v3382 = vunpack.c.l.b16 %v903
    %v3383 = vunpack.c.h.b16 %v903
    %v3384 = vunpack.c.l.b16 %v904
    %v3385 = vunpack.c.h.b16 %v904
    %v3386 = vunpack.c.l.b16 %v905
    %v3387 = vunpack.c.h.b16 %v905
    %v3388 = vunpack.c.l.b16 %v906
    %v3389 = vunpack.c.h.b16 %v906
    %v3390 = vunpack.c.l.b16 %v907
    %v3391 = vunpack.c.h.b16 %v907
    %v3392 = vunpack.c.l.b16 %v908
    %v3393 = vunpack.c.h.b16 %v908
    %v3394 = vunpack.c.l.b16 %v909
    %v3395 = vunpack.c.h.b16 %v909
    %v3396 = vunpack.c.l.b16 %v910
    %v3397 = vunpack.c.h.b16 %v910
    %v3398 = vunpack.c.l.b16 %v911
    %v3399 = vunpack.c.h.b16 %v911
    %v3400 = vunpack.c.l.b16 %v912
    %v3401 = vunpack.c.h.b16 %v912
    %v3402 = vunpack.c.l.b16 %v913
    %v3403 = vunpack.c.h.b16 %v913
    %v3404 = vunpack.c.l.b16 %v914
    %v3405 = vunpack.c.h.b16 %v914
    %v3406 = vunpack.c.l.b16 %v915
    %v3407 = vunpack.c.h.b16 %v915
    %v3408 = vunpack.c.l.b16 %v916
    %v3409 = vunpack.c.h.b16 %v916
    %v3410 = vunpack.c.l.b16 %v917
    %v3411 = vunpack.c.h.b16 %v917
    %v3412 = vunpack.c.l.b16 %v918
    %v3413 = vunpack.c.h.b16 %v918
    %v3414 = vunpack.c.l.b16 %v919
    %v3415 = vunpack.c.h.b16 %v919
    %v3416 = vunpack.c.l.b16 %v920
    %v3417 = vunpack.c.h.b16 %v920
    %v3418 = vunpack.c.l.b16 %v921
    %v3419 = vunpack.c.h.b16 %v921
    %v3420 = vunpack.c.l.b16 %v922
    %v3421 = vunpack.c.h.b16 %v922
    %v3422 = vunpack.c.l.b16 %v923
    %v3423 = vunpack.c.h.b16 %v923
    %v3424 = vunpack.c.l.b16 %v924
    %v3425 = vunpack.c.h.b16 %v924
    %v3426 = vunpack.c.l.b16 %v925
    %v3427 = vunpack.c.h.b16 %v925
    %v3428 = vunpack.c.l.b16 %v926
    %v3429 = vunpack.c.h.b16 %v926
    %v3430 = vunpack.c.l.b16 %v927
    %v3431 = vunpack.c.h.b16 %v927
    %v3432 = vunpack.c.l.b16 %v928
    %v3433 = vunpack.c.h.b16 %v928
    %v3434 = vunpack.c.l.b16 %v929
    %v3435 = vunpack.c.h.b16 %v929
    %v3436 = vunpack.c.l.b16 %v930
    %v3437 = vunpack.c.h.b16 %v930
    %v3438 = vunpack.c.l.b16 %v931
    %v3439 = vunpack.c.h.b16 %v931
    %v3440 = vunpack.c.l.b16 %v932
    %v3441 = vunpack.c.h.b16 %v932
    %v3442 = vunpack.c.l.b16 %v933
    %v3443 = vunpack.c.h.b16 %v933
    %v3444 = vunpack.c.l.b16 %v934
    %v3445 = vunpack.c.h.b16 %v934
    %v3446 = vunpack.c.l.b16 %v935
    %v3447 = vunpack.c.h.b16 %v935
    %v3448 = vunpack.c.l.b16 %v936
    %v3449 = vunpack.c.h.b16 %v936
    %v3450 = vunpack.c.l.b16 %v937
    %v3451 = vunpack.c.h.b16 %v937
    %v3452 = vunpack.c.l.b16 %v938
    %v3453 = vunpack.c.h.b16 %v938
    %v3454 = vunpack.c.l.b16 %v939
    %v3455 = vunpack.c.h.b16 %v939
    %v3456 = vunpack.c.l.b16 %v940
    %v3457 = vunpack.c.h.b16 %v940
    %v3458 = vunpack.c.l.b16 %v941
    %v3459 = vunpack.c.h.b16 %v941
    %v3460 = vunpack.c.l.b16 %v942
    %v3461 = vunpack.c.h.b16 %v942
    %v3462 = vunpack.c.l.b16 %v943
    %v3463 = vunpack.c.h.b16 %v943
    %v3464 = vunpack.c.l.b16 %v944
    %v3465 = vunpack.c.h.b16 %v944
    %v3466 = vunpack.c.l.b16 %v945
    %v3467 = vunpack.c.h.b16 %v945
    %v3468 = vunpack.c.l.b16 %v946
    %v3469 = vunpack.c.h.b16 %v946
    %v3470 = vunpack.c.l.b16 %v947
    %v3471 = vunpack.c.h.b16 %v947
    %v3472 = vunpack.c.l.b16 %v948
    %v3473 = vunpack.c.h.b16 %v948
    %v3474 = vunpack.c.l.b16 %v949
    %v3475 = vunpack.c.h.b16 %v949
    %v3476 = vunpack.c.l.b16 %v950
    %v3477 = vunpack.c.h.b16 %v950
    %v3478 = vunpack.c.l.b16 %v951
    %v3479 = vunpack.c.h.b16 %v951
    %v3480 = vunpack.c.l.b16 %v952
    %v3481 = vunpack.c.h.b16 %v952
    %v3482 = vunpack.c.l.b16 %v953
    %v3483 = vunpack.c.h.b16 %v953
    %v3484 = vunpack.c.l.b16 %v954
    %v3485 = vunpack.c.h.b16 %v954
    %v3486 = vunpack.c.l.b16 %v955
    %v3487 = vunpack.c.h.b16 %v955
    %v3488 = vunpack.c.l.b16 %v956
    %v3489 = vunpack.c.h.b16 %v956
    %v3490 = vunpack.c.l.b16 %v957
    %v3491 = vunpack.c.h.b16 %v957
    %v3492 = vunpack.c.l.b16 %v958
    %v3493 = vunpack.c.h.b16 %v958
    %v3494 = vunpack.c.l.b16 %v959
    %v3495 = vunpack.c.h.b16 %v959
    %v3496 = vunpack.c.l.b16 %v960
    %v3497 = vunpack.c.h.b16 %v960
    %v3498 = vunpack.c.l.b16 %v961
    %v3499 = vunpack.c.h.b16 %v961
    %v3500 = vunpack.c.l.b16 %v962
    %v3501 = vunpack.c.h.b16 %v962
    %v3502 = vunpack.c.l.b16 %v963
    %v3503 = vunpack.c.h.b16 %v963
    %v3504 = vunpack.c.l.b16 %v964
    %v3505 = vunpack.c.h.b16 %v964
    %v3506 = vunpack.c.l.b16 %v965
    %v3507 = vunpack.c.h.b16 %v965
    %v3508 = vunpack.c.l.b16 %v966
    %v3509 = vunpack.c.h.b16 %v966
    %v3510 = vunpack.c.l.b16 %v967
    %v3511 = vunpack.c.h.b16 %v967
    %v3512 = vunpack.c.l.b16 %v968
    %v3513 = vunpack.c.h.b16 %v968
    %v3514 = vunpack.c.l.b16 %v969
    %v3515 = vunpack.c.h.b16 %v969
    %v3516 = vunpack.c.l.b16 %v970
    %v3517 = vunpack.c.h.b16 %v970
    %v3518 = vunpack.c.l.b16 %v971
    %v3519 = vunpack.c.h.b16 %v971
    %v3520 = vunpack.c.l.b16 %v972
    %v3521 = vunpack.c.h.b16 %v972
    %v3522 = vunpack.c.l.b16 %v973
    %v3523 = vunpack.c.h.b16 %v973
    %v3524 = vunpack.c.l.b16 %v974
    %v3525 = vunpack.c.h.b16 %v974
    %v3526 = vunpack.c.l.b16 %v975
    %v3527 = vunpack.c.h.b16 %v975
    %v3528 = vunpack.c.l.b16 %v976
    %v3529 = vunpack.c.h.b16 %v976
    %v3530 = vunpack.c.l.b16 %v977
    %v3531 = vunpack.c.h.b16 %v977
    %v3532 = vunpack.c.l.b16 %v978
    %v3533 = vunpack.c.h.b16 %v978
    %v3534 = vunpack.c.l.b16 %v979
    %v3535 = vunpack.c.h.b16 %v979
    %v3536 = vunpack.c.l.b16 %v980
    %v3537 = vunpack.c.h.b16 %v980
    %v3538 = vunpack.c.l.b16 %v981
    %v3539 = vunpack.c.h.b16 %v981
    %v3540 = vunpack.c.l.b16 %v982
    %v3541 = vunpack.c.h.b16 %v982
    %v3542 = vunpack.c.l.b16 %v983
    %v3543 = vunpack.c.h.b16 %v983
    %v3544 = vunpack.c.l.b16 %v984
    %v3545 = vunpack.c.h.b16 %v984
    %v3546 = vunpack.c.l.b16 %v985
    %v3547 = vunpack.c.h.b16 %v985
    %v3548 = vunpack.c.l.b16 %v986
    %v3549 = vunpack.c.h.b16 %v986
    %v3550 = vunpack.c.l.b16 %v987
    %v3551 = vunpack.c.h.b16 %v987
    %v3552 = vunpack.c.l.b16 %v988
    %v3553 = vunpack.c.h.b16 %v988
    %v3554 = vunpack.c.l.b16 %v989
    %v3555 = vunpack.c.h.b16 %v989
    %v3556 = vunpack.c.l.b16 %v990
    %v3557 = vunpack.c.h.b16 %v990
    %v3558 = vunpack.c.l.b16 %v991
    %v3559 = vunpack.c.h.b16 %v991
    %v3560 = vunpack.c.l.b16 %v992
    %v3561 = vunpack.c.h.b16 %v992
    %v3562 = vunpack.c.l.b16 %v993
    %v3563 = vunpack.c.h.b16 %v993
    %v3564 = vunpack.c.l.b16 %v994
    %v3565 = vunpack.c.h.b16 %v994
    %v3566 = vunpack.c.l.b16 %v995
    %v3567 = vunpack.c.h.b16 %v995
    %v3568 = vunpack.c.l.b16 %v996
    %v3569 = vunpack.c.h.b16 %v996
    %v3570 = vunpack.c.l.b16 %v997
    %v3571 = vunpack.c.h.b16 %v997
    %v3572 = vunpack.c.l.b16 %v998
    %v3573 = vunpack.c.h.b16 %v998
    %v3574 = vunpack.c.l.b16 %v999
    %v3575 = vunpack.c.h.b16 %v999
    %v3576 = vunpack.c.l.b16 %v1000
    %v3577 = vunpack.c.h.b16 %v1000
    %v3578 = vunpack.c.l.b16 %v1001
    %v3579 = vunpack.c.h.b16 %v1001
    %v3580 = vunpack.c.l.b16 %v1002
    %v3581 = vunpack.c.h.b16 %v1002
    %v3582 = vunpack.c.l.b16 %v1003
    %v3583 = vunpack.c.h.b16 %v1003
    %v3584 = vunpack.c.l.b16 %v1004
    %v3585 = vunpack.c.h.b16 %v1004
    %v3586 = vunpack.c.l.b16 %v1005
    %v3587 = vunpack.c.h.b16 %v1005
    %v3588 = vunpack.c.l.b16 %v1006
    %v3589 = vunpack.c.h.b16 %v1006
    %v3590 = vunpack.c.l.b16 %v1007
    %v3591 = vunpack.c.h.b16 %v1007
    %v3592 = vunpack.c.l.b16 %v1008
    %v3593 = vunpack.c.h.b16 %v1008
    %v3594 = vunpack.c.l.b16 %v1009
    %v3595 = vunpack.c.h.b16 %v1009
    %v3596 = vunpack.c.l.b16 %v1010
    %v3597 = vunpack.c.h.b16 %v1010
    %v3598 = vunpack.c.l.b16 %v1011
    %v3599 = vunpack.c.h.b16 %v1011
    %v3600 = vunpack.c.l.b16 %v1012
    %v3601 = vunpack.c.h.b16 %v1012
    %v3602 = vunpack.c.l.b16 %v1013
    %v3603 = vunpack.c.h.b16 %v1013
    %v3604 = vunpack.c.l.b16 %v1014
    %v3605 = vunpack.c.h.b16 %v1014
    %v3606 = vunpack.c.l.b16 %v1015
    %v3607 = vunpack.c.h.b16 %v1015
    %v3608 = vunpack.c.l.b16 %v1016
    %v3609 = vunpack.c.h.b16 %v1016
    %v3610 = vunpack.c.l.b16 %v1017
    %v3611 = vunpack.c.h.b16 %v1017
    %v3612 = vunpack.c.l.b16 %v1018
    %v3613 = vunpack.c.h.b16 %v1018
    %v3614 = vunpack.c.l.b16 %v1019
    %v3615 = vunpack.c.h.b16 %v1019
    %v3616 = vunpack.c.l.b16 %v1020
    %v3617 = vunpack.c.h.b16 %v1020
    %v3618 = vunpack.c.l.b16 %v1021
    %v3619 = vunpack.c.h.b16 %v1021
    %v3620 = vunpack.c.l.b16 %v1022
    %v3621 = vunpack.c.h.b16 %v1022
    %v3622 = vunpack.c.l.b16 %v1023
    %v3623 = vunpack.c.h.b16 %v1023
    %v3624 = vunpack.c.l.b16 %v1024
    %v3625 = vunpack.c.h.b16 %v1024
    %v3626 = vunpack.c.l.b16 %v1025
    %v3627 = vunpack.c.h.b16 %v1025
    %v3628 = vunpack.c.l.b16 %v1026
    %v3629 = vunpack.c.h.b16 %v1026
    %v3630 = vunpack.c.l.b16 %v1027
    %v3631 = vunpack.c.h.b16 %v1027
    %v3632 = vunpack.c.l.b16 %v1028
    %v3633 = vunpack.c.h.b16 %v1028
    %v3634 = vunpack.c.l.b16 %v1029
    %v3635 = vunpack.c.h.b16 %v1029
    %v3636 = vunpack.c.l.b16 %v1030
    %v3637 = vunpack.c.h.b16 %v1030
    %v3638 = vunpack.c.l.b16 %v1031
    %v3639 = vunpack.c.h.b16 %v1031
    %v3640 = vunpack.c.l.b16 %v1032
    %v3641 = vunpack.c.h.b16 %v1032
    %v3642 = vunpack.c.l.b16 %v1033
    %v3643 = vunpack.c.h.b16 %v1033
    %v3644 = vunpack.c.l.b16 %v1034
    %v3645 = vunpack.c.h.b16 %v1034
    %v3646 = vunpack.c.l.b16 %v1035
    %v3647 = vunpack.c.h.b16 %v1035
    %v3648 = vunpack.c.l.b16 %v1036
    %v3649 = vunpack.c.h.b16 %v1036
    %v3650 = vunpack.c.l.b16 %v1037
    %v3651 = vunpack.c.h.b16 %v1037
    %v3652 = vunpack.c.l.b16 %v1038
    %v3653 = vunpack.c.h.b16 %v1038
    %v3654 = vunpack.c.l.b16 %v1039
    %v3655 = vunpack.c.h.b16 %v1039
    %v3656 = vunpack.c.l.b16 %v1040
    %v3657 = vunpack.c.h.b16 %v1040
    %v3658 = vunpack.c.l.b16 %v1041
    %v3659 = vunpack.c.h.b16 %v1041
    %v3660 = vunpack.c.l.b16 %v1042
    %v3661 = vunpack.c.h.b16 %v1042
    %v3662 = vunpack.c.l.b16 %v1043
    %v3663 = vunpack.c.h.b16 %v1043
    %v3664 = vunpack.c.l.b16 %v1044
    %v3665 = vunpack.c.h.b16 %v1044
    %v3666 = vunpack.c.l.b16 %v1045
    %v3667 = vunpack.c.h.b16 %v1045
    %v3668 = vunpack.c.l.b16 %v1046
    %v3669 = vunpack.c.h.b16 %v1046
    %v3670 = vunpack.c.l.b16 %v1047
    %v3671 = vunpack.c.h.b16 %v1047
    %v3672 = vunpack.c.l.b16 %v1048
    %v3673 = vunpack.c.h.b16 %v1048
    %v3674 = vunpack.c.l.b16 %v1049
    %v3675 = vunpack.c.h.b16 %v1049
    %v3676 = vunpack.c.l.b16 %v1050
    %v3677 = vunpack.c.h.b16 %v1050
    %v3678 = vunpack.c.l.b16 %v1051
    %v3679 = vunpack.c.h.b16 %v1051
    %v3680 = vunpack.c.l.b16 %v1052
    %v3681 = vunpack.c.h.b16 %v1052
    %v3682 = vunpack.c.l.b16 %v1053
    %v3683 = vunpack.c.h.b16 %v1053
    %v3684 = vunpack.c.l.b16 %v1054
    %v3685 = vunpack.c.h.b16 %v1054
    %v3686 = vunpack.c.l.b16 %v1055
    %v3687 = vunpack.c.h.b16 %v1055
    %v3688 = vunpack.c.l.b16 %v1056
    %v3689 = vunpack.c.h.b16 %v1056
    %v3690 = vunpack.c.l.b16 %v1057
    %v3691 = vunpack.c.h.b16 %v1057
    %v3692 = vunpack.c.l.b16 %v1058
    %v3693 = vunpack.c.h.b16 %v1058
    %v3694 = vunpack.c.l.b16 %v1059
    %v3695 = vunpack.c.h.b16 %v1059
    %v3696 = vunpack.c.l.b16 %v1060
    %v3697 = vunpack.c.h.b16 %v1060
    %v3698 = vunpack.c.l.b16 %v1061
    %v3699 = vunpack.c.h.b16 %v1061
    %v3700 = vunpack.c.l.b16 %v1062
    %v3701 = vunpack.c.h.b16 %v1062
    %v3702 = vunpack.c.l.b16 %v1063
    %v3703 = vunpack.c.h.b16 %v1063
    %v3704 = vunpack.c.l.b16 %v1064
    %v3705 = vunpack.c.h.b16 %v1064
    %v3706 = vunpack.c.l.b16 %v1065
    %v3707 = vunpack.c.h.b16 %v1065
    %v3708 = vunpack.c.l.b16 %v1066
    %v3709 = vunpack.c.h.b16 %v1066
    %v3710 = vunpack.c.l.b16 %v1067
    %v3711 = vunpack.c.h.b16 %v1067
    %v3712 = vunpack.c.l.b16 %v1068
    %v3713 = vunpack.c.h.b16 %v1068
    %v3714 = vunpack.c.l.b16 %v1069
    %v3715 = vunpack.c.h.b16 %v1069
    %v3716 = vunpack.c.l.b16 %v1070
    %v3717 = vunpack.c.h.b16 %v1070
    %v3718 = vunpack.c.l.b16 %v1071
    %v3719 = vunpack.c.h.b16 %v1071
    %v3720 = vunpack.c.l.b16 %v1072
    %v3721 = vunpack.c.h.b16 %v1072
    %v3722 = vunpack.c.l.b16 %v1073
    %v3723 = vunpack.c.h.b16 %v1073
    %v3724 = vunpack.c.l.b16 %v1074
    %v3725 = vunpack.c.h.b16 %v1074
    %v3726 = vunpack.c.l.b16 %v1075
    %v3727 = vunpack.c.h.b16 %v1075
    %v3728 = vunpack.c.l.b16 %v1076
    %v3729 = vunpack.c.h.b16 %v1076
    %v3730 = vunpack.c.l.b16 %v1077
    %v3731 = vunpack.c.h.b16 %v1077
    %v3732 = vunpack.c.l.b16 %v1078
    %v3733 = vunpack.c.h.b16 %v1078
    %v3734 = vunpack.c.l.b16 %v1079
    %v3735 = vunpack.c.h.b16 %v1079
    %v3736 = vunpack.c.l.b16 %v1080
    %v3737 = vunpack.c.h.b16 %v1080
    %v3738 = vunpack.c.l.b16 %v1081
    %v3739 = vunpack.c.h.b16 %v1081
    %v3740 = vunpack.c.l.b16 %v1082
    %v3741 = vunpack.c.h.b16 %v1082
    %v3742 = vunpack.c.l.b16 %v1083
    %v3743 = vunpack.c.h.b16 %v1083
    %v3744 = vunpack.c.l.b16 %v1084
    %v3745 = vunpack.c.h.b16 %v1084
    %v3746 = vunpack.c.l.b16 %v1085
    %v3747 = vunpack.c.h.b16 %v1085
    %v3748 = vunpack.c.l.b16 %v1086
    %v3749 = vunpack.c.h.b16 %v1086
    %v3750 = vunpack.c.l.b16 %v1087
    %v3751 = vunpack.c.h.b16 %v1087
    %v3752 = vunpack.c.l.b16 %v1088
    %v3753 = vunpack.c.h.b16 %v1088
    %v3754 = vunpack.c.l.b16 %v1089
    %v3755 = vunpack.c.h.b16 %v1089
    %v3756 = vunpack.c.l.b16 %v1090
    %v3757 = vunpack.c.h.b16 %v1090
    %v3758 = vunpack.c.l.b16 %v1091
    %v3759 = vunpack.c.h.b16 %v1091
    %v3760 = vunpack.c.l.b16 %v1092
    %v3761 = vunpack.c.h.b16 %v1092
    %v3762 = vunpack.c.l.b16 %v1093
    %v3763 = vunpack.c.h.b16 %v1093
    %v3764 = vunpack.c.l.b16 %v1094
    %v3765 = vunpack.c.h.b16 %v1094
    %v3766 = vunpack.c.l.b16 %v1095
    %v3767 = vunpack.c.h.b16 %v1095
    %v3768 = vunpack.c.l.b16 %v1096
    %v3769 = vunpack.c.h.b16 %v1096
    %v3770 = vunpack.c.l.b16 %v1097
    %v3771 = vunpack.c.h.b16 %v1097
    %v3772 = vunpack.c.l.b16 %v1098
    %v3773 = vunpack.c.h.b16 %v1098
    %v3774 = vunpack.c.l.b16 %v1099
    %v3775 = vunpack.c.h.b16 %v1099
    %v3776 = vunpack.c.l.b16 %v1100
    %v3777 = vunpack.c.h.b16 %v1100
    %v3778 = vunpack.c.l.b16 %v1101
    %v3779 = vunpack.c.h.b16 %v1101
    %v3780 = vunpack.c.l.b16 %v1102
    %v3781 = vunpack.c.h.b16 %v1102
    %v3782 = vunpack.c.l.b16 %v1103
    %v3783 = vunpack.c.h.b16 %v1103
    %v3784 = vunpack.c.l.b16 %v1104
    %v3785 = vunpack.c.h.b16 %v1104
    %v3786 = vunpack.c.l.b16 %v1105
    %v3787 = vunpack.c.h.b16 %v1105
    %v3788 = vunpack.c.l.b16 %v1106
    %v3789 = vunpack.c.h.b16 %v1106
    %v3790 = vunpack.c.l.b16 %v1107
    %v3791 = vunpack.c.h.b16 %v1107
    %v3792 = vunpack.c.l.b16 %v1108
    %v3793 = vunpack.c.h.b16 %v1108
    %v3794 = vunpack.c.l.b16 %v1109
    %v3795 = vunpack.c.h.b16 %v1109
    %v3796 = vunpack.c.l.b16 %v1110
    %v3797 = vunpack.c.h.b16 %v1110
    %v3798 = vunpack.c.l.b16 %v1111
    %v3799 = vunpack.c.h.b16 %v1111
    %v3800 = vunpack.c.l.b16 %v1112
    %v3801 = vunpack.c.h.b16 %v1112
    %v3802 = vunpack.c.l.b16 %v1113
    %v3803 = vunpack.c.h.b16 %v1113
    %v3804 = vunpack.c.l.b16 %v1114
    %v3805 = vunpack.c.h.b16 %v1114
    %v3806 = vunpack.c.l.b16 %v1115
    %v3807 = vunpack.c.h.b16 %v1115
    %v3808 = vunpack.c.l.b16 %v1116
    %v3809 = vunpack.c.h.b16 %v1116
    %v3810 = vunpack.c.l.b16 %v1117
    %v3811 = vunpack.c.h.b16 %v1117
    %v3812 = vunpack.c.l.b16 %v1118
    %v3813 = vunpack.c.h.b16 %v1118
    %v3814 = vunpack.c.l.b16 %v1119
    %v3815 = vunpack.c.h.b16 %v1119
    %v3816 = vunpack.c.l.b16 %v1120
    %v3817 = vunpack.c.h.b16 %v1120
    %v3818 = vunpack.c.l.b16 %v1121
    %v3819 = vunpack.c.h.b16 %v1121
    %v3820 = vunpack.c.l.b16 %v1122
    %v3821 = vunpack.c.h.b16 %v1122
    %v3822 = vunpack.c.l.b16 %v1123
    %v3823 = vunpack.c.h.b16 %v1123
    %v3824 = vunpack.c.l.b16 %v1124
    %v3825 = vunpack.c.h.b16 %v1124
    %v3826 = vunpack.c.l.b16 %v1125
    %v3827 = vunpack.c.h.b16 %v1125
    %v3828 = vunpack.c.l.b16 %v1126
    %v3829 = vunpack.c.h.b16 %v1126
    %v3830 = vunpack.c.l.b16 %v1127
    %v3831 = vunpack.c.h.b16 %v1127
    %v3832 = vunpack.c.l.b16 %v1128
    %v3833 = vunpack.c.h.b16 %v1128
    %v3834 = vunpack.c.l.b16 %v1129
    %v3835 = vunpack.c.h.b16 %v1129
    %v3836 = vunpack.c.l.b16 %v1130
    %v3837 = vunpack.c.h.b16 %v1130
    %v3838 = vunpack.c.l.b16 %v1131
    %v3839 = vunpack.c.h.b16 %v1131
    %v3840 = vunpack.c.l.b16 %v1132
    %v3841 = vunpack.c.h.b16 %v1132
    %v3842 = vunpack.c.l.b16 %v1133
    %v3843 = vunpack.c.h.b16 %v1133
    %v3844 = vunpack.c.l.b16 %v1134
    %v3845 = vunpack.c.h.b16 %v1134
    %v3846 = vunpack.c.l.b16 %v1135
    %v3847 = vunpack.c.h.b16 %v1135
    %v3848 = vunpack.c.l.b16 %v1136
    %v3849 = vunpack.c.h.b16 %v1136
    %v3850 = vunpack.c.l.b16 %v1137
    %v3851 = vunpack.c.h.b16 %v1137
    %v3852 = vunpack.c.l.b16 %v1138
    %v3853 = vunpack.c.h.b16 %v1138
    %v3854 = vunpack.c.l.b16 %v1139
    %v3855 = vunpack.c.h.b16 %v1139
    %v3856 = vunpack.c.l.b16 %v1140
    %v3857 = vunpack.c.h.b16 %v1140
    %v3858 = vunpack.c.l.b16 %v1141
    %v3859 = vunpack.c.h.b16 %v1141
    %v3860 = vunpack.c.l.b16 %v1142
    %v3861 = vunpack.c.h.b16 %v1142
    %v3862 = vunpack.c.l.b16 %v1143
    %v3863 = vunpack.c.h.b16 %v1143
    %v3864 = vunpack.c.l.b16 %v1144
    %v3865 = vunpack.c.h.b16 %v1144
    %v3866 = vunpack.c.l.b16 %v1145
    %v3867 = vunpack.c.h.b16 %v1145
    %v3868 = vunpack.c.l.b16 %v1146
    %v3869 = vunpack.c.h.b16 %v1146
    %v3870 = vunpack.c.l.b16 %v1147
    %v3871 = vunpack.c.h.b16 %v1147
    %v3872 = vunpack.c.l.b16 %v1148
    %v3873 = vunpack.c.h.b16 %v1148
    %v3874 = vunpack.c.l.b16 %v1149
    %v3875 = vunpack.c.h.b16 %v1149
    %v3876 = vunpack.c.l.b16 %v1150
    %v3877 = vunpack.c.h.b16 %v1150
    %v3878 = vunpack.c.l.b16 %v1151
    %v3879 = vunpack.c.h.b16 %v1151
    %v3880 = vunpack.c.l.b16 %v1152
    %v3881 = vunpack.c.h.b16 %v1152
    %v3882 = vunpack.c.l.b16 %v1153
    %v3883 = vunpack.c.h.b16 %v1153
    %v3884 = vunpack.c.l.b16 %v1154
    %v3885 = vunpack.c.h.b16 %v1154
    %v3886 = vunpack.c.l.b16 %v1155
    %v3887 = vunpack.c.h.b16 %v1155
    %v3888 = vunpack.c.l.b16 %v1156
    %v3889 = vunpack.c.h.b16 %v1156
    %v3890 = vunpack.c.l.b16 %v1157
    %v3891 = vunpack.c.h.b16 %v1157
    %v3892 = vunpack.c.l.b16 %v1158
    %v3893 = vunpack.c.h.b16 %v1158
    %v3894 = vunpack.c.l.b16 %v1159
    %v3895 = vunpack.c.h.b16 %v1159
    %v3896 = vunpack.c.l.b16 %v1160
    %v3897 = vunpack.c.h.b16 %v1160
    %v3898 = vunpack.c.l.b16 %v1161
    %v3899 = vunpack.c.h.b16 %v1161
    %v3900 = vunpack.c.l.b16 %v1162
    %v3901 = vunpack.c.h.b16 %v1162
    %v3902 = vunpack.c.l.b16 %v1163
    %v3903 = vunpack.c.h.b16 %v1163
    %v3904 = vunpack.c.l.b16 %v1164
    %v3905 = vunpack.c.h.b16 %v1164
    %v3906 = vunpack.c.l.b16 %v1165
    %v3907 = vunpack.c.h.b16 %v1165
    %v3908 = vunpack.c.l.b16 %v1166
    %v3909 = vunpack.c.h.b16 %v1166
    %v3910 = vunpack.c.l.b16 %v1167
    %v3911 = vunpack.c.h.b16 %v1167
    %v3912 = vunpack.c.l.b16 %v1168
    %v3913 = vunpack.c.h.b16 %v1168
    %v3914 = vunpack.c.l.b16 %v1169
    %v3915 = vunpack.c.h.b16 %v1169
    %v3916 = vunpack.c.l.b16 %v1170
    %v3917 = vunpack.c.h.b16 %v1170
    %v3918 = vunpack.c.l.b16 %v1171
    %v3919 = vunpack.c.h.b16 %v1171
    %v3920 = vunpack.c.l.b16 %v1172
    %v3921 = vunpack.c.h.b16 %v1172
    %v3922 = vunpack.c.l.b16 %v1173
    %v3923 = vunpack.c.h.b16 %v1173
    %v3924 = vunpack.c.l.b16 %v1174
    %v3925 = vunpack.c.h.b16 %v1174
    %v3926 = vunpack.c.l.b16 %v1175
    %v3927 = vunpack.c.h.b16 %v1175
    %v3928 = vunpack.c.l.b16 %v1176
    %v3929 = vunpack.c.h.b16 %v1176
    %v3930 = vunpack.c.l.b16 %v1177
    %v3931 = vunpack.c.h.b16 %v1177
    %v3932 = vunpack.c.l.b16 %v1178
    %v3933 = vunpack.c.h.b16 %v1178
    %v3934 = vunpack.c.l.b16 %v1179
    %v3935 = vunpack.c.h.b16 %v1179
    %v3936 = vunpack.c.l.b16 %v1180
    %v3937 = vunpack.c.h.b16 %v1180
    %v3938 = vunpack.c.l.b16 %v1181
    %v3939 = vunpack.c.h.b16 %v1181
    %v3940 = vunpack.c.l.b16 %v1182
    %v3941 = vunpack.c.h.b16 %v1182
    %v3942 = vunpack.c.l.b16 %v1183
    %v3943 = vunpack.c.h.b16 %v1183
    %v3944 = vunpack.c.l.b16 %v1184
    %v3945 = vunpack.c.h.b16 %v1184
    %v3946 = vunpack.c.l.b16 %v1185
    %v3947 = vunpack.c.h.b16 %v1185
    %v3948 = vunpack.c.l.b16 %v1186
    %v3949 = vunpack.c.h.b16 %v1186
    %v3950 = vunpack.c.l.b16 %v1187
    %v3951 = vunpack.c.h.b16 %v1187
    %v3952 = vunpack.c.l.b16 %v1188
    %v3953 = vunpack.c.h.b16 %v1188
    %v3954 = vunpack.c.l.b16 %v1189
    %v3955 = vunpack.c.h.b16 %v1189
    %v3956 = vunpack.c.l.b16 %v1190
    %v3957 = vunpack.c.h.b16 %v1190
    %v3958 = vunpack.c.l.b16 %v1191
    %v3959 = vunpack.c.h.b16 %v1191
    %v3960 = vunpack.c.l.b16 %v1192
    %v3961 = vunpack.c.h.b16 %v1192
    %v3962 = vunpack.c.l.b16 %v1193
    %v3963 = vunpack.c.h.b16 %v1193
    %v3964 = vunpack.c.l.b16 %v1194
    %v3965 = vunpack.c.h.b16 %v1194
    %v3966 = vunpack.c.l.b16 %v1195
    %v3967 = vunpack.c.h.b16 %v1195
    %v3968 = vunpack.c.l.b16 %v1196
    %v3969 = vunpack.c.h.b16 %v1196
    %v3970 = vunpack.c.l.b16 %v1197
    %v3971 = vunpack.c.h.b16 %v1197
    %v3972 = vunpack.c.l.b16 %v1198
    %v3973 = vunpack.c.h.b16 %v1198
    %v3974 = vunpack.c.l.b16 %v1199
    %v3975 = vunpack.c.h.b16 %v1199
    %v3976 = vunpack.c.l.b16 %v1200
    %v3977 = vunpack.c.h.b16 %v1200
    %v3978 = vunpack.c.l.b16 %v1201
    %v3979 = vunpack.c.h.b16 %v1201
    %v3980 = vunpack.c.l.b16 %v1202
    %v3981 = vunpack.c.h.b16 %v1202
    %v3982 = vunpack.c.l.b16 %v1203
    %v3983 = vunpack.c.h.b16 %v1203
    %v3984 = vunpack.c.l.b16 %v1204
    %v3985 = vunpack.c.h.b16 %v1204
    %v3986 = vunpack.c.l.b16 %v1205
    %v3987 = vunpack.c.h.b16 %v1205
    %v3988 = vunpack.c.l.b16 %v1206
    %v3989 = vunpack.c.h.b16 %v1206
    %v3990 = vunpack.c.l.b16 %v1207
    %v3991 = vunpack.c.h.b16 %v1207
    %v3992 = vunpack.c.l.b16 %v1208
    %v3993 = vunpack.c.h.b16 %v1208
    %v3994 = vunpack.c.l.b16 %v1209
    %v3995 = vunpack.c.h.b16 %v1209
    %v3996 = vunpack.c.l.b16 %v1210
    %v3997 = vunpack.c.h.b16 %v1210
    %v3998 = vunpack.c.l.b16 %v1211
    %v3999 = vunpack.c.h.b16 %v1211
    %v4000 = vunpack.c.l.b16 %v1212
    %v4001 = vunpack.c.h.b16 %v1212
    %v4002 = vunpack.c.l.b16 %v1213
    %v4003 = vunpack.c.h.b16 %v1213
    %v4004 = vunpack.c.l.b16 %v1214
    %v4005 = vunpack.c.h.b16 %v1214
    %v4006 = vunpack.c.l.b16 %v1215
    %v4007 = vunpack.c.h.b16 %v1215
    %v4008 = vunpack.c.l.b16 %v1216
    %v4009 = vunpack.c.h.b16 %v1216
    %v4010 = vunpack.c.l.b16 %v1217
    %v4011 = vunpack.c.h.b16 %v1217
    %v4012 = vunpack.c.l.b16 %v1218
    %v4013 = vunpack.c.h.b16 %v1218
    %v4014 = vunpack.c.l.b16 %v1219
    %v4015 = vunpack.c.h.b16 %v1219
    %v4016 = vunpack.c.l.b16 %v1220
    %v4017 = vunpack.c.h.b16 %v1220
    %v4018 = vunpack.c.l.b16 %v1221
    %v4019 = vunpack.c.h.b16 %v1221
    %v4020 = vunpack.c.l.b16 %v1222
    %v4021 = vunpack.c.h.b16 %v1222
    %v4022 = vunpack.c.l.b16 %v1223
    %v4023 = vunpack.c.h.b16 %v1223
    %v4024 = vunpack.c.l.b16 %v1224
    %v4025 = vunpack.c.h.b16 %v1224
    %v4026 = vunpack.c.l.b16 %v1225
    %v4027 = vunpack.c.h.b16 %v1225
    %v4028 = vunpack.c.l.b16 %v1226
    %v4029 = vunpack.c.h.b16 %v1226
    %v4030 = vunpack.c.l.b16 %v1227
    %v4031 = vunpack.c.h.b16 %v1227
    %v4032 = vunpack.c.l.b16 %v1228
    %v4033 = vunpack.c.h.b16 %v1228
    %v4034 = vunpack.c.l.b16 %v1229
    %v4035 = vunpack.c.h.b16 %v1229
    %v4036 = vunpack.c.l.b16 %v1230
    %v4037 = vunpack.c.h.b16 %v1230
    %v4038 = vunpack.c.l.b16 %v1231
    %v4039 = vunpack.c.h.b16 %v1231
    %v4040 = vunpack.c.l.b16 %v1232
    %v4041 = vunpack.c.h.b16 %v1232
    %v4042 = vunpack.c.l.b16 %v1233
    %v4043 = vunpack.c.h.b16 %v1233
    %v4044 = vunpack.c.l.b16 %v1234
    %v4045 = vunpack.c.h.b16 %v1234
    %v4046 = vunpack.c.l.b16 %v1235
    %v4047 = vunpack.c.h.b16 %v1235
    %v4048 = vunpack.c.l.b16 %v1236
    %v4049 = vunpack.c.h.b16 %v1236
    %v4050 = vunpack.c.l.b16 %v1237
    %v4051 = vunpack.c.h.b16 %v1237
    %v4052 = vunpack.c.l.b16 %v1238
    %v4053 = vunpack.c.h.b16 %v1238
    %v4054 = vunpack.c.l.b16 %v1239
    %v4055 = vunpack.c.h.b16 %v1239
    %v4056 = vunpack.c.l.b16 %v1240
    %v4057 = vunpack.c.h.b16 %v1240
    %v4058 = vunpack.c.l.b16 %v1241
    %v4059 = vunpack.c.h.b16 %v1241
    %v4060 = vunpack.c.l.b16 %v1242
    %v4061 = vunpack.c.h.b16 %v1242
    %v4062 = vunpack.c.l.b16 %v1243
    %v4063 = vunpack.c.h.b16 %v1243
    %v4064 = vunpack.c.l.b16 %v1244
    %v4065 = vunpack.c.h.b16 %v1244
    %v4066 = vunpack.c.l.b16 %v1245
    %v4067 = vunpack.c.h.b16 %v1245
    %v4068 = vunpack.c.l.b16 %v1246
    %v4069 = vunpack.c.h.b16 %v1246
    %v4070 = vunpack.c.l.b16 %v1247
    %v4071 = vunpack.c.h.b16 %v1247
    %v4072 = vunpack.c.l.b16 %v1248
    %v4073 = vunpack.c.h.b16 %v1248
    %v4074 = vunpack.c.l.b16 %v1249
    %v4075 = vunpack.c.h.b16 %v1249
    %v4076 = vunpack.c.l.b16 %v1250
    %v4077 = vunpack.c.h.b16 %v1250
    %v4078 = vunpack.c.l.b16 %v1251
    %v4079 = vunpack.c.h.b16 %v1251
    %v4080 = vunpack.c.l.b16 %v1252
    %v4081 = vunpack.c.h.b16 %v1252
    %v4082 = vunpack.c.l.b16 %v1253
    %v4083 = vunpack.c.h.b16 %v1253
    %v4084 = vunpack.c.l.b16 %v1254
    %v4085 = vunpack.c.h.b16 %v1254
    %v4086 = vunpack.c.l.b16 %v1255
    %v4087 = vunpack.c.h.b16 %v1255
    %v4088 = vunpack.c.l.b16 %v1256
    %v4089 = vunpack.c.h.b16 %v1256
    %v4090 = vunpack.c.l.b16 %v1257
    %v4091 = vunpack.c.h.b16 %v1257
    %v4092 = vunpack.c.l.b16 %v1258
    %v4093 = vunpack.c.h.b16 %v1258
    %v4094 = vunpack.c.l.b16 %v1259
    %v4095 = vunpack.c.h.b16 %v1259
    %v4096 = vunpack.c.l.b16 %v1260
    %v4097 = vunpack.c.h.b16 %v1260
    %v4098 = vunpack.c.l.b16 %v1261
    %v4099 = vunpack.c.h.b16 %v1261
    %v4100 = vunpack.c.l.b16 %v1262
    %v4101 = vunpack.c.h.b16 %v1262
    %v4102 = vunpack.c.l.b16 %v1263
    %v4103 = vunpack.c.h.b16 %v1263
    %v4104 = vunpack.c.l.b16 %v1264
    %v4105 = vunpack.c.h.b16 %v1264
    %v4106 = vunpack.c.l.b16 %v1265
    %v4107 = vunpack.c.h.b16 %v1265
    %v4108 = vunpack.c.l.b16 %v1266
    %v4109 = vunpack.c.h.b16 %v1266
    %v4110 = vunpack.c.l.b16 %v1267
    %v4111 = vunpack.c.h.b16 %v1267
    %v4112 = vunpack.c.l.b16 %v1268
    %v4113 = vunpack.c.h.b16 %v1268
    %v4114 = vunpack.c.l.b16 %v1269
    %v4115 = vunpack.c.h.b16 %v1269
    %v4116 = vunpack.c.l.b16 %v1270
    %v4117 = vunpack.c.h.b16 %v1270
    %v4118 = vunpack.c.l.b16 %v1271
    %v4119 = vunpack.c.h.b16 %v1271
    %v4120 = vunpack.c.l.b16 %v1272
    %v4121 = vunpack.c.h.b16 %v1272
    %v4122 = vunpack.c.l.b16 %v1273
    %v4123 = vunpack.c.h.b16 %v1273
    %v4124 = vunpack.c.l.b16 %v1274
    %v4125 = vunpack.c.h.b16 %v1274
    %v4126 = vunpack.c.l.b16 %v1275
    %v4127 = vunpack.c.h.b16 %v1275
    %v4128 = vunpack.c.l.b16 %v1276
    %v4129 = vunpack.c.h.b16 %v1276
    %v4130 = vunpack.c.l.b16 %v1277
    %v4131 = vunpack.c.h.b16 %v1277
    %v4132 = vunpack.c.l.b16 %v1278
    %v4133 = vunpack.c.h.b16 %v1278
    %v4134 = vunpack.c.l.b16 %v1279
    %v4135 = vunpack.c.h.b16 %v1279
    %v4136 = vunpack.c.l.b16 %v1280
    %v4137 = vunpack.c.h.b16 %v1280
    %v4138 = vunpack.c.l.b16 %v1281
    %v4139 = vunpack.c.h.b16 %v1281
    %v4140 = vunpack.c.l.b16 %v1282
    %v4141 = vunpack.c.h.b16 %v1282
    %v4142 = vunpack.c.l.b16 %v1283
    %v4143 = vunpack.c.h.b16 %v1283
    %v4144 = vunpack.c.l.b16 %v1284
    %v4145 = vunpack.c.h.b16 %v1284
    %v4146 = vunpack.c.l.b16 %v1285
    %v4147 = vunpack.c.h.b16 %v1285
    %v4148 = vunpack.c.l.b16 %v1286
    %v4149 = vunpack.c.h.b16 %v1286
    %v4150 = vunpack.c.l.b16 %v1287
    %v4151 = vunpack.c.h.b16 %v1287
    %v4152 = vunpack.c.l.b16 %v1288
    %v4153 = vunpack.c.h.b16 %v1288
    %v4154 = vunpack.c.l.b16 %v1289
    %v4155 = vunpack.c.h.b16 %v1289
    %v4156 = vunpack.c.l.b16 %v1290
    %v4157 = vunpack.c.h.b16 %v1290
    %v4158 = vunpack.c.l.b16 %v1291
    %v4159 = vunpack.c.h.b16 %v1291
    %v4160 = vunpack.c.l.b16 %v1292
    %v4161 = vunpack.c.h.b16 %v1292
    %v4162 = vunpack.c.l.b16 %v1293
    %v4163 = vunpack.c.h.b16 %v1293
    %v4164 = vunpack.c.l.b16 %v1294
    %v4165 = vunpack.c.h.b16 %v1294
    %v4166 = vunpack.c.l.b16 %v1295
    %v4167 = vunpack.c.h.b16 %v1295
    %v4168 = vunpack.c.l.b16 %v1296
    %v4169 = vunpack.c.h.b16 %v1296
    %v4170 = vunpack.c.l.b16 %v1297
    %v4171 = vunpack.c.h.b16 %v1297
    %v4172 = vunpack.c.l.b16 %v1298
    %v4173 = vunpack.c.h.b16 %v1298
    %v4174 = vunpack.c.l.b16 %v1299
    %v4175 = vunpack.c.h.b16 %v1299
    %v4176 = vunpack.c.l.b16 %v1300
    %v4177 = vunpack.c.h.b16 %v1300
    %v4178 = vunpack.c.l.b16 %v1301
    %v4179 = vunpack.c.h.b16 %v1301
    %v4180 = vunpack.c.l.b16 %v1302
    %v4181 = vunpack.c.h.b16 %v1302
    %v4182 = vunpack.c.l.b16 %v1303
    %v4183 = vunpack.c.h.b16 %v1303
    %v4184 = vunpack.c.l.b16 %v1304
    %v4185 = vunpack.c.h.b16 %v1304
    %v4186 = vunpack.c.l.b16 %v1305
    %v4187 = vunpack.c.h.b16 %v1305
    %v4188 = vunpack.c.l.b16 %v1306
    %v4189 = vunpack.c.h.b16 %v1306
    %v4190 = vunpack.c.l.b16 %v1307
    %v4191 = vunpack.c.h.b16 %v1307
    %v4192 = vunpack.c.l.b16 %v1308
    %v4193 = vunpack.c.h.b16 %v1308
    %v4194 = vunpack.c.l.b16 %v1309
    %v4195 = vunpack.c.h.b16 %v1309
    %v4196 = vunpack.c.l.b16 %v1310
    %v4197 = vunpack.c.h.b16 %v1310
    %v4198 = vunpack.c.l.b16 %v1311
    %v4199 = vunpack.c.h.b16 %v1311
    %v4200 = vunpack.c.l.b16 %v1312
    %v4201 = vunpack.c.h.b16 %v1312
    %v4202 = vunpack.c.l.b16 %v1313
    %v4203 = vunpack.c.h.b16 %v1313
    %v4204 = vunpack.c.l.b16 %v1314
    %v4205 = vunpack.c.h.b16 %v1314
    %v4206 = vunpack.c.l.b16 %v1315
    %v4207 = vunpack.c.h.b16 %v1315
    %v4208 = vunpack.c.l.b16 %v1316
    %v4209 = vunpack.c.h.b16 %v1316
    %v4210 = vunpack.c.l.b16 %v1317
    %v4211 = vunpack.c.h.b16 %v1317
    %v4212 = vunpack.c.l.b16 %v1318
    %v4213 = vunpack.c.h.b16 %v1318
    %v4214 = vunpack.c.l.b16 %v1319
    %v4215 = vunpack.c.h.b16 %v1319
    %v4216 = vunpack.c.l.b16 %v1320
    %v4217 = vunpack.c.h.b16 %v1320
    %v4218 = vunpack.c.l.b16 %v1321
    %v4219 = vunpack.c.h.b16 %v1321
    %v4220 = vunpack.c.l.b16 %v1322
    %v4221 = vunpack.c.h.b16 %v1322
    %v4222 = vunpack.c.l.b16 %v1323
    %v4223 = vunpack.c.h.b16 %v1323
    %v4224 = vunpack.c.l.b16 %v1324
    %v4225 = vunpack.c.h.b16 %v1324
    %v4226 = vunpack.c.l.b16 %v1325
    %v4227 = vunpack.c.h.b16 %v1325
    %v4228 = vunpack.c.l.b16 %v1326
    %v4229 = vunpack.c.h.b16 %v1326
    %v4230 = vunpack.c.l.b16 %v1327
    %v4231 = vunpack.c.h.b16 %v1327
    %v4232 = vunpack.c.l.b16 %v1328
    %v4233 = vunpack.c.h.b16 %v1328
    %v4234 = vunpack.c.l.b16 %v1329
    %v4235 = vunpack.c.h.b16 %v1329
    %v4236 = vunpack.c.l.b16 %v1330
    %v4237 = vunpack.c.h.b16 %v1330
    %v4238 = vunpack.c.l.b16 %v1331
    %v4239 = vunpack.c.h.b16 %v1331
    %v4240 = vunpack.c.l.b16 %v1332
    %v4241 = vunpack.c.h.b16 %v1332
    %v4242 = vunpack.c.l.b16 %v1333
    %v4243 = vunpack.c.h.b16 %v1333
    %v4244 = vunpack.c.l.b16 %v1334
    %v4245 = vunpack.c.h.b16 %v1334
    %v4246 = vunpack.c.l.b16 %v1335
    %v4247 = vunpack.c.h.b16 %v1335
    %v4248 = vunpack.c.l.b16 %v1336
    %v4249 = vunpack.c.h.b16 %v1336
    %v4250 = vunpack.c.l.b16 %v1337
    %v4251 = vunpack.c.h.b16 %v1337
    %v4252 = vunpack.c.l.b16 %v1338
    %v4253 = vunpack.c.h.b16 %v1338
    %v4254 = vunpack.c.l.b16 %v1339
    %v4255 = vunpack.c.h.b16 %v1339
    %v4256 = vunpack.c.l.b16 %v1340
    %v4257 = vunpack.c.h.b16 %v1340
    %v4258 = vunpack.c.l.b16 %v1341
    %v4259 = vunpack.c.h.b16 %v1341
    %v4260 = vunpack.c.l.b16 %v1342
    %v4261 = vunpack.c.h.b16 %v1342
    %v4262 = vunpack.c.l.b16 %v1343
    %v4263 = vunpack.c.h.b16 %v1343
    %v4264 = vunpack.c.l.b16 %v1344
    %v4265 = vunpack.c.h.b16 %v1344
    %v4266 = vunpack.c.l.b16 %v1345
    %v4267 = vunpack.c.h.b16 %v1345
    %v4268 = vunpack.c.l.b16 %v1346
    %v4269 = vunpack.c.h.b16 %v1346
    %v4270 = vunpack.c.l.b16 %v1347
    %v4271 = vunpack.c.h.b16 %v1347
    %v4272 = vunpack.c.l.b16 %v1348
    %v4273 = vunpack.c.h.b16 %v1348
    %v4274 = vunpack.c.l.b16 %v1349
    %v4275 = vunpack.c.h.b16 %v1349
    %v4276 = vunpack.c.l.b16 %v1350
    %v4277 = vunpack.c.h.b16 %v1350
    %v4278 = vunpack.c.l.b16 %v1351
    %v4279 = vunpack.c.h.b16 %v1351
    %v4280 = vunpack.c.l.b16 %v1352
    %v4281 = vunpack.c.h.b16 %v1352
    %v4282 = vunpack.c.l.b16 %v1353
    %v4283 = vunpack.c.h.b16 %v1353
    %v4284 = vunpack.c.l.b16 %v1354
    %v4285 = vunpack.c.h.b16 %v1354
    %v4286 = vunpack.c.l.b16 %v1355
    %v4287 = vunpack.c.h.b16 %v1355
    %v4288 = vunpack.c.l.b16 %v1356
    %v4289 = vunpack.c.h.b16 %v1356
    %v4290 = vunpack.c.l.b16 %v1357
    %v4291 = vunpack.c.h.b16 %v1357
    %v4292 = vunpack.c.l.b16 %v1358
    %v4293 = vunpack.c.h.b16 %v1358
    %v4294 = vunpack.c.l.b16 %v1359
    %v4295 = vunpack.c.h.b16 %v1359
    %v4296 = vunpack.c.l.b16 %v1360
    %v4297 = vunpack.c.h.b16 %v1360
    %v4298 = vunpack.c.l.b16 %v1361
    %v4299 = vunpack.c.h.b16 %v1361
    %v4300 = vunpack.c.l.b16 %v1362
    %v4301 = vunpack.c.h.b16 %v1362
    %v4302 = vunpack.c.l.b16 %v1363
    %v4303 = vunpack.c.h.b16 %v1363
    %v4304 = vunpack.c.l.b16 %v1364
    %v4305 = vunpack.c.h.b16 %v1364
    %v4306 = vunpack.c.l.b16 %v1365
    %v4307 = vunpack.c.h.b16 %v1365
    %v4308 = vunpack.c.l.b16 %v1366
    %v4309 = vunpack.c.h.b16 %v1366
    %v4310 = vunpack.c.l.b16 %v1367
    %v4311 = vunpack.c.h.b16 %v1367
    %v4312 = vunpack.c.l.b16 %v1368
    %v4313 = vunpack.c.h.b16 %v1368
    %v4314 = vunpack.c.l.b16 %v1369
    %v4315 = vunpack.c.h.b16 %v1369
    %v4316 = vunpack.c.l.b16 %v1370
    %v4317 = vunpack.c.h.b16 %v1370
    %v4318 = vunpack.c.l.b16 %v1371
    %v4319 = vunpack.c.h.b16 %v1371
    %v4320 = vunpack.c.l.b16 %v1372
    %v4321 = vunpack.c.h.b16 %v1372
    %v4322 = vunpack.c.l.b16 %v1373
    %v4323 = vunpack.c.h.b16 %v1373
    %v4324 = vunpack.c.l.b16 %v1374
    %v4325 = vunpack.c.h.b16 %v1374
    %v4326 = vunpack.c.l.b16 %v1375
    %v4327 = vunpack.c.h.b16 %v1375
    %v4328 = vunpack.c.l.b16 %v1376
    %v4329 = vunpack.c.h.b16 %v1376
    %v4330 = vunpack.c.l.b16 %v1377
    %v4331 = vunpack.c.h.b16 %v1377
    %v4332 = vunpack.c.l.b16 %v1378
    %v4333 = vunpack.c.h.b16 %v1378
    %v4334 = vunpack.c.l.b16 %v1379
    %v4335 = vunpack.c.h.b16 %v1379
    %v4336 = vunpack.c.l.b16 %v1380
    %v4337 = vunpack.c.h.b16 %v1380
    %v4338 = vunpack.c.l.b16 %v1381
    %v4339 = vunpack.c.h.b16 %v1381
    %v4340 = vunpack.c.l.b16 %v1382
    %v4341 = vunpack.c.h.b16 %v1382
    %v4342 = vunpack.c.l.b16 %v1383
    %v4343 = vunpack.c.h.b16 %v1383
    %v4344 = vunpack.c.l.b16 %v1384
    %v4345 = vunpack.c.h.b16 %v1384
    %v4346 = vunpack.c.l.b16 %v1385
    %v4347 = vunpack.c.h.b16 %v1385
    %v4348 = vunpack.c.l.b16 %v1386
    %v4349 = vunpack.c.h.b16 %v1386
    %v4350 = vunpack.c.l.b16 %v1387
    %v4351 = vunpack.c.h.b16 %v1387
    %v4352 = vunpack.c.l.b16 %v1388
    %v4353 = vunpack.c.h.b16 %v1388
    %v4354 = vunpack.c.l.b16 %v1389
    %v4355 = vunpack.c.h.b16 %v1389
    %v4356 = vunpack.c.l.b16 %v1390
    %v4357 = vunpack.c.h.b16 %v1390
    %v4358 = vunpack.c.l.b16 %v1391
    %v4359 = vunpack.c.h.b16 %v1391
    %v4360 = vunpack.c.l.b16 %v1392
    %v4361 = vunpack.c.h.b16 %v1392
    %v4362 = vunpack.c.l.b16 %v1393
    %v4363 = vunpack.c.h.b16 %v1393
    %v4364 = vunpack.c.l.b16 %v1394
    %v4365 = vunpack.c.h.b16 %v1394
    %v4366 = vunpack.c.l.b16 %v1395
    %v4367 = vunpack.c.h.b16 %v1395
    %v4368 = vunpack.c.l.b16 %v1396
    %v4369 = vunpack.c.h.b16 %v1396
    %v4370 = vunpack.c.l.b16 %v1397
    %v4371 = vunpack.c.h.b16 %v1397
    %v4372 = vunpack.c.l.b16 %v1398
    %v4373 = vunpack.c.h.b16 %v1398
    %v4374 = vunpack.c.l.b16 %v1399
    %v4375 = vunpack.c.h.b16 %v1399
    %v4376 = vunpack.c.l.b16 %v1400
    %v4377 = vunpack.c.h.b16 %v1400
    %v4378 = vunpack.c.l.b16 %v1401
    %v4379 = vunpack.c.h.b16 %v1401
    %v4380 = vunpack.c.l.b16 %v1402
    %v4381 = vunpack.c.h.b16 %v1402
    %v4382 = vunpack.c.l.b16 %v1403
    %v4383 = vunpack.c.h.b16 %v1403
    %v4384 = vunpack.c.l.b16 %v1404
    %v4385 = vunpack.c.h.b16 %v1404
    %v4386 = vunpack.c.l.b16 %v1405
    %v4387 = vunpack.c.h.b16 %v1405
    %v4388 = vunpack.c.l.b16 %v1406
    %v4389 = vunpack.c.h.b16 %v1406
    %v4390 = vunpack.c.l.b16 %v1407
    %v4391 = vunpack.c.h.b16 %v1407
    %v4392 = vunpack.c.l.b16 %v1408
    %v4393 = vunpack.c.h.b16 %v1408
    %v4394 = vunpack.c.l.b16 %v1409
    %v4395 = vunpack.c.h.b16 %v1409
    %v4396 = vunpack.c.l.b16 %v1410
    %v4397 = vunpack.c.h.b16 %v1410
    %v4398 = vunpack.c.l.b16 %v1411
    %v4399 = vunpack.c.h.b16 %v1411
    %v4400 = vunpack.c.l.b16 %v1412
    %v4401 = vunpack.c.h.b16 %v1412
    %v4402 = vunpack.c.l.b16 %v1413
    %v4403 = vunpack.c.h.b16 %v1413
    %v4404 = vunpack.c.l.b16 %v1414
    %v4405 = vunpack.c.h.b16 %v1414
    %v4406 = vunpack.c.l.b16 %v1415
    %v4407 = vunpack.c.h.b16 %v1415
    %v4408 = vunpack.c.l.b16 %v1416
    %v4409 = vunpack.c.h.b16 %v1416
    %v4410 = vunpack.c.l.b16 %v1417
    %v4411 = vunpack.c.h.b16 %v1417
    %v4412 = vunpack.c.l.b16 %v1418
    %v4413 = vunpack.c.h.b16 %v1418
    %v4414 = vunpack.c.l.b16 %v1419
    %v4415 = vunpack.c.h.b16 %v1419
    %v4416 = vunpack.c.l.b16 %v1420
    %v4417 = vunpack.c.h.b16 %v1420
    %v4418 = vunpack.c.l.b16 %v1421
    %v4419 = vunpack.c.h.b16 %v1421
    %v4420 = vunpack.c.l.b16 %v1422
    %v4421 = vunpack.c.h.b16 %v1422
    %v4422 = vunpack.c.l.b16 %v1423
    %v4423 = vunpack.c.h.b16 %v1423
    %v4424 = vunpack.c.l.b16 %v1424
    %v4425 = vunpack.c.h.b16 %v1424
    %v4426 = vunpack.c.l.b16 %v1425
    %v4427 = vunpack.c.h.b16 %v1425
    %v4428 = vunpack.c.l.b16 %v1426
    %v4429 = vunpack.c.h.b16 %v1426
    %v4430 = vunpack.c.l.b16 %v1427
    %v4431 = vunpack.c.h.b16 %v1427
    %v4432 = vunpack.c.l.b16 %v1428
    %v4433 = vunpack.c.h.b16 %v1428
    %v4434 = vunpack.c.l.b16 %v1429
    %v4435 = vunpack.c.h.b16 %v1429
    %v4436 = vunpack.c.l.b16 %v1430
    %v4437 = vunpack.c.h.b16 %v1430
    %v4438 = vunpack.c.l.b16 %v1431
    %v4439 = vunpack.c.h.b16 %v1431
    %v4440 = vunpack.c.l.b16 %v1432
    %v4441 = vunpack.c.h.b16 %v1432
    %v4442 = vunpack.c.l.b16 %v1433
    %v4443 = vunpack.c.h.b16 %v1433
    %v4444 = vunpack.c.l.b16 %v1434
    %v4445 = vunpack.c.h.b16 %v1434
    %v4446 = vunpack.c.l.b16 %v1435
    %v4447 = vunpack.c.h.b16 %v1435
    %v4448 = vunpack.c.l.b16 %v1436
    %v4449 = vunpack.c.h.b16 %v1436
    %v4450 = vunpack.c.l.b16 %v1437
    %v4451 = vunpack.c.h.b16 %v1437
    %v4452 = vunpack.c.l.b16 %v1438
    %v4453 = vunpack.c.h.b16 %v1438
    %v4454 = vunpack.c.l.b16 %v1439
    %v4455 = vunpack.c.h.b16 %v1439
    %v4456 = vunpack.c.l.b16 %v1440
    %v4457 = vunpack.c.h.b16 %v1440
    %v4458 = vunpack.c.l.b16 %v1441
    %v4459 = vunpack.c.h.b16 %v1441
    %v4460 = vunpack.c.l.b16 %v1442
    %v4461 = vunpack.c.h.b16 %v1442
    %v4462 = vunpack.c.l.b16 %v1443
    %v4463 = vunpack.c.h.b16 %v1443
    %v4464 = vunpack.c.l.b16 %v1444
    %v4465 = vunpack.c.h.b16 %v1444
    %v4466 = vunpack.c.l.b16 %v1445
    %v4467 = vunpack.c.h.b16 %v1445
    %v4468 = vunpack.c.l.b16 %v1446
    %v4469 = vunpack.c.h.b16 %v1446
    %v4470 = vunpack.c.l.b16 %v1447
    %v4471 = vunpack.c.h.b16 %v1447
    %v4472 = vunpack.c.l.b16 %v1448
    %v4473 = vunpack.c.h.b16 %v1448
    %v4474 = vunpack.c.l.b16 %v1449
    %v4475 = vunpack.c.h.b16 %v1449
    %v4476 = vunpack.c.l.b16 %v1450
    %v4477 = vunpack.c.h.b16 %v1450
    %v4478 = vunpack.c.l.b16 %v1451
    %v4479 = vunpack.c.h.b16 %v1451
    %v4480 = vunpack.c.l.b16 %v1452
    %v4481 = vunpack.c.h.b16 %v1452
    %v4482 = vunpack.c.l.b16 %v1453
    %v4483 = vunpack.c.h.b16 %v1453
    %v4484 = vunpack.c.l.b16 %v1454
    %v4485 = vunpack.c.h.b16 %v1454
    %v4486 = vunpack.c.l.b16 %v1455
    %v4487 = vunpack.c.h.b16 %v1455
    %v4488 = vunpack.c.l.b16 %v1456
    %v4489 = vunpack.c.h.b16 %v1456
    %v4490 = vunpack.c.l.b16 %v1457
    %v4491 = vunpack.c.h.b16 %v1457
    %v4492 = vunpack.c.l.b16 %v1458
    %v4493 = vunpack.c.h.b16 %v1458
    %v4494 = vunpack.c.l.b16 %v1459
    %v4495 = vunpack.c.h.b16 %v1459
    %v4496 = vunpack.c.l.b16 %v1460
    %v4497 = vunpack.c.h.b16 %v1460
    %v4498 = vunpack.c.l.b16 %v1461
    %v4499 = vunpack.c.h.b16 %v1461
    %v4500 = vunpack.c.l.b16 %v1462
    %v4501 = vunpack.c.h.b16 %v1462
    %v4502 = vunpack.c.l.b16 %v1463
    %v4503 = vunpack.c.h.b16 %v1463
    %v4504 = vunpack.c.l.b16 %v1464
    %v4505 = vunpack.c.h.b16 %v1464
    %v4506 = vunpack.c.l.b16 %v1465
    %v4507 = vunpack.c.h.b16 %v1465
    %v4508 = vunpack.c.l.b16 %v1466
    %v4509 = vunpack.c.h.b16 %v1466
    %v4510 = vunpack.c.l.b16 %v1467
    %v4511 = vunpack.c.h.b16 %v1467
    %v4512 = vunpack.c.l.b16 %v1468
    %v4513 = vunpack.c.h.b16 %v1468
    %v4514 = vunpack.c.l.b16 %v1469
    %v4515 = vunpack.c.h.b16 %v1469
    %v4516 = vunpack.c.l.b16 %v1470
    %v4517 = vunpack.c.h.b16 %v1470
    %v4518 = vunpack.c.l.b16 %v1471
    %v4519 = vunpack.c.h.b16 %v1471
    %v4520 = vunpack.c.l.b16 %v1472
    %v4521 = vunpack.c.h.b16 %v1472
    %v4522 = vunpack.c.l.b16 %v1473
    %v4523 = vunpack.c.h.b16 %v1473
    %v4524 = vunpack.c.l.b16 %v1474
    %v4525 = vunpack.c.h.b16 %v1474
    %v4526 = vunpack.c.l.b16 %v1475
    %v4527 = vunpack.c.h.b16 %v1475
    %v4528 = vunpack.c.l.b16 %v1476
    %v4529 = vunpack.c.h.b16 %v1476
    %v4530 = vunpack.c.l.b16 %v1477
    %v4531 = vunpack.c.h.b16 %v1477
    %v4532 = vunpack.c.l.b16 %v1478
    %v4533 = vunpack.c.h.b16 %v1478
    %v4534 = vunpack.c.l.b16 %v1479
    %v4535 = vunpack.c.h.b16 %v1479
    %v4536 = vunpack.c.l.b16 %v1480
    %v4537 = vunpack.c.h.b16 %v1480
    %v4538 = vunpack.c.l.b16 %v1481
    %v4539 = vunpack.c.h.b16 %v1481
    %v4540 = vunpack.c.l.b16 %v1482
    %v4541 = vunpack.c.h.b16 %v1482
    %v4542 = vunpack.c.l.b16 %v1483
    %v4543 = vunpack.c.h.b16 %v1483
    %v4544 = vunpack.c.l.b16 %v1484
    %v4545 = vunpack.c.h.b16 %v1484
    %v4546 = vunpack.c.l.b16 %v1485
    %v4547 = vunpack.c.h.b16 %v1485
    %v4548 = vunpack.c.l.b16 %v1486
    %v4549 = vunpack.c.h.b16 %v1486
    %v4550 = vunpack.c.l.b16 %v1487
    %v4551 = vunpack.c.h.b16 %v1487
    %v4552 = vunpack.c.l.b16 %v1488
    %v4553 = vunpack.c.h.b16 %v1488
    %v4554 = vunpack.c.l.b16 %v1489
    %v4555 = vunpack.c.h.b16 %v1489
    %v4556 = vunpack.c.l.b16 %v1490
    %v4557 = vunpack.c.h.b16 %v1490
    %v4558 = vunpack.c.l.b16 %v1491
    %v4559 = vunpack.c.h.b16 %v1491
    %v4560 = vunpack.c.l.b16 %v1492
    %v4561 = vunpack.c.h.b16 %v1492
    %v4562 = vunpack.c.l.b16 %v1493
    %v4563 = vunpack.c.h.b16 %v1493
    %v4564 = vunpack.c.l.b16 %v1494
    %v4565 = vunpack.c.h.b16 %v1494
    %v4566 = vunpack.c.l.b16 %v1495
    %v4567 = vunpack.c.h.b16 %v1495
    %v4568 = vunpack.c.l.b16 %v1496
    %v4569 = vunpack.c.h.b16 %v1496
    %v4570 = vunpack.c.l.b16 %v1497
    %v4571 = vunpack.c.h.b16 %v1497
    %v4572 = vunpack.c.l.b16 %v1498
    %v4573 = vunpack.c.h.b16 %v1498
    %v4574 = vunpack.c.l.b16 %v1499
    %v4575 = vunpack.c.h.b16 %v1499
    %v4576 = vunpack.c.l.b16 %v1500
    %v4577 = vunpack.c.h.b16 %v1500
    %v4578 = vunpack.c.l.b16 %v1501
    %v4579 = vunpack.c.h.b16 %v1501
    %v4580 = vunpack.c.l.b16 %v1502
    %v4581 = vunpack.c.h.b16 %v1502
    %v4582 = vunpack.c.l.b16 %v1503
    %v4583 = vunpack.c.h.b16 %v1503
    %v4584 = vunpack.c.l.b16 %v1504
    %v4585 = vunpack.c.h.b16 %v1504
    %v4586 = vunpack.c.l.b16 %v1505
    %v4587 = vunpack.c.h.b16 %v1505
    %v4588 = vunpack.c.l.b16 %v1506
    %v4589 = vunpack.c.h.b16 %v1506
    %v4590 = vunpack.c.l.b16 %v1507
    %v4591 = vunpack.c.h.b16 %v1507
    %v4592 = vunpack.c.l.b16 %v1508
    %v4593 = vunpack.c.h.b16 %v1508
    %v4594 = vunpack.c.l.b16 %v1509
    %v4595 = vunpack.c.h.b16 %v1509
    %v4596 = vunpack.c.l.b16 %v1510
    %v4597 = vunpack.c.h.b16 %v1510
    %v4598 = vunpack.c.l.b16 %v1511
    %v4599 = vunpack.c.h.b16 %v1511
    %v4600 = vunpack.c.l.b16 %v1512
    %v4601 = vunpack.c.h.b16 %v1512
    %v4602 = vunpack.c.l.b16 %v1513
    %v4603 = vunpack.c.h.b16 %v1513
    %v4604 = vunpack.c.l.b16 %v1514
    %v4605 = vunpack.c.h.b16 %v1514
    %v4606 = vunpack.c.l.b16 %v1515
    %v4607 = vunpack.c.h.b16 %v1515
    %v4608 = vunpack.c.l.b16 %v1516
    %v4609 = vunpack.c.h.b16 %v1516
    %v4610 = vunpack.c.l.b16 %v1517
    %v4611 = vunpack.c.h.b16 %v1517
    %v4612 = vunpack.c.l.b16 %v1518
    %v4613 = vunpack.c.h.b16 %v1518
    %v4614 = vunpack.c.l.b16 %v1519
    %v4615 = vunpack.c.h.b16 %v1519
    %v4616 = vunpack.c.l.b16 %v1520
    %v4617 = vunpack.c.h.b16 %v1520
    %v4618 = vunpack.c.l.b16 %v1521
    %v4619 = vunpack.c.h.b16 %v1521
    %v4620 = vunpack.c.l.b16 %v1522
    %v4621 = vunpack.c.h.b16 %v1522
    %v4622 = vunpack.c.l.b16 %v1523
    %v4623 = vunpack.c.h.b16 %v1523
    %v4624 = vunpack.c.l.b16 %v1524
    %v4625 = vunpack.c.h.b16 %v1524
    %v4626 = vunpack.c.l.b16 %v1525
    %v4627 = vunpack.c.h.b16 %v1525
    %v4628 = vunpack.c.l.b16 %v1526
    %v4629 = vunpack.c.h.b16 %v1526
    %v4630 = vunpack.c.l.b16 %v1527
    %v4631 = vunpack.c.h.b16 %v1527
    %v4632 = vunpack.c.l.b16 %v1528
    %v4633 = vunpack.c.h.b16 %v1528
    %v4634 = vunpack.c.l.b16 %v1529
    %v4635 = vunpack.c.h.b16 %v1529
    %v4636 = vunpack.c.l.b16 %v1530
    %v4637 = vunpack.c.h.b16 %v1530
    %v4638 = vunpack.c.l.b16 %v1531
    %v4639 = vunpack.c.h.b16 %v1531
    %v4640 = vunpack.c.l.b16 %v1532
    %v4641 = vunpack.c.h.b16 %v1532
    %v4642 = vunpack.c.l.b16 %v1533
    %v4643 = vunpack.c.h.b16 %v1533
    %v4644 = vunpack.c.l.b16 %v1534
    %v4645 = vunpack.c.h.b16 %v1534
    %v4646 = vunpack.c.l.b16 %v1535
    %v4647 = vunpack.c.h.b16 %v1535
    %v4648 = vunpack.c.l.b16 %v1536
    %v4649 = vunpack.c.h.b16 %v1536
    %v4650 = vunpack.c.l.b16 %v1537
    %v4651 = vunpack.c.h.b16 %v1537
    %v4652 = vpack.c.b16 %v2612, %v2604
    %v4653 = vpack.c.b16 %v2613, %v2605
    %v4654 = vpack.c.b16 %v2614, %v2606
    %v4655 = vpack.c.b16 %v2615, %v2607
    %v4656 = vpack.c.b16 %v2616, %v2608
    %v4657 = vpack.c.b16 %v2617, %v2609
    %v4658 = vpack.c.b16 %v2618, %v2610
    %v4659 = vpack.c.b16 %v2619, %v2611
    %v4660 = vpack.c.b16 %v2628, %v2620
    %v4661 = vpack.c.b16 %v2629, %v2621
    %v4662 = vpack.c.b16 %v2630, %v2622
    %v4663 = vpack.c.b16 %v2631, %v2623
    %v4664 = vpack.c.b16 %v2632, %v2624
    %v4665 = vpack.c.b16 %v2633, %v2625
    %v4666 = vpack.c.b16 %v2634, %v2626
    %v4667 = vpack.c.b16 %v2635, %v2627
    %v4668 = vpack.c.b16 %v2644, %v2636
    %v4669 = vpack.c.b16 %v2645, %v2637
    %v4670 = vpack.c.b16 %v2646, %v2638
    %v4671 = vpack.c.b16 %v2647, %v2639
    %v4672 = vpack.c.b16 %v2648, %v2640
    %v4673 = vpack.c.b16 %v2649, %v2641
    %v4674 = vpack.c.b16 %v2650, %v2642
    %v4675 = vpack.c.b16 %v2651, %v2643
    %v4676 = vpack.c.b16 %v2660, %v2652
    %v4677 = vpack.c.b16 %v2661, %v2653
    %v4678 = vpack.c.b16 %v2662, %v2654
    %v4679 = vpack.c.b16 %v2663, %v2655
    %v4680 = vpack.c.b16 %v2664, %v2656
    %v4681 = vpack.c.b16 %v2665, %v2657
    %v4682 = vpack.c.b16 %v2666, %v2658
    %v4683 = vpack.c.b16 %v2667, %v2659
    %v4684 = vpack.c.b16 %v2676, %v2668
    %v4685 = vpack.c.b16 %v2677, %v2669
    %v4686 = vpack.c.b16 %v2678, %v2670
    %v4687 = vpack.c.b16 %v2679, %v2671
    %v4688 = vpack.c.b16 %v2680, %v2672
    %v4689 = vpack.c.b16 %v2681, %v2673
    %v4690 = vpack.c.b16 %v2682, %v2674
    %v4691 = vpack.c.b16 %v2683, %v2675
    %v4692 = vpack.c.b16 %v2692, %v2684
    %v4693 = vpack.c.b16 %v2693, %v2685
    %v4694 = vpack.c.b16 %v2694, %v2686
    %v4695 = vpack.c.b16 %v2695, %v2687
    %v4696 = vpack.c.b16 %v2696, %v2688
    %v4697 = vpack.c.b16 %v2697, %v2689
    %v4698 = vpack.c.b16 %v2698, %v2690
    %v4699 = vpack.c.b16 %v2699, %v2691
    %v4700 = vpack.c.b16 %v2708, %v2700
    %v4701 = vpack.c.b16 %v2709, %v2701
    %v4702 = vpack.c.b16 %v2710, %v2702
    %v4703 = vpack.c.b16 %v2711, %v2703
    %v4704 = vpack.c.b16 %v2712, %v2704
    %v4705 = vpack.c.b16 %v2713, %v2705
    %v4706 = vpack.c.b16 %v2714, %v2706
    %v4707 = vpack.c.b16 %v2715, %v2707
    %v4708 = vpack.c.b16 %v2724, %v2716
    %v4709 = vpack.c.b16 %v2725, %v2717
    %v4710 = vpack.c.b16 %v2726, %v2718
    %v4711 = vpack.c.b16 %v2727, %v2719
    %v4712 = vpack.c.b16 %v2728, %v2720
    %v4713 = vpack.c.b16 %v2729, %v2721
    %v4714 = vpack.c.b16 %v2730, %v2722
    %v4715 = vpack.c.b16 %v2731, %v2723
    %v4716 = vpack.c.b16 %v2740, %v2732
    %v4717 = vpack.c.b16 %v2741, %v2733
    %v4718 = vpack.c.b16 %v2742, %v2734
    %v4719 = vpack.c.b16 %v2743, %v2735
    %v4720 = vpack.c.b16 %v2744, %v2736
    %v4721 = vpack.c.b16 %v2745, %v2737
    %v4722 = vpack.c.b16 %v2746, %v2738
    %v4723 = vpack.c.b16 %v2747, %v2739
    %v4724 = vpack.c.b16 %v2756, %v2748
    %v4725 = vpack.c.b16 %v2757, %v2749
    %v4726 = vpack.c.b16 %v2758, %v2750
    %v4727 = vpack.c.b16 %v2759, %v2751
    %v4728 = vpack.c.b16 %v2760, %v2752
    %v4729 = vpack.c.b16 %v2761, %v2753
    %v4730 = vpack.c.b16 %v2762, %v2754
    %v4731 = vpack.c.b16 %v2763, %v2755
    %v4732 = vpack.c.b16 %v2772, %v2764
    %v4733 = vpack.c.b16 %v2773, %v2765
    %v4734 = vpack.c.b16 %v2774, %v2766
    %v4735 = vpack.c.b16 %v2775, %v2767
    %v4736 = vpack.c.b16 %v2776, %v2768
    %v4737 = vpack.c.b16 %v2777, %v2769
    %v4738 = vpack.c.b16 %v2778, %v2770
    %v4739 = vpack.c.b16 %v2779, %v2771
    %v4740 = vpack.c.b16 %v2788, %v2780
    %v4741 = vpack.c.b16 %v2789, %v2781
    %v4742 = vpack.c.b16 %v2790, %v2782
    %v4743 = vpack.c.b16 %v2791, %v2783
    %v4744 = vpack.c.b16 %v2792, %v2784
    %v4745 = vpack.c.b16 %v2793, %v2785
    %v4746 = vpack.c.b16 %v2794, %v2786
    %v4747 = vpack.c.b16 %v2795, %v2787
    %v4748 = vpack.c.b16 %v2804, %v2796
    %v4749 = vpack.c.b16 %v2805, %v2797
    %v4750 = vpack.c.b16 %v2806, %v2798
    %v4751 = vpack.c.b16 %v2807, %v2799
    %v4752 = vpack.c.b16 %v2808, %v2800
    %v4753 = vpack.c.b16 %v2809, %v2801
    %v4754 = vpack.c.b16 %v2810, %v2802
    %v4755 = vpack.c.b16 %v2811, %v2803
    %v4756 = vpack.c.b16 %v2820, %v2812
    %v4757 = vpack.c.b16 %v2821, %v2813
    %v4758 = vpack.c.b16 %v2822, %v2814
    %v4759 = vpack.c.b16 %v2823, %v2815
    %v4760 = vpack.c.b16 %v2824, %v2816
    %v4761 = vpack.c.b16 %v2825, %v2817
    %v4762 = vpack.c.b16 %v2826, %v2818
    %v4763 = vpack.c.b16 %v2827, %v2819
    %v4764 = vpack.c.b16 %v2836, %v2828
    %v4765 = vpack.c.b16 %v2837, %v2829
    %v4766 = vpack.c.b16 %v2838, %v2830
    %v4767 = vpack.c.b16 %v2839, %v2831
    %v4768 = vpack.c.b16 %v2840, %v2832
    %v4769 = vpack.c.b16 %v2841, %v2833
    %v4770 = vpack.c.b16 %v2842, %v2834
    %v4771 = vpack.c.b16 %v2843, %v2835
    %v4772 = vpack.c.b16 %v2852, %v2844
    %v4773 = vpack.c.b16 %v2853, %v2845
    %v4774 = vpack.c.b16 %v2854, %v2846
    %v4775 = vpack.c.b16 %v2855, %v2847
    %v4776 = vpack.c.b16 %v2856, %v2848
    %v4777 = vpack.c.b16 %v2857, %v2849
    %v4778 = vpack.c.b16 %v2858, %v2850
    %v4779 = vpack.c.b16 %v2859, %v2851
    %v4780 = vpack.c.b16 %v2868, %v2860
    %v4781 = vpack.c.b16 %v2869, %v2861
    %v4782 = vpack.c.b16 %v2870, %v2862
    %v4783 = vpack.c.b16 %v2871, %v2863
    %v4784 = vpack.c.b16 %v2872, %v2864
    %v4785 = vpack.c.b16 %v2873, %v2865
    %v4786 = vpack.c.b16 %v2874, %v2866
    %v4787 = vpack.c.b16 %v2875, %v2867
    %v4788 = vpack.c.b16 %v2884, %v2876
    %v4789 = vpack.c.b16 %v2885, %v2877
    %v4790 = vpack.c.b16 %v2886, %v2878
    %v4791 = vpack.c.b16 %v2887, %v2879
    %v4792 = vpack.c.b16 %v2888, %v2880
    %v4793 = vpack.c.b16 %v2889, %v2881
    %v4794 = vpack.c.b16 %v2890, %v2882
    %v4795 = vpack.c.b16 %v2891, %v2883
    %v4796 = vpack.c.b16 %v2900, %v2892
    %v4797 = vpack.c.b16 %v2901, %v2893
    %v4798 = vpack.c.b16 %v2902, %v2894
    %v4799 = vpack.c.b16 %v2903, %v2895
    %v4800 = vpack.c.b16 %v2904, %v2896
    %v4801 = vpack.c.b16 %v2905, %v2897
    %v4802 = vpack.c.b16 %v2906, %v2898
    %v4803 = vpack.c.b16 %v2907, %v2899
    %v4804 = vpack.c.b16 %v2916, %v2908
    %v4805 = vpack.c.b16 %v2917, %v2909
    %v4806 = vpack.c.b16 %v2918, %v2910
    %v4807 = vpack.c.b16 %v2919, %v2911
    %v4808 = vpack.c.b16 %v2920, %v2912
    %v4809 = vpack.c.b16 %v2921, %v2913
    %v4810 = vpack.c.b16 %v2922, %v2914
    %v4811 = vpack.c.b16 %v2923, %v2915
    %v4812 = vpack.c.b16 %v2932, %v2924
    %v4813 = vpack.c.b16 %v2933, %v2925
    %v4814 = vpack.c.b16 %v2934, %v2926
    %v4815 = vpack.c.b16 %v2935, %v2927
    %v4816 = vpack.c.b16 %v2936, %v2928
    %v4817 = vpack.c.b16 %v2937, %v2929
    %v4818 = vpack.c.b16 %v2938, %v2930
    %v4819 = vpack.c.b16 %v2939, %v2931
    %v4820 = vpack.c.b16 %v2948, %v2940
    %v4821 = vpack.c.b16 %v2949, %v2941
    %v4822 = vpack.c.b16 %v2950, %v2942
    %v4823 = vpack.c.b16 %v2951, %v2943
    %v4824 = vpack.c.b16 %v2952, %v2944
    %v4825 = vpack.c.b16 %v2953, %v2945
    %v4826 = vpack.c.b16 %v2954, %v2946
    %v4827 = vpack.c.b16 %v2955, %v2947
    %v4828 = vpack.c.b16 %v2964, %v2956
    %v4829 = vpack.c.b16 %v2965, %v2957
    %v4830 = vpack.c.b16 %v2966, %v2958
    %v4831 = vpack.c.b16 %v2967, %v2959
    %v4832 = vpack.c.b16 %v2968, %v2960
    %v4833 = vpack.c.b16 %v2969, %v2961
    %v4834 = vpack.c.b16 %v2970, %v2962
    %v4835 = vpack.c.b16 %v2971, %v2963
    %v4836 = vpack.c.b16 %v2980, %v2972
    %v4837 = vpack.c.b16 %v2981, %v2973
    %v4838 = vpack.c.b16 %v2982, %v2974
    %v4839 = vpack.c.b16 %v2983, %v2975
    %v4840 = vpack.c.b16 %v2984, %v2976
    %v4841 = vpack.c.b16 %v2985, %v2977
    %v4842 = vpack.c.b16 %v2986, %v2978
    %v4843 = vpack.c.b16 %v2987, %v2979
    %v4844 = vpack.c.b16 %v2996, %v2988
    %v4845 = vpack.c.b16 %v2997, %v2989
    %v4846 = vpack.c.b16 %v2998, %v2990
    %v4847 = vpack.c.b16 %v2999, %v2991
    %v4848 = vpack.c.b16 %v3000, %v2992
    %v4849 = vpack.c.b16 %v3001, %v2993
    %v4850 = vpack.c.b16 %v3002, %v2994
    %v4851 = vpack.c.b16 %v3003, %v2995
    %v4852 = vpack.c.b16 %v3012, %v3004
    %v4853 = vpack.c.b16 %v3013, %v3005
    %v4854 = vpack.c.b16 %v3014, %v3006
    %v4855 = vpack.c.b16 %v3015, %v3007
    %v4856 = vpack.c.b16 %v3016, %v3008
    %v4857 = vpack.c.b16 %v3017, %v3009
    %v4858 = vpack.c.b16 %v3018, %v3010
    %v4859 = vpack.c.b16 %v3019, %v3011
    %v4860 = vpack.c.b16 %v3028, %v3020
    %v4861 = vpack.c.b16 %v3029, %v3021
    %v4862 = vpack.c.b16 %v3030, %v3022
    %v4863 = vpack.c.b16 %v3031, %v3023
    %v4864 = vpack.c.b16 %v3032, %v3024
    %v4865 = vpack.c.b16 %v3033, %v3025
    %v4866 = vpack.c.b16 %v3034, %v3026
    %v4867 = vpack.c.b16 %v3035, %v3027
    %v4868 = vpack.c.b16 %v3044, %v3036
    %v4869 = vpack.c.b16 %v3045, %v3037
    %v4870 = vpack.c.b16 %v3046, %v3038
    %v4871 = vpack.c.b16 %v3047, %v3039
    %v4872 = vpack.c.b16 %v3048, %v3040
    %v4873 = vpack.c.b16 %v3049, %v3041
    %v4874 = vpack.c.b16 %v3050, %v3042
    %v4875 = vpack.c.b16 %v3051, %v3043
    %v4876 = vpack.c.b16 %v3060, %v3052
    %v4877 = vpack.c.b16 %v3061, %v3053
    %v4878 = vpack.c.b16 %v3062, %v3054
    %v4879 = vpack.c.b16 %v3063, %v3055
    %v4880 = vpack.c.b16 %v3064, %v3056
    %v4881 = vpack.c.b16 %v3065, %v3057
    %v4882 = vpack.c.b16 %v3066, %v3058
    %v4883 = vpack.c.b16 %v3067, %v3059
    %v4884 = vpack.c.b16 %v3076, %v3068
    %v4885 = vpack.c.b16 %v3077, %v3069
    %v4886 = vpack.c.b16 %v3078, %v3070
    %v4887 = vpack.c.b16 %v3079, %v3071
    %v4888 = vpack.c.b16 %v3080, %v3072
    %v4889 = vpack.c.b16 %v3081, %v3073
    %v4890 = vpack.c.b16 %v3082, %v3074
    %v4891 = vpack.c.b16 %v3083, %v3075
    %v4892 = vpack.c.b16 %v3092, %v3084
    %v4893 = vpack.c.b16 %v3093, %v3085
    %v4894 = vpack.c.b16 %v3094, %v3086
    %v4895 = vpack.c.b16 %v3095, %v3087
    %v4896 = vpack.c.b16 %v3096, %v3088
    %v4897 = vpack.c.b16 %v3097, %v3089
    %v4898 = vpack.c.b16 %v3098, %v3090
    %v4899 = vpack.c.b16 %v3099, %v3091
    %v4900 = vpack.c.b16 %v3108, %v3100
    %v4901 = vpack.c.b16 %v3109, %v3101
    %v4902 = vpack.c.b16 %v3110, %v3102
    %v4903 = vpack.c.b16 %v3111, %v3103
    %v4904 = vpack.c.b16 %v3112, %v3104
    %v4905 = vpack.c.b16 %v3113, %v3105
    %v4906 = vpack.c.b16 %v3114, %v3106
    %v4907 = vpack.c.b16 %v3115, %v3107
    %v4908 = vpack.c.b16 %v3124, %v3116
    %v4909 = vpack.c.b16 %v3125, %v3117
    %v4910 = vpack.c.b16 %v3126, %v3118
    %v4911 = vpack.c.b16 %v3127, %v3119
    %v4912 = vpack.c.b16 %v3128, %v3120
    %v4913 = vpack.c.b16 %v3129, %v3121
    %v4914 = vpack.c.b16 %v3130, %v3122
    %v4915 = vpack.c.b16 %v3131, %v3123
    %v4916 = vpack.c.b16 %v3140, %v3132
    %v4917 = vpack.c.b16 %v3141, %v3133
    %v4918 = vpack.c.b16 %v3142, %v3134
    %v4919 = vpack.c.b16 %v3143, %v3135
    %v4920 = vpack.c.b16 %v3144, %v3136
    %v4921 = vpack.c.b16 %v3145, %v3137
    %v4922 = vpack.c.b16 %v3146, %v3138
    %v4923 = vpack.c.b16 %v3147, %v3139
    %v4924 = vpack.c.b16 %v3156, %v3148
    %v4925 = vpack.c.b16 %v3157, %v3149
    %v4926 = vpack.c.b16 %v3158, %v3150
    %v4927 = vpack.c.b16 %v3159, %v3151
    %v4928 = vpack.c.b16 %v3160, %v3152
    %v4929 = vpack.c.b16 %v3161, %v3153
    %v4930 = vpack.c.b16 %v3162, %v3154
    %v4931 = vpack.c.b16 %v3163, %v3155
    %v4932 = vpack.c.b16 %v3172, %v3164
    %v4933 = vpack.c.b16 %v3173, %v3165
    %v4934 = vpack.c.b16 %v3174, %v3166
    %v4935 = vpack.c.b16 %v3175, %v3167
    %v4936 = vpack.c.b16 %v3176, %v3168
    %v4937 = vpack.c.b16 %v3177, %v3169
    %v4938 = vpack.c.b16 %v3178, %v3170
    %v4939 = vpack.c.b16 %v3179, %v3171
    %v4940 = vpack.c.b16 %v3188, %v3180
    %v4941 = vpack.c.b16 %v3189, %v3181
    %v4942 = vpack.c.b16 %v3190, %v3182
    %v4943 = vpack.c.b16 %v3191, %v3183
    %v4944 = vpack.c.b16 %v3192, %v3184
    %v4945 = vpack.c.b16 %v3193, %v3185
    %v4946 = vpack.c.b16 %v3194, %v3186
    %v4947 = vpack.c.b16 %v3195, %v3187
    %v4948 = vpack.c.b16 %v3204, %v3196
    %v4949 = vpack.c.b16 %v3205, %v3197
    %v4950 = vpack.c.b16 %v3206, %v3198
    %v4951 = vpack.c.b16 %v3207, %v3199
    %v4952 = vpack.c.b16 %v3208, %v3200
    %v4953 = vpack.c.b16 %v3209, %v3201
    %v4954 = vpack.c.b16 %v3210, %v3202
    %v4955 = vpack.c.b16 %v3211, %v3203
    %v4956 = vpack.c.b16 %v3220, %v3212
    %v4957 = vpack.c.b16 %v3221, %v3213
    %v4958 = vpack.c.b16 %v3222, %v3214
    %v4959 = vpack.c.b16 %v3223, %v3215
    %v4960 = vpack.c.b16 %v3224, %v3216
    %v4961 = vpack.c.b16 %v3225, %v3217
    %v4962 = vpack.c.b16 %v3226, %v3218
    %v4963 = vpack.c.b16 %v3227, %v3219
    %v4964 = vpack.c.b16 %v3236, %v3228
    %v4965 = vpack.c.b16 %v3237, %v3229
    %v4966 = vpack.c.b16 %v3238, %v3230
    %v4967 = vpack.c.b16 %v3239, %v3231
    %v4968 = vpack.c.b16 %v3240, %v3232
    %v4969 = vpack.c.b16 %v3241, %v3233
    %v4970 = vpack.c.b16 %v3242, %v3234
    %v4971 = vpack.c.b16 %v3243, %v3235
    %v4972 = vpack.c.b16 %v3252, %v3244
    %v4973 = vpack.c.b16 %v3253, %v3245
    %v4974 = vpack.c.b16 %v3254, %v3246
    %v4975 = vpack.c.b16 %v3255, %v3247
    %v4976 = vpack.c.b16 %v3256, %v3248
    %v4977 = vpack.c.b16 %v3257, %v3249
    %v4978 = vpack.c.b16 %v3258, %v3250
    %v4979 = vpack.c.b16 %v3259, %v3251
    %v4980 = vpack.c.b16 %v3268, %v3260
    %v4981 = vpack.c.b16 %v3269, %v3261
    %v4982 = vpack.c.b16 %v3270, %v3262
    %v4983 = vpack.c.b16 %v3271, %v3263
    %v4984 = vpack.c.b16 %v3272, %v3264
    %v4985 = vpack.c.b16 %v3273, %v3265
    %v4986 = vpack.c.b16 %v3274, %v3266
    %v4987 = vpack.c.b16 %v3275, %v3267
    %v4988 = vpack.c.b16 %v3284, %v3276
    %v4989 = vpack.c.b16 %v3285, %v3277
    %v4990 = vpack.c.b16 %v3286, %v3278
    %v4991 = vpack.c.b16 %v3287, %v3279
    %v4992 = vpack.c.b16 %v3288, %v3280
    %v4993 = vpack.c.b16 %v3289, %v3281
    %v4994 = vpack.c.b16 %v3290, %v3282
    %v4995 = vpack.c.b16 %v3291, %v3283
    %v4996 = vpack.c.b16 %v3300, %v3292
    %v4997 = vpack.c.b16 %v3301, %v3293
    %v4998 = vpack.c.b16 %v3302, %v3294
    %v4999 = vpack.c.b16 %v3303, %v3295
    %v5000 = vpack.c.b16 %v3304, %v3296
    %v5001 = vpack.c.b16 %v3305, %v3297
    %v5002 = vpack.c.b16 %v3306, %v3298
    %v5003 = vpack.c.b16 %v3307, %v3299
    %v5004 = vpack.c.b16 %v3316, %v3308
    %v5005 = vpack.c.b16 %v3317, %v3309
    %v5006 = vpack.c.b16 %v3318, %v3310
    %v5007 = vpack.c.b16 %v3319, %v3311
    %v5008 = vpack.c.b16 %v3320, %v3312
    %v5009 = vpack.c.b16 %v3321, %v3313
    %v5010 = vpack.c.b16 %v3322, %v3314
    %v5011 = vpack.c.b16 %v3323, %v3315
    %v5012 = vpack.c.b16 %v3332, %v3324
    %v5013 = vpack.c.b16 %v3333, %v3325
    %v5014 = vpack.c.b16 %v3334, %v3326
    %v5015 = vpack.c.b16 %v3335, %v3327
    %v5016 = vpack.c.b16 %v3336, %v3328
    %v5017 = vpack.c.b16 %v3337, %v3329
    %v5018 = vpack.c.b16 %v3338, %v3330
    %v5019 = vpack.c.b16 %v3339, %v3331
    %v5020 = vpack.c.b16 %v3348, %v3340
    %v5021 = vpack.c.b16 %v3349, %v3341
    %v5022 = vpack.c.b16 %v3350, %v3342
    %v5023 = vpack.c.b16 %v3351, %v3343
    %v5024 = vpack.c.b16 %v3352, %v3344
    %v5025 = vpack.c.b16 %v3353, %v3345
    %v5026 = vpack.c.b16 %v3354, %v3346
    %v5027 = vpack.c.b16 %v3355, %v3347
    %v5028 = vpack.c.b16 %v3364, %v3356
    %v5029 = vpack.c.b16 %v3365, %v3357
    %v5030 = vpack.c.b16 %v3366, %v3358
    %v5031 = vpack.c.b16 %v3367, %v3359
    %v5032 = vpack.c.b16 %v3368, %v3360
    %v5033 = vpack.c.b16 %v3369, %v3361
    %v5034 = vpack.c.b16 %v3370, %v3362
    %v5035 = vpack.c.b16 %v3371, %v3363
    %v5036 = vpack.c.b16 %v3380, %v3372
    %v5037 = vpack.c.b16 %v3381, %v3373
    %v5038 = vpack.c.b16 %v3382, %v3374
    %v5039 = vpack.c.b16 %v3383, %v3375
    %v5040 = vpack.c.b16 %v3384, %v3376
    %v5041 = vpack.c.b16 %v3385, %v3377
    %v5042 = vpack.c.b16 %v3386, %v3378
    %v5043 = vpack.c.b16 %v3387, %v3379
    %v5044 = vpack.c.b16 %v3396, %v3388
    %v5045 = vpack.c.b16 %v3397, %v3389
    %v5046 = vpack.c.b16 %v3398, %v3390
    %v5047 = vpack.c.b16 %v3399, %v3391
    %v5048 = vpack.c.b16 %v3400, %v3392
    %v5049 = vpack.c.b16 %v3401, %v3393
    %v5050 = vpack.c.b16 %v3402, %v3394
    %v5051 = vpack.c.b16 %v3403, %v3395
    %v5052 = vpack.c.b16 %v3412, %v3404
    %v5053 = vpack.c.b16 %v3413, %v3405
    %v5054 = vpack.c.b16 %v3414, %v3406
    %v5055 = vpack.c.b16 %v3415, %v3407
    %v5056 = vpack.c.b16 %v3416, %v3408
    %v5057 = vpack.c.b16 %v3417, %v3409
    %v5058 = vpack.c.b16 %v3418, %v3410
    %v5059 = vpack.c.b16 %v3419, %v3411
    %v5060 = vpack.c.b16 %v3428, %v3420
    %v5061 = vpack.c.b16 %v3429, %v3421
    %v5062 = vpack.c.b16 %v3430, %v3422
    %v5063 = vpack.c.b16 %v3431, %v3423
    %v5064 = vpack.c.b16 %v3432, %v3424
    %v5065 = vpack.c.b16 %v3433, %v3425
    %v5066 = vpack.c.b16 %v3434, %v3426
    %v5067 = vpack.c.b16 %v3435, %v3427
    %v5068 = vpack.c.b16 %v3444, %v3436
    %v5069 = vpack.c.b16 %v3445, %v3437
    %v5070 = vpack.c.b16 %v3446, %v3438
    %v5071 = vpack.c.b16 %v3447, %v3439
    %v5072 = vpack.c.b16 %v3448, %v3440
    %v5073 = vpack.c.b16 %v3449, %v3441
    %v5074 = vpack.c.b16 %v3450, %v3442
    %v5075 = vpack.c.b16 %v3451, %v3443
    %v5076 = vpack.c.b16 %v3460, %v3452
    %v5077 = vpack.c.b16 %v3461, %v3453
    %v5078 = vpack.c.b16 %v3462, %v3454
    %v5079 = vpack.c.b16 %v3463, %v3455
    %v5080 = vpack.c.b16 %v3464, %v3456
    %v5081 = vpack.c.b16 %v3465, %v3457
    %v5082 = vpack.c.b16 %v3466, %v3458
    %v5083 = vpack.c.b16 %v3467, %v3459
    %v5084 = vpack.c.b16 %v3476, %v3468
    %v5085 = vpack.c.b16 %v3477, %v3469
    %v5086 = vpack.c.b16 %v3478, %v3470
    %v5087 = vpack.c.b16 %v3479, %v3471
    %v5088 = vpack.c.b16 %v3480, %v3472
    %v5089 = vpack.c.b16 %v3481, %v3473
    %v5090 = vpack.c.b16 %v3482, %v3474
    %v5091 = vpack.c.b16 %v3483, %v3475
    %v5092 = vpack.c.b16 %v3492, %v3484
    %v5093 = vpack.c.b16 %v3493, %v3485
    %v5094 = vpack.c.b16 %v3494, %v3486
    %v5095 = vpack.c.b16 %v3495, %v3487
    %v5096 = vpack.c.b16 %v3496, %v3488
    %v5097 = vpack.c.b16 %v3497, %v3489
    %v5098 = vpack.c.b16 %v3498, %v3490
    %v5099 = vpack.c.b16 %v3499, %v3491
    %v5100 = vpack.c.b16 %v3508, %v3500
    %v5101 = vpack.c.b16 %v3509, %v3501
    %v5102 = vpack.c.b16 %v3510, %v3502
    %v5103 = vpack.c.b16 %v3511, %v3503
    %v5104 = vpack.c.b16 %v3512, %v3504
    %v5105 = vpack.c.b16 %v3513, %v3505
    %v5106 = vpack.c.b16 %v3514, %v3506
    %v5107 = vpack.c.b16 %v3515, %v3507
    %v5108 = vpack.c.b16 %v3524, %v3516
    %v5109 = vpack.c.b16 %v3525, %v3517
    %v5110 = vpack.c.b16 %v3526, %v3518
    %v5111 = vpack.c.b16 %v3527, %v3519
    %v5112 = vpack.c.b16 %v3528, %v3520
    %v5113 = vpack.c.b16 %v3529, %v3521
    %v5114 = vpack.c.b16 %v3530, %v3522
    %v5115 = vpack.c.b16 %v3531, %v3523
    %v5116 = vpack.c.b16 %v3540, %v3532
    %v5117 = vpack.c.b16 %v3541, %v3533
    %v5118 = vpack.c.b16 %v3542, %v3534
    %v5119 = vpack.c.b16 %v3543, %v3535
    %v5120 = vpack.c.b16 %v3544, %v3536
    %v5121 = vpack.c.b16 %v3545, %v3537
    %v5122 = vpack.c.b16 %v3546, %v3538
    %v5123 = vpack.c.b16 %v3547, %v3539
    %v5124 = vpack.c.b16 %v3556, %v3548
    %v5125 = vpack.c.b16 %v3557, %v3549
    %v5126 = vpack.c.b16 %v3558, %v3550
    %v5127 = vpack.c.b16 %v3559, %v3551
    %v5128 = vpack.c.b16 %v3560, %v3552
    %v5129 = vpack.c.b16 %v3561, %v3553
    %v5130 = vpack.c.b16 %v3562, %v3554
    %v5131 = vpack.c.b16 %v3563, %v3555
    %v5132 = vpack.c.b16 %v3572, %v3564
    %v5133 = vpack.c.b16 %v3573, %v3565
    %v5134 = vpack.c.b16 %v3574, %v3566
    %v5135 = vpack.c.b16 %v3575, %v3567
    %v5136 = vpack.c.b16 %v3576, %v3568
    %v5137 = vpack.c.b16 %v3577, %v3569
    %v5138 = vpack.c.b16 %v3578, %v3570
    %v5139 = vpack.c.b16 %v3579, %v3571
    %v5140 = vpack.c.b16 %v3588, %v3580
    %v5141 = vpack.c.b16 %v3589, %v3581
    %v5142 = vpack.c.b16 %v3590, %v3582
    %v5143 = vpack.c.b16 %v3591, %v3583
    %v5144 = vpack.c.b16 %v3592, %v3584
    %v5145 = vpack.c.b16 %v3593, %v3585
    %v5146 = vpack.c.b16 %v3594, %v3586
    %v5147 = vpack.c.b16 %v3595, %v3587
    %v5148 = vpack.c.b16 %v3604, %v3596
    %v5149 = vpack.c.b16 %v3605, %v3597
    %v5150 = vpack.c.b16 %v3606, %v3598
    %v5151 = vpack.c.b16 %v3607, %v3599
    %v5152 = vpack.c.b16 %v3608, %v3600
    %v5153 = vpack.c.b16 %v3609, %v3601
    %v5154 = vpack.c.b16 %v3610, %v3602
    %v5155 = vpack.c.b16 %v3611, %v3603
    %v5156 = vpack.c.b16 %v3620, %v3612
    %v5157 = vpack.c.b16 %v3621, %v3613
    %v5158 = vpack.c.b16 %v3622, %v3614
    %v5159 = vpack.c.b16 %v3623, %v3615
    %v5160 = vpack.c.b16 %v3624, %v3616
    %v5161 = vpack.c.b16 %v3625, %v3617
    %v5162 = vpack.c.b16 %v3626, %v3618
    %v5163 = vpack.c.b16 %v3627, %v3619
    %v5164 = vpack.c.b16 %v3636, %v3628
    %v5165 = vpack.c.b16 %v3637, %v3629
    %v5166 = vpack.c.b16 %v3638, %v3630
    %v5167 = vpack.c.b16 %v3639, %v3631
    %v5168 = vpack.c.b16 %v3640, %v3632
    %v5169 = vpack.c.b16 %v3641, %v3633
    %v5170 = vpack.c.b16 %v3642, %v3634
    %v5171 = vpack.c.b16 %v3643, %v3635
    %v5172 = vpack.c.b16 %v3652, %v3644
    %v5173 = vpack.c.b16 %v3653, %v3645
    %v5174 = vpack.c.b16 %v3654, %v3646
    %v5175 = vpack.c.b16 %v3655, %v3647
    %v5176 = vpack.c.b16 %v3656, %v3648
    %v5177 = vpack.c.b16 %v3657, %v3649
    %v5178 = vpack.c.b16 %v3658, %v3650
    %v5179 = vpack.c.b16 %v3659, %v3651
    %v5180 = vpack.c.b16 %v3668, %v3660
    %v5181 = vpack.c.b16 %v3669, %v3661
    %v5182 = vpack.c.b16 %v3670, %v3662
    %v5183 = vpack.c.b16 %v3671, %v3663
    %v5184 = vpack.c.b16 %v3672, %v3664
    %v5185 = vpack.c.b16 %v3673, %v3665
    %v5186 = vpack.c.b16 %v3674, %v3666
    %v5187 = vpack.c.b16 %v3675, %v3667
    %v5188 = vpack.c.b16 %v3684, %v3676
    %v5189 = vpack.c.b16 %v3685, %v3677
    %v5190 = vpack.c.b16 %v3686, %v3678
    %v5191 = vpack.c.b16 %v3687, %v3679
    %v5192 = vpack.c.b16 %v3688, %v3680
    %v5193 = vpack.c.b16 %v3689, %v3681
    %v5194 = vpack.c.b16 %v3690, %v3682
    %v5195 = vpack.c.b16 %v3691, %v3683
    %v5196 = vpack.c.b16 %v3700, %v3692
    %v5197 = vpack.c.b16 %v3701, %v3693
    %v5198 = vpack.c.b16 %v3702, %v3694
    %v5199 = vpack.c.b16 %v3703, %v3695
    %v5200 = vpack.c.b16 %v3704, %v3696
    %v5201 = vpack.c.b16 %v3705, %v3697
    %v5202 = vpack.c.b16 %v3706, %v3698
    %v5203 = vpack.c.b16 %v3707, %v3699
    %v5204 = vpack.c.b16 %v3716, %v3708
    %v5205 = vpack.c.b16 %v3717, %v3709
    %v5206 = vpack.c.b16 %v3718, %v3710
    %v5207 = vpack.c.b16 %v3719, %v3711
    %v5208 = vpack.c.b16 %v3720, %v3712
    %v5209 = vpack.c.b16 %v3721, %v3713
    %v5210 = vpack.c.b16 %v3722, %v3714
    %v5211 = vpack.c.b16 %v3723, %v3715
    %v5212 = vpack.c.b16 %v3732, %v3724
    %v5213 = vpack.c.b16 %v3733, %v3725
    %v5214 = vpack.c.b16 %v3734, %v3726
    %v5215 = vpack.c.b16 %v3735, %v3727
    %v5216 = vpack.c.b16 %v3736, %v3728
    %v5217 = vpack.c.b16 %v3737, %v3729
    %v5218 = vpack.c.b16 %v3738, %v3730
    %v5219 = vpack.c.b16 %v3739, %v3731
    %v5220 = vpack.c.b16 %v3748, %v3740
    %v5221 = vpack.c.b16 %v3749, %v3741
    %v5222 = vpack.c.b16 %v3750, %v3742
    %v5223 = vpack.c.b16 %v3751, %v3743
    %v5224 = vpack.c.b16 %v3752, %v3744
    %v5225 = vpack.c.b16 %v3753, %v3745
    %v5226 = vpack.c.b16 %v3754, %v3746
    %v5227 = vpack.c.b16 %v3755, %v3747
    %v5228 = vpack.c.b16 %v3764, %v3756
    %v5229 = vpack.c.b16 %v3765, %v3757
    %v5230 = vpack.c.b16 %v3766, %v3758
    %v5231 = vpack.c.b16 %v3767, %v3759
    %v5232 = vpack.c.b16 %v3768, %v3760
    %v5233 = vpack.c.b16 %v3769, %v3761
    %v5234 = vpack.c.b16 %v3770, %v3762
    %v5235 = vpack.c.b16 %v3771, %v3763
    %v5236 = vpack.c.b16 %v3780, %v3772
    %v5237 = vpack.c.b16 %v3781, %v3773
    %v5238 = vpack.c.b16 %v3782, %v3774
    %v5239 = vpack.c.b16 %v3783, %v3775
    %v5240 = vpack.c.b16 %v3784, %v3776
    %v5241 = vpack.c.b16 %v3785, %v3777
    %v5242 = vpack.c.b16 %v3786, %v3778
    %v5243 = vpack.c.b16 %v3787, %v3779
    %v5244 = vpack.c.b16 %v3796, %v3788
    %v5245 = vpack.c.b16 %v3797, %v3789
    %v5246 = vpack.c.b16 %v3798, %v3790
    %v5247 = vpack.c.b16 %v3799, %v3791
    %v5248 = vpack.c.b16 %v3800, %v3792
    %v5249 = vpack.c.b16 %v3801, %v3793
    %v5250 = vpack.c.b16 %v3802, %v3794
    %v5251 = vpack.c.b16 %v3803, %v3795
    %v5252 = vpack.c.b16 %v3812, %v3804
    %v5253 = vpack.c.b16 %v3813, %v3805
    %v5254 = vpack.c.b16 %v3814, %v3806
    %v5255 = vpack.c.b16 %v3815, %v3807
    %v5256 = vpack.c.b16 %v3816, %v3808
    %v5257 = vpack.c.b16 %v3817, %v3809
    %v5258 = vpack.c.b16 %v3818, %v3810
    %v5259 = vpack.c.b16 %v3819, %v3811
    %v5260 = vpack.c.b16 %v3828, %v3820
    %v5261 = vpack.c.b16 %v3829, %v3821
    %v5262 = vpack.c.b16 %v3830, %v3822
    %v5263 = vpack.c.b16 %v3831, %v3823
    %v5264 = vpack.c.b16 %v3832, %v3824
    %v5265 = vpack.c.b16 %v3833, %v3825
    %v5266 = vpack.c.b16 %v3834, %v3826
    %v5267 = vpack.c.b16 %v3835, %v3827
    %v5268 = vpack.c.b16 %v3844, %v3836
    %v5269 = vpack.c.b16 %v3845, %v3837
    %v5270 = vpack.c.b16 %v3846, %v3838
    %v5271 = vpack.c.b16 %v3847, %v3839
    %v5272 = vpack.c.b16 %v3848, %v3840
    %v5273 = vpack.c.b16 %v3849, %v3841
    %v5274 = vpack.c.b16 %v3850, %v3842
    %v5275 = vpack.c.b16 %v3851, %v3843
    %v5276 = vpack.c.b16 %v3860, %v3852
    %v5277 = vpack.c.b16 %v3861, %v3853
    %v5278 = vpack.c.b16 %v3862, %v3854
    %v5279 = vpack.c.b16 %v3863, %v3855
    %v5280 = vpack.c.b16 %v3864, %v3856
    %v5281 = vpack.c.b16 %v3865, %v3857
    %v5282 = vpack.c.b16 %v3866, %v3858
    %v5283 = vpack.c.b16 %v3867, %v3859
    %v5284 = vpack.c.b16 %v3876, %v3868
    %v5285 = vpack.c.b16 %v3877, %v3869
    %v5286 = vpack.c.b16 %v3878, %v3870
    %v5287 = vpack.c.b16 %v3879, %v3871
    %v5288 = vpack.c.b16 %v3880, %v3872
    %v5289 = vpack.c.b16 %v3881, %v3873
    %v5290 = vpack.c.b16 %v3882, %v3874
    %v5291 = vpack.c.b16 %v3883, %v3875
    %v5292 = vpack.c.b16 %v3892, %v3884
    %v5293 = vpack.c.b16 %v3893, %v3885
    %v5294 = vpack.c.b16 %v3894, %v3886
    %v5295 = vpack.c.b16 %v3895, %v3887
    %v5296 = vpack.c.b16 %v3896, %v3888
    %v5297 = vpack.c.b16 %v3897, %v3889
    %v5298 = vpack.c.b16 %v3898, %v3890
    %v5299 = vpack.c.b16 %v3899, %v3891
    %v5300 = vpack.c.b16 %v3908, %v3900
    %v5301 = vpack.c.b16 %v3909, %v3901
    %v5302 = vpack.c.b16 %v3910, %v3902
    %v5303 = vpack.c.b16 %v3911, %v3903
    %v5304 = vpack.c.b16 %v3912, %v3904
    %v5305 = vpack.c.b16 %v3913, %v3905
    %v5306 = vpack.c.b16 %v3914, %v3906
    %v5307 = vpack.c.b16 %v3915, %v3907
    %v5308 = vpack.c.b16 %v3924, %v3916
    %v5309 = vpack.c.b16 %v3925, %v3917
    %v5310 = vpack.c.b16 %v3926, %v3918
    %v5311 = vpack.c.b16 %v3927, %v3919
    %v5312 = vpack.c.b16 %v3928, %v3920
    %v5313 = vpack.c.b16 %v3929, %v3921
    %v5314 = vpack.c.b16 %v3930, %v3922
    %v5315 = vpack.c.b16 %v3931, %v3923
    %v5316 = vpack.c.b16 %v3940, %v3932
    %v5317 = vpack.c.b16 %v3941, %v3933
    %v5318 = vpack.c.b16 %v3942, %v3934
    %v5319 = vpack.c.b16 %v3943, %v3935
    %v5320 = vpack.c.b16 %v3944, %v3936
    %v5321 = vpack.c.b16 %v3945, %v3937
    %v5322 = vpack.c.b16 %v3946, %v3938
    %v5323 = vpack.c.b16 %v3947, %v3939
    %v5324 = vpack.c.b16 %v3956, %v3948
    %v5325 = vpack.c.b16 %v3957, %v3949
    %v5326 = vpack.c.b16 %v3958, %v3950
    %v5327 = vpack.c.b16 %v3959, %v3951
    %v5328 = vpack.c.b16 %v3960, %v3952
    %v5329 = vpack.c.b16 %v3961, %v3953
    %v5330 = vpack.c.b16 %v3962, %v3954
    %v5331 = vpack.c.b16 %v3963, %v3955
    %v5332 = vpack.c.b16 %v3972, %v3964
    %v5333 = vpack.c.b16 %v3973, %v3965
    %v5334 = vpack.c.b16 %v3974, %v3966
    %v5335 = vpack.c.b16 %v3975, %v3967
    %v5336 = vpack.c.b16 %v3976, %v3968
    %v5337 = vpack.c.b16 %v3977, %v3969
    %v5338 = vpack.c.b16 %v3978, %v3970
    %v5339 = vpack.c.b16 %v3979, %v3971
    %v5340 = vpack.c.b16 %v3988, %v3980
    %v5341 = vpack.c.b16 %v3989, %v3981
    %v5342 = vpack.c.b16 %v3990, %v3982
    %v5343 = vpack.c.b16 %v3991, %v3983
    %v5344 = vpack.c.b16 %v3992, %v3984
    %v5345 = vpack.c.b16 %v3993, %v3985
    %v5346 = vpack.c.b16 %v3994, %v3986
    %v5347 = vpack.c.b16 %v3995, %v3987
    %v5348 = vpack.c.b16 %v4004, %v3996
    %v5349 = vpack.c.b16 %v4005, %v3997
    %v5350 = vpack.c.b16 %v4006, %v3998
    %v5351 = vpack.c.b16 %v4007, %v3999
    %v5352 = vpack.c.b16 %v4008, %v4000
    %v5353 = vpack.c.b16 %v4009, %v4001
    %v5354 = vpack.c.b16 %v4010, %v4002
    %v5355 = vpack.c.b16 %v4011, %v4003
    %v5356 = vpack.c.b16 %v4020, %v4012
    %v5357 = vpack.c.b16 %v4021, %v4013
    %v5358 = vpack.c.b16 %v4022, %v4014
    %v5359 = vpack.c.b16 %v4023, %v4015
    %v5360 = vpack.c.b16 %v4024, %v4016
    %v5361 = vpack.c.b16 %v4025, %v4017
    %v5362 = vpack.c.b16 %v4026, %v4018
    %v5363 = vpack.c.b16 %v4027, %v4019
    %v5364 = vpack.c.b16 %v4036, %v4028
    %v5365 = vpack.c.b16 %v4037, %v4029
    %v5366 = vpack.c.b16 %v4038, %v4030
    %v5367 = vpack.c.b16 %v4039, %v4031
    %v5368 = vpack.c.b16 %v4040, %v4032
    %v5369 = vpack.c.b16 %v4041, %v4033
    %v5370 = vpack.c.b16 %v4042, %v4034
    %v5371 = vpack.c.b16 %v4043, %v4035
    %v5372 = vpack.c.b16 %v4052, %v4044
    %v5373 = vpack.c.b16 %v4053, %v4045
    %v5374 = vpack.c.b16 %v4054, %v4046
    %v5375 = vpack.c.b16 %v4055, %v4047
    %v5376 = vpack.c.b16 %v4056, %v4048
    %v5377 = vpack.c.b16 %v4057, %v4049
    %v5378 = vpack.c.b16 %v4058, %v4050
    %v5379 = vpack.c.b16 %v4059, %v4051
    %v5380 = vpack.c.b16 %v4068, %v4060
    %v5381 = vpack.c.b16 %v4069, %v4061
    %v5382 = vpack.c.b16 %v4070, %v4062
    %v5383 = vpack.c.b16 %v4071, %v4063
    %v5384 = vpack.c.b16 %v4072, %v4064
    %v5385 = vpack.c.b16 %v4073, %v4065
    %v5386 = vpack.c.b16 %v4074, %v4066
    %v5387 = vpack.c.b16 %v4075, %v4067
    %v5388 = vpack.c.b16 %v4084, %v4076
    %v5389 = vpack.c.b16 %v4085, %v4077
    %v5390 = vpack.c.b16 %v4086, %v4078
    %v5391 = vpack.c.b16 %v4087, %v4079
    %v5392 = vpack.c.b16 %v4088, %v4080
    %v5393 = vpack.c.b16 %v4089, %v4081
    %v5394 = vpack.c.b16 %v4090, %v4082
    %v5395 = vpack.c.b16 %v4091, %v4083
    %v5396 = vpack.c.b16 %v4100, %v4092
    %v5397 = vpack.c.b16 %v4101, %v4093
    %v5398 = vpack.c.b16 %v4102, %v4094
    %v5399 = vpack.c.b16 %v4103, %v4095
    %v5400 = vpack.c.b16 %v4104, %v4096
    %v5401 = vpack.c.b16 %v4105, %v4097
    %v5402 = vpack.c.b16 %v4106, %v4098
    %v5403 = vpack.c.b16 %v4107, %v4099
    %v5404 = vpack.c.b16 %v4116, %v4108
    %v5405 = vpack.c.b16 %v4117, %v4109
    %v5406 = vpack.c.b16 %v4118, %v4110
    %v5407 = vpack.c.b16 %v4119, %v4111
    %v5408 = vpack.c.b16 %v4120, %v4112
    %v5409 = vpack.c.b16 %v4121, %v4113
    %v5410 = vpack.c.b16 %v4122, %v4114
    %v5411 = vpack.c.b16 %v4123, %v4115
    %v5412 = vpack.c.b16 %v4132, %v4124
    %v5413 = vpack.c.b16 %v4133, %v4125
    %v5414 = vpack.c.b16 %v4134, %v4126
    %v5415 = vpack.c.b16 %v4135, %v4127
    %v5416 = vpack.c.b16 %v4136, %v4128
    %v5417 = vpack.c.b16 %v4137, %v4129
    %v5418 = vpack.c.b16 %v4138, %v4130
    %v5419 = vpack.c.b16 %v4139, %v4131
    %v5420 = vpack.c.b16 %v4148, %v4140
    %v5421 = vpack.c.b16 %v4149, %v4141
    %v5422 = vpack.c.b16 %v4150, %v4142
    %v5423 = vpack.c.b16 %v4151, %v4143
    %v5424 = vpack.c.b16 %v4152, %v4144
    %v5425 = vpack.c.b16 %v4153, %v4145
    %v5426 = vpack.c.b16 %v4154, %v4146
    %v5427 = vpack.c.b16 %v4155, %v4147
    %v5428 = vpack.c.b16 %v4164, %v4156
    %v5429 = vpack.c.b16 %v4165, %v4157
    %v5430 = vpack.c.b16 %v4166, %v4158
    %v5431 = vpack.c.b16 %v4167, %v4159
    %v5432 = vpack.c.b16 %v4168, %v4160
    %v5433 = vpack.c.b16 %v4169, %v4161
    %v5434 = vpack.c.b16 %v4170, %v4162
    %v5435 = vpack.c.b16 %v4171, %v4163
    %v5436 = vpack.c.b16 %v4180, %v4172
    %v5437 = vpack.c.b16 %v4181, %v4173
    %v5438 = vpack.c.b16 %v4182, %v4174
    %v5439 = vpack.c.b16 %v4183, %v4175
    %v5440 = vpack.c.b16 %v4184, %v4176
    %v5441 = vpack.c.b16 %v4185, %v4177
    %v5442 = vpack.c.b16 %v4186, %v4178
    %v5443 = vpack.c.b16 %v4187, %v4179
    %v5444 = vpack.c.b16 %v4196, %v4188
    %v5445 = vpack.c.b16 %v4197, %v4189
    %v5446 = vpack.c.b16 %v4198, %v4190
    %v5447 = vpack.c.b16 %v4199, %v4191
    %v5448 = vpack.c.b16 %v4200, %v4192
    %v5449 = vpack.c.b16 %v4201, %v4193
    %v5450 = vpack.c.b16 %v4202, %v4194
    %v5451 = vpack.c.b16 %v4203, %v4195
    %v5452 = vpack.c.b16 %v4212, %v4204
    %v5453 = vpack.c.b16 %v4213, %v4205
    %v5454 = vpack.c.b16 %v4214, %v4206
    %v5455 = vpack.c.b16 %v4215, %v4207
    %v5456 = vpack.c.b16 %v4216, %v4208
    %v5457 = vpack.c.b16 %v4217, %v4209
    %v5458 = vpack.c.b16 %v4218, %v4210
    %v5459 = vpack.c.b16 %v4219, %v4211
    %v5460 = vpack.c.b16 %v4228, %v4220
    %v5461 = vpack.c.b16 %v4229, %v4221
    %v5462 = vpack.c.b16 %v4230, %v4222
    %v5463 = vpack.c.b16 %v4231, %v4223
    %v5464 = vpack.c.b16 %v4232, %v4224
    %v5465 = vpack.c.b16 %v4233, %v4225
    %v5466 = vpack.c.b16 %v4234, %v4226
    %v5467 = vpack.c.b16 %v4235, %v4227
    %v5468 = vpack.c.b16 %v4244, %v4236
    %v5469 = vpack.c.b16 %v4245, %v4237
    %v5470 = vpack.c.b16 %v4246, %v4238
    %v5471 = vpack.c.b16 %v4247, %v4239
    %v5472 = vpack.c.b16 %v4248, %v4240
    %v5473 = vpack.c.b16 %v4249, %v4241
    %v5474 = vpack.c.b16 %v4250, %v4242
    %v5475 = vpack.c.b16 %v4251, %v4243
    %v5476 = vpack.c.b16 %v4260, %v4252
    %v5477 = vpack.c.b16 %v4261, %v4253
    %v5478 = vpack.c.b16 %v4262, %v4254
    %v5479 = vpack.c.b16 %v4263, %v4255
    %v5480 = vpack.c.b16 %v4264, %v4256
    %v5481 = vpack.c.b16 %v4265, %v4257
    %v5482 = vpack.c.b16 %v4266, %v4258
    %v5483 = vpack.c.b16 %v4267, %v4259
    %v5484 = vpack.c.b16 %v4276, %v4268
    %v5485 = vpack.c.b16 %v4277, %v4269
    %v5486 = vpack.c.b16 %v4278, %v4270
    %v5487 = vpack.c.b16 %v4279, %v4271
    %v5488 = vpack.c.b16 %v4280, %v4272
    %v5489 = vpack.c.b16 %v4281, %v4273
    %v5490 = vpack.c.b16 %v4282, %v4274
    %v5491 = vpack.c.b16 %v4283, %v4275
    %v5492 = vpack.c.b16 %v4292, %v4284
    %v5493 = vpack.c.b16 %v4293, %v4285
    %v5494 = vpack.c.b16 %v4294, %v4286
    %v5495 = vpack.c.b16 %v4295, %v4287
    %v5496 = vpack.c.b16 %v4296, %v4288
    %v5497 = vpack.c.b16 %v4297, %v4289
    %v5498 = vpack.c.b16 %v4298, %v4290
    %v5499 = vpack.c.b16 %v4299, %v4291
    %v5500 = vpack.c.b16 %v4308, %v4300
    %v5501 = vpack.c.b16 %v4309, %v4301
    %v5502 = vpack.c.b16 %v4310, %v4302
    %v5503 = vpack.c.b16 %v4311, %v4303
    %v5504 = vpack.c.b16 %v4312, %v4304
    %v5505 = vpack.c.b16 %v4313, %v4305
    %v5506 = vpack.c.b16 %v4314, %v4306
    %v5507 = vpack.c.b16 %v4315, %v4307
    %v5508 = vpack.c.b16 %v4324, %v4316
    %v5509 = vpack.c.b16 %v4325, %v4317
    %v5510 = vpack.c.b16 %v4326, %v4318
    %v5511 = vpack.c.b16 %v4327, %v4319
    %v5512 = vpack.c.b16 %v4328, %v4320
    %v5513 = vpack.c.b16 %v4329, %v4321
    %v5514 = vpack.c.b16 %v4330, %v4322
    %v5515 = vpack.c.b16 %v4331, %v4323
    %v5516 = vpack.c.b16 %v4340, %v4332
    %v5517 = vpack.c.b16 %v4341, %v4333
    %v5518 = vpack.c.b16 %v4342, %v4334
    %v5519 = vpack.c.b16 %v4343, %v4335
    %v5520 = vpack.c.b16 %v4344, %v4336
    %v5521 = vpack.c.b16 %v4345, %v4337
    %v5522 = vpack.c.b16 %v4346, %v4338
    %v5523 = vpack.c.b16 %v4347, %v4339
    %v5524 = vpack.c.b16 %v4356, %v4348
    %v5525 = vpack.c.b16 %v4357, %v4349
    %v5526 = vpack.c.b16 %v4358, %v4350
    %v5527 = vpack.c.b16 %v4359, %v4351
    %v5528 = vpack.c.b16 %v4360, %v4352
    %v5529 = vpack.c.b16 %v4361, %v4353
    %v5530 = vpack.c.b16 %v4362, %v4354
    %v5531 = vpack.c.b16 %v4363, %v4355
    %v5532 = vpack.c.b16 %v4372, %v4364
    %v5533 = vpack.c.b16 %v4373, %v4365
    %v5534 = vpack.c.b16 %v4374, %v4366
    %v5535 = vpack.c.b16 %v4375, %v4367
    %v5536 = vpack.c.b16 %v4376, %v4368
    %v5537 = vpack.c.b16 %v4377, %v4369
    %v5538 = vpack.c.b16 %v4378, %v4370
    %v5539 = vpack.c.b16 %v4379, %v4371
    %v5540 = vpack.c.b16 %v4388, %v4380
    %v5541 = vpack.c.b16 %v4389, %v4381
    %v5542 = vpack.c.b16 %v4390, %v4382
    %v5543 = vpack.c.b16 %v4391, %v4383
    %v5544 = vpack.c.b16 %v4392, %v4384
    %v5545 = vpack.c.b16 %v4393, %v4385
    %v5546 = vpack.c.b16 %v4394, %v4386
    %v5547 = vpack.c.b16 %v4395, %v4387
    %v5548 = vpack.c.b16 %v4404, %v4396
    %v5549 = vpack.c.b16 %v4405, %v4397
    %v5550 = vpack.c.b16 %v4406, %v4398
    %v5551 = vpack.c.b16 %v4407, %v4399
    %v5552 = vpack.c.b16 %v4408, %v4400
    %v5553 = vpack.c.b16 %v4409, %v4401
    %v5554 = vpack.c.b16 %v4410, %v4402
    %v5555 = vpack.c.b16 %v4411, %v4403
    %v5556 = vpack.c.b16 %v4420, %v4412
    %v5557 = vpack.c.b16 %v4421, %v4413
    %v5558 = vpack.c.b16 %v4422, %v4414
    %v5559 = vpack.c.b16 %v4423, %v4415
    %v5560 = vpack.c.b16 %v4424, %v4416
    %v5561 = vpack.c.b16 %v4425, %v4417
    %v5562 = vpack.c.b16 %v4426, %v4418
    %v5563 = vpack.c.b16 %v4427, %v4419
    %v5564 = vpack.c.b16 %v4436, %v4428
    %v5565 = vpack.c.b16 %v4437, %v4429
    %v5566 = vpack.c.b16 %v4438, %v4430
    %v5567 = vpack.c.b16 %v4439, %v4431
    %v5568 = vpack.c.b16 %v4440, %v4432
    %v5569 = vpack.c.b16 %v4441, %v4433
    %v5570 = vpack.c.b16 %v4442, %v4434
    %v5571 = vpack.c.b16 %v4443, %v4435
    %v5572 = vpack.c.b16 %v4452, %v4444
    %v5573 = vpack.c.b16 %v4453, %v4445
    %v5574 = vpack.c.b16 %v4454, %v4446
    %v5575 = vpack.c.b16 %v4455, %v4447
    %v5576 = vpack.c.b16 %v4456, %v4448
    %v5577 = vpack.c.b16 %v4457, %v4449
    %v5578 = vpack.c.b16 %v4458, %v4450
    %v5579 = vpack.c.b16 %v4459, %v4451
    %v5580 = vpack.c.b16 %v4468, %v4460
    %v5581 = vpack.c.b16 %v4469, %v4461
    %v5582 = vpack.c.b16 %v4470, %v4462
    %v5583 = vpack.c.b16 %v4471, %v4463
    %v5584 = vpack.c.b16 %v4472, %v4464
    %v5585 = vpack.c.b16 %v4473, %v4465
    %v5586 = vpack.c.b16 %v4474, %v4466
    %v5587 = vpack.c.b16 %v4475, %v4467
    %v5588 = vpack.c.b16 %v4484, %v4476
    %v5589 = vpack.c.b16 %v4485, %v4477
    %v5590 = vpack.c.b16 %v4486, %v4478
    %v5591 = vpack.c.b16 %v4487, %v4479
    %v5592 = vpack.c.b16 %v4488, %v4480
    %v5593 = vpack.c.b16 %v4489, %v4481
    %v5594 = vpack.c.b16 %v4490, %v4482
    %v5595 = vpack.c.b16 %v4491, %v4483
    %v5596 = vpack.c.b16 %v4500, %v4492
    %v5597 = vpack.c.b16 %v4501, %v4493
    %v5598 = vpack.c.b16 %v4502, %v4494
    %v5599 = vpack.c.b16 %v4503, %v4495
    %v5600 = vpack.c.b16 %v4504, %v4496
    %v5601 = vpack.c.b16 %v4505, %v4497
    %v5602 = vpack.c.b16 %v4506, %v4498
    %v5603 = vpack.c.b16 %v4507, %v4499
    %v5604 = vpack.c.b16 %v4516, %v4508
    %v5605 = vpack.c.b16 %v4517, %v4509
    %v5606 = vpack.c.b16 %v4518, %v4510
    %v5607 = vpack.c.b16 %v4519, %v4511
    %v5608 = vpack.c.b16 %v4520, %v4512
    %v5609 = vpack.c.b16 %v4521, %v4513
    %v5610 = vpack.c.b16 %v4522, %v4514
    %v5611 = vpack.c.b16 %v4523, %v4515
    %v5612 = vpack.c.b16 %v4532, %v4524
    %v5613 = vpack.c.b16 %v4533, %v4525
    %v5614 = vpack.c.b16 %v4534, %v4526
    %v5615 = vpack.c.b16 %v4535, %v4527
    %v5616 = vpack.c.b16 %v4536, %v4528
    %v5617 = vpack.c.b16 %v4537, %v4529
    %v5618 = vpack.c.b16 %v4538, %v4530
    %v5619 = vpack.c.b16 %v4539, %v4531
    %v5620 = vpack.c.b16 %v4548, %v4540
    %v5621 = vpack.c.b16 %v4549, %v4541
    %v5622 = vpack.c.b16 %v4550, %v4542
    %v5623 = vpack.c.b16 %v4551, %v4543
    %v5624 = vpack.c.b16 %v4552, %v4544
    %v5625 = vpack.c.b16 %v4553, %v4545
    %v5626 = vpack.c.b16 %v4554, %v4546
    %v5627 = vpack.c.b16 %v4555, %v4547
    %v5628 = vpack.c.b16 %v4564, %v4556
    %v5629 = vpack.c.b16 %v4565, %v4557
    %v5630 = vpack.c.b16 %v4566, %v4558
    %v5631 = vpack.c.b16 %v4567, %v4559
    %v5632 = vpack.c.b16 %v4568, %v4560
    %v5633 = vpack.c.b16 %v4569, %v4561
    %v5634 = vpack.c.b16 %v4570, %v4562
    %v5635 = vpack.c.b16 %v4571, %v4563
    %v5636 = vpack.c.b16 %v4580, %v4572
    %v5637 = vpack.c.b16 %v4581, %v4573
    %v5638 = vpack.c.b16 %v4582, %v4574
    %v5639 = vpack.c.b16 %v4583, %v4575
    %v5640 = vpack.c.b16 %v4584, %v4576
    %v5641 = vpack.c.b16 %v4585, %v4577
    %v5642 = vpack.c.b16 %v4586, %v4578
    %v5643 = vpack.c.b16 %v4587, %v4579
    %v5644 = vpack.c.b16 %v4596, %v4588
    %v5645 = vpack.c.b16 %v4597, %v4589
    %v5646 = vpack.c.b16 %v4598, %v4590
    %v5647 = vpack.c.b16 %v4599, %v4591
    %v5648 = vpack.c.b16 %v4600, %v4592
    %v5649 = vpack.c.b16 %v4601, %v4593
    %v5650 = vpack.c.b16 %v4602, %v4594
    %v5651 = vpack.c.b16 %v4603, %v4595
    %v5652 = vpack.c.b16 %v4612, %v4604
    %v5653 = vpack.c.b16 %v4613, %v4605
    %v5654 = vpack.c.b16 %v4614, %v4606
    %v5655 = vpack.c.b16 %v4615, %v4607
    %v5656 = vpack.c.b16 %v4616, %v4608
    %v5657 = vpack.c.b16 %v4617, %v4609
    %v5658 = vpack.c.b16 %v4618, %v4610
    %v5659 = vpack.c.b16 %v4619, %v4611
    %v5660 = vpack.c.b16 %v4628, %v4620
    %v5661 = vpack.c.b16 %v4629, %v4621
    %v5662 = vpack.c.b16 %v4630, %v4622
    %v5663 = vpack.c.b16 %v4631, %v4623
    %v5664 = vpack.c.b16 %v4632, %v4624
    %v5665 = vpack.c.b16 %v4633, %v4625
    %v5666 = vpack.c.b16 %v4634, %v4626
    %v5667 = vpack.c.b16 %v4635, %v4627
    %v5668 = vpack.c.b16 %v4644, %v4636
    %v5669 = vpack.c.b16 %v4645, %v4637
    %v5670 = vpack.c.b16 %v4646, %v4638
    %v5671 = vpack.c.b16 %v4647, %v4639
    %v5672 = vpack.c.b16 %v4648, %v4640
    %v5673 = vpack.c.b16 %v4649, %v4641
    %v5674 = vpack.c.b16 %v4650, %v4642
    %v5675 = vpack.c.b16 %v4651, %v4643
    %6700 = vmatprep.subr.bf16.mxu0 %v4653
    %6701 = vmatpush1.bf16.msra.mxu0 %v4652
    %6702 = vmatprep.subr.bf16.mxu0 %v4661
    %6703 = vmatpush1.bf16.msra.mxu0 %v4660
    %6704 = vmatprep.subr.bf16.mxu0 %v4669
    %6705 = vmatpush1.bf16.msra.mxu0 %v4668
    %6706 = vmatprep.subr.bf16.mxu0 %v4677
    %6707 = vmatpush1.bf16.msra.mxu0 %v4676
    %6708 = vmatprep.subr.bf16.mxu0 %v4685
    %6709 = vmatpush1.bf16.msra.mxu0 %v4684
    %6710 = vmatprep.subr.bf16.mxu0 %v4693
    %6711 = vmatpush1.bf16.msra.mxu0 %v4692
    %6712 = vmatprep.subr.bf16.mxu0 %v4701
    %6713 = vmatpush1.bf16.msra.mxu0 %v4700
    %6714 = vmatprep.subr.bf16.mxu0 %v4709
    %6715 = vmatpush1.bf16.msra.mxu0 %v4708
    %6716 = vmatprep.subr.bf16.mxu0 %v4717
    %6717 = vmatpush1.bf16.msra.mxu0 %v4716
    %6718 = vmatprep.subr.bf16.mxu0 %v4725
    %6719 = vmatpush1.bf16.msra.mxu0 %v4724
    %6720 = vmatprep.subr.bf16.mxu0 %v4733
    %6721 = vmatpush1.bf16.msra.mxu0 %v4732
    %6722 = vmatprep.subr.bf16.mxu0 %v4741
    %6723 = vmatpush1.bf16.msra.mxu0 %v4740
    %6724 = vmatprep.subr.bf16.mxu0 %v4749
    %6725 = vmatpush1.bf16.msra.mxu0 %v4748
    %6726 = vmatprep.subr.bf16.mxu0 %v4757
    %6727 = vmatpush1.bf16.msra.mxu0 %v4756
    %6728 = vmatprep.subr.bf16.mxu0 %v4765
    %6729 = vmatpush1.bf16.msra.mxu0 %v4764
    %6730 = vmatprep.subr.bf16.mxu0 %v4773
    %6731 = vmatpush1.bf16.msra.mxu0 %v4772
    %6732 = vmatprep.mubr.bf16.mxu0 %v499
    %6733 = vmatmul.mubr.bf16.gmra.mrb[0].mxu0 %v498
    %v6734 = vpop.f32.mrb[0].mxu0
    %v6735 = vadd.f32 %v1543, %v6734
    %v6736 = vpop.f32.mrb[0].mxu0
    %v6737 = vadd.f32 %v1547, %v6736
    %v6738 = vpop.f32.mrb[0].mxu0
    %v6739 = vpop.f32.mrb[0].mxu0
    %6740 = vdwg.mxu0
    %6741 = vmatprep.subr.bf16.mxu0 %v4781
    %6742 = vmatpush1.bf16.msra.mxu0 %v4780
    %6743 = vmatprep.subr.bf16.mxu0 %v4789
    %6744 = vmatpush1.bf16.msra.mxu0 %v4788
    %6745 = vmatprep.subr.bf16.mxu0 %v4797
    %6746 = vmatpush1.bf16.msra.mxu0 %v4796
    %6747 = vmatprep.subr.bf16.mxu0 %v4805
    %6748 = vmatpush1.bf16.msra.mxu0 %v4804
    %6749 = vmatprep.subr.bf16.mxu0 %v4813
    %6750 = vmatpush1.bf16.msra.mxu0 %v4812
    %6751 = vmatprep.subr.bf16.mxu0 %v4821
    %6752 = vmatpush1.bf16.msra.mxu0 %v4820
    %6753 = vmatprep.subr.bf16.mxu0 %v4829
    %6754 = vmatpush1.bf16.msra.mxu0 %v4828
    %6755 = vmatprep.subr.bf16.mxu0 %v4837
    %6756 = vmatpush1.bf16.msra.mxu0 %v4836
    %6757 = vmatprep.subr.bf16.mxu0 %v4845
    %6758 = vmatpush1.bf16.msra.mxu0 %v4844
    %6759 = vmatprep.subr.bf16.mxu0 %v4853
    %6760 = vmatpush1.bf16.msra.mxu0 %v4852
    %6761 = vmatprep.subr.bf16.mxu0 %v4861
    %6762 = vmatpush1.bf16.msra.mxu0 %v4860
    %6763 = vmatprep.subr.bf16.mxu0 %v4869
    %6764 = vmatpush1.bf16.msra.mxu0 %v4868
    %6765 = vmatprep.subr.bf16.mxu0 %v4877
    %6766 = vmatpush1.bf16.msra.mxu0 %v4876
    %6767 = vmatprep.subr.bf16.mxu0 %v4885
    %6768 = vmatpush1.bf16.msra.mxu0 %v4884
    %6769 = vmatprep.subr.bf16.mxu0 %v4893
    %6770 = vmatpush1.bf16.msra.mxu0 %v4892
    %6771 = vmatprep.subr.bf16.mxu0 %v4901
    %6772 = vmatpush1.bf16.msra.mxu0 %v4900
    %6773 = vmatprep.mubr.bf16.mxu0 %v501
    %6774 = vmatmul.mubr.bf16.gmra.mrb[0].mxu0 %v500
    %v6775 = vpop.f32.mrb[0].mxu0
    %v6776 = vadd.f32 %v6735, %v6775
    %v6777 = vpop.f32.mrb[0].mxu0
    %v6778 = vadd.f32 %v6737, %v6777
    %v6779 = vpop.f32.mrb[0].mxu0
    %v6780 = vpop.f32.mrb[0].mxu0
    %6781 = vdwg.mxu0
    %6782 = vmatprep.subr.bf16.mxu0 %v4909
    %6783 = vmatpush1.bf16.msra.mxu0 %v4908
    %6784 = vmatprep.subr.bf16.mxu0 %v4917
    %6785 = vmatpush1.bf16.msra.mxu0 %v4916
    %6786 = vmatprep.subr.bf16.mxu0 %v4925
    %6787 = vmatpush1.bf16.msra.mxu0 %v4924
    %6788 = vmatprep.subr.bf16.mxu0 %v4933
    %6789 = vmatpush1.bf16.msra.mxu0 %v4932
    %6790 = vmatprep.subr.bf16.mxu0 %v4941
    %6791 = vmatpush1.bf16.msra.mxu0 %v4940
    %6792 = vmatprep.subr.bf16.mxu0 %v4949
    %6793 = vmatpush1.bf16.msra.mxu0 %v4948
    %6794 = vmatprep.subr.bf16.mxu0 %v4957
    %6795 = vmatpush1.bf16.msra.mxu0 %v4956
    %6796 = vmatprep.subr.bf16.mxu0 %v4965
    %6797 = vmatpush1.bf16.msra.mxu0 %v4964
    %6798 = vmatprep.subr.bf16.mxu0 %v4973
    %6799 = vmatpush1.bf16.msra.mxu0 %v4972
    %6800 = vmatprep.subr.bf16.mxu0 %v4981
    %6801 = vmatpush1.bf16.msra.mxu0 %v4980
    %6802 = vmatprep.subr.bf16.mxu0 %v4989
    %6803 = vmatpush1.bf16.msra.mxu0 %v4988
    %6804 = vmatprep.subr.bf16.mxu0 %v4997
    %6805 = vmatpush1.bf16.msra.mxu0 %v4996
    %6806 = vmatprep.subr.bf16.mxu0 %v5005
    %6807 = vmatpush1.bf16.msra.mxu0 %v5004
    %6808 = vmatprep.subr.bf16.mxu0 %v5013
    %6809 = vmatpush1.bf16.msra.mxu0 %v5012
    %6810 = vmatprep.subr.bf16.mxu0 %v5021
    %6811 = vmatpush1.bf16.msra.mxu0 %v5020
    %6812 = vmatprep.subr.bf16.mxu0 %v5029
    %6813 = vmatpush1.bf16.msra.mxu0 %v5028
    %6814 = vmatprep.mubr.bf16.mxu0 %v503
    %6815 = vmatmul.mubr.bf16.gmra.mrb[0].mxu0 %v502
    %v6816 = vpop.f32.mrb[0].mxu0
    %v6817 = vadd.f32 %v6776, %v6816
    %v6818 = vpop.f32.mrb[0].mxu0
    %v6819 = vadd.f32 %v6778, %v6818
    %v6820 = vpop.f32.mrb[0].mxu0
    %v6821 = vpop.f32.mrb[0].mxu0
    %6822 = vdwg.mxu0
    %6823 = vmatprep.subr.bf16.mxu0 %v5037
    %6824 = vmatpush1.bf16.msra.mxu0 %v5036
    %6825 = vmatprep.subr.bf16.mxu0 %v5045
    %6826 = vmatpush1.bf16.msra.mxu0 %v5044
    %6827 = vmatprep.subr.bf16.mxu0 %v5053
    %6828 = vmatpush1.bf16.msra.mxu0 %v5052
    %6829 = vmatprep.subr.bf16.mxu0 %v5061
    %6830 = vmatpush1.bf16.msra.mxu0 %v5060
    %6831 = vmatprep.subr.bf16.mxu0 %v5069
    %6832 = vmatpush1.bf16.msra.mxu0 %v5068
    %6833 = vmatprep.subr.bf16.mxu0 %v5077
    %6834 = vmatpush1.bf16.msra.mxu0 %v5076
    %6835 = vmatprep.subr.bf16.mxu0 %v5085
    %6836 = vmatpush1.bf16.msra.mxu0 %v5084
    %6837 = vmatprep.subr.bf16.mxu0 %v5093
    %6838 = vmatpush1.bf16.msra.mxu0 %v5092
    %6839 = vmatprep.subr.bf16.mxu0 %v5101
    %6840 = vmatpush1.bf16.msra.mxu0 %v5100
    %6841 = vmatprep.subr.bf16.mxu0 %v5109
    %6842 = vmatpush1.bf16.msra.mxu0 %v5108
    %6843 = vmatprep.subr.bf16.mxu0 %v5117
    %6844 = vmatpush1.bf16.msra.mxu0 %v5116
    %6845 = vmatprep.subr.bf16.mxu0 %v5125
    %6846 = vmatpush1.bf16.msra.mxu0 %v5124
    %6847 = vmatprep.subr.bf16.mxu0 %v5133
    %6848 = vmatpush1.bf16.msra.mxu0 %v5132
    %6849 = vmatprep.subr.bf16.mxu0 %v5141
    %6850 = vmatpush1.bf16.msra.mxu0 %v5140
    %6851 = vmatprep.subr.bf16.mxu0 %v5149
    %6852 = vmatpush1.bf16.msra.mxu0 %v5148
    %6853 = vmatprep.subr.bf16.mxu0 %v5157
    %6854 = vmatpush1.bf16.msra.mxu0 %v5156
    %6855 = vmatprep.mubr.bf16.mxu0 %v505
    %6856 = vmatmul.mubr.bf16.gmra.mrb[0].mxu0 %v504
    %v6857 = vpop.f32.mrb[0].mxu0
    %v6858 = vadd.f32 %v6817, %v6857
    %v6859 = vpop.f32.mrb[0].mxu0
    %v6860 = vadd.f32 %v6819, %v6859
    %v6861 = vpop.f32.mrb[0].mxu0
    %v6862 = vpop.f32.mrb[0].mxu0
    %6863 = vdwg.mxu0
    %6864 = vmatprep.subr.bf16.mxu0 %v5165
    %6865 = vmatpush1.bf16.msra.mxu0 %v5164
    %6866 = vmatprep.subr.bf16.mxu0 %v5173
    %6867 = vmatpush1.bf16.msra.mxu0 %v5172
    %6868 = vmatprep.subr.bf16.mxu0 %v5181
    %6869 = vmatpush1.bf16.msra.mxu0 %v5180
    %6870 = vmatprep.subr.bf16.mxu0 %v5189
    %6871 = vmatpush1.bf16.msra.mxu0 %v5188
    %6872 = vmatprep.subr.bf16.mxu0 %v5197
    %6873 = vmatpush1.bf16.msra.mxu0 %v5196
    %6874 = vmatprep.subr.bf16.mxu0 %v5205
    %6875 = vmatpush1.bf16.msra.mxu0 %v5204
    %6876 = vmatprep.subr.bf16.mxu0 %v5213
    %6877 = vmatpush1.bf16.msra.mxu0 %v5212
    %6878 = vmatprep.subr.bf16.mxu0 %v5221
    %6879 = vmatpush1.bf16.msra.mxu0 %v5220
    %6880 = vmatprep.subr.bf16.mxu0 %v5229
    %6881 = vmatpush1.bf16.msra.mxu0 %v5228
    %6882 = vmatprep.subr.bf16.mxu0 %v5237
    %6883 = vmatpush1.bf16.msra.mxu0 %v5236
    %6884 = vmatprep.subr.bf16.mxu0 %v5245
    %6885 = vmatpush1.bf16.msra.mxu0 %v5244
    %6886 = vmatprep.subr.bf16.mxu0 %v5253
    %6887 = vmatpush1.bf16.msra.mxu0 %v5252
    %6888 = vmatprep.subr.bf16.mxu0 %v5261
    %6889 = vmatpush1.bf16.msra.mxu0 %v5260
    %6890 = vmatprep.subr.bf16.mxu0 %v5269
    %6891 = vmatpush1.bf16.msra.mxu0 %v5268
    %6892 = vmatprep.subr.bf16.mxu0 %v5277
    %6893 = vmatpush1.bf16.msra.mxu0 %v5276
    %6894 = vmatprep.subr.bf16.mxu0 %v5285
    %6895 = vmatpush1.bf16.msra.mxu0 %v5284
    %6896 = vmatprep.mubr.bf16.mxu0 %v507
    %6897 = vmatmul.mubr.bf16.gmra.mrb[0].mxu0 %v506
    %v6898 = vpop.f32.mrb[0].mxu0
    %v6899 = vadd.f32 %v6858, %v6898
    %v6900 = vpop.f32.mrb[0].mxu0
    %v6901 = vadd.f32 %v6860, %v6900
    %v6902 = vpop.f32.mrb[0].mxu0
    %v6903 = vpop.f32.mrb[0].mxu0
    %6904 = vdwg.mxu0
    %6905 = vmatprep.subr.bf16.mxu0 %v5293
    %6906 = vmatpush1.bf16.msra.mxu0 %v5292
    %6907 = vmatprep.subr.bf16.mxu0 %v5301
    %6908 = vmatpush1.bf16.msra.mxu0 %v5300
    %6909 = vmatprep.subr.bf16.mxu0 %v5309
    %6910 = vmatpush1.bf16.msra.mxu0 %v5308
    %6911 = vmatprep.subr.bf16.mxu0 %v5317
    %6912 = vmatpush1.bf16.msra.mxu0 %v5316
    %6913 = vmatprep.subr.bf16.mxu0 %v5325
    %6914 = vmatpush1.bf16.msra.mxu0 %v5324
    %6915 = vmatprep.subr.bf16.mxu0 %v5333
    %6916 = vmatpush1.bf16.msra.mxu0 %v5332
    %6917 = vmatprep.subr.bf16.mxu0 %v5341
    %6918 = vmatpush1.bf16.msra.mxu0 %v5340
    %6919 = vmatprep.subr.bf16.mxu0 %v5349
    %6920 = vmatpush1.bf16.msra.mxu0 %v5348
    %6921 = vmatprep.subr.bf16.mxu0 %v5357
    %6922 = vmatpush1.bf16.msra.mxu0 %v5356
    %6923 = vmatprep.subr.bf16.mxu0 %v5365
    %6924 = vmatpush1.bf16.msra.mxu0 %v5364
    %6925 = vmatprep.subr.bf16.mxu0 %v5373
    %6926 = vmatpush1.bf16.msra.mxu0 %v5372
    %6927 = vmatprep.subr.bf16.mxu0 %v5381
    %6928 = vmatpush1.bf16.msra.mxu0 %v5380
    %6929 = vmatprep.subr.bf16.mxu0 %v5389
    %6930 = vmatpush1.bf16.msra.mxu0 %v5388
    %6931 = vmatprep.subr.bf16.mxu0 %v5397
    %6932 = vmatpush1.bf16.msra.mxu0 %v5396
    %6933 = vmatprep.subr.bf16.mxu0 %v5405
    %6934 = vmatpush1.bf16.msra.mxu0 %v5404
    %6935 = vmatprep.subr.bf16.mxu0 %v5413
    %6936 = vmatpush1.bf16.msra.mxu0 %v5412
    %6937 = vmatprep.mubr.bf16.mxu0 %v509
    %6938 = vmatmul.mubr.bf16.gmra.mrb[0].mxu0 %v508
    %v6939 = vpop.f32.mrb[0].mxu0
    %v6940 = vadd.f32 %v6899, %v6939
    %v6941 = vpop.f32.mrb[0].mxu0
    %v6942 = vadd.f32 %v6901, %v6941
    %v6943 = vpop.f32.mrb[0].mxu0
    %v6944 = vpop.f32.mrb[0].mxu0
    %6945 = vdwg.mxu0
    %6946 = vmatprep.subr.bf16.mxu0 %v5421
    %6947 = vmatpush1.bf16.msra.mxu0 %v5420
    %6948 = vmatprep.subr.bf16.mxu0 %v5429
    %6949 = vmatpush1.bf16.msra.mxu0 %v5428
    %6950 = vmatprep.subr.bf16.mxu0 %v5437
    %6951 = vmatpush1.bf16.msra.mxu0 %v5436
    %6952 = vmatprep.subr.bf16.mxu0 %v5445
    %6953 = vmatpush1.bf16.msra.mxu0 %v5444
    %6954 = vmatprep.subr.bf16.mxu0 %v5453
    %6955 = vmatpush1.bf16.msra.mxu0 %v5452
    %6956 = vmatprep.subr.bf16.mxu0 %v5461
    %6957 = vmatpush1.bf16.msra.mxu0 %v5460
    %6958 = vmatprep.subr.bf16.mxu0 %v5469
    %6959 = vmatpush1.bf16.msra.mxu0 %v5468
    %6960 = vmatprep.subr.bf16.mxu0 %v5477
    %6961 = vmatpush1.bf16.msra.mxu0 %v5476
    %6962 = vmatprep.subr.bf16.mxu0 %v5485
    %6963 = vmatpush1.bf16.msra.mxu0 %v5484
    %6964 = vmatprep.subr.bf16.mxu0 %v5493
    %6965 = vmatpush1.bf16.msra.mxu0 %v5492
    %6966 = vmatprep.subr.bf16.mxu0 %v5501
    %6967 = vmatpush1.bf16.msra.mxu0 %v5500
    %6968 = vmatprep.subr.bf16.mxu0 %v5509
    %6969 = vmatpush1.bf16.msra.mxu0 %v5508
    %6970 = vmatprep.subr.bf16.mxu0 %v5517
    %6971 = vmatpush1.bf16.msra.mxu0 %v5516
    %6972 = vmatprep.subr.bf16.mxu0 %v5525
    %6973 = vmatpush1.bf16.msra.mxu0 %v5524
    %6974 = vmatprep.subr.bf16.mxu0 %v5533
    %6975 = vmatpush1.bf16.msra.mxu0 %v5532
    %6976 = vmatprep.subr.bf16.mxu0 %v5541
    %6977 = vmatpush1.bf16.msra.mxu0 %v5540
    %6978 = vmatprep.mubr.bf16.mxu0 %v511
    %6979 = vmatmul.mubr.bf16.gmra.mrb[0].mxu0 %v510
    %v6980 = vpop.f32.mrb[0].mxu0
    %v6981 = vadd.f32 %v6940, %v6980
    %v6982 = vpop.f32.mrb[0].mxu0
    %v6983 = vadd.f32 %v6942, %v6982
    %v6984 = vpop.f32.mrb[0].mxu0
    %v6985 = vpop.f32.mrb[0].mxu0
    %6986 = vdwg.mxu0
    %6987 = vmatprep.subr.bf16.mxu0 %v5549
    %6988 = vmatpush1.bf16.msra.mxu0 %v5548
    %6989 = vmatprep.subr.bf16.mxu0 %v5557
    %6990 = vmatpush1.bf16.msra.mxu0 %v5556
    %6991 = vmatprep.subr.bf16.mxu0 %v5565
    %6992 = vmatpush1.bf16.msra.mxu0 %v5564
    %6993 = vmatprep.subr.bf16.mxu0 %v5573
    %6994 = vmatpush1.bf16.msra.mxu0 %v5572
    %6995 = vmatprep.subr.bf16.mxu0 %v5581
    %6996 = vmatpush1.bf16.msra.mxu0 %v5580
    %6997 = vmatprep.subr.bf16.mxu0 %v5589
    %6998 = vmatpush1.bf16.msra.mxu0 %v5588
    %6999 = vmatprep.subr.bf16.mxu0 %v5597
    %7000 = vmatpush1.bf16.msra.mxu0 %v5596
    %7001 = vmatprep.subr.bf16.mxu0 %v5605
    %7002 = vmatpush1.bf16.msra.mxu0 %v5604
    %7003 = vmatprep.subr.bf16.mxu0 %v5613
    %7004 = vmatpush1.bf16.msra.mxu0 %v5612
    %7005 = vmatprep.subr.bf16.mxu0 %v5621
    %7006 = vmatpush1.bf16.msra.mxu0 %v5620
    %7007 = vmatprep.subr.bf16.mxu0 %v5629
    %7008 = vmatpush1.bf16.msra.mxu0 %v5628
    %7009 = vmatprep.subr.bf16.mxu0 %v5637
    %7010 = vmatpush1.bf16.msra.mxu0 %v5636
    %7011 = vmatprep.subr.bf16.mxu0 %v5645
    %7012 = vmatpush1.bf16.msra.mxu0 %v5644
    %7013 = vmatprep.subr.bf16.mxu0 %v5653
    %7014 = vmatpush1.bf16.msra.mxu0 %v5652
    %7015 = vmatprep.subr.bf16.mxu0 %v5661
    %7016 = vmatpush1.bf16.msra.mxu0 %v5660
    %7017 = vmatprep.subr.bf16.mxu0 %v5669
    %7018 = vmatpush1.bf16.msra.mxu0 %v5668
    %7019 = vmatprep.mubr.bf16.mxu0 %v513
    %7020 = vmatmul.mubr.bf16.gmra.mrb[0].mxu0 %v512
    %v7021 = vpop.f32.mrb[0].mxu0
    %v7022 = vadd.f32 %v6981, %v7021
    %v7023 = vpop.f32.mrb[0].mxu0
    %v7024 = vadd.f32 %v6983, %v7023
    %v7025 = vpop.f32.mrb[0].mxu0
    %v7026 = vpop.f32.mrb[0].mxu0
    %7027 = vdwg.mxu0
    %7028 = vmatprep.subr.bf16.mxu0 %v4655
    %7029 = vmatpush1.bf16.msra.mxu0 %v4654
    %7030 = vmatprep.subr.bf16.mxu0 %v4663
    %7031 = vmatpush1.bf16.msra.mxu0 %v4662
    %7032 = vmatprep.subr.bf16.mxu0 %v4671
    %7033 = vmatpush1.bf16.msra.mxu0 %v4670
    %7034 = vmatprep.subr.bf16.mxu0 %v4679
    %7035 = vmatpush1.bf16.msra.mxu0 %v4678
    %7036 = vmatprep.subr.bf16.mxu0 %v4687
    %7037 = vmatpush1.bf16.msra.mxu0 %v4686
    %7038 = vmatprep.subr.bf16.mxu0 %v4695
    %7039 = vmatpush1.bf16.msra.mxu0 %v4694
    %7040 = vmatprep.subr.bf16.mxu0 %v4703
    %7041 = vmatpush1.bf16.msra.mxu0 %v4702
    %7042 = vmatprep.subr.bf16.mxu0 %v4711
    %7043 = vmatpush1.bf16.msra.mxu0 %v4710
    %7044 = vmatprep.subr.bf16.mxu0 %v4719
    %7045 = vmatpush1.bf16.msra.mxu0 %v4718
    %7046 = vmatprep.subr.bf16.mxu0 %v4727
    %7047 = vmatpush1.bf16.msra.mxu0 %v4726
    %7048 = vmatprep.subr.bf16.mxu0 %v4735
    %7049 = vmatpush1.bf16.msra.mxu0 %v4734
    %7050 = vmatprep.subr.bf16.mxu0 %v4743
    %7051 = vmatpush1.bf16.msra.mxu0 %v4742
    %7052 = vmatprep.subr.bf16.mxu0 %v4751
    %7053 = vmatpush1.bf16.msra.mxu0 %v4750
    %7054 = vmatprep.subr.bf16.mxu0 %v4759
    %7055 = vmatpush1.bf16.msra.mxu0 %v4758
    %7056 = vmatprep.subr.bf16.mxu0 %v4767
    %7057 = vmatpush1.bf16.msra.mxu0 %v4766
    %7058 = vmatprep.subr.bf16.mxu0 %v4775
    %7059 = vmatpush1.bf16.msra.mxu0 %v4774
    %7060 = vmatprep.mubr.bf16.mxu0 %v499
    %7061 = vmatmul.mubr.bf16.gmra.mrb[0].mxu0 %v498
    %v7062 = vpop.f32.mrb[0].mxu0
    %v7063 = vadd.f32 %v1551, %v7062
    %v7064 = vpop.f32.mrb[0].mxu0
    %v7065 = vadd.f32 %v1555, %v7064
    %v7066 = vpop.f32.mrb[0].mxu0
    %v7067 = vpop.f32.mrb[0].mxu0
    %7068 = vdwg.mxu0
    %7069 = vmatprep.subr.bf16.mxu0 %v4783
    %7070 = vmatpush1.bf16.msra.mxu0 %v4782
    %7071 = vmatprep.subr.bf16.mxu0 %v4791
    %7072 = vmatpush1.bf16.msra.mxu0 %v4790
    %7073 = vmatprep.subr.bf16.mxu0 %v4799
    %7074 = vmatpush1.bf16.msra.mxu0 %v4798
    %7075 = vmatprep.subr.bf16.mxu0 %v4807
    %7076 = vmatpush1.bf16.msra.mxu0 %v4806
    %7077 = vmatprep.subr.bf16.mxu0 %v4815
    %7078 = vmatpush1.bf16.msra.mxu0 %v4814
    %7079 = vmatprep.subr.bf16.mxu0 %v4823
    %7080 = vmatpush1.bf16.msra.mxu0 %v4822
    %7081 = vmatprep.subr.bf16.mxu0 %v4831
    %7082 = vmatpush1.bf16.msra.mxu0 %v4830
    %7083 = vmatprep.subr.bf16.mxu0 %v4839
    %7084 = vmatpush1.bf16.msra.mxu0 %v4838
    %7085 = vmatprep.subr.bf16.mxu0 %v4847
    %7086 = vmatpush1.bf16.msra.mxu0 %v4846
    %7087 = vmatprep.subr.bf16.mxu0 %v4855
    %7088 = vmatpush1.bf16.msra.mxu0 %v4854
    %7089 = vmatprep.subr.bf16.mxu0 %v4863
    %7090 = vmatpush1.bf16.msra.mxu0 %v4862
    %7091 = vmatprep.subr.bf16.mxu0 %v4871
    %7092 = vmatpush1.bf16.msra.mxu0 %v4870
    %7093 = vmatprep.subr.bf16.mxu0 %v4879
    %7094 = vmatpush1.bf16.msra.mxu0 %v4878
    %7095 = vmatprep.subr.bf16.mxu0 %v4887
    %7096 = vmatpush1.bf16.msra.mxu0 %v4886
    %7097 = vmatprep.subr.bf16.mxu0 %v4895
    %7098 = vmatpush1.bf16.msra.mxu0 %v4894
    %7099 = vmatprep.subr.bf16.mxu0 %v4903
    %7100 = vmatpush1.bf16.msra.mxu0 %v4902
    %7101 = vmatprep.mubr.bf16.mxu0 %v501
    %7102 = vmatmul.mubr.bf16.gmra.mrb[0].mxu0 %v500
    %v7103 = vpop.f32.mrb[0].mxu0
    %v7104 = vadd.f32 %v7063, %v7103
    %v7105 = vpop.f32.mrb[0].mxu0
    %v7106 = vadd.f32 %v7065, %v7105
    %v7107 = vpop.f32.mrb[0].mxu0
    %v7108 = vpop.f32.mrb[0].mxu0
    %7109 = vdwg.mxu0
    %7110 = vmatprep.subr.bf16.mxu0 %v4911
    %7111 = vmatpush1.bf16.msra.mxu0 %v4910
    %7112 = vmatprep.subr.bf16.mxu0 %v4919
    %7113 = vmatpush1.bf16.msra.mxu0 %v4918
    %7114 = vmatprep.subr.bf16.mxu0 %v4927
    %7115 = vmatpush1.bf16.msra.mxu0 %v4926
    %7116 = vmatprep.subr.bf16.mxu0 %v4935
    %7117 = vmatpush1.bf16.msra.mxu0 %v4934
    %7118 = vmatprep.subr.bf16.mxu0 %v4943
    %7119 = vmatpush1.bf16.msra.mxu0 %v4942
    %7120 = vmatprep.subr.bf16.mxu0 %v4951
    %7121 = vmatpush1.bf16.msra.mxu0 %v4950
    %7122 = vmatprep.subr.bf16.mxu0 %v4959
    %7123 = vmatpush1.bf16.msra.mxu0 %v4958
    %7124 = vmatprep.subr.bf16.mxu0 %v4967
    %7125 = vmatpush1.bf16.msra.mxu0 %v4966
    %7126 = vmatprep.subr.bf16.mxu0 %v4975
    %7127 = vmatpush1.bf16.msra.mxu0 %v4974
    %7128 = vmatprep.subr.bf16.mxu0 %v4983
    %7129 = vmatpush1.bf16.msra.mxu0 %v4982
    %7130 = vmatprep.subr.bf16.mxu0 %v4991
    %7131 = vmatpush1.bf16.msra.mxu0 %v4990
    %7132 = vmatprep.subr.bf16.mxu0 %v4999
    %7133 = vmatpush1.bf16.msra.mxu0 %v4998
    %7134 = vmatprep.subr.bf16.mxu0 %v5007
    %7135 = vmatpush1.bf16.msra.mxu0 %v5006
    %7136 = vmatprep.subr.bf16.mxu0 %v5015
    %7137 = vmatpush1.bf16.msra.mxu0 %v5014
    %7138 = vmatprep.subr.bf16.mxu0 %v5023
    %7139 = vmatpush1.bf16.msra.mxu0 %v5022
    %7140 = vmatprep.subr.bf16.mxu0 %v5031
    %7141 = vmatpush1.bf16.msra.mxu0 %v5030
    %7142 = vmatprep.mubr.bf16.mxu0 %v503
    %7143 = vmatmul.mubr.bf16.gmra.mrb[0].mxu0 %v502
    %v7144 = vpop.f32.mrb[0].mxu0
    %v7145 = vadd.f32 %v7104, %v7144
    %v7146 = vpop.f32.mrb[0].mxu0
    %v7147 = vadd.f32 %v7106, %v7146
    %v7148 = vpop.f32.mrb[0].mxu0
    %v7149 = vpop.f32.mrb[0].mxu0
    %7150 = vdwg.mxu0
    %7151 = vmatprep.subr.bf16.mxu0 %v5039
    %7152 = vmatpush1.bf16.msra.mxu0 %v5038
    %7153 = vmatprep.subr.bf16.mxu0 %v5047
    %7154 = vmatpush1.bf16.msra.mxu0 %v5046
    %7155 = vmatprep.subr.bf16.mxu0 %v5055
    %7156 = vmatpush1.bf16.msra.mxu0 %v5054
    %7157 = vmatprep.subr.bf16.mxu0 %v5063
    %7158 = vmatpush1.bf16.msra.mxu0 %v5062
    %7159 = vmatprep.subr.bf16.mxu0 %v5071
    %7160 = vmatpush1.bf16.msra.mxu0 %v5070
    %7161 = vmatprep.subr.bf16.mxu0 %v5079
    %7162 = vmatpush1.bf16.msra.mxu0 %v5078
    %7163 = vmatprep.subr.bf16.mxu0 %v5087
    %7164 = vmatpush1.bf16.msra.mxu0 %v5086
    %7165 = vmatprep.subr.bf16.mxu0 %v5095
    %7166 = vmatpush1.bf16.msra.mxu0 %v5094
    %7167 = vmatprep.subr.bf16.mxu0 %v5103
    %7168 = vmatpush1.bf16.msra.mxu0 %v5102
    %7169 = vmatprep.subr.bf16.mxu0 %v5111
    %7170 = vmatpush1.bf16.msra.mxu0 %v5110
    %7171 = vmatprep.subr.bf16.mxu0 %v5119
    %7172 = vmatpush1.bf16.msra.mxu0 %v5118
    %7173 = vmatprep.subr.bf16.mxu0 %v5127
    %7174 = vmatpush1.bf16.msra.mxu0 %v5126
    %7175 = vmatprep.subr.bf16.mxu0 %v5135
    %7176 = vmatpush1.bf16.msra.mxu0 %v5134
    %7177 = vmatprep.subr.bf16.mxu0 %v5143
    %7178 = vmatpush1.bf16.msra.mxu0 %v5142
    %7179 = vmatprep.subr.bf16.mxu0 %v5151
    %7180 = vmatpush1.bf16.msra.mxu0 %v5150
    %7181 = vmatprep.subr.bf16.mxu0 %v5159
    %7182 = vmatpush1.bf16.msra.mxu0 %v5158
    %7183 = vmatprep.mubr.bf16.mxu0 %v505
    %7184 = vmatmul.mubr.bf16.gmra.mrb[0].mxu0 %v504
    %v7185 = vpop.f32.mrb[0].mxu0
    %v7186 = vadd.f32 %v7145, %v7185
    %v7187 = vpop.f32.mrb[0].mxu0
    %v7188 = vadd.f32 %v7147, %v7187
    %v7189 = vpop.f32.mrb[0].mxu0
    %v7190 = vpop.f32.mrb[0].mxu0
    %7191 = vdwg.mxu0
    %7192 = vmatprep.subr.bf16.mxu0 %v5167
    %7193 = vmatpush1.bf16.msra.mxu0 %v5166
    %7194 = vmatprep.subr.bf16.mxu0 %v5175
    %7195 = vmatpush1.bf16.msra.mxu0 %v5174
    %7196 = vmatprep.subr.bf16.mxu0 %v5183
    %7197 = vmatpush1.bf16.msra.mxu0 %v5182
    %7198 = vmatprep.subr.bf16.mxu0 %v5191
    %7199 = vmatpush1.bf16.msra.mxu0 %v5190
    %7200 = vmatprep.subr.bf16.mxu0 %v5199
    %7201 = vmatpush1.bf16.msra.mxu0 %v5198
    %7202 = vmatprep.subr.bf16.mxu0 %v5207
    %7203 = vmatpush1.bf16.msra.mxu0 %v5206
    %7204 = vmatprep.subr.bf16.mxu0 %v5215
    %7205 = vmatpush1.bf16.msra.mxu0 %v5214
    %7206 = vmatprep.subr.bf16.mxu0 %v5223
    %7207 = vmatpush1.bf16.msra.mxu0 %v5222
    %7208 = vmatprep.subr.bf16.mxu0 %v5231
    %7209 = vmatpush1.bf16.msra.mxu0 %v5230
    %7210 = vmatprep.subr.bf16.mxu0 %v5239
    %7211 = vmatpush1.bf16.msra.mxu0 %v5238
    %7212 = vmatprep.subr.bf16.mxu0 %v5247
    %7213 = vmatpush1.bf16.msra.mxu0 %v5246
    %7214 = vmatprep.subr.bf16.mxu0 %v5255
    %7215 = vmatpush1.bf16.msra.mxu0 %v5254
    %7216 = vmatprep.subr.bf16.mxu0 %v5263
    %7217 = vmatpush1.bf16.msra.mxu0 %v5262
    %7218 = vmatprep.subr.bf16.mxu0 %v5271
    %7219 = vmatpush1.bf16.msra.mxu0 %v5270
    %7220 = vmatprep.subr.bf16.mxu0 %v5279
    %7221 = vmatpush1.bf16.msra.mxu0 %v5278
    %7222 = vmatprep.subr.bf16.mxu0 %v5287
    %7223 = vmatpush1.bf16.msra.mxu0 %v5286
    %7224 = vmatprep.mubr.bf16.mxu0 %v507
    %7225 = vmatmul.mubr.bf16.gmra.mrb[0].mxu0 %v506
    %v7226 = vpop.f32.mrb[0].mxu0
    %v7227 = vadd.f32 %v7186, %v7226
    %v7228 = vpop.f32.mrb[0].mxu0
    %v7229 = vadd.f32 %v7188, %v7228
    %v7230 = vpop.f32.mrb[0].mxu0
    %v7231 = vpop.f32.mrb[0].mxu0
    %7232 = vdwg.mxu0
    %7233 = vmatprep.subr.bf16.mxu0 %v5295
    %7234 = vmatpush1.bf16.msra.mxu0 %v5294
    %7235 = vmatprep.subr.bf16.mxu0 %v5303
    %7236 = vmatpush1.bf16.msra.mxu0 %v5302
    %7237 = vmatprep.subr.bf16.mxu0 %v5311
    %7238 = vmatpush1.bf16.msra.mxu0 %v5310
    %7239 = vmatprep.subr.bf16.mxu0 %v5319
    %7240 = vmatpush1.bf16.msra.mxu0 %v5318
    %7241 = vmatprep.subr.bf16.mxu0 %v5327
    %7242 = vmatpush1.bf16.msra.mxu0 %v5326
    %7243 = vmatprep.subr.bf16.mxu0 %v5335
    %7244 = vmatpush1.bf16.msra.mxu0 %v5334
    %7245 = vmatprep.subr.bf16.mxu0 %v5343
    %7246 = vmatpush1.bf16.msra.mxu0 %v5342
    %7247 = vmatprep.subr.bf16.mxu0 %v5351
    %7248 = vmatpush1.bf16.msra.mxu0 %v5350
    %7249 = vmatprep.subr.bf16.mxu0 %v5359
    %7250 = vmatpush1.bf16.msra.mxu0 %v5358
    %7251 = vmatprep.subr.bf16.mxu0 %v5367
    %7252 = vmatpush1.bf16.msra.mxu0 %v5366
    %7253 = vmatprep.subr.bf16.mxu0 %v5375
    %7254 = vmatpush1.bf16.msra.mxu0 %v5374
    %7255 = vmatprep.subr.bf16.mxu0 %v5383
    %7256 = vmatpush1.bf16.msra.mxu0 %v5382
    %7257 = vmatprep.subr.bf16.mxu0 %v5391
    %7258 = vmatpush1.bf16.msra.mxu0 %v5390
    %7259 = vmatprep.subr.bf16.mxu0 %v5399
    %7260 = vmatpush1.bf16.msra.mxu0 %v5398
    %7261 = vmatprep.subr.bf16.mxu0 %v5407
    %7262 = vmatpush1.bf16.msra.mxu0 %v5406
    %7263 = vmatprep.subr.bf16.mxu0 %v5415
    %7264 = vmatpush1.bf16.msra.mxu0 %v5414
    %7265 = vmatprep.mubr.bf16.mxu0 %v509
    %7266 = vmatmul.mubr.bf16.gmra.mrb[0].mxu0 %v508
    %v7267 = vpop.f32.mrb[0].mxu0
    %v7268 = vadd.f32 %v7227, %v7267
    %v7269 = vpop.f32.mrb[0].mxu0
    %v7270 = vadd.f32 %v7229, %v7269
    %v7271 = vpop.f32.mrb[0].mxu0
    %v7272 = vpop.f32.mrb[0].mxu0
    %7273 = vdwg.mxu0
    %7274 = vmatprep.subr.bf16.mxu0 %v5423
    %7275 = vmatpush1.bf16.msra.mxu0 %v5422
    %7276 = vmatprep.subr.bf16.mxu0 %v5431
    %7277 = vmatpush1.bf16.msra.mxu0 %v5430
    %7278 = vmatprep.subr.bf16.mxu0 %v5439
    %7279 = vmatpush1.bf16.msra.mxu0 %v5438
    %7280 = vmatprep.subr.bf16.mxu0 %v5447
    %7281 = vmatpush1.bf16.msra.mxu0 %v5446
    %7282 = vmatprep.subr.bf16.mxu0 %v5455
    %7283 = vmatpush1.bf16.msra.mxu0 %v5454
    %7284 = vmatprep.subr.bf16.mxu0 %v5463
    %7285 = vmatpush1.bf16.msra.mxu0 %v5462
    %7286 = vmatprep.subr.bf16.mxu0 %v5471
    %7287 = vmatpush1.bf16.msra.mxu0 %v5470
    %7288 = vmatprep.subr.bf16.mxu0 %v5479
    %7289 = vmatpush1.bf16.msra.mxu0 %v5478
    %7290 = vmatprep.subr.bf16.mxu0 %v5487
    %7291 = vmatpush1.bf16.msra.mxu0 %v5486
    %7292 = vmatprep.subr.bf16.mxu0 %v5495
    %7293 = vmatpush1.bf16.msra.mxu0 %v5494
    %7294 = vmatprep.subr.bf16.mxu0 %v5503
    %7295 = vmatpush1.bf16.msra.mxu0 %v5502
    %7296 = vmatprep.subr.bf16.mxu0 %v5511
    %7297 = vmatpush1.bf16.msra.mxu0 %v5510
    %7298 = vmatprep.subr.bf16.mxu0 %v5519
    %7299 = vmatpush1.bf16.msra.mxu0 %v5518
    %7300 = vmatprep.subr.bf16.mxu0 %v5527
    %7301 = vmatpush1.bf16.msra.mxu0 %v5526
    %7302 = vmatprep.subr.bf16.mxu0 %v5535
    %7303 = vmatpush1.bf16.msra.mxu0 %v5534
    %7304 = vmatprep.subr.bf16.mxu0 %v5543
    %7305 = vmatpush1.bf16.msra.mxu0 %v5542
    %7306 = vmatprep.mubr.bf16.mxu0 %v511
    %7307 = vmatmul.mubr.bf16.gmra.mrb[0].mxu0 %v510
    %v7308 = vpop.f32.mrb[0].mxu0
    %v7309 = vadd.f32 %v7268, %v7308
    %v7310 = vpop.f32.mrb[0].mxu0
    %v7311 = vadd.f32 %v7270, %v7310
    %v7312 = vpop.f32.mrb[0].mxu0
    %v7313 = vpop.f32.mrb[0].mxu0
    %7314 = vdwg.mxu0
    %7315 = vmatprep.subr.bf16.mxu0 %v5551
    %7316 = vmatpush1.bf16.msra.mxu0 %v5550
    %7317 = vmatprep.subr.bf16.mxu0 %v5559
    %7318 = vmatpush1.bf16.msra.mxu0 %v5558
    %7319 = vmatprep.subr.bf16.mxu0 %v5567
    %7320 = vmatpush1.bf16.msra.mxu0 %v5566
    %7321 = vmatprep.subr.bf16.mxu0 %v5575
    %7322 = vmatpush1.bf16.msra.mxu0 %v5574
    %7323 = vmatprep.subr.bf16.mxu0 %v5583
    %7324 = vmatpush1.bf16.msra.mxu0 %v5582
    %7325 = vmatprep.subr.bf16.mxu0 %v5591
    %7326 = vmatpush1.bf16.msra.mxu0 %v5590
    %7327 = vmatprep.subr.bf16.mxu0 %v5599
    %7328 = vmatpush1.bf16.msra.mxu0 %v5598
    %7329 = vmatprep.subr.bf16.mxu0 %v5607
    %7330 = vmatpush1.bf16.msra.mxu0 %v5606
    %7331 = vmatprep.subr.bf16.mxu0 %v5615
    %7332 = vmatpush1.bf16.msra.mxu0 %v5614
    %7333 = vmatprep.subr.bf16.mxu0 %v5623
    %7334 = vmatpush1.bf16.msra.mxu0 %v5622
    %7335 = vmatprep.subr.bf16.mxu0 %v5631
    %7336 = vmatpush1.bf16.msra.mxu0 %v5630
    %7337 = vmatprep.subr.bf16.mxu0 %v5639
    %7338 = vmatpush1.bf16.msra.mxu0 %v5638
    %7339 = vmatprep.subr.bf16.mxu0 %v5647
    %7340 = vmatpush1.bf16.msra.mxu0 %v5646
    %7341 = vmatprep.subr.bf16.mxu0 %v5655
    %7342 = vmatpush1.bf16.msra.mxu0 %v5654
    %7343 = vmatprep.subr.bf16.mxu0 %v5663
    %7344 = vmatpush1.bf16.msra.mxu0 %v5662
    %7345 = vmatprep.subr.bf16.mxu0 %v5671
    %7346 = vmatpush1.bf16.msra.mxu0 %v5670
    %7347 = vmatprep.mubr.bf16.mxu0 %v513
    %7348 = vmatmul.mubr.bf16.gmra.mrb[0].mxu0 %v512
    %v7349 = vpop.f32.mrb[0].mxu0
    %v7350 = vadd.f32 %v7309, %v7349
    %v7351 = vpop.f32.mrb[0].mxu0
    %v7352 = vadd.f32 %v7311, %v7351
    %v7353 = vpop.f32.mrb[0].mxu0
    %v7354 = vpop.f32.mrb[0].mxu0
    %7355 = vdwg.mxu0
    %7356 = vmatprep.subr.bf16.mxu0 %v4657
    %7357 = vmatpush1.bf16.msra.mxu0 %v4656
    %7358 = vmatprep.subr.bf16.mxu0 %v4665
    %7359 = vmatpush1.bf16.msra.mxu0 %v4664
    %7360 = vmatprep.subr.bf16.mxu0 %v4673
    %7361 = vmatpush1.bf16.msra.mxu0 %v4672
    %7362 = vmatprep.subr.bf16.mxu0 %v4681
    %7363 = vmatpush1.bf16.msra.mxu0 %v4680
    %7364 = vmatprep.subr.bf16.mxu0 %v4689
    %7365 = vmatpush1.bf16.msra.mxu0 %v4688
    %7366 = vmatprep.subr.bf16.mxu0 %v4697
    %7367 = vmatpush1.bf16.msra.mxu0 %v4696
    %7368 = vmatprep.subr.bf16.mxu0 %v4705
    %7369 = vmatpush1.bf16.msra.mxu0 %v4704
    %7370 = vmatprep.subr.bf16.mxu0 %v4713
    %7371 = vmatpush1.bf16.msra.mxu0 %v4712
    %7372 = vmatprep.subr.bf16.mxu0 %v4721
    %7373 = vmatpush1.bf16.msra.mxu0 %v4720
    %7374 = vmatprep.subr.bf16.mxu0 %v4729
    %7375 = vmatpush1.bf16.msra.mxu0 %v4728
    %7376 = vmatprep.subr.bf16.mxu0 %v4737
    %7377 = vmatpush1.bf16.msra.mxu0 %v4736
    %7378 = vmatprep.subr.bf16.mxu0 %v4745
    %7379 = vmatpush1.bf16.msra.mxu0 %v4744
    %7380 = vmatprep.subr.bf16.mxu0 %v4753
    %7381 = vmatpush1.bf16.msra.mxu0 %v4752
    %7382 = vmatprep.subr.bf16.mxu0 %v4761
    %7383 = vmatpush1.bf16.msra.mxu0 %v4760
    %7384 = vmatprep.subr.bf16.mxu0 %v4769
    %7385 = vmatpush1.bf16.msra.mxu0 %v4768
    %7386 = vmatprep.subr.bf16.mxu0 %v4777
    %7387 = vmatpush1.bf16.msra.mxu0 %v4776
    %7388 = vmatprep.mubr.bf16.mxu0 %v499
    %7389 = vmatmul.mubr.bf16.gmra.mrb[0].mxu0 %v498
    %v7390 = vpop.f32.mrb[0].mxu0
    %v7391 = vadd.f32 %v1559, %v7390
    %v7392 = vpop.f32.mrb[0].mxu0
    %v7393 = vadd.f32 %v1563, %v7392
    %v7394 = vpop.f32.mrb[0].mxu0
    %v7395 = vpop.f32.mrb[0].mxu0
    %7396 = vdwg.mxu0
    %7397 = vmatprep.subr.bf16.mxu0 %v4785
    %7398 = vmatpush1.bf16.msra.mxu0 %v4784
    %7399 = vmatprep.subr.bf16.mxu0 %v4793
    %7400 = vmatpush1.bf16.msra.mxu0 %v4792
    %7401 = vmatprep.subr.bf16.mxu0 %v4801
    %7402 = vmatpush1.bf16.msra.mxu0 %v4800
    %7403 = vmatprep.subr.bf16.mxu0 %v4809
    %7404 = vmatpush1.bf16.msra.mxu0 %v4808
    %7405 = vmatprep.subr.bf16.mxu0 %v4817
    %7406 = vmatpush1.bf16.msra.mxu0 %v4816
    %7407 = vmatprep.subr.bf16.mxu0 %v4825
    %7408 = vmatpush1.bf16.msra.mxu0 %v4824
    %7409 = vmatprep.subr.bf16.mxu0 %v4833
    %7410 = vmatpush1.bf16.msra.mxu0 %v4832
    %7411 = vmatprep.subr.bf16.mxu0 %v4841
    %7412 = vmatpush1.bf16.msra.mxu0 %v4840
    %7413 = vmatprep.subr.bf16.mxu0 %v4849
    %7414 = vmatpush1.bf16.msra.mxu0 %v4848
    %7415 = vmatprep.subr.bf16.mxu0 %v4857
    %7416 = vmatpush1.bf16.msra.mxu0 %v4856
    %7417 = vmatprep.subr.bf16.mxu0 %v4865
    %7418 = vmatpush1.bf16.msra.mxu0 %v4864
    %7419 = vmatprep.subr.bf16.mxu0 %v4873
    %7420 = vmatpush1.bf16.msra.mxu0 %v4872
    %7421 = vmatprep.subr.bf16.mxu0 %v4881
    %7422 = vmatpush1.bf16.msra.mxu0 %v4880
    %7423 = vmatprep.subr.bf16.mxu0 %v4889
    %7424 = vmatpush1.bf16.msra.mxu0 %v4888
    %7425 = vmatprep.subr.bf16.mxu0 %v4897
    %7426 = vmatpush1.bf16.msra.mxu0 %v4896
    %7427 = vmatprep.subr.bf16.mxu0 %v4905
    %7428 = vmatpush1.bf16.msra.mxu0 %v4904
    %7429 = vmatprep.mubr.bf16.mxu0 %v501
    %7430 = vmatmul.mubr.bf16.gmra.mrb[0].mxu0 %v500
    %v7431 = vpop.f32.mrb[0].mxu0
    %v7432 = vadd.f32 %v7391, %v7431
    %v7433 = vpop.f32.mrb[0].mxu0
    %v7434 = vadd.f32 %v7393, %v7433
    %v7435 = vpop.f32.mrb[0].mxu0
    %v7436 = vpop.f32.mrb[0].mxu0
    %7437 = vdwg.mxu0
    %7438 = vmatprep.subr.bf16.mxu0 %v4913
    %7439 = vmatpush1.bf16.msra.mxu0 %v4912
    %7440 = vmatprep.subr.bf16.mxu0 %v4921
    %7441 = vmatpush1.bf16.msra.mxu0 %v4920
    %7442 = vmatprep.subr.bf16.mxu0 %v4929
    %7443 = vmatpush1.bf16.msra.mxu0 %v4928
    %7444 = vmatprep.subr.bf16.mxu0 %v4937
    %7445 = vmatpush1.bf16.msra.mxu0 %v4936
    %7446 = vmatprep.subr.bf16.mxu0 %v4945
    %7447 = vmatpush1.bf16.msra.mxu0 %v4944
    %7448 = vmatprep.subr.bf16.mxu0 %v4953
    %7449 = vmatpush1.bf16.msra.mxu0 %v4952
    %7450 = vmatprep.subr.bf16.mxu0 %v4961
    %7451 = vmatpush1.bf16.msra.mxu0 %v4960
    %7452 = vmatprep.subr.bf16.mxu0 %v4969
    %7453 = vmatpush1.bf16.msra.mxu0 %v4968
    %7454 = vmatprep.subr.bf16.mxu0 %v4977
    %7455 = vmatpush1.bf16.msra.mxu0 %v4976
    %7456 = vmatprep.subr.bf16.mxu0 %v4985
    %7457 = vmatpush1.bf16.msra.mxu0 %v4984
    %7458 = vmatprep.subr.bf16.mxu0 %v4993
    %7459 = vmatpush1.bf16.msra.mxu0 %v4992
    %7460 = vmatprep.subr.bf16.mxu0 %v5001
    %7461 = vmatpush1.bf16.msra.mxu0 %v5000
    %7462 = vmatprep.subr.bf16.mxu0 %v5009
    %7463 = vmatpush1.bf16.msra.mxu0 %v5008
    %7464 = vmatprep.subr.bf16.mxu0 %v5017
    %7465 = vmatpush1.bf16.msra.mxu0 %v5016
    %7466 = vmatprep.subr.bf16.mxu0 %v5025
    %7467 = vmatpush1.bf16.msra.mxu0 %v5024
    %7468 = vmatprep.subr.bf16.mxu0 %v5033
    %7469 = vmatpush1.bf16.msra.mxu0 %v5032
    %7470 = vmatprep.mubr.bf16.mxu0 %v503
    %7471 = vmatmul.mubr.bf16.gmra.mrb[0].mxu0 %v502
    %v7472 = vpop.f32.mrb[0].mxu0
    %v7473 = vadd.f32 %v7432, %v7472
    %v7474 = vpop.f32.mrb[0].mxu0
    %v7475 = vadd.f32 %v7434, %v7474
    %v7476 = vpop.f32.mrb[0].mxu0
    %v7477 = vpop.f32.mrb[0].mxu0
    %7478 = vdwg.mxu0
    %7479 = vmatprep.subr.bf16.mxu0 %v5041
    %7480 = vmatpush1.bf16.msra.mxu0 %v5040
    %7481 = vmatprep.subr.bf16.mxu0 %v5049
    %7482 = vmatpush1.bf16.msra.mxu0 %v5048
    %7483 = vmatprep.subr.bf16.mxu0 %v5057
    %7484 = vmatpush1.bf16.msra.mxu0 %v5056
    %7485 = vmatprep.subr.bf16.mxu0 %v5065
    %7486 = vmatpush1.bf16.msra.mxu0 %v5064
    %7487 = vmatprep.subr.bf16.mxu0 %v5073
    %7488 = vmatpush1.bf16.msra.mxu0 %v5072
    %7489 = vmatprep.subr.bf16.mxu0 %v5081
    %7490 = vmatpush1.bf16.msra.mxu0 %v5080
    %7491 = vmatprep.subr.bf16.mxu0 %v5089
    %7492 = vmatpush1.bf16.msra.mxu0 %v5088
    %7493 = vmatprep.subr.bf16.mxu0 %v5097
    %7494 = vmatpush1.bf16.msra.mxu0 %v5096
    %7495 = vmatprep.subr.bf16.mxu0 %v5105
    %7496 = vmatpush1.bf16.msra.mxu0 %v5104
    %7497 = vmatprep.subr.bf16.mxu0 %v5113
    %7498 = vmatpush1.bf16.msra.mxu0 %v5112
    %7499 = vmatprep.subr.bf16.mxu0 %v5121
    %7500 = vmatpush1.bf16.msra.mxu0 %v5120
    %7501 = vmatprep.subr.bf16.mxu0 %v5129
    %7502 = vmatpush1.bf16.msra.mxu0 %v5128
    %7503 = vmatprep.subr.bf16.mxu0 %v5137
    %7504 = vmatpush1.bf16.msra.mxu0 %v5136
    %7505 = vmatprep.subr.bf16.mxu0 %v5145
    %7506 = vmatpush1.bf16.msra.mxu0 %v5144
    %7507 = vmatprep.subr.bf16.mxu0 %v5153
    %7508 = vmatpush1.bf16.msra.mxu0 %v5152
    %7509 = vmatprep.subr.bf16.mxu0 %v5161
    %7510 = vmatpush1.bf16.msra.mxu0 %v5160
    %7511 = vmatprep.mubr.bf16.mxu0 %v505
    %7512 = vmatmul.mubr.bf16.gmra.mrb[0].mxu0 %v504
    %v7513 = vpop.f32.mrb[0].mxu0
    %v7514 = vadd.f32 %v7473, %v7513
    %v7515 = vpop.f32.mrb[0].mxu0
    %v7516 = vadd.f32 %v7475, %v7515
    %v7517 = vpop.f32.mrb[0].mxu0
    %v7518 = vpop.f32.mrb[0].mxu0
    %7519 = vdwg.mxu0
    %7520 = vmatprep.subr.bf16.mxu0 %v5169
    %7521 = vmatpush1.bf16.msra.mxu0 %v5168
    %7522 = vmatprep.subr.bf16.mxu0 %v5177
    %7523 = vmatpush1.bf16.msra.mxu0 %v5176
    %7524 = vmatprep.subr.bf16.mxu0 %v5185
    %7525 = vmatpush1.bf16.msra.mxu0 %v5184
    %7526 = vmatprep.subr.bf16.mxu0 %v5193
    %7527 = vmatpush1.bf16.msra.mxu0 %v5192
    %7528 = vmatprep.subr.bf16.mxu0 %v5201
    %7529 = vmatpush1.bf16.msra.mxu0 %v5200
    %7530 = vmatprep.subr.bf16.mxu0 %v5209
    %7531 = vmatpush1.bf16.msra.mxu0 %v5208
    %7532 = vmatprep.subr.bf16.mxu0 %v5217
    %7533 = vmatpush1.bf16.msra.mxu0 %v5216
    %7534 = vmatprep.subr.bf16.mxu0 %v5225
    %7535 = vmatpush1.bf16.msra.mxu0 %v5224
    %7536 = vmatprep.subr.bf16.mxu0 %v5233
    %7537 = vmatpush1.bf16.msra.mxu0 %v5232
    %7538 = vmatprep.subr.bf16.mxu0 %v5241
    %7539 = vmatpush1.bf16.msra.mxu0 %v5240
    %7540 = vmatprep.subr.bf16.mxu0 %v5249
    %7541 = vmatpush1.bf16.msra.mxu0 %v5248
    %7542 = vmatprep.subr.bf16.mxu0 %v5257
    %7543 = vmatpush1.bf16.msra.mxu0 %v5256
    %7544 = vmatprep.subr.bf16.mxu0 %v5265
    %7545 = vmatpush1.bf16.msra.mxu0 %v5264
    %7546 = vmatprep.subr.bf16.mxu0 %v5273
    %7547 = vmatpush1.bf16.msra.mxu0 %v5272
    %7548 = vmatprep.subr.bf16.mxu0 %v5281
    %7549 = vmatpush1.bf16.msra.mxu0 %v5280
    %7550 = vmatprep.subr.bf16.mxu0 %v5289
    %7551 = vmatpush1.bf16.msra.mxu0 %v5288
    %7552 = vmatprep.mubr.bf16.mxu0 %v507
    %7553 = vmatmul.mubr.bf16.gmra.mrb[0].mxu0 %v506
    %v7554 = vpop.f32.mrb[0].mxu0
    %v7555 = vadd.f32 %v7514, %v7554
    %v7556 = vpop.f32.mrb[0].mxu0
    %v7557 = vadd.f32 %v7516, %v7556
    %v7558 = vpop.f32.mrb[0].mxu0
    %v7559 = vpop.f32.mrb[0].mxu0
    %7560 = vdwg.mxu0
    %7561 = vmatprep.subr.bf16.mxu0 %v5297
    %7562 = vmatpush1.bf16.msra.mxu0 %v5296
    %7563 = vmatprep.subr.bf16.mxu0 %v5305
    %7564 = vmatpush1.bf16.msra.mxu0 %v5304
    %7565 = vmatprep.subr.bf16.mxu0 %v5313
    %7566 = vmatpush1.bf16.msra.mxu0 %v5312
    %7567 = vmatprep.subr.bf16.mxu0 %v5321
    %7568 = vmatpush1.bf16.msra.mxu0 %v5320
    %7569 = vmatprep.subr.bf16.mxu0 %v5329
    %7570 = vmatpush1.bf16.msra.mxu0 %v5328
    %7571 = vmatprep.subr.bf16.mxu0 %v5337
    %7572 = vmatpush1.bf16.msra.mxu0 %v5336
    %7573 = vmatprep.subr.bf16.mxu0 %v5345
    %7574 = vmatpush1.bf16.msra.mxu0 %v5344
    %7575 = vmatprep.subr.bf16.mxu0 %v5353
    %7576 = vmatpush1.bf16.msra.mxu0 %v5352
    %7577 = vmatprep.subr.bf16.mxu0 %v5361
    %7578 = vmatpush1.bf16.msra.mxu0 %v5360
    %7579 = vmatprep.subr.bf16.mxu0 %v5369
    %7580 = vmatpush1.bf16.msra.mxu0 %v5368
    %7581 = vmatprep.subr.bf16.mxu0 %v5377
    %7582 = vmatpush1.bf16.msra.mxu0 %v5376
    %7583 = vmatprep.subr.bf16.mxu0 %v5385
    %7584 = vmatpush1.bf16.msra.mxu0 %v5384
    %7585 = vmatprep.subr.bf16.mxu0 %v5393
    %7586 = vmatpush1.bf16.msra.mxu0 %v5392
    %7587 = vmatprep.subr.bf16.mxu0 %v5401
    %7588 = vmatpush1.bf16.msra.mxu0 %v5400
    %7589 = vmatprep.subr.bf16.mxu0 %v5409
    %7590 = vmatpush1.bf16.msra.mxu0 %v5408
    %7591 = vmatprep.subr.bf16.mxu0 %v5417
    %7592 = vmatpush1.bf16.msra.mxu0 %v5416
    %7593 = vmatprep.mubr.bf16.mxu0 %v509
    %7594 = vmatmul.mubr.bf16.gmra.mrb[0].mxu0 %v508
    %v7595 = vpop.f32.mrb[0].mxu0
    %v7596 = vadd.f32 %v7555, %v7595
    %v7597 = vpop.f32.mrb[0].mxu0
    %v7598 = vadd.f32 %v7557, %v7597
    %v7599 = vpop.f32.mrb[0].mxu0
    %v7600 = vpop.f32.mrb[0].mxu0
    %7601 = vdwg.mxu0
    %7602 = vmatprep.subr.bf16.mxu0 %v5425
    %7603 = vmatpush1.bf16.msra.mxu0 %v5424
    %7604 = vmatprep.subr.bf16.mxu0 %v5433
    %7605 = vmatpush1.bf16.msra.mxu0 %v5432
    %7606 = vmatprep.subr.bf16.mxu0 %v5441
    %7607 = vmatpush1.bf16.msra.mxu0 %v5440
    %7608 = vmatprep.subr.bf16.mxu0 %v5449
    %7609 = vmatpush1.bf16.msra.mxu0 %v5448
    %7610 = vmatprep.subr.bf16.mxu0 %v5457
    %7611 = vmatpush1.bf16.msra.mxu0 %v5456
    %7612 = vmatprep.subr.bf16.mxu0 %v5465
    %7613 = vmatpush1.bf16.msra.mxu0 %v5464
    %7614 = vmatprep.subr.bf16.mxu0 %v5473
    %7615 = vmatpush1.bf16.msra.mxu0 %v5472
    %7616 = vmatprep.subr.bf16.mxu0 %v5481
    %7617 = vmatpush1.bf16.msra.mxu0 %v5480
    %7618 = vmatprep.subr.bf16.mxu0 %v5489
    %7619 = vmatpush1.bf16.msra.mxu0 %v5488
    %7620 = vmatprep.subr.bf16.mxu0 %v5497
    %7621 = vmatpush1.bf16.msra.mxu0 %v5496
    %7622 = vmatprep.subr.bf16.mxu0 %v5505
    %7623 = vmatpush1.bf16.msra.mxu0 %v5504
    %7624 = vmatprep.subr.bf16.mxu0 %v5513
    %7625 = vmatpush1.bf16.msra.mxu0 %v5512
    %7626 = vmatprep.subr.bf16.mxu0 %v5521
    %7627 = vmatpush1.bf16.msra.mxu0 %v5520
    %7628 = vmatprep.subr.bf16.mxu0 %v5529
    %7629 = vmatpush1.bf16.msra.mxu0 %v5528
    %7630 = vmatprep.subr.bf16.mxu0 %v5537
    %7631 = vmatpush1.bf16.msra.mxu0 %v5536
    %7632 = vmatprep.subr.bf16.mxu0 %v5545
    %7633 = vmatpush1.bf16.msra.mxu0 %v5544
    %7634 = vmatprep.mubr.bf16.mxu0 %v511
    %7635 = vmatmul.mubr.bf16.gmra.mrb[0].mxu0 %v510
    %v7636 = vpop.f32.mrb[0].mxu0
    %v7637 = vadd.f32 %v7596, %v7636
    %v7638 = vpop.f32.mrb[0].mxu0
    %v7639 = vadd.f32 %v7598, %v7638
    %v7640 = vpop.f32.mrb[0].mxu0
    %v7641 = vpop.f32.mrb[0].mxu0
    %7642 = vdwg.mxu0
    %7643 = vmatprep.subr.bf16.mxu0 %v5553
    %7644 = vmatpush1.bf16.msra.mxu0 %v5552
    %7645 = vmatprep.subr.bf16.mxu0 %v5561
    %7646 = vmatpush1.bf16.msra.mxu0 %v5560
    %7647 = vmatprep.subr.bf16.mxu0 %v5569
    %7648 = vmatpush1.bf16.msra.mxu0 %v5568
    %7649 = vmatprep.subr.bf16.mxu0 %v5577
    %7650 = vmatpush1.bf16.msra.mxu0 %v5576
    %7651 = vmatprep.subr.bf16.mxu0 %v5585
    %7652 = vmatpush1.bf16.msra.mxu0 %v5584
    %7653 = vmatprep.subr.bf16.mxu0 %v5593
    %7654 = vmatpush1.bf16.msra.mxu0 %v5592
    %7655 = vmatprep.subr.bf16.mxu0 %v5601
    %7656 = vmatpush1.bf16.msra.mxu0 %v5600
    %7657 = vmatprep.subr.bf16.mxu0 %v5609
    %7658 = vmatpush1.bf16.msra.mxu0 %v5608
    %7659 = vmatprep.subr.bf16.mxu0 %v5617
    %7660 = vmatpush1.bf16.msra.mxu0 %v5616
    %7661 = vmatprep.subr.bf16.mxu0 %v5625
    %7662 = vmatpush1.bf16.msra.mxu0 %v5624
    %7663 = vmatprep.subr.bf16.mxu0 %v5633
    %7664 = vmatpush1.bf16.msra.mxu0 %v5632
    %7665 = vmatprep.subr.bf16.mxu0 %v5641
    %7666 = vmatpush1.bf16.msra.mxu0 %v5640
    %7667 = vmatprep.subr.bf16.mxu0 %v5649
    %7668 = vmatpush1.bf16.msra.mxu0 %v5648
    %7669 = vmatprep.subr.bf16.mxu0 %v5657
    %7670 = vmatpush1.bf16.msra.mxu0 %v5656
    %7671 = vmatprep.subr.bf16.mxu0 %v5665
    %7672 = vmatpush1.bf16.msra.mxu0 %v5664
    %7673 = vmatprep.subr.bf16.mxu0 %v5673
    %7674 = vmatpush1.bf16.msra.mxu0 %v5672
    %7675 = vmatprep.mubr.bf16.mxu0 %v513
    %7676 = vmatmul.mubr.bf16.gmra.mrb[0].mxu0 %v512
    %v7677 = vpop.f32.mrb[0].mxu0
    %v7678 = vadd.f32 %v7637, %v7677
    %v7679 = vpop.f32.mrb[0].mxu0
    %v7680 = vadd.f32 %v7639, %v7679
    %v7681 = vpop.f32.mrb[0].mxu0
    %v7682 = vpop.f32.mrb[0].mxu0
    %7683 = vdwg.mxu0
    %7684 = vmatprep.subr.bf16.mxu0 %v4659
    %7685 = vmatpush1.bf16.msra.mxu0 %v4658
    %7686 = vmatprep.subr.bf16.mxu0 %v4667
    %7687 = vmatpush1.bf16.msra.mxu0 %v4666
    %7688 = vmatprep.subr.bf16.mxu0 %v4675
    %7689 = vmatpush1.bf16.msra.mxu0 %v4674
    %7690 = vmatprep.subr.bf16.mxu0 %v4683
    %7691 = vmatpush1.bf16.msra.mxu0 %v4682
    %7692 = vmatprep.subr.bf16.mxu0 %v4691
    %7693 = vmatpush1.bf16.msra.mxu0 %v4690
    %7694 = vmatprep.subr.bf16.mxu0 %v4699
    %7695 = vmatpush1.bf16.msra.mxu0 %v4698
    %7696 = vmatprep.subr.bf16.mxu0 %v4707
    %7697 = vmatpush1.bf16.msra.mxu0 %v4706
    %7698 = vmatprep.subr.bf16.mxu0 %v4715
    %7699 = vmatpush1.bf16.msra.mxu0 %v4714
    %7700 = vmatprep.subr.bf16.mxu0 %v4723
    %7701 = vmatpush1.bf16.msra.mxu0 %v4722
    %7702 = vmatprep.subr.bf16.mxu0 %v4731
    %7703 = vmatpush1.bf16.msra.mxu0 %v4730
    %7704 = vmatprep.subr.bf16.mxu0 %v4739
    %7705 = vmatpush1.bf16.msra.mxu0 %v4738
    %7706 = vmatprep.subr.bf16.mxu0 %v4747
    %7707 = vmatpush1.bf16.msra.mxu0 %v4746
    %7708 = vmatprep.subr.bf16.mxu0 %v4755
    %7709 = vmatpush1.bf16.msra.mxu0 %v4754
    %7710 = vmatprep.subr.bf16.mxu0 %v4763
    %7711 = vmatpush1.bf16.msra.mxu0 %v4762
    %7712 = vmatprep.subr.bf16.mxu0 %v4771
    %7713 = vmatpush1.bf16.msra.mxu0 %v4770
    %7714 = vmatprep.subr.bf16.mxu0 %v4779
    %7715 = vmatpush1.bf16.msra.mxu0 %v4778
    %7716 = vmatprep.mubr.bf16.mxu0 %v499
    %7717 = vmatmul.mubr.bf16.gmra.mrb[0].mxu0 %v498
    %v7718 = vpop.f32.mrb[0].mxu0
    %v7719 = vadd.f32 %v1567, %v7718
    %v7720 = vpop.f32.mrb[0].mxu0
    %v7721 = vadd.f32 %v1571, %v7720
    %v7722 = vpop.f32.mrb[0].mxu0
    %v7723 = vpop.f32.mrb[0].mxu0
    %7724 = vdwg.mxu0
    %7725 = vmatprep.subr.bf16.mxu0 %v4787
    %7726 = vmatpush1.bf16.msra.mxu0 %v4786
    %7727 = vmatprep.subr.bf16.mxu0 %v4795
    %7728 = vmatpush1.bf16.msra.mxu0 %v4794
    %7729 = vmatprep.subr.bf16.mxu0 %v4803
    %7730 = vmatpush1.bf16.msra.mxu0 %v4802
    %7731 = vmatprep.subr.bf16.mxu0 %v4811
    %7732 = vmatpush1.bf16.msra.mxu0 %v4810
    %7733 = vmatprep.subr.bf16.mxu0 %v4819
    %7734 = vmatpush1.bf16.msra.mxu0 %v4818
    %7735 = vmatprep.subr.bf16.mxu0 %v4827
    %7736 = vmatpush1.bf16.msra.mxu0 %v4826
    %7737 = vmatprep.subr.bf16.mxu0 %v4835
    %7738 = vmatpush1.bf16.msra.mxu0 %v4834
    %7739 = vmatprep.subr.bf16.mxu0 %v4843
    %7740 = vmatpush1.bf16.msra.mxu0 %v4842
    %7741 = vmatprep.subr.bf16.mxu0 %v4851
    %7742 = vmatpush1.bf16.msra.mxu0 %v4850
    %7743 = vmatprep.subr.bf16.mxu0 %v4859
    %7744 = vmatpush1.bf16.msra.mxu0 %v4858
    %7745 = vmatprep.subr.bf16.mxu0 %v4867
    %7746 = vmatpush1.bf16.msra.mxu0 %v4866
    %7747 = vmatprep.subr.bf16.mxu0 %v4875
    %7748 = vmatpush1.bf16.msra.mxu0 %v4874
    %7749 = vmatprep.subr.bf16.mxu0 %v4883
    %7750 = vmatpush1.bf16.msra.mxu0 %v4882
    %7751 = vmatprep.subr.bf16.mxu0 %v4891
    %7752 = vmatpush1.bf16.msra.mxu0 %v4890
    %7753 = vmatprep.subr.bf16.mxu0 %v4899
    %7754 = vmatpush1.bf16.msra.mxu0 %v4898
    %7755 = vmatprep.subr.bf16.mxu0 %v4907
    %7756 = vmatpush1.bf16.msra.mxu0 %v4906
    %7757 = vmatprep.mubr.bf16.mxu0 %v501
    %7758 = vmatmul.mubr.bf16.gmra.mrb[0].mxu0 %v500
    %v7759 = vpop.f32.mrb[0].mxu0
    %v7760 = vadd.f32 %v7719, %v7759
    %v7761 = vpop.f32.mrb[0].mxu0
    %v7762 = vadd.f32 %v7721, %v7761
    %v7763 = vpop.f32.mrb[0].mxu0
    %v7764 = vpop.f32.mrb[0].mxu0
    %7765 = vdwg.mxu0
    %7766 = vmatprep.subr.bf16.mxu0 %v4915
    %7767 = vmatpush1.bf16.msra.mxu0 %v4914
    %7768 = vmatprep.subr.bf16.mxu0 %v4923
    %7769 = vmatpush1.bf16.msra.mxu0 %v4922
    %7770 = vmatprep.subr.bf16.mxu0 %v4931
    %7771 = vmatpush1.bf16.msra.mxu0 %v4930
    %7772 = vmatprep.subr.bf16.mxu0 %v4939
    %7773 = vmatpush1.bf16.msra.mxu0 %v4938
    %7774 = vmatprep.subr.bf16.mxu0 %v4947
    %7775 = vmatpush1.bf16.msra.mxu0 %v4946
    %7776 = vmatprep.subr.bf16.mxu0 %v4955
    %7777 = vmatpush1.bf16.msra.mxu0 %v4954
    %7778 = vmatprep.subr.bf16.mxu0 %v4963
    %7779 = vmatpush1.bf16.msra.mxu0 %v4962
    %7780 = vmatprep.subr.bf16.mxu0 %v4971
    %7781 = vmatpush1.bf16.msra.mxu0 %v4970
    %7782 = vmatprep.subr.bf16.mxu0 %v4979
    %7783 = vmatpush1.bf16.msra.mxu0 %v4978
    %7784 = vmatprep.subr.bf16.mxu0 %v4987
    %7785 = vmatpush1.bf16.msra.mxu0 %v4986
    %7786 = vmatprep.subr.bf16.mxu0 %v4995
    %7787 = vmatpush1.bf16.msra.mxu0 %v4994
    %7788 = vmatprep.subr.bf16.mxu0 %v5003
    %7789 = vmatpush1.bf16.msra.mxu0 %v5002
    %7790 = vmatprep.subr.bf16.mxu0 %v5011
    %7791 = vmatpush1.bf16.msra.mxu0 %v5010
    %7792 = vmatprep.subr.bf16.mxu0 %v5019
    %7793 = vmatpush1.bf16.msra.mxu0 %v5018
    %7794 = vmatprep.subr.bf16.mxu0 %v5027
    %7795 = vmatpush1.bf16.msra.mxu0 %v5026
    %7796 = vmatprep.subr.bf16.mxu0 %v5035
    %7797 = vmatpush1.bf16.msra.mxu0 %v5034
    %7798 = vmatprep.mubr.bf16.mxu0 %v503
    %7799 = vmatmul.mubr.bf16.gmra.mrb[0].mxu0 %v502
    %v7800 = vpop.f32.mrb[0].mxu0
    %v7801 = vadd.f32 %v7760, %v7800
    %v7802 = vpop.f32.mrb[0].mxu0
    %v7803 = vadd.f32 %v7762, %v7802
    %v7804 = vpop.f32.mrb[0].mxu0
    %v7805 = vpop.f32.mrb[0].mxu0
    %7806 = vdwg.mxu0
    %7807 = vmatprep.subr.bf16.mxu0 %v5043
    %7808 = vmatpush1.bf16.msra.mxu0 %v5042
    %7809 = vmatprep.subr.bf16.mxu0 %v5051
    %7810 = vmatpush1.bf16.msra.mxu0 %v5050
    %7811 = vmatprep.subr.bf16.mxu0 %v5059
    %7812 = vmatpush1.bf16.msra.mxu0 %v5058
    %7813 = vmatprep.subr.bf16.mxu0 %v5067
    %7814 = vmatpush1.bf16.msra.mxu0 %v5066
    %7815 = vmatprep.subr.bf16.mxu0 %v5075
    %7816 = vmatpush1.bf16.msra.mxu0 %v5074
    %7817 = vmatprep.subr.bf16.mxu0 %v5083
    %7818 = vmatpush1.bf16.msra.mxu0 %v5082
    %7819 = vmatprep.subr.bf16.mxu0 %v5091
    %7820 = vmatpush1.bf16.msra.mxu0 %v5090
    %7821 = vmatprep.subr.bf16.mxu0 %v5099
    %7822 = vmatpush1.bf16.msra.mxu0 %v5098
    %7823 = vmatprep.subr.bf16.mxu0 %v5107
    %7824 = vmatpush1.bf16.msra.mxu0 %v5106
    %7825 = vmatprep.subr.bf16.mxu0 %v5115
    %7826 = vmatpush1.bf16.msra.mxu0 %v5114
    %7827 = vmatprep.subr.bf16.mxu0 %v5123
    %7828 = vmatpush1.bf16.msra.mxu0 %v5122
    %7829 = vmatprep.subr.bf16.mxu0 %v5131
    %7830 = vmatpush1.bf16.msra.mxu0 %v5130
    %7831 = vmatprep.subr.bf16.mxu0 %v5139
    %7832 = vmatpush1.bf16.msra.mxu0 %v5138
    %7833 = vmatprep.subr.bf16.mxu0 %v5147
    %7834 = vmatpush1.bf16.msra.mxu0 %v5146
    %7835 = vmatprep.subr.bf16.mxu0 %v5155
    %7836 = vmatpush1.bf16.msra.mxu0 %v5154
    %7837 = vmatprep.subr.bf16.mxu0 %v5163
    %7838 = vmatpush1.bf16.msra.mxu0 %v5162
    %7839 = vmatprep.mubr.bf16.mxu0 %v505
    %7840 = vmatmul.mubr.bf16.gmra.mrb[0].mxu0 %v504
    %v7841 = vpop.f32.mrb[0].mxu0
    %v7842 = vadd.f32 %v7801, %v7841
    %v7843 = vpop.f32.mrb[0].mxu0
    %v7844 = vadd.f32 %v7803, %v7843
    %v7845 = vpop.f32.mrb[0].mxu0
    %v7846 = vpop.f32.mrb[0].mxu0
    %7847 = vdwg.mxu0
    %7848 = vmatprep.subr.bf16.mxu0 %v5171
    %7849 = vmatpush1.bf16.msra.mxu0 %v5170
    %7850 = vmatprep.subr.bf16.mxu0 %v5179
    %7851 = vmatpush1.bf16.msra.mxu0 %v5178
    %7852 = vmatprep.subr.bf16.mxu0 %v5187
    %7853 = vmatpush1.bf16.msra.mxu0 %v5186
    %7854 = vmatprep.subr.bf16.mxu0 %v5195
    %7855 = vmatpush1.bf16.msra.mxu0 %v5194
    %7856 = vmatprep.subr.bf16.mxu0 %v5203
    %7857 = vmatpush1.bf16.msra.mxu0 %v5202
    %7858 = vmatprep.subr.bf16.mxu0 %v5211
    %7859 = vmatpush1.bf16.msra.mxu0 %v5210
    %7860 = vmatprep.subr.bf16.mxu0 %v5219
    %7861 = vmatpush1.bf16.msra.mxu0 %v5218
    %7862 = vmatprep.subr.bf16.mxu0 %v5227
    %7863 = vmatpush1.bf16.msra.mxu0 %v5226
    %7864 = vmatprep.subr.bf16.mxu0 %v5235
    %7865 = vmatpush1.bf16.msra.mxu0 %v5234
    %7866 = vmatprep.subr.bf16.mxu0 %v5243
    %7867 = vmatpush1.bf16.msra.mxu0 %v5242
    %7868 = vmatprep.subr.bf16.mxu0 %v5251
    %7869 = vmatpush1.bf16.msra.mxu0 %v5250
    %7870 = vmatprep.subr.bf16.mxu0 %v5259
    %7871 = vmatpush1.bf16.msra.mxu0 %v5258
    %7872 = vmatprep.subr.bf16.mxu0 %v5267
    %7873 = vmatpush1.bf16.msra.mxu0 %v5266
    %7874 = vmatprep.subr.bf16.mxu0 %v5275
    %7875 = vmatpush1.bf16.msra.mxu0 %v5274
    %7876 = vmatprep.subr.bf16.mxu0 %v5283
    %7877 = vmatpush1.bf16.msra.mxu0 %v5282
    %7878 = vmatprep.subr.bf16.mxu0 %v5291
    %7879 = vmatpush1.bf16.msra.mxu0 %v5290
    %7880 = vmatprep.mubr.bf16.mxu0 %v507
    %7881 = vmatmul.mubr.bf16.gmra.mrb[0].mxu0 %v506
    %v7882 = vpop.f32.mrb[0].mxu0
    %v7883 = vadd.f32 %v7842, %v7882
    %v7884 = vpop.f32.mrb[0].mxu0
    %v7885 = vadd.f32 %v7844, %v7884
    %v7886 = vpop.f32.mrb[0].mxu0
    %v7887 = vpop.f32.mrb[0].mxu0
    %7888 = vdwg.mxu0
    %7889 = vmatprep.subr.bf16.mxu0 %v5299
    %7890 = vmatpush1.bf16.msra.mxu0 %v5298
    %7891 = vmatprep.subr.bf16.mxu0 %v5307
    %7892 = vmatpush1.bf16.msra.mxu0 %v5306
    %7893 = vmatprep.subr.bf16.mxu0 %v5315
    %7894 = vmatpush1.bf16.msra.mxu0 %v5314
    %7895 = vmatprep.subr.bf16.mxu0 %v5323
    %7896 = vmatpush1.bf16.msra.mxu0 %v5322
    %7897 = vmatprep.subr.bf16.mxu0 %v5331
    %7898 = vmatpush1.bf16.msra.mxu0 %v5330
    %7899 = vmatprep.subr.bf16.mxu0 %v5339
    %7900 = vmatpush1.bf16.msra.mxu0 %v5338
    %7901 = vmatprep.subr.bf16.mxu0 %v5347
    %7902 = vmatpush1.bf16.msra.mxu0 %v5346
    %7903 = vmatprep.subr.bf16.mxu0 %v5355
    %7904 = vmatpush1.bf16.msra.mxu0 %v5354
    %7905 = vmatprep.subr.bf16.mxu0 %v5363
    %7906 = vmatpush1.bf16.msra.mxu0 %v5362
    %7907 = vmatprep.subr.bf16.mxu0 %v5371
    %7908 = vmatpush1.bf16.msra.mxu0 %v5370
    %7909 = vmatprep.subr.bf16.mxu0 %v5379
    %7910 = vmatpush1.bf16.msra.mxu0 %v5378
    %7911 = vmatprep.subr.bf16.mxu0 %v5387
    %7912 = vmatpush1.bf16.msra.mxu0 %v5386
    %7913 = vmatprep.subr.bf16.mxu0 %v5395
    %7914 = vmatpush1.bf16.msra.mxu0 %v5394
    %7915 = vmatprep.subr.bf16.mxu0 %v5403
    %7916 = vmatpush1.bf16.msra.mxu0 %v5402
    %7917 = vmatprep.subr.bf16.mxu0 %v5411
    %7918 = vmatpush1.bf16.msra.mxu0 %v5410
    %7919 = vmatprep.subr.bf16.mxu0 %v5419
    %7920 = vmatpush1.bf16.msra.mxu0 %v5418
    %7921 = vmatprep.mubr.bf16.mxu0 %v509
    %7922 = vmatmul.mubr.bf16.gmra.mrb[0].mxu0 %v508
    %v7923 = vpop.f32.mrb[0].mxu0
    %v7924 = vadd.f32 %v7883, %v7923
    %v7925 = vpop.f32.mrb[0].mxu0
    %v7926 = vadd.f32 %v7885, %v7925
    %v7927 = vpop.f32.mrb[0].mxu0
    %v7928 = vpop.f32.mrb[0].mxu0
    %7929 = vdwg.mxu0
    %7930 = vmatprep.subr.bf16.mxu0 %v5427
    %7931 = vmatpush1.bf16.msra.mxu0 %v5426
    %7932 = vmatprep.subr.bf16.mxu0 %v5435
    %7933 = vmatpush1.bf16.msra.mxu0 %v5434
    %7934 = vmatprep.subr.bf16.mxu0 %v5443
    %7935 = vmatpush1.bf16.msra.mxu0 %v5442
    %7936 = vmatprep.subr.bf16.mxu0 %v5451
    %7937 = vmatpush1.bf16.msra.mxu0 %v5450
    %7938 = vmatprep.subr.bf16.mxu0 %v5459
    %7939 = vmatpush1.bf16.msra.mxu0 %v5458
    %7940 = vmatprep.subr.bf16.mxu0 %v5467
    %7941 = vmatpush1.bf16.msra.mxu0 %v5466
    %7942 = vmatprep.subr.bf16.mxu0 %v5475
    %7943 = vmatpush1.bf16.msra.mxu0 %v5474
    %7944 = vmatprep.subr.bf16.mxu0 %v5483
    %7945 = vmatpush1.bf16.msra.mxu0 %v5482
    %7946 = vmatprep.subr.bf16.mxu0 %v5491
    %7947 = vmatpush1.bf16.msra.mxu0 %v5490
    %7948 = vmatprep.subr.bf16.mxu0 %v5499
    %7949 = vmatpush1.bf16.msra.mxu0 %v5498
    %7950 = vmatprep.subr.bf16.mxu0 %v5507
    %7951 = vmatpush1.bf16.msra.mxu0 %v5506
    %7952 = vmatprep.subr.bf16.mxu0 %v5515
    %7953 = vmatpush1.bf16.msra.mxu0 %v5514
    %7954 = vmatprep.subr.bf16.mxu0 %v5523
    %7955 = vmatpush1.bf16.msra.mxu0 %v5522
    %7956 = vmatprep.subr.bf16.mxu0 %v5531
    %7957 = vmatpush1.bf16.msra.mxu0 %v5530
    %7958 = vmatprep.subr.bf16.mxu0 %v5539
    %7959 = vmatpush1.bf16.msra.mxu0 %v5538
    %7960 = vmatprep.subr.bf16.mxu0 %v5547
    %7961 = vmatpush1.bf16.msra.mxu0 %v5546
    %7962 = vmatprep.mubr.bf16.mxu0 %v511
    %7963 = vmatmul.mubr.bf16.gmra.mrb[0].mxu0 %v510
    %v7964 = vpop.f32.mrb[0].mxu0
    %v7965 = vadd.f32 %v7924, %v7964
    %v7966 = vpop.f32.mrb[0].mxu0
    %v7967 = vadd.f32 %v7926, %v7966
    %v7968 = vpop.f32.mrb[0].mxu0
    %v7969 = vpop.f32.mrb[0].mxu0
    %7970 = vdwg.mxu0
    %7971 = vmatprep.subr.bf16.mxu0 %v5555
    %7972 = vmatpush1.bf16.msra.mxu0 %v5554
    %7973 = vmatprep.subr.bf16.mxu0 %v5563
    %7974 = vmatpush1.bf16.msra.mxu0 %v5562
    %7975 = vmatprep.subr.bf16.mxu0 %v5571
    %7976 = vmatpush1.bf16.msra.mxu0 %v5570
    %7977 = vmatprep.subr.bf16.mxu0 %v5579
    %7978 = vmatpush1.bf16.msra.mxu0 %v5578
    %7979 = vmatprep.subr.bf16.mxu0 %v5587
    %7980 = vmatpush1.bf16.msra.mxu0 %v5586
    %7981 = vmatprep.subr.bf16.mxu0 %v5595
    %7982 = vmatpush1.bf16.msra.mxu0 %v5594
    %7983 = vmatprep.subr.bf16.mxu0 %v5603
    %7984 = vmatpush1.bf16.msra.mxu0 %v5602
    %7985 = vmatprep.subr.bf16.mxu0 %v5611
    %7986 = vmatpush1.bf16.msra.mxu0 %v5610
    %7987 = vmatprep.subr.bf16.mxu0 %v5619
    %7988 = vmatpush1.bf16.msra.mxu0 %v5618
    %7989 = vmatprep.subr.bf16.mxu0 %v5627
    %7990 = vmatpush1.bf16.msra.mxu0 %v5626
    %7991 = vmatprep.subr.bf16.mxu0 %v5635
    %7992 = vmatpush1.bf16.msra.mxu0 %v5634
    %7993 = vmatprep.subr.bf16.mxu0 %v5643
    %7994 = vmatpush1.bf16.msra.mxu0 %v5642
    %7995 = vmatprep.subr.bf16.mxu0 %v5651
    %7996 = vmatpush1.bf16.msra.mxu0 %v5650
    %7997 = vmatprep.subr.bf16.mxu0 %v5659
    %7998 = vmatpush1.bf16.msra.mxu0 %v5658
    %7999 = vmatprep.subr.bf16.mxu0 %v5667
    %8000 = vmatpush1.bf16.msra.mxu0 %v5666
    %8001 = vmatprep.subr.bf16.mxu0 %v5675
    %8002 = vmatpush1.bf16.msra.mxu0 %v5674
    %8003 = vmatprep.mubr.bf16.mxu0 %v513
    %8004 = vmatmul.mubr.bf16.gmra.mrb[0].mxu0 %v512
    %v8005 = vpop.f32.mrb[0].mxu0
    %v8006 = vadd.f32 %v7965, %v8005
    %v8007 = vpop.f32.mrb[0].mxu0
    %v8008 = vadd.f32 %v7967, %v8007
    %v8009 = vpop.f32.mrb[0].mxu0
    %v8010 = vpop.f32.mrb[0].mxu0
    %8011 = vdwg.mxu0
    %v8012 = vmax.f32 %v7022, 0.0
    %v8013 = vmax.f32 %v7024, 0.0
    %v8014 = vmax.f32 %v7350, 0.0
    %v8015 = vmax.f32 %v7352, 0.0
    %v8016 = vmax.f32 %v7678, 0.0
    %v8017 = vmax.f32 %v7680, 0.0
    %v8018 = vmax.f32 %v8006, 0.0
    %v8019 = vmax.f32 %v8008, 0.0
    %v8020 = vpack.c.bf16 %v8012, %v8012
    %v8021 = vpack.c.bf16 %v8013, %v8013
    %v8022 = vpack.c.bf16 %v8014, %v8014
    %v8023 = vpack.c.bf16 %v8015, %v8015
    %v8024 = vpack.c.bf16 %v8016, %v8016
    %v8025 = vpack.c.bf16 %v8017, %v8017
    %v8026 = vpack.c.bf16 %v8018, %v8018
    %v8027 = vpack.c.bf16 %v8019, %v8019
    %v8028 = vld [vmem:[#allocation11] sm:$0xf]
    %v8029 = vld [vmem:[#allocation11 + $0x4] sm:$0xf]
    %v8030 = vld [vmem:[#allocation11 + $0x8] sm:$0xf]
    %v8031 = vld [vmem:[#allocation11 + $0xc] sm:$0xf]
    %v8032 = vld [vmem:[#allocation11 + $0x10] sm:$0xf]
    %v8033 = vld [vmem:[#allocation11 + $0x14] sm:$0xf]
    %v8034 = vld [vmem:[#allocation11 + $0x18] sm:$0xf]
    %v8035 = vld [vmem:[#allocation11 + $0x1c] sm:$0xf]
    %v8036 = vld [vmem:[#allocation11 + $0x20] sm:$0xf]
    %v8037 = vld [vmem:[#allocation11 + $0x24] sm:$0xf]
    %v8038 = vld [vmem:[#allocation11 + $0x28] sm:$0xf]
    %v8039 = vld [vmem:[#allocation11 + $0x2c] sm:$0xf]
    %v8040 = vld [vmem:[#allocation11 + $0x30] sm:$0xf]
    %v8041 = vld [vmem:[#allocation11 + $0x34] sm:$0xf]
    %v8042 = vld [vmem:[#allocation11 + $0x38] sm:$0xf]
    %v8043 = vld [vmem:[#allocation11 + $0x3c] sm:$0xf]
    %v8044 = vld [vmem:[#allocation11 + $0x40] sm:$0xf]
    %v8045 = vld [vmem:[#allocation11 + $0x44] sm:$0xf]
    %v8046 = vld [vmem:[#allocation11 + $0x48] sm:$0xf]
    %v8047 = vld [vmem:[#allocation11 + $0x4c] sm:$0xf]
    %v8048 = vld [vmem:[#allocation11 + $0x50] sm:$0xf]
    %v8049 = vld [vmem:[#allocation11 + $0x54] sm:$0xf]
    %v8050 = vld [vmem:[#allocation11 + $0x58] sm:$0xf]
    %v8051 = vld [vmem:[#allocation11 + $0x5c] sm:$0xf]
    %v8052 = vld [vmem:[#allocation11 + $0x60] sm:$0xf]
    %v8053 = vld [vmem:[#allocation11 + $0x64] sm:$0xf]
    %v8054 = vld [vmem:[#allocation11 + $0x68] sm:$0xf]
    %v8055 = vld [vmem:[#allocation11 + $0x6c] sm:$0xf]
    %v8056 = vld [vmem:[#allocation11 + $0x70] sm:$0xf]
    %v8057 = vld [vmem:[#allocation11 + $0x74] sm:$0xf]
    %v8058 = vld [vmem:[#allocation11 + $0x78] sm:$0xf]
    %v8059 = vld [vmem:[#allocation11 + $0x7c] sm:$0xf]
    %v8060 = vld [vmem:[#allocation11 + $0x80] sm:$0xf]
    %v8061 = vld [vmem:[#allocation11 + $0x84] sm:$0xf]
    %v8062 = vld [vmem:[#allocation11 + $0x88] sm:$0xf]
    %v8063 = vld [vmem:[#allocation11 + $0x8c] sm:$0xf]
    %v8064 = vld [vmem:[#allocation11 + $0x90] sm:$0xf]
    %v8065 = vld [vmem:[#allocation11 + $0x94] sm:$0xf]
    %v8066 = vld [vmem:[#allocation11 + $0x98] sm:$0xf]
    %v8067 = vld [vmem:[#allocation11 + $0x9c] sm:$0xf]
    %v8068 = vld [vmem:[#allocation11 + $0xa0] sm:$0xf]
    %v8069 = vld [vmem:[#allocation11 + $0xa4] sm:$0xf]
    %v8070 = vld [vmem:[#allocation11 + $0xa8] sm:$0xf]
    %v8071 = vld [vmem:[#allocation11 + $0xac] sm:$0xf]
    %v8072 = vld [vmem:[#allocation11 + $0xb0] sm:$0xf]
    %v8073 = vld [vmem:[#allocation11 + $0xb4] sm:$0xf]
    %v8074 = vld [vmem:[#allocation11 + $0xb8] sm:$0xf]
    %v8075 = vld [vmem:[#allocation11 + $0xbc] sm:$0xf]
    %v8076 = vld [vmem:[#allocation11 + $0xc0] sm:$0xf]
    %v8077 = vld [vmem:[#allocation11 + $0xc4] sm:$0xf]
    %v8078 = vld [vmem:[#allocation11 + $0xc8] sm:$0xf]
    %v8079 = vld [vmem:[#allocation11 + $0xcc] sm:$0xf]
    %v8080 = vld [vmem:[#allocation11 + $0xd0] sm:$0xf]
    %v8081 = vld [vmem:[#allocation11 + $0xd4] sm:$0xf]
    %v8082 = vld [vmem:[#allocation11 + $0xd8] sm:$0xf]
    %v8083 = vld [vmem:[#allocation11 + $0xdc] sm:$0xf]
    %v8084 = vld [vmem:[#allocation11 + $0xe0] sm:$0xf]
    %v8085 = vld [vmem:[#allocation11 + $0xe4] sm:$0xf]
    %v8086 = vld [vmem:[#allocation11 + $0xe8] sm:$0xf]
    %v8087 = vld [vmem:[#allocation11 + $0xec] sm:$0xf]
    %v8088 = vld [vmem:[#allocation11 + $0xf0] sm:$0xf]
    %v8089 = vld [vmem:[#allocation11 + $0xf4] sm:$0xf]
    %v8090 = vld [vmem:[#allocation11 + $0xf8] sm:$0xf]
    %v8091 = vld [vmem:[#allocation11 + $0xfc] sm:$0xf]
    %v8092 = vld [vmem:[#allocation11 + $0x100] sm:$0xf]
    %v8093 = vld [vmem:[#allocation11 + $0x104] sm:$0xf]
    %v8094 = vld [vmem:[#allocation11 + $0x108] sm:$0xf]
    %v8095 = vld [vmem:[#allocation11 + $0x10c] sm:$0xf]
    %v8096 = vld [vmem:[#allocation11 + $0x110] sm:$0xf]
    %v8097 = vld [vmem:[#allocation11 + $0x114] sm:$0xf]
    %v8098 = vld [vmem:[#allocation11 + $0x118] sm:$0xf]
    %v8099 = vld [vmem:[#allocation11 + $0x11c] sm:$0xf]
    %v8100 = vld [vmem:[#allocation11 + $0x120] sm:$0xf]
    %v8101 = vld [vmem:[#allocation11 + $0x124] sm:$0xf]
    %v8102 = vld [vmem:[#allocation11 + $0x128] sm:$0xf]
    %v8103 = vld [vmem:[#allocation11 + $0x12c] sm:$0xf]
    %v8104 = vld [vmem:[#allocation11 + $0x130] sm:$0xf]
    %v8105 = vld [vmem:[#allocation11 + $0x134] sm:$0xf]
    %v8106 = vld [vmem:[#allocation11 + $0x138] sm:$0xf]
    %v8107 = vld [vmem:[#allocation11 + $0x13c] sm:$0xf]
    %v8108 = vld [vmem:[#allocation11 + $0x140] sm:$0xf]
    %v8109 = vld [vmem:[#allocation11 + $0x144] sm:$0xf]
    %v8110 = vld [vmem:[#allocation11 + $0x148] sm:$0xf]
    %v8111 = vld [vmem:[#allocation11 + $0x14c] sm:$0xf]
    %v8112 = vld [vmem:[#allocation11 + $0x150] sm:$0xf]
    %v8113 = vld [vmem:[#allocation11 + $0x154] sm:$0xf]
    %v8114 = vld [vmem:[#allocation11 + $0x158] sm:$0xf]
    %v8115 = vld [vmem:[#allocation11 + $0x15c] sm:$0xf]
    %v8116 = vld [vmem:[#allocation11 + $0x160] sm:$0xf]
    %v8117 = vld [vmem:[#allocation11 + $0x164] sm:$0xf]
    %v8118 = vld [vmem:[#allocation11 + $0x168] sm:$0xf]
    %v8119 = vld [vmem:[#allocation11 + $0x16c] sm:$0xf]
    %v8120 = vld [vmem:[#allocation11 + $0x170] sm:$0xf]
    %v8121 = vld [vmem:[#allocation11 + $0x174] sm:$0xf]
    %v8122 = vld [vmem:[#allocation11 + $0x178] sm:$0xf]
    %v8123 = vld [vmem:[#allocation11 + $0x17c] sm:$0xf]
    %v8124 = vld [vmem:[#allocation11 + $0x180] sm:$0xf]
    %v8125 = vld [vmem:[#allocation11 + $0x184] sm:$0xf]
    %v8126 = vld [vmem:[#allocation11 + $0x188] sm:$0xf]
    %v8127 = vld [vmem:[#allocation11 + $0x18c] sm:$0xf]
    %v8128 = vld [vmem:[#allocation11 + $0x190] sm:$0xf]
    %v8129 = vld [vmem:[#allocation11 + $0x194] sm:$0xf]
    %v8130 = vld [vmem:[#allocation11 + $0x198] sm:$0xf]
    %v8131 = vld [vmem:[#allocation11 + $0x19c] sm:$0xf]
    %v8132 = vld [vmem:[#allocation11 + $0x1a0] sm:$0xf]
    %v8133 = vld [vmem:[#allocation11 + $0x1a4] sm:$0xf]
    %v8134 = vld [vmem:[#allocation11 + $0x1a8] sm:$0xf]
    %v8135 = vld [vmem:[#allocation11 + $0x1ac] sm:$0xf]
    %v8136 = vld [vmem:[#allocation11 + $0x1b0] sm:$0xf]
    %v8137 = vld [vmem:[#allocation11 + $0x1b4] sm:$0xf]
    %v8138 = vld [vmem:[#allocation11 + $0x1b8] sm:$0xf]
    %v8139 = vld [vmem:[#allocation11 + $0x1bc] sm:$0xf]
    %v8140 = vld [vmem:[#allocation11 + $0x1c0] sm:$0xf]
    %v8141 = vld [vmem:[#allocation11 + $0x1c4] sm:$0xf]
    %v8142 = vld [vmem:[#allocation11 + $0x1c8] sm:$0xf]
    %v8143 = vld [vmem:[#allocation11 + $0x1cc] sm:$0xf]
    %v8144 = vld [vmem:[#allocation11 + $0x1d0] sm:$0xf]
    %v8145 = vld [vmem:[#allocation11 + $0x1d4] sm:$0xf]
    %v8146 = vld [vmem:[#allocation11 + $0x1d8] sm:$0xf]
    %v8147 = vld [vmem:[#allocation11 + $0x1dc] sm:$0xf]
    %v8148 = vld [vmem:[#allocation11 + $0x1e0] sm:$0xf]
    %v8149 = vld [vmem:[#allocation11 + $0x1e4] sm:$0xf]
    %v8150 = vld [vmem:[#allocation11 + $0x1e8] sm:$0xf]
    %v8151 = vld [vmem:[#allocation11 + $0x1ec] sm:$0xf]
    %v8152 = vld [vmem:[#allocation11 + $0x1f0] sm:$0xf]
    %v8153 = vld [vmem:[#allocation11 + $0x1f4] sm:$0xf]
    %v8154 = vld [vmem:[#allocation11 + $0x1f8] sm:$0xf]
    %v8155 = vld [vmem:[#allocation11 + $0x1fc] sm:$0xf]
    %v8156 = vld [vmem:[#allocation13] sm:$0x1]
    %v8158 = vlaneseq
    %v8159 = vshrl.u32 %v8158, 7
    %v8160 = vsub.s32 0, %v8159
    %v8161 = vrot.slane %v8156, %v8160
    %v8291 = vunpack.c.l.b16 %v8028
    %v8292 = vunpack.c.l.b16 %v8029
    %v8293 = vunpack.c.l.b16 %v8030
    %v8294 = vunpack.c.l.b16 %v8031
    %v8295 = vunpack.c.l.b16 %v8032
    %v8296 = vunpack.c.l.b16 %v8033
    %v8297 = vunpack.c.l.b16 %v8034
    %v8298 = vunpack.c.l.b16 %v8035
    %v8299 = vunpack.c.l.b16 %v8036
    %v8300 = vunpack.c.l.b16 %v8037
    %v8301 = vunpack.c.l.b16 %v8038
    %v8302 = vunpack.c.l.b16 %v8039
    %v8303 = vunpack.c.l.b16 %v8040
    %v8304 = vunpack.c.l.b16 %v8041
    %v8305 = vunpack.c.l.b16 %v8042
    %v8306 = vunpack.c.l.b16 %v8043
    %v8307 = vunpack.c.l.b16 %v8044
    %v8308 = vunpack.c.l.b16 %v8045
    %v8309 = vunpack.c.l.b16 %v8046
    %v8310 = vunpack.c.l.b16 %v8047
    %v8311 = vunpack.c.l.b16 %v8048
    %v8312 = vunpack.c.l.b16 %v8049
    %v8313 = vunpack.c.l.b16 %v8050
    %v8314 = vunpack.c.l.b16 %v8051
    %v8315 = vunpack.c.l.b16 %v8052
    %v8316 = vunpack.c.l.b16 %v8053
    %v8317 = vunpack.c.l.b16 %v8054
    %v8318 = vunpack.c.l.b16 %v8055
    %v8319 = vunpack.c.l.b16 %v8056
    %v8320 = vunpack.c.l.b16 %v8057
    %v8321 = vunpack.c.l.b16 %v8058
    %v8322 = vunpack.c.l.b16 %v8059
    %v8323 = vunpack.c.l.b16 %v8060
    %v8324 = vunpack.c.l.b16 %v8061
    %v8325 = vunpack.c.l.b16 %v8062
    %v8326 = vunpack.c.l.b16 %v8063
    %v8327 = vunpack.c.l.b16 %v8064
    %v8328 = vunpack.c.l.b16 %v8065
    %v8329 = vunpack.c.l.b16 %v8066
    %v8330 = vunpack.c.l.b16 %v8067
    %v8331 = vunpack.c.l.b16 %v8068
    %v8332 = vunpack.c.l.b16 %v8069
    %v8333 = vunpack.c.l.b16 %v8070
    %v8334 = vunpack.c.l.b16 %v8071
    %v8335 = vunpack.c.l.b16 %v8072
    %v8336 = vunpack.c.l.b16 %v8073
    %v8337 = vunpack.c.l.b16 %v8074
    %v8338 = vunpack.c.l.b16 %v8075
    %v8339 = vunpack.c.l.b16 %v8076
    %v8340 = vunpack.c.l.b16 %v8077
    %v8341 = vunpack.c.l.b16 %v8078
    %v8342 = vunpack.c.l.b16 %v8079
    %v8343 = vunpack.c.l.b16 %v8080
    %v8344 = vunpack.c.l.b16 %v8081
    %v8345 = vunpack.c.l.b16 %v8082
    %v8346 = vunpack.c.l.b16 %v8083
    %v8347 = vunpack.c.l.b16 %v8084
    %v8348 = vunpack.c.l.b16 %v8085
    %v8349 = vunpack.c.l.b16 %v8086
    %v8350 = vunpack.c.l.b16 %v8087
    %v8351 = vunpack.c.l.b16 %v8088
    %v8352 = vunpack.c.l.b16 %v8089
    %v8353 = vunpack.c.l.b16 %v8090
    %v8354 = vunpack.c.l.b16 %v8091
    %v8355 = vunpack.c.l.b16 %v8092
    %v8356 = vunpack.c.l.b16 %v8093
    %v8357 = vunpack.c.l.b16 %v8094
    %v8358 = vunpack.c.l.b16 %v8095
    %v8359 = vunpack.c.l.b16 %v8096
    %v8360 = vunpack.c.l.b16 %v8097
    %v8361 = vunpack.c.l.b16 %v8098
    %v8362 = vunpack.c.l.b16 %v8099
    %v8363 = vunpack.c.l.b16 %v8100
    %v8364 = vunpack.c.l.b16 %v8101
    %v8365 = vunpack.c.l.b16 %v8102
    %v8366 = vunpack.c.l.b16 %v8103
    %v8367 = vunpack.c.l.b16 %v8104
    %v8368 = vunpack.c.l.b16 %v8105
    %v8369 = vunpack.c.l.b16 %v8106
    %v8370 = vunpack.c.l.b16 %v8107
    %v8371 = vunpack.c.l.b16 %v8108
    %v8372 = vunpack.c.l.b16 %v8109
    %v8373 = vunpack.c.l.b16 %v8110
    %v8374 = vunpack.c.l.b16 %v8111
    %v8375 = vunpack.c.l.b16 %v8112
    %v8376 = vunpack.c.l.b16 %v8113
    %v8377 = vunpack.c.l.b16 %v8114
    %v8378 = vunpack.c.l.b16 %v8115
    %v8379 = vunpack.c.l.b16 %v8116
    %v8380 = vunpack.c.l.b16 %v8117
    %v8381 = vunpack.c.l.b16 %v8118
    %v8382 = vunpack.c.l.b16 %v8119
    %v8383 = vunpack.c.l.b16 %v8120
    %v8384 = vunpack.c.l.b16 %v8121
    %v8385 = vunpack.c.l.b16 %v8122
    %v8386 = vunpack.c.l.b16 %v8123
    %v8387 = vunpack.c.l.b16 %v8124
    %v8388 = vunpack.c.l.b16 %v8125
    %v8389 = vunpack.c.l.b16 %v8126
    %v8390 = vunpack.c.l.b16 %v8127
    %v8391 = vunpack.c.l.b16 %v8128
    %v8392 = vunpack.c.l.b16 %v8129
    %v8393 = vunpack.c.l.b16 %v8130
    %v8394 = vunpack.c.l.b16 %v8131
    %v8395 = vunpack.c.l.b16 %v8132
    %v8396 = vunpack.c.l.b16 %v8133
    %v8397 = vunpack.c.l.b16 %v8134
    %v8398 = vunpack.c.l.b16 %v8135
    %v8399 = vunpack.c.l.b16 %v8136
    %v8400 = vunpack.c.l.b16 %v8137
    %v8401 = vunpack.c.l.b16 %v8138
    %v8402 = vunpack.c.l.b16 %v8139
    %v8403 = vunpack.c.l.b16 %v8140
    %v8404 = vunpack.c.l.b16 %v8141
    %v8405 = vunpack.c.l.b16 %v8142
    %v8406 = vunpack.c.l.b16 %v8143
    %v8407 = vunpack.c.l.b16 %v8144
    %v8408 = vunpack.c.l.b16 %v8145
    %v8409 = vunpack.c.l.b16 %v8146
    %v8410 = vunpack.c.l.b16 %v8147
    %v8411 = vunpack.c.l.b16 %v8148
    %v8412 = vunpack.c.l.b16 %v8149
    %v8413 = vunpack.c.l.b16 %v8150
    %v8414 = vunpack.c.l.b16 %v8151
    %v8415 = vunpack.c.l.b16 %v8152
    %v8416 = vunpack.c.l.b16 %v8153
    %v8417 = vunpack.c.l.b16 %v8154
    %v8418 = vunpack.c.l.b16 %v8155
    %v8419 = vpack.c.b16 %v8292, %v8291
    %v8420 = vpack.c.b16 %v8294, %v8293
    %v8421 = vpack.c.b16 %v8296, %v8295
    %v8422 = vpack.c.b16 %v8298, %v8297
    %v8423 = vpack.c.b16 %v8300, %v8299
    %v8424 = vpack.c.b16 %v8302, %v8301
    %v8425 = vpack.c.b16 %v8304, %v8303
    %v8426 = vpack.c.b16 %v8306, %v8305
    %v8427 = vpack.c.b16 %v8308, %v8307
    %v8428 = vpack.c.b16 %v8310, %v8309
    %v8429 = vpack.c.b16 %v8312, %v8311
    %v8430 = vpack.c.b16 %v8314, %v8313
    %v8431 = vpack.c.b16 %v8316, %v8315
    %v8432 = vpack.c.b16 %v8318, %v8317
    %v8433 = vpack.c.b16 %v8320, %v8319
    %v8434 = vpack.c.b16 %v8322, %v8321
    %v8435 = vpack.c.b16 %v8324, %v8323
    %v8436 = vpack.c.b16 %v8326, %v8325
    %v8437 = vpack.c.b16 %v8328, %v8327
    %v8438 = vpack.c.b16 %v8330, %v8329
    %v8439 = vpack.c.b16 %v8332, %v8331
    %v8440 = vpack.c.b16 %v8334, %v8333
    %v8441 = vpack.c.b16 %v8336, %v8335
    %v8442 = vpack.c.b16 %v8338, %v8337
    %v8443 = vpack.c.b16 %v8340, %v8339
    %v8444 = vpack.c.b16 %v8342, %v8341
    %v8445 = vpack.c.b16 %v8344, %v8343
    %v8446 = vpack.c.b16 %v8346, %v8345
    %v8447 = vpack.c.b16 %v8348, %v8347
    %v8448 = vpack.c.b16 %v8350, %v8349
    %v8449 = vpack.c.b16 %v8352, %v8351
    %v8450 = vpack.c.b16 %v8354, %v8353
    %v8451 = vpack.c.b16 %v8356, %v8355
    %v8452 = vpack.c.b16 %v8358, %v8357
    %v8453 = vpack.c.b16 %v8360, %v8359
    %v8454 = vpack.c.b16 %v8362, %v8361
    %v8455 = vpack.c.b16 %v8364, %v8363
    %v8456 = vpack.c.b16 %v8366, %v8365
    %v8457 = vpack.c.b16 %v8368, %v8367
    %v8458 = vpack.c.b16 %v8370, %v8369
    %v8459 = vpack.c.b16 %v8372, %v8371
    %v8460 = vpack.c.b16 %v8374, %v8373
    %v8461 = vpack.c.b16 %v8376, %v8375
    %v8462 = vpack.c.b16 %v8378, %v8377
    %v8463 = vpack.c.b16 %v8380, %v8379
    %v8464 = vpack.c.b16 %v8382, %v8381
    %v8465 = vpack.c.b16 %v8384, %v8383
    %v8466 = vpack.c.b16 %v8386, %v8385
    %v8467 = vpack.c.b16 %v8388, %v8387
    %v8468 = vpack.c.b16 %v8390, %v8389
    %v8469 = vpack.c.b16 %v8392, %v8391
    %v8470 = vpack.c.b16 %v8394, %v8393
    %v8471 = vpack.c.b16 %v8396, %v8395
    %v8472 = vpack.c.b16 %v8398, %v8397
    %v8473 = vpack.c.b16 %v8400, %v8399
    %v8474 = vpack.c.b16 %v8402, %v8401
    %v8475 = vpack.c.b16 %v8404, %v8403
    %v8476 = vpack.c.b16 %v8406, %v8405
    %v8477 = vpack.c.b16 %v8408, %v8407
    %v8478 = vpack.c.b16 %v8410, %v8409
    %v8479 = vpack.c.b16 %v8412, %v8411
    %v8480 = vpack.c.b16 %v8414, %v8413
    %v8481 = vpack.c.b16 %v8416, %v8415
    %v8482 = vpack.c.b16 %v8418, %v8417
    %8547 = vmatprep.subr.bf16.mxu0 0
    %8548 = vmatpush1.bf16.msra.mxu0 %v8419
    %8549 = vmatprep.subr.bf16.mxu0 0
    %8550 = vmatpush1.bf16.msra.mxu0 %v8420
    %8551 = vmatprep.subr.bf16.mxu0 0
    %8552 = vmatpush1.bf16.msra.mxu0 %v8421
    %8553 = vmatprep.subr.bf16.mxu0 0
    %8554 = vmatpush1.bf16.msra.mxu0 %v8422
    %8555 = vmatprep.subr.bf16.mxu0 0
    %8556 = vmatpush1.bf16.msra.mxu0 %v8423
    %8557 = vmatprep.subr.bf16.mxu0 0
    %8558 = vmatpush1.bf16.msra.mxu0 %v8424
    %8559 = vmatprep.subr.bf16.mxu0 0
    %8560 = vmatpush1.bf16.msra.mxu0 %v8425
    %8561 = vmatprep.subr.bf16.mxu0 0
    %8562 = vmatpush1.bf16.msra.mxu0 %v8426
    %8563 = vmatprep.subr.bf16.mxu0 0
    %8564 = vmatpush1.bf16.msra.mxu0 %v8427
    %8565 = vmatprep.subr.bf16.mxu0 0
    %8566 = vmatpush1.bf16.msra.mxu0 %v8428
    %8567 = vmatprep.subr.bf16.mxu0 0
    %8568 = vmatpush1.bf16.msra.mxu0 %v8429
    %8569 = vmatprep.subr.bf16.mxu0 0
    %8570 = vmatpush1.bf16.msra.mxu0 %v8430
    %8571 = vmatprep.subr.bf16.mxu0 0
    %8572 = vmatpush1.bf16.msra.mxu0 %v8431
    %8573 = vmatprep.subr.bf16.mxu0 0
    %8574 = vmatpush1.bf16.msra.mxu0 %v8432
    %8575 = vmatprep.subr.bf16.mxu0 0
    %8576 = vmatpush1.bf16.msra.mxu0 %v8433
    %8577 = vmatprep.subr.bf16.mxu0 0
    %8578 = vmatpush1.bf16.msra.mxu0 %v8434
    %8579 = vmatprep.mubr.bf16.mxu0 %v8021
    %8580 = vmatmul.mubr.bf16.gmra.mrb[0].mxu0 %v8020
    %v8581 = vpop.f32.mrb[0].mxu0
    %v8582 = vadd.f32 %v8161, %v8581
    %v8583 = vpop.f32.mrb[0].mxu0
    %v8584 = vpop.f32.mrb[0].mxu0
    %v8585 = vpop.f32.mrb[0].mxu0
    %8586 = vdwg.mxu0
    %8587 = vmatprep.subr.bf16.mxu0 0
    %8588 = vmatpush1.bf16.msra.mxu0 %v8435
    %8589 = vmatprep.subr.bf16.mxu0 0
    %8590 = vmatpush1.bf16.msra.mxu0 %v8436
    %8591 = vmatprep.subr.bf16.mxu0 0
    %8592 = vmatpush1.bf16.msra.mxu0 %v8437
    %8593 = vmatprep.subr.bf16.mxu0 0
    %8594 = vmatpush1.bf16.msra.mxu0 %v8438
    %8595 = vmatprep.subr.bf16.mxu0 0
    %8596 = vmatpush1.bf16.msra.mxu0 %v8439
    %8597 = vmatprep.subr.bf16.mxu0 0
    %8598 = vmatpush1.bf16.msra.mxu0 %v8440
    %8599 = vmatprep.subr.bf16.mxu0 0
    %8600 = vmatpush1.bf16.msra.mxu0 %v8441
    %8601 = vmatprep.subr.bf16.mxu0 0
    %8602 = vmatpush1.bf16.msra.mxu0 %v8442
    %8603 = vmatprep.subr.bf16.mxu0 0
    %8604 = vmatpush1.bf16.msra.mxu0 %v8443
    %8605 = vmatprep.subr.bf16.mxu0 0
    %8606 = vmatpush1.bf16.msra.mxu0 %v8444
    %8607 = vmatprep.subr.bf16.mxu0 0
    %8608 = vmatpush1.bf16.msra.mxu0 %v8445
    %8609 = vmatprep.subr.bf16.mxu0 0
    %8610 = vmatpush1.bf16.msra.mxu0 %v8446
    %8611 = vmatprep.subr.bf16.mxu0 0
    %8612 = vmatpush1.bf16.msra.mxu0 %v8447
    %8613 = vmatprep.subr.bf16.mxu0 0
    %8614 = vmatpush1.bf16.msra.mxu0 %v8448
    %8615 = vmatprep.subr.bf16.mxu0 0
    %8616 = vmatpush1.bf16.msra.mxu0 %v8449
    %8617 = vmatprep.subr.bf16.mxu0 0
    %8618 = vmatpush1.bf16.msra.mxu0 %v8450
    %8619 = vmatprep.mubr.bf16.mxu0 %v8023
    %8620 = vmatmul.mubr.bf16.gmra.mrb[0].mxu0 %v8022
    %v8621 = vpop.f32.mrb[0].mxu0
    %v8622 = vadd.f32 %v8582, %v8621
    %v8623 = vpop.f32.mrb[0].mxu0
    %v8624 = vpop.f32.mrb[0].mxu0
    %v8625 = vpop.f32.mrb[0].mxu0
    %8626 = vdwg.mxu0
    %8627 = vmatprep.subr.bf16.mxu0 0
    %8628 = vmatpush1.bf16.msra.mxu0 %v8451
    %8629 = vmatprep.subr.bf16.mxu0 0
    %8630 = vmatpush1.bf16.msra.mxu0 %v8452
    %8631 = vmatprep.subr.bf16.mxu0 0
    %8632 = vmatpush1.bf16.msra.mxu0 %v8453
    %8633 = vmatprep.subr.bf16.mxu0 0
    %8634 = vmatpush1.bf16.msra.mxu0 %v8454
    %8635 = vmatprep.subr.bf16.mxu0 0
    %8636 = vmatpush1.bf16.msra.mxu0 %v8455
    %8637 = vmatprep.subr.bf16.mxu0 0
    %8638 = vmatpush1.bf16.msra.mxu0 %v8456
    %8639 = vmatprep.subr.bf16.mxu0 0
    %8640 = vmatpush1.bf16.msra.mxu0 %v8457
    %8641 = vmatprep.subr.bf16.mxu0 0
    %8642 = vmatpush1.bf16.msra.mxu0 %v8458
    %8643 = vmatprep.subr.bf16.mxu0 0
    %8644 = vmatpush1.bf16.msra.mxu0 %v8459
    %8645 = vmatprep.subr.bf16.mxu0 0
    %8646 = vmatpush1.bf16.msra.mxu0 %v8460
    %8647 = vmatprep.subr.bf16.mxu0 0
    %8648 = vmatpush1.bf16.msra.mxu0 %v8461
    %8649 = vmatprep.subr.bf16.mxu0 0
    %8650 = vmatpush1.bf16.msra.mxu0 %v8462
    %8651 = vmatprep.subr.bf16.mxu0 0
    %8652 = vmatpush1.bf16.msra.mxu0 %v8463
    %8653 = vmatprep.subr.bf16.mxu0 0
    %8654 = vmatpush1.bf16.msra.mxu0 %v8464
    %8655 = vmatprep.subr.bf16.mxu0 0
    %8656 = vmatpush1.bf16.msra.mxu0 %v8465
    %8657 = vmatprep.subr.bf16.mxu0 0
    %8658 = vmatpush1.bf16.msra.mxu0 %v8466
    %8659 = vmatprep.mubr.bf16.mxu0 %v8025
    %8660 = vmatmul.mubr.bf16.gmra.mrb[0].mxu0 %v8024
    %v8661 = vpop.f32.mrb[0].mxu0
    %v8662 = vadd.f32 %v8622, %v8661
    %v8663 = vpop.f32.mrb[0].mxu0
    %v8664 = vpop.f32.mrb[0].mxu0
    %v8665 = vpop.f32.mrb[0].mxu0
    %8666 = vdwg.mxu0
    %8667 = vmatprep.subr.bf16.mxu0 0
    %8668 = vmatpush1.bf16.msra.mxu0 %v8467
    %8669 = vmatprep.subr.bf16.mxu0 0
    %8670 = vmatpush1.bf16.msra.mxu0 %v8468
    %8671 = vmatprep.subr.bf16.mxu0 0
    %8672 = vmatpush1.bf16.msra.mxu0 %v8469
    %8673 = vmatprep.subr.bf16.mxu0 0
    %8674 = vmatpush1.bf16.msra.mxu0 %v8470
    %8675 = vmatprep.subr.bf16.mxu0 0
    %8676 = vmatpush1.bf16.msra.mxu0 %v8471
    %8677 = vmatprep.subr.bf16.mxu0 0
    %8678 = vmatpush1.bf16.msra.mxu0 %v8472
    %8679 = vmatprep.subr.bf16.mxu0 0
    %8680 = vmatpush1.bf16.msra.mxu0 %v8473
    %8681 = vmatprep.subr.bf16.mxu0 0
    %8682 = vmatpush1.bf16.msra.mxu0 %v8474
    %8683 = vmatprep.subr.bf16.mxu0 0
    %8684 = vmatpush1.bf16.msra.mxu0 %v8475
    %8685 = vmatprep.subr.bf16.mxu0 0
    %8686 = vmatpush1.bf16.msra.mxu0 %v8476
    %8687 = vmatprep.subr.bf16.mxu0 0
    %8688 = vmatpush1.bf16.msra.mxu0 %v8477
    %8689 = vmatprep.subr.bf16.mxu0 0
    %8690 = vmatpush1.bf16.msra.mxu0 %v8478
    %8691 = vmatprep.subr.bf16.mxu0 0
    %8692 = vmatpush1.bf16.msra.mxu0 %v8479
    %8693 = vmatprep.subr.bf16.mxu0 0
    %8694 = vmatpush1.bf16.msra.mxu0 %v8480
    %8695 = vmatprep.subr.bf16.mxu0 0
    %8696 = vmatpush1.bf16.msra.mxu0 %v8481
    %8697 = vmatprep.subr.bf16.mxu0 0
    %8698 = vmatpush1.bf16.msra.mxu0 %v8482
    %8699 = vmatprep.mubr.bf16.mxu0 %v8027
    %8700 = vmatmul.mubr.bf16.gmra.mrb[0].mxu0 %v8026
    %v8701 = vpop.f32.mrb[0].mxu0
    %v8702 = vadd.f32 %v8662, %v8701
    %v8703 = vpop.f32.mrb[0].mxu0
    %v8704 = vpop.f32.mrb[0].mxu0
    %v8705 = vpop.f32.mrb[0].mxu0
    %8706 = vdwg.mxu0
    %8707 = vst [vmem:[#allocation14] sm:$0x3] %v8702
    // Predicated region
    $region62: #{aux_logits_forward.1} parent=1 // pred_check
      _
    $region63: #{aux_logits_forward.1} parent=1 // pred_check_branch
      %8709 = sbr.rel (0) target = $region65
    $region64: #{aux_logits_forward.1} parent=1 // pred_region
      %s8711 = ssub.s32 32, 32
      %8712 = vsyncadd [#allocation4], %s8711
      %s8714 = sshll.u32 [#allocation14], 4
      %s8715 = int_to_ptr.vmem [resolvable:$true] %s8714
      %8717 = dma.vmem_to_hbm [thread:$0]  %s8715, 32, %s8, [#allocation4]
    $region65: #{aux_logits_forward.1} parent=1 // pred_fallthru
      _
    // Predicated region
    $region66: #{aux_logits_forward.1} parent=1 // pred_check
      _
    $region67: #{aux_logits_forward.1} parent=1 // pred_check_branch
      %8719 = sbr.rel (0) target = $region69
    $region68: #{aux_logits_forward.1} parent=1 // pred_region
      %8720 = dma.done [#allocation4], 32
    $region69: #{aux_logits_forward.1} parent=1 // pred_fallthru
      _
    %8721 = vsyncpa [#allocation3], 1
    %8722 = vsyncpa [#allocation6], 1
    %8723 = vsyncpa [#allocation9], 1
    %8724 = vsyncpa [#allocation12], 1
    %8725 = vsyncpa [#allocation4], 1

</llo_original>
